<compile_context>
chip_gen: v5e
topology: v5e:2x2
jax: 0.10.0
libtpu: 0.0.40
codegen_flags: <defaults>
</compile_context>

<pallas_src>
import functools
import math

import jax
import jax.numpy as jnp
import numpy as np
from jax.experimental import pallas as pl
from jax.experimental.pallas import tpu as pltpu


def _round_up(v, m):
    return (v + m - 1) // m * m


def _pow2_at_least(v):
    return 1 << max(0, int(v) - 1).bit_length()


def _supports_packed_bf16():
    """Packed-bf16 VALU/EUP: v6e / v7x.  v5e (and unknown chips) -> f32 chain."""
    try:
        kind = jax.devices()[0].device_kind.lower()
    except Exception:
        return False
    return any(tag in kind for tag in ("v6", "v7", "7x"))


def _vmem_limit_bytes():
    """3/4 of physical per-core VMEM — leaves headroom for Mosaic scratch."""
    try:
        cap = int(pltpu.get_tpu_info().vmem_capacity_bytes)
    except Exception:
        cap = 64 * 1024 * 1024          # conservative default (v7x per-TC size)
    return int(min(cap * 3 // 4, 96 * 1024 * 1024))


# -----------------------------------------------------------------------------
# Pre-pass (row-tiled): feat = x @ W, per-node attention scores el / er.
# -----------------------------------------------------------------------------
def _breadth_prepass_kernel(x_ref, w_ref, al_ref, ar_ref,
                            feat_ref, el_ref, er_ref):
    feat = jnp.dot(x_ref[...], w_ref[...], preferred_element_type=jnp.float32)
    feat_ref[...] = feat.astype(jnp.bfloat16)                          # (T, Dp) bf16
    el_ref[...] = jnp.sum(feat * al_ref[...], axis=-1, keepdims=True)  # source score
    er_ref[...] = jnp.sum(feat * ar_ref[...], axis=-1, keepdims=True)  # dest score


# -----------------------------------------------------------------------------
# Main kernel: grid = (row tiles, source-column chunks).  Online softmax over
# the column chunks; LSTM step runs in the last-chunk finalizer.
#   adj chunk : (T, C) int8      feat chunk : (C, Dp) bf16
#   el chunk  : (1, C) f32       er tile    : (T, 1)  f32
# -----------------------------------------------------------------------------
def _geniepath_tile_kernel(adj_ref, feat_ref, el_ref, er_ref, b_ref, wlstm_ref,
                           h_ref, c_ref, h_out_ref, c_out_ref,
                           m_sc, l_sc, acc_sc, *, use_bf16_chain):
    k = pl.program_id(1)
    hp = h_ref.shape[1]

    @pl.when(k == 0)
    def _():
        # -1e9 (not -inf / -1e30) so chunks with no edges keep exp() underflowing
        # to 0 instead of producing NaNs / spurious mass.
        m_sc[...] = jnp.full_like(m_sc, -1e9)
        l_sc[...] = jnp.zeros_like(l_sc)
        acc_sc[...] = jnp.zeros_like(acc_sc)

    # ---- Breadth: masked online edge-softmax over in-neighbours ----
    mask = adj_ref[...] != 0                              # int8 -> bool
    e = er_ref[...] + el_ref[...]                         # (T,1)+(1,C) -> (T,C) f32
    if use_bf16_chain:                                    # packed bf16 VALU/EUP (v6e/v7x)
        e = e.astype(jnp.bfloat16)
    e = jnp.maximum(e, 0.2 * e)                           # LeakyReLU(0.2)
    scores = jnp.where(mask, e, -1e30)                    # masked logits

    chunk_max = jnp.max(scores, axis=-1, keepdims=True).astype(jnp.float32)
    m_prev = m_sc[...]
    m_new = jnp.maximum(m_prev, chunk_max)                # (T,1) f32 running max
    alpha = jnp.exp(m_prev - m_new)                       # rescale of previous state
    p = jnp.exp(scores - m_new.astype(scores.dtype))      # masked entries underflow to 0
    p_mm = p.astype(jnp.bfloat16)                         # unnormalized weights -> MXU

    l_sc[...] = alpha * l_sc[...] + jnp.sum(p.astype(jnp.float32),
                                            axis=-1, keepdims=True)
    acc_sc[...] = alpha * acc_sc[...] + jnp.dot(p_mm, feat_ref[...],
                                                preferred_element_type=jnp.float32)
    m_sc[...] = m_new

    # ---- finalize on last chunk: normalize, tanh, one bias-free LSTM step ----
    @pl.when(k == pl.num_programs(1) - 1)
    def _():
        # Post-matmul normalization: scale the (T, Dp) accumulator, not the
        # (T, Np) weights.  Requires every row to have >= 1 in-edge (self-loop).
        inv = pl.reciprocal(l_sc[...], approx=True)       # (T,1), EUP slot
        rst = acc_sc[...] * inv + b_ref[...]
        xg = jnp.tanh(rst)                                # (T, Dp) f32

        # Depth: fused [x|h] @ [Wih; Whh]; each gate owns a 128-lane block.
        zin = jnp.concatenate([xg.astype(jnp.bfloat16), h_ref[...]], axis=-1)
        gates = jnp.dot(zin, wlstm_ref[...], preferred_element_type=jnp.float32)
        i_g = jax.nn.sigmoid(gates[:, 0 * hp:1 * hp])
        f_g = jax.nn.sigmoid(gates[:, 1 * hp:2 * hp])
        g_g = jnp.tanh(gates[:, 2 * hp:3 * hp])
        o_g = jax.nn.sigmoid(gates[:, 3 * hp:4 * hp])
        c_new = f_g * c_ref[...] + i_g * g_g
        h_new = o_g * jnp.tanh(c_new)

        h_out_ref[...] = h_new      # also serves as the layer's x output
        c_out_ref[...] = c_new


@functools.partial(jax.jit,
                   static_argnames=("tile_n", "col_chunk", "use_bf16_chain",
                                    "single_buffer_invariants"))
def _geniepath_layer_impl(adj, x, h, c, params, tile_n, col_chunk,
                          use_bf16_chain, single_buffer_invariants):
    N, D = x.shape
    H = h.shape[-1]
    f32, bf16 = jnp.float32, jnp.bfloat16

    # Lane-dense padding: D, H -> multiples of 128; Np -> multiple of both tiles
    # (col_chunk is a multiple of 128, so Np is lane-dense everywhere).
    Dp = _round_up(D, 128)
    Hp = _round_up(H, 128)
    tile_n = max(32, _round_up(int(tile_n), 32))       # int8 adj sublane packing
    col_chunk = max(128, _round_up(int(col_chunk), 128))
    Np = _round_up(N, math.lcm(tile_n, col_chunk))
    grid_n = Np // tile_n
    grid_k = Np // col_chunk

    # ---- pad + cast operands (zero padding is exact for this math) ----
    x_p = jnp.zeros((Np, Dp), f32).at[:N, :D].set(x).astype(bf16)
    w_p = jnp.zeros((Dp, Dp), f32).at[:D, :D].set(params["w"]).astype(bf16)
    al_p = jnp.zeros((1, Dp), f32).at[:, :D].set(params["al"])
    ar_p = jnp.zeros((1, Dp), f32).at[:, :D].set(params["ar"])
    b_p = jnp.zeros((1, Dp), f32).at[:, :D].set(params["b"])

    # int8 adjacency; padded destination rows get a self-loop (finite softmax).
    adj_p = jnp.zeros((Np, Np), jnp.int8).at[:N, :N].set((adj != 0).astype(jnp.int8))
    if Np > N:
        pad_idx = jnp.arange(N, Np)
        adj_p = adj_p.at[pad_idx, pad_idx].set(1)

    # Fused LSTM weight [Wih; Whh]; each gate owns its own 128-lane column block.
    wih = params["wih"].reshape(D, 4, H)
    whh = params["whh"].reshape(H, 4, H)
    w_ih_p = jnp.zeros((Dp, 4, Hp), f32).at[:D, :, :H].set(wih)
    w_hh_p = jnp.zeros((Hp, 4, Hp), f32).at[:H, :, :H].set(whh)
    w_lstm = jnp.concatenate([w_ih_p, w_hh_p], axis=0).reshape(Dp + Hp, 4 * Hp).astype(bf16)

    h_p = jnp.zeros((Np, Hp), f32).at[:N, :H].set(h.reshape(N, H)).astype(bf16)
    c_p = jnp.zeros((Np, Hp), f32).at[:N, :H].set(c.reshape(N, H))

    vmem_limit = _vmem_limit_bytes()
    inv_mode = pl.Buffered(1) if single_buffer_invariants else None

    # ---- pre-pass: feat / el / er (O(N*D), row-tiled) ----
    tile_pre = col_chunk                      # multiple of 128, divides Np
    feat_b, el_col, er_col = pl.pallas_call(
        _breadth_prepass_kernel,
        grid=(Np // tile_pre,),
        in_specs=[
            pl.BlockSpec((tile_pre, Dp), lambda i: (i, 0)),
            pl.BlockSpec((Dp, Dp), lambda i: (0, 0), pipeline_mode=inv_mode),
            pl.BlockSpec((1, Dp), lambda i: (0, 0), pipeline_mode=inv_mode),
            pl.BlockSpec((1, Dp), lambda i: (0, 0), pipeline_mode=inv_mode),
        ],
        out_specs=(pl.BlockSpec((tile_pre, Dp), lambda i: (i, 0)),
                   pl.BlockSpec((tile_pre, 1), lambda i: (i, 0)),
                   pl.BlockSpec((tile_pre, 1), lambda i: (i, 0))),
        out_shape=(jax.ShapeDtypeStruct((Np, Dp), bf16),
                   jax.ShapeDtypeStruct((Np, 1), f32),
                   jax.ShapeDtypeStruct((Np, 1), f32)),
        compiler_params=pltpu.CompilerParams(
            dimension_semantics=("parallel",),
            vmem_limit_bytes=vmem_limit),
    )(x_p, w_p, al_p, ar_p)
    el_row = el_col.reshape(1, Np)            # tiny one-time relayout, outside kernels

    # ---- main pass: (row tiles) x (source column chunks), online softmax ----
    kernel = functools.partial(_geniepath_tile_kernel,
                               use_bf16_chain=bool(use_bf16_chain))

    cost = pl.CostEstimate(
        flops=int(2 * Np * Np * Dp + 2 * Np * (Dp + Hp) * 4 * Hp + 10 * Np * Np),
        transcendentals=int(Np * Np + Np * Dp + 5 * Np * Hp),
        bytes_accessed=int(Np * Np + grid_n * Np * Dp * 2 + Np * 8
                           + Np * Hp * 14 + (Dp + Hp) * 4 * Hp * 2),
    )

    h_out, c_out = pl.pallas_call(
        kernel,
        grid=(grid_n, grid_k),
        in_specs=[
            pl.BlockSpec((tile_n, col_chunk), lambda i, k: (i, k)),     # adj chunk (int8)
            pl.BlockSpec((col_chunk, Dp), lambda i, k: (k, 0)),         # feat chunk (bf16)
            pl.BlockSpec((1, col_chunk), lambda i, k: (0, k)),          # el chunk
            pl.BlockSpec((tile_n, 1), lambda i, k: (i, 0)),             # er tile
            pl.BlockSpec((1, Dp), lambda i, k: (0, 0),
                         pipeline_mode=inv_mode),                       # GAT bias (invariant)
            pl.BlockSpec((Dp + Hp, 4 * Hp), lambda i, k: (0, 0),
                         pipeline_mode=inv_mode),                       # fused LSTM W (invariant)
            pl.BlockSpec((tile_n, Hp), lambda i, k: (i, 0)),            # h tile (bf16)
            pl.BlockSpec((tile_n, Hp), lambda i, k: (i, 0)),            # c tile (f32)
        ],
        out_specs=(pl.BlockSpec((tile_n, Hp), lambda i, k: (i, 0)),
                   pl.BlockSpec((tile_n, Hp), lambda i, k: (i, 0))),
        out_shape=(jax.ShapeDtypeStruct((Np, Hp), f32),
                   jax.ShapeDtypeStruct((Np, Hp), f32)),
        scratch_shapes=[pltpu.VMEM((tile_n, 1), f32),     # running max m
                        pltpu.VMEM((tile_n, 1), f32),     # running sum  l
                        pltpu.VMEM((tile_n, Dp), f32)],   # running acc
        compiler_params=pltpu.CompilerParams(
            dimension_semantics=("parallel", "arbitrary"),
            vmem_limit_bytes=vmem_limit),
        cost_estimate=cost,
    )(adj_p, feat_b, el_row, er_col, b_p, w_lstm, h_p, c_p)

    x_out = h_out[:N, :H]          # GeniePath output x == new hidden state h
    return x_out, (x_out.reshape(1, N, H), c_out[:N, :H].reshape(1, N, H))


def geniepath_layer(adj, x, h, c, params, tile_n=None, col_chunk=None,
                    use_bf16_chain=None):
    """Mirrors GeniePathLayer.forward(graph, x, h, c) -> (x, (h, c)).

    adj[v, u] != 0 <=> edge u -> v; every real node needs in-degree >= 1
    (self-loops), matching DGL's zero-in-degree requirement.
    """
    N = x.shape[0]
    if use_bf16_chain is None:
        use_bf16_chain = _supports_packed_bf16()
    if col_chunk is None:
        col_chunk = int(min(512, max(128, _pow2_at_least(N))))
    if tile_n is None:
        # keep >= 2 row tiles when possible so "parallel" can shard across cores
        tile_n = int(min(256, max(32, _pow2_at_least((N + 1) // 2))))
    try:
        return _geniepath_layer_impl(adj, x, h, c, params, int(tile_n),
                                     int(col_chunk), bool(use_bf16_chain), True)
    except Exception:
        # Fallback if this jax/Mosaic version rejects pl.Buffered(1)
        # single-buffering of the grid-invariant operands.
        return _geniepath_layer_impl(adj, x, h, c, params, int(tile_n),
                                     int(col_chunk), bool(use_bf16_chain), False)


def reference_forward(adj, x, h, c, p):
    """Pure-JAX reference with matching numerics (bf16 matmul operands, f32 accum)."""
    N = x.shape[0]
    H = h.shape[-1]
    bf16 = jnp.bfloat16
    feat = jnp.dot(x.astype(bf16), p["w"].astype(bf16), preferred_element_type=jnp.float32)
    el = (feat * p["al"]).sum(-1, keepdims=True)
    er = (feat * p["ar"]).sum(-1, keepdims=True)
    e = er + el.T
    e = jnp.maximum(e, 0.2 * e)
    scores = jnp.where(adj != 0, e, -1e30)
    scores = scores - scores.max(-1, keepdims=True)
    pexp = jnp.exp(scores)
    attn = pexp / pexp.sum(-1, keepdims=True)
    rst = jnp.dot(attn.astype(bf16), feat.astype(bf16),
                  preferred_element_type=jnp.float32) + p["b"]
    xg = jnp.tanh(rst)

    h2 = h.reshape(N, H)
    c2 = c.reshape(N, H)
    gates = (jnp.dot(xg.astype(bf16), p["wih"].astype(bf16), preferred_element_type=jnp.float32)
             + jnp.dot(h2.astype(bf16), p["whh"].astype(bf16), preferred_element_type=jnp.float32))
    i_g = jax.nn.sigmoid(gates[:, 0 * H:1 * H])
    f_g = jax.nn.sigmoid(gates[:, 1 * H:2 * H])
    g_g = jnp.tanh(gates[:, 2 * H:3 * H])
    o_g = jax.nn.sigmoid(gates[:, 3 * H:4 * H])
    c_new = f_g * c2 + i_g * g_g
    h_new = o_g * jnp.tanh(c_new)
    return h_new, h_new.reshape(1, N, H), c_new.reshape(1, N, H)


if __name__ == "__main__":
    key = jax.random.PRNGKey(0)
    N = 200   # number of graph nodes (== LSTM "batch")
    D = 32    # gat_dim (GATConv in_dim == out_dim)
    H = 32    # lstm_hidden_dim

    k = jax.random.split(key, 10)
    x = jax.random.normal(k[0], (N, D), jnp.float32)

    # Deterministic random directed graph + self-loops (adj[v, u] = edge u -> v);
    # self-loops guarantee in-degree >= 1 (DGL zero-in-degree requirement).
    adj = (jax.random.uniform(k[1], (N, N)) < 0.2).astype(jnp.float32)
    adj = jnp.clip(adj + jnp.eye(N, dtype=jnp.float32), 0.0, 1.0)

    # Parameters follow the PyTorch module; weights stored transposed so the
    # kernels use right-multiplication.
    params = {
        "w":   0.1 * jax.random.normal(k[2], (D, D), jnp.float32),       # GATConv.fc.weight^T
        "al":  0.1 * jax.random.normal(k[3], (1, D), jnp.float32),       # attn_l (1 head)
        "ar":  0.1 * jax.random.normal(k[4], (1, D), jnp.float32),       # attn_r (1 head)
        "b":   0.1 * jax.random.normal(k[5], (1, D), jnp.float32),       # GATConv bias
        "wih": 0.1 * jax.random.normal(k[6], (D, 4 * H), jnp.float32),   # LSTM weight_ih_l0^T
        "whh": 0.1 * jax.random.normal(k[7], (H, 4 * H), jnp.float32),   # LSTM weight_hh_l0^T
    }
    h0 = jax.random.normal(k[8], (1, N, H), jnp.float32)
    c0 = jax.random.normal(k[9], (1, N, H), jnp.float32)

    # tile_n=64, col_chunk=128 -> Np=256, grid=(4, 2): exercises both the row
    # tiling and the online-softmax column chunking (and a 2-tile pre-pass).
    use_bf16 = _supports_packed_bf16()
    x_out, (h_out, c_out) = geniepath_layer(adj, x, h0, c0, params,
                                            tile_n=64, col_chunk=128,
                                            use_bf16_chain=use_bf16)
    jax.block_until_ready((x_out, h_out, c_out))

    x_r, h_r, c_r = reference_forward(adj, x, h0, c0, params)
    # bf16 softmax chain (v6e/v7x) carries ~bf16-level rounding on the logits.
    tol = 2e-2 if use_bf16 else 5e-3
    assert np.allclose(np.asarray(x_out), np.asarray(x_r), atol=tol, rtol=tol)
    assert np.allclose(np.asarray(h_out), np.asarray(h_r), atol=tol, rtol=tol)
    assert np.allclose(np.asarray(c_out), np.asarray(c_r), atol=tol, rtol=tol)

    print("KERNEL_OK")
</pallas_src>

<mosaic_0001>
module attributes {stable_mosaic.version = 11 : i64} {
  func.func @_breadth_prepass_kernel(%arg0: i32, %arg1: memref<128x128xbf16, #tpu.memory_space<vmem>>, %arg2: memref<128x128xbf16, #tpu.memory_space<vmem>>, %arg3: memref<1x128xf32, #tpu.memory_space<vmem>>, %arg4: memref<1x128xf32, #tpu.memory_space<vmem>>, %arg5: memref<128x128xbf16, #tpu.memory_space<vmem>>, %arg6: memref<128x1xf32, #tpu.memory_space<vmem>>, %arg7: memref<128x1xf32, #tpu.memory_space<vmem>>) attributes {dimension_semantics = [#tpu.dimension_semantics<parallel>], iteration_bounds = array<i64: 2>, scalar_prefetch = 0 : i64, scratch_operands = 0 : i64, tpu.core_type = #tpu.core_type<tc>, window_params = [{transform_indices = @transform_0, window_bounds = array<i64: 128, 128>}, {pipeline_mode = #tpu.pipeline_mode<synchronous>, transform_indices = @transform_1, window_bounds = array<i64: 128, 128>}, {pipeline_mode = #tpu.pipeline_mode<synchronous>, transform_indices = @transform_2, window_bounds = array<i64: 1, 128>}, {pipeline_mode = #tpu.pipeline_mode<synchronous>, transform_indices = @transform_3, window_bounds = array<i64: 1, 128>}, {transform_indices = @transform_4, window_bounds = array<i64: 128, 128>}, {transform_indices = @transform_5, window_bounds = array<i64: 128, 1>}, {transform_indices = @transform_6, window_bounds = array<i64: 128, 1>}]} {
    %c0 = arith.constant 0 : index
    %c0_0 = arith.constant 0 : index
    %0 = vector.load %arg1[%c0, %c0_0] : memref<128x128xbf16, #tpu.memory_space<vmem>>, vector<128x128xbf16>
    %c0_1 = arith.constant 0 : index
    %c0_2 = arith.constant 0 : index
    %1 = vector.load %arg2[%c0_1, %c0_2] : memref<128x128xbf16, #tpu.memory_space<vmem>>, vector<128x128xbf16>
    %cst = arith.constant dense<0.000000e+00> : vector<128x128xf32>
    %2 = tpu.matmul %0, %1, %cst {dimension_numbers = #tpu.dot_dimension_numbers<[1], [0], [0], [1], [0, 0, 1, 1], [], []>} : vector<128x128xbf16>, vector<128x128xbf16>, vector<128x128xf32> -> vector<128x128xf32>
    %3 = arith.truncf %2 : vector<128x128xf32> to vector<128x128xbf16>
    %c0_3 = arith.constant 0 : index
    %c0_4 = arith.constant 0 : index
    %4 = vector.load %arg5[%c0_3, %c0_4] : memref<128x128xbf16, #tpu.memory_space<vmem>>, vector<128x128xbf16>
    tpu.vector_store %arg5[%c0_3, %c0_4], %3 {strides = array<i32>} : memref<128x128xbf16, #tpu.memory_space<vmem>>, vector<128x128xbf16>,
    %c0_5 = arith.constant 0 : index
    %c0_6 = arith.constant 0 : index
    %5 = vector.load %arg3[%c0_5, %c0_6] : memref<1x128xf32, #tpu.memory_space<vmem>>, vector<1x128xf32>
    %6 = vector.broadcast %5 : vector<1x128xf32> to vector<128x128xf32>
    %7 = arith.mulf %2, %6 : vector<128x128xf32>
    %cst_7 = arith.constant dense<0.000000e+00> : vector<128xf32>
    %8 = vector.multi_reduction <add>, %7, %cst_7 [1] : vector<128x128xf32> to vector<128xf32>
    %9 = vector.shape_cast %8 : vector<128xf32> to vector<128x1xf32>
    %c0_8 = arith.constant 0 : index
    %c0_9 = arith.constant 0 : index
    %10 = vector.load %arg6[%c0_8, %c0_9] : memref<128x1xf32, #tpu.memory_space<vmem>>, vector<128x1xf32>
    tpu.vector_store %arg6[%c0_8, %c0_9], %9 {strides = array<i32>} : memref<128x1xf32, #tpu.memory_space<vmem>>, vector<128x1xf32>,
    %c0_10 = arith.constant 0 : index
    %c0_11 = arith.constant 0 : index
    %11 = vector.load %arg4[%c0_10, %c0_11] : memref<1x128xf32, #tpu.memory_space<vmem>>, vector<1x128xf32>
    %12 = vector.broadcast %11 : vector<1x128xf32> to vector<128x128xf32>
    %13 = arith.mulf %2, %12 : vector<128x128xf32>
    %cst_12 = arith.constant dense<0.000000e+00> : vector<128xf32>
    %14 = vector.multi_reduction <add>, %13, %cst_12 [1] : vector<128x128xf32> to vector<128xf32>
    %15 = vector.shape_cast %14 : vector<128xf32> to vector<128x1xf32>
    %c0_13 = arith.constant 0 : index
    %c0_14 = arith.constant 0 : index
    %16 = vector.load %arg7[%c0_13, %c0_14] : memref<128x1xf32, #tpu.memory_space<vmem>>, vector<128x1xf32>
    tpu.vector_store %arg7[%c0_13, %c0_14], %15 {strides = array<i32>} : memref<128x1xf32, #tpu.memory_space<vmem>>, vector<128x1xf32>,
    return
  }
  func.func @transform_0(%arg0: i32) -> (i32, i32) {
    %c0_i32 = arith.constant 0 : i32
    %c0_i32_0 = arith.constant 0 : i32
    return %arg0, %c0_i32 : i32, i32
  }
  func.func @transform_1(%arg0: i32) -> (i32, i32) {
    %c0_i32 = arith.constant 0 : i32
    %c0_i32_0 = arith.constant 0 : i32
    %c0_i32_1 = arith.constant 0 : i32
    return %c0_i32, %c0_i32_0 : i32, i32
  }
  func.func @transform_2(%arg0: i32) -> (i32, i32) {
    %c0_i32 = arith.constant 0 : i32
    %c0_i32_0 = arith.constant 0 : i32
    %c0_i32_1 = arith.constant 0 : i32
    return %c0_i32, %c0_i32_0 : i32, i32
  }
  func.func @transform_3(%arg0: i32) -> (i32, i32) {
    %c0_i32 = arith.constant 0 : i32
    %c0_i32_0 = arith.constant 0 : i32
    %c0_i32_1 = arith.constant 0 : i32
    return %c0_i32, %c0_i32_0 : i32, i32
  }
  func.func @transform_4(%arg0: i32) -> (i32, i32) {
    %c0_i32 = arith.constant 0 : i32
    %c0_i32_0 = arith.constant 0 : i32
    return %arg0, %c0_i32 : i32, i32
  }
  func.func @transform_5(%arg0: i32) -> (i32, i32) {
    %c0_i32 = arith.constant 0 : i32
    %c0_i32_0 = arith.constant 0 : i32
    return %arg0, %c0_i32 : i32, i32
  }
  func.func @transform_6(%arg0: i32) -> (i32, i32) {
    %c0_i32 = arith.constant 0 : i32
    %c0_i32_0 = arith.constant 0 : i32
    return %arg0, %c0_i32 : i32, i32
  }
}

module attributes {stable_mosaic.version = 11 : i64} {
  func.func @_geniepath_tile_kernel(%arg0: i32, %arg1: i32, %arg2: memref<64x128xi8, #tpu.memory_space<vmem>>, %arg3: memref<128x128xbf16, #tpu.memory_space<vmem>>, %arg4: memref<1x128xf32, #tpu.memory_space<vmem>>, %arg5: memref<64x1xf32, #tpu.memory_space<vmem>>, %arg6: memref<1x128xf32, #tpu.memory_space<vmem>>, %arg7: memref<256x512xbf16, #tpu.memory_space<vmem>>, %arg8: memref<64x128xbf16, #tpu.memory_space<vmem>>, %arg9: memref<64x128xf32, #tpu.memory_space<vmem>>, %arg10: memref<64x128xf32, #tpu.memory_space<vmem>>, %arg11: memref<64x128xf32, #tpu.memory_space<vmem>>, %arg12: memref<64x1xf32, #tpu.memory_space<vmem>>, %arg13: memref<64x1xf32, #tpu.memory_space<vmem>>, %arg14: memref<64x128xf32, #tpu.memory_space<vmem>>) attributes {dimension_semantics = [#tpu.dimension_semantics<parallel>, #tpu.dimension_semantics<arbitrary>], iteration_bounds = array<i64: 4, 2>, scalar_prefetch = 0 : i64, scratch_operands = 3 : i64, tpu.core_type = #tpu.core_type<tc>, window_params = [{transform_indices = @transform_0, window_bounds = array<i64: 64, 128>}, {transform_indices = @transform_1, window_bounds = array<i64: 128, 128>}, {transform_indices = @transform_2, window_bounds = array<i64: 1, 128>}, {transform_indices = @transform_3, window_bounds = array<i64: 64, 1>}, {pipeline_mode = #tpu.pipeline_mode<synchronous>, transform_indices = @transform_4, window_bounds = array<i64: 1, 128>}, {pipeline_mode = #tpu.pipeline_mode<synchronous>, transform_indices = @transform_5, window_bounds = array<i64: 256, 512>}, {transform_indices = @transform_6, window_bounds = array<i64: 64, 128>}, {transform_indices = @transform_7, window_bounds = array<i64: 64, 128>}, {transform_indices = @transform_8, window_bounds = array<i64: 64, 128>}, {transform_indices = @transform_9, window_bounds = array<i64: 64, 128>}]} {
    %c0_i32 = arith.constant 0 : i32
    %0 = arith.cmpi eq, %arg1, %c0_i32 : i32
    %1 = arith.extui %0 : i1 to i32
    %c0_i32_0 = arith.constant 0 : i32
    %2 = arith.cmpi ne, %1, %c0_i32_0 : i32
    scf.if %2 {
      %cst_25 = arith.constant -1.000000e+09 : f32
      %43 = vector.broadcast %cst_25 : f32 to vector<64x1xf32>
      %c0_26 = arith.constant 0 : index
      %c0_27 = arith.constant 0 : index
      %44 = vector.load %arg12[%c0_26, %c0_27] : memref<64x1xf32, #tpu.memory_space<vmem>>, vector<64x1xf32>
      tpu.vector_store %arg12[%c0_26, %c0_27], %43 {strides = array<i32>} : memref<64x1xf32, #tpu.memory_space<vmem>>, vector<64x1xf32>,
      %cst_28 = arith.constant 0.000000e+00 : f32
      %45 = vector.broadcast %cst_28 : f32 to vector<64x1xf32>
      %c0_29 = arith.constant 0 : index
      %c0_30 = arith.constant 0 : index
      %46 = vector.load %arg13[%c0_29, %c0_30] : memref<64x1xf32, #tpu.memory_space<vmem>>, vector<64x1xf32>
      tpu.vector_store %arg13[%c0_29, %c0_30], %45 {strides = array<i32>} : memref<64x1xf32, #tpu.memory_space<vmem>>, vector<64x1xf32>,
      %cst_31 = arith.constant 0.000000e+00 : f32
      %47 = vector.broadcast %cst_31 : f32 to vector<64x128xf32>
      %c0_32 = arith.constant 0 : index
      %c0_33 = arith.constant 0 : index
      %48 = vector.load %arg14[%c0_32, %c0_33] : memref<64x128xf32, #tpu.memory_space<vmem>>, vector<64x128xf32>
      tpu.vector_store %arg14[%c0_32, %c0_33], %47 {strides = array<i32>} : memref<64x128xf32, #tpu.memory_space<vmem>>, vector<64x128xf32>,
    } else {
    }
    %c0 = arith.constant 0 : index
    %c0_1 = arith.constant 0 : index
    %3 = vector.load %arg2[%c0, %c0_1] : memref<64x128xi8, #tpu.memory_space<vmem>>, vector<64x128xi8>
    %c0_i8 = arith.constant 0 : i8
    %4 = vector.broadcast %c0_i8 : i8 to vector<64x128xi8>
    %5 = arith.cmpi ne, %3, %4 : vector<64x128xi8>
    %c0_2 = arith.constant 0 : index
    %c0_3 = arith.constant 0 : index
    %6 = vector.load %arg5[%c0_2, %c0_3] : memref<64x1xf32, #tpu.memory_space<vmem>>, vector<64x1xf32>
    %c0_4 = arith.constant 0 : index
    %c0_5 = arith.constant 0 : index
    %7 = vector.load %arg4[%c0_4, %c0_5] : memref<1x128xf32, #tpu.memory_space<vmem>>, vector<1x128xf32>
    %8 = vector.broadcast %6 : vector<64x1xf32> to vector<64x128xf32>
    %9 = vector.broadcast %7 : vector<1x128xf32> to vector<64x128xf32>
    %10 = arith.addf %8, %9 : vector<64x128xf32>
    %cst = arith.constant 2.000000e-01 : f32
    %11 = vector.broadcast %cst : f32 to vector<64x128xf32>
    %12 = arith.mulf %11, %10 : vector<64x128xf32>
    %13 = arith.maximumf %10, %12 : vector<64x128xf32>
    %cst_6 = arith.constant -1.000000e+30 : f32
    %14 = vector.broadcast %cst_6 : f32 to vector<64x128xf32>
    %15 = arith.select %5, %13, %14 : vector<64x128xi1>, vector<64x128xf32>
    %cst_7 = arith.constant dense<0xFF800000> : vector<64xf32>
    %16 = vector.multi_reduction <maximumf>, %15, %cst_7 [1] : vector<64x128xf32> to vector<64xf32>
    %17 = vector.shape_cast %16 : vector<64xf32> to vector<64x1xf32>
    %c0_8 = arith.constant 0 : index
    %c0_9 = arith.constant 0 : index
    %18 = vector.load %arg12[%c0_8, %c0_9] : memref<64x1xf32, #tpu.memory_space<vmem>>, vector<64x1xf32>
    %19 = arith.maximumf %18, %17 : vector<64x1xf32>
    %20 = arith.subf %18, %19 : vector<64x1xf32>
    %21 = math.exp %20 : vector<64x1xf32>
    %22 = vector.broadcast %19 : vector<64x1xf32> to vector<64x128xf32>
    %23 = arith.subf %15, %22 : vector<64x128xf32>
    %24 = math.exp %23 : vector<64x128xf32>
    %25 = arith.truncf %24 : vector<64x128xf32> to vector<64x128xbf16>
    %c0_10 = arith.constant 0 : index
    %c0_11 = arith.constant 0 : index
    %26 = vector.load %arg13[%c0_10, %c0_11] : memref<64x1xf32, #tpu.memory_space<vmem>>, vector<64x1xf32>
    %27 = arith.mulf %21, %26 : vector<64x1xf32>
    %cst_12 = arith.constant dense<0.000000e+00> : vector<64xf32>
    %28 = vector.multi_reduction <add>, %24, %cst_12 [1] : vector<64x128xf32> to vector<64xf32>
    %29 = vector.shape_cast %28 : vector<64xf32> to vector<64x1xf32>
    %30 = arith.addf %27, %29 : vector<64x1xf32>
    %c0_13 = arith.constant 0 : index
    %c0_14 = arith.constant 0 : index
    %31 = vector.load %arg13[%c0_13, %c0_14] : memref<64x1xf32, #tpu.memory_space<vmem>>, vector<64x1xf32>
    tpu.vector_store %arg13[%c0_13, %c0_14], %30 {strides = array<i32>} : memref<64x1xf32, #tpu.memory_space<vmem>>, vector<64x1xf32>,
    %c0_15 = arith.constant 0 : index
    %c0_16 = arith.constant 0 : index
    %32 = vector.load %arg14[%c0_15, %c0_16] : memref<64x128xf32, #tpu.memory_space<vmem>>, vector<64x128xf32>
    %33 = vector.broadcast %21 : vector<64x1xf32> to vector<64x128xf32>
    %34 = arith.mulf %33, %32 : vector<64x128xf32>
    %c0_17 = arith.constant 0 : index
    %c0_18 = arith.constant 0 : index
    %35 = vector.load %arg3[%c0_17, %c0_18] : memref<128x128xbf16, #tpu.memory_space<vmem>>, vector<128x128xbf16>
    %cst_19 = arith.constant dense<0.000000e+00> : vector<64x128xf32>
    %36 = tpu.matmul %25, %35, %cst_19 {dimension_numbers = #tpu.dot_dimension_numbers<[1], [0], [0], [1], [0, 0, 1, 1], [], []>} : vector<64x128xbf16>, vector<128x128xbf16>, vector<64x128xf32> -> vector<64x128xf32>
    %37 = arith.addf %34, %36 : vector<64x128xf32>
    %c0_20 = arith.constant 0 : index
    %c0_21 = arith.constant 0 : index
    %38 = vector.load %arg14[%c0_20, %c0_21] : memref<64x128xf32, #tpu.memory_space<vmem>>, vector<64x128xf32>
    tpu.vector_store %arg14[%c0_20, %c0_21], %37 {strides = array<i32>} : memref<64x128xf32, #tpu.memory_space<vmem>>, vector<64x128xf32>,
    %c0_22 = arith.constant 0 : index
    %c0_23 = arith.constant 0 : index
    %39 = vector.load %arg12[%c0_22, %c0_23] : memref<64x1xf32, #tpu.memory_space<vmem>>, vector<64x1xf32>
    tpu.vector_store %arg12[%c0_22, %c0_23], %19 {strides = array<i32>} : memref<64x1xf32, #tpu.memory_space<vmem>>, vector<64x1xf32>,
    %c1_i32 = arith.constant 1 : i32
    %40 = arith.cmpi eq, %arg1, %c1_i32 : i32
    %41 = arith.extui %40 : i1 to i32
    %c0_i32_24 = arith.constant 0 : i32
    %42 = arith.cmpi ne, %41, %c0_i32_24 : i32
    scf.if %42 {
      %c0_25 = arith.constant 0 : index
      %c0_26 = arith.constant 0 : index
      %43 = vector.load %arg13[%c0_25, %c0_26] : memref<64x1xf32, #tpu.memory_space<vmem>>, vector<64x1xf32>
      %44 = tpu.reciprocal %43 {approx = true} : vector<64x1xf32> -> vector<64x1xf32>
      %c0_27 = arith.constant 0 : index
      %c0_28 = arith.constant 0 : index
      %45 = vector.load %arg14[%c0_27, %c0_28] : memref<64x128xf32, #tpu.memory_space<vmem>>, vector<64x128xf32>
      %46 = vector.broadcast %44 : vector<64x1xf32> to vector<64x128xf32>
      %47 = arith.mulf %45, %46 : vector<64x128xf32>
      %c0_29 = arith.constant 0 : index
      %c0_30 = arith.constant 0 : index
      %48 = vector.load %arg6[%c0_29, %c0_30] : memref<1x128xf32, #tpu.memory_space<vmem>>, vector<1x128xf32>
      %49 = vector.broadcast %48 : vector<1x128xf32> to vector<64x128xf32>
      %50 = arith.addf %47, %49 : vector<64x128xf32>
      %51 = math.tanh %50 : vector<64x128xf32>
      %52 = arith.truncf %51 : vector<64x128xf32> to vector<64x128xbf16>
      %c0_31 = arith.constant 0 : index
      %c0_32 = arith.constant 0 : index
      %53 = vector.load %arg8[%c0_31, %c0_32] : memref<64x128xbf16, #tpu.memory_space<vmem>>, vector<64x128xbf16>
      %54 = tpu.concatenate %52, %53 in 1 : vector<64x128xbf16>, vector<64x128xbf16> -> vector<64x256xbf16>
      %c0_33 = arith.constant 0 : index
      %c0_34 = arith.constant 0 : index
      %55 = vector.load %arg7[%c0_33, %c0_34] : memref<256x512xbf16, #tpu.memory_space<vmem>>, vector<256x512xbf16>
      %cst_35 = arith.constant dense<0.000000e+00> : vector<64x512xf32>
      %56 = tpu.matmul %54, %55, %cst_35 {dimension_numbers = #tpu.dot_dimension_numbers<[1], [0], [0], [1], [0, 0, 1, 1], [], []>} : vector<64x256xbf16>, vector<256x512xbf16>, vector<64x512xf32> -> vector<64x512xf32>
      %57 = vector.extract_strided_slice %56 {offsets = [0, 0], sizes = [64, 128], strides = [1, 1]} : vector<64x512xf32> to vector<64x128xf32>
      %58 = arith.negf %57 : vector<64x128xf32>
      %59 = math.exp %58 : vector<64x128xf32>
      %cst_36 = arith.constant 1.000000e+00 : f32
      %60 = vector.broadcast %cst_36 : f32 to vector<64x128xf32>
      %61 = arith.addf %60, %59 : vector<64x128xf32>
      %62 = arith.divf %60, %61 : vector<64x128xf32>
      %63 = vector.extract_strided_slice %56 {offsets = [0, 128], sizes = [64, 128], strides = [1, 1]} : vector<64x512xf32> to vector<64x128xf32>
      %64 = arith.negf %63 : vector<64x128xf32>
      %65 = math.exp %64 : vector<64x128xf32>
      %cst_37 = arith.constant 1.000000e+00 : f32
      %66 = vector.broadcast %cst_37 : f32 to vector<64x128xf32>
      %67 = arith.addf %66, %65 : vector<64x128xf32>
      %68 = arith.divf %66, %67 : vector<64x128xf32>
      %69 = vector.extract_strided_slice %56 {offsets = [0, 256], sizes = [64, 128], strides = [1, 1]} : vector<64x512xf32> to vector<64x128xf32>
      %70 = math.tanh %69 : vector<64x128xf32>
      %71 = vector.extract_strided_slice %56 {offsets = [0, 384], sizes = [64, 128], strides = [1, 1]} : vector<64x512xf32> to vector<64x128xf32>
      %72 = arith.negf %71 : vector<64x128xf32>
      %73 = math.exp %72 : vector<64x128xf32>
      %cst_38 = arith.constant 1.000000e+00 : f32
      %74 = vector.broadcast %cst_38 : f32 to vector<64x128xf32>
      %75 = arith.addf %74, %73 : vector<64x128xf32>
      %76 = arith.divf %74, %75 : vector<64x128xf32>
      %c0_39 = arith.constant 0 : index
      %c0_40 = arith.constant 0 : index
      %77 = vector.load %arg9[%c0_39, %c0_40] : memref<64x128xf32, #tpu.memory_space<vmem>>, vector<64x128xf32>
      %78 = arith.mulf %68, %77 : vector<64x128xf32>
      %79 = arith.mulf %62, %70 : vector<64x128xf32>
      %80 = arith.addf %78, %79 : vector<64x128xf32>
      %81 = math.tanh %80 : vector<64x128xf32>
      %82 = arith.mulf %76, %81 : vector<64x128xf32>
      %c0_41 = arith.constant 0 : index
      %c0_42 = arith.constant 0 : index
      %83 = vector.load %arg10[%c0_41, %c0_42] : memref<64x128xf32, #tpu.memory_space<vmem>>, vector<64x128xf32>
      tpu.vector_store %arg10[%c0_41, %c0_42], %82 {strides = array<i32>} : memref<64x128xf32, #tpu.memory_space<vmem>>, vector<64x128xf32>,
      %c0_43 = arith.constant 0 : index
      %c0_44 = arith.constant 0 : index
      %84 = vector.load %arg11[%c0_43, %c0_44] : memref<64x128xf32, #tpu.memory_space<vmem>>, vector<64x128xf32>
      tpu.vector_store %arg11[%c0_43, %c0_44], %80 {strides = array<i32>} : memref<64x128xf32, #tpu.memory_space<vmem>>, vector<64x128xf32>,
    } else {
    }
    return
  }
  func.func @transform_0(%arg0: i32, %arg1: i32) -> (i32, i32) {
    %c0_i32 = arith.constant 0 : i32
    return %arg0, %arg1 : i32, i32
  }
  func.func @transform_1(%arg0: i32, %arg1: i32) -> (i32, i32) {
    %c0_i32 = arith.constant 0 : i32
    %c0_i32_0 = arith.constant 0 : i32
    return %arg1, %c0_i32 : i32, i32
  }
  func.func @transform_2(%arg0: i32, %arg1: i32) -> (i32, i32) {
    %c0_i32 = arith.constant 0 : i32
    %c0_i32_0 = arith.constant 0 : i32
    return %c0_i32, %arg1 : i32, i32
  }
  func.func @transform_3(%arg0: i32, %arg1: i32) -> (i32, i32) {
    %c0_i32 = arith.constant 0 : i32
    %c0_i32_0 = arith.constant 0 : i32
    return %arg0, %c0_i32 : i32, i32
  }
  func.func @transform_4(%arg0: i32, %arg1: i32) -> (i32, i32) {
    %c0_i32 = arith.constant 0 : i32
    %c0_i32_0 = arith.constant 0 : i32
    %c0_i32_1 = arith.constant 0 : i32
    return %c0_i32, %c0_i32_0 : i32, i32
  }
  func.func @transform_5(%arg0: i32, %arg1: i32) -> (i32, i32) {
    %c0_i32 = arith.constant 0 : i32
    %c0_i32_0 = arith.constant 0 : i32
    %c0_i32_1 = arith.constant 0 : i32
    return %c0_i32, %c0_i32_0 : i32, i32
  }
  func.func @transform_6(%arg0: i32, %arg1: i32) -> (i32, i32) {
    %c0_i32 = arith.constant 0 : i32
    %c0_i32_0 = arith.constant 0 : i32
    return %arg0, %c0_i32 : i32, i32
  }
  func.func @transform_7(%arg0: i32, %arg1: i32) -> (i32, i32) {
    %c0_i32 = arith.constant 0 : i32
    %c0_i32_0 = arith.constant 0 : i32
    return %arg0, %c0_i32 : i32, i32
  }
  func.func @transform_8(%arg0: i32, %arg1: i32) -> (i32, i32) {
    %c0_i32 = arith.constant 0 : i32
    %c0_i32_0 = arith.constant 0 : i32
    return %arg0, %c0_i32 : i32, i32
  }
  func.func @transform_9(%arg0: i32, %arg1: i32) -> (i32, i32) {
    %c0_i32 = arith.constant 0 : i32
    %c0_i32_0 = arith.constant 0 : i32
    return %arg0, %c0_i32 : i32, i32
  }
}

module attributes {stable_mosaic.version = 11 : i64} {
  func.func @_breadth_prepass_kernel(%arg0: i32, %arg1: memref<128x128xbf16, #tpu.memory_space<vmem>>, %arg2: memref<128x128xbf16, #tpu.memory_space<vmem>>, %arg3: memref<1x128xf32, #tpu.memory_space<vmem>>, %arg4: memref<1x128xf32, #tpu.memory_space<vmem>>, %arg5: memref<128x128xbf16, #tpu.memory_space<vmem>>, %arg6: memref<128x1xf32, #tpu.memory_space<vmem>>, %arg7: memref<128x1xf32, #tpu.memory_space<vmem>>) attributes {dimension_semantics = [#tpu.dimension_semantics<parallel>], iteration_bounds = array<i64: 2>, scalar_prefetch = 0 : i64, scratch_operands = 0 : i64, tpu.core_type = #tpu.core_type<tc>, window_params = [{transform_indices = @transform_0, window_bounds = array<i64: 128, 128>}, {pipeline_mode = #tpu.pipeline_mode<synchronous>, transform_indices = @transform_1, window_bounds = array<i64: 128, 128>}, {pipeline_mode = #tpu.pipeline_mode<synchronous>, transform_indices = @transform_2, window_bounds = array<i64: 1, 128>}, {pipeline_mode = #tpu.pipeline_mode<synchronous>, transform_indices = @transform_3, window_bounds = array<i64: 1, 128>}, {transform_indices = @transform_4, window_bounds = array<i64: 128, 128>}, {transform_indices = @transform_5, window_bounds = array<i64: 128, 1>}, {transform_indices = @transform_6, window_bounds = array<i64: 128, 1>}]} {
    %c0 = arith.constant 0 : index
    %c0_0 = arith.constant 0 : index
    %0 = vector.load %arg1[%c0, %c0_0] : memref<128x128xbf16, #tpu.memory_space<vmem>>, vector<128x128xbf16>
    %c0_1 = arith.constant 0 : index
    %c0_2 = arith.constant 0 : index
    %1 = vector.load %arg2[%c0_1, %c0_2] : memref<128x128xbf16, #tpu.memory_space<vmem>>, vector<128x128xbf16>
    %cst = arith.constant dense<0.000000e+00> : vector<128x128xf32>
    %2 = tpu.matmul %0, %1, %cst {dimension_numbers = #tpu.dot_dimension_numbers<[1], [0], [0], [1], [0, 0, 1, 1], [], []>} : vector<128x128xbf16>, vector<128x128xbf16>, vector<128x128xf32> -> vector<128x128xf32>
    %3 = arith.truncf %2 : vector<128x128xf32> to vector<128x128xbf16>
    %c0_3 = arith.constant 0 : index
    %c0_4 = arith.constant 0 : index
    %4 = vector.load %arg5[%c0_3, %c0_4] : memref<128x128xbf16, #tpu.memory_space<vmem>>, vector<128x128xbf16>
    tpu.vector_store %arg5[%c0_3, %c0_4], %3 {strides = array<i32>} : memref<128x128xbf16, #tpu.memory_space<vmem>>, vector<128x128xbf16>,
    %c0_5 = arith.constant 0 : index
    %c0_6 = arith.constant 0 : index
    %5 = vector.load %arg3[%c0_5, %c0_6] : memref<1x128xf32, #tpu.memory_space<vmem>>, vector<1x128xf32>
    %6 = vector.broadcast %5 : vector<1x128xf32> to vector<128x128xf32>
    %7 = arith.mulf %2, %6 : vector<128x128xf32>
    %cst_7 = arith.constant dense<0.000000e+00> : vector<128xf32>
    %8 = vector.multi_reduction <add>, %7, %cst_7 [1] : vector<128x128xf32> to vector<128xf32>
    %9 = vector.shape_cast %8 : vector<128xf32> to vector<128x1xf32>
    %c0_8 = arith.constant 0 : index
    %c0_9 = arith.constant 0 : index
    %10 = vector.load %arg6[%c0_8, %c0_9] : memref<128x1xf32, #tpu.memory_space<vmem>>, vector<128x1xf32>
    tpu.vector_store %arg6[%c0_8, %c0_9], %9 {strides = array<i32>} : memref<128x1xf32, #tpu.memory_space<vmem>>, vector<128x1xf32>,
    %c0_10 = arith.constant 0 : index
    %c0_11 = arith.constant 0 : index
    %11 = vector.load %arg4[%c0_10, %c0_11] : memref<1x128xf32, #tpu.memory_space<vmem>>, vector<1x128xf32>
    %12 = vector.broadcast %11 : vector<1x128xf32> to vector<128x128xf32>
    %13 = arith.mulf %2, %12 : vector<128x128xf32>
    %cst_12 = arith.constant dense<0.000000e+00> : vector<128xf32>
    %14 = vector.multi_reduction <add>, %13, %cst_12 [1] : vector<128x128xf32> to vector<128xf32>
    %15 = vector.shape_cast %14 : vector<128xf32> to vector<128x1xf32>
    %c0_13 = arith.constant 0 : index
    %c0_14 = arith.constant 0 : index
    %16 = vector.load %arg7[%c0_13, %c0_14] : memref<128x1xf32, #tpu.memory_space<vmem>>, vector<128x1xf32>
    tpu.vector_store %arg7[%c0_13, %c0_14], %15 {strides = array<i32>} : memref<128x1xf32, #tpu.memory_space<vmem>>, vector<128x1xf32>,
    return
  }
  func.func @transform_0(%arg0: i32) -> (i32, i32) {
    %c0_i32 = arith.constant 0 : i32
    %c0_i32_0 = arith.constant 0 : i32
    return %arg0, %c0_i32 : i32, i32
  }
  func.func @transform_1(%arg0: i32) -> (i32, i32) {
    %c0_i32 = arith.constant 0 : i32
    %c0_i32_0 = arith.constant 0 : i32
    %c0_i32_1 = arith.constant 0 : i32
    return %c0_i32, %c0_i32_0 : i32, i32
  }
  func.func @transform_2(%arg0: i32) -> (i32, i32) {
    %c0_i32 = arith.constant 0 : i32
    %c0_i32_0 = arith.constant 0 : i32
    %c0_i32_1 = arith.constant 0 : i32
    return %c0_i32, %c0_i32_0 : i32, i32
  }
  func.func @transform_3(%arg0: i32) -> (i32, i32) {
    %c0_i32 = arith.constant 0 : i32
    %c0_i32_0 = arith.constant 0 : i32
    %c0_i32_1 = arith.constant 0 : i32
    return %c0_i32, %c0_i32_0 : i32, i32
  }
  func.func @transform_4(%arg0: i32) -> (i32, i32) {
    %c0_i32 = arith.constant 0 : i32
    %c0_i32_0 = arith.constant 0 : i32
    return %arg0, %c0_i32 : i32, i32
  }
  func.func @transform_5(%arg0: i32) -> (i32, i32) {
    %c0_i32 = arith.constant 0 : i32
    %c0_i32_0 = arith.constant 0 : i32
    return %arg0, %c0_i32 : i32, i32
  }
  func.func @transform_6(%arg0: i32) -> (i32, i32) {
    %c0_i32 = arith.constant 0 : i32
    %c0_i32_0 = arith.constant 0 : i32
    return %arg0, %c0_i32 : i32, i32
  }
}

module attributes {stable_mosaic.version = 11 : i64} {
  func.func @_geniepath_tile_kernel(%arg0: i32, %arg1: i32, %arg2: memref<64x128xi8, #tpu.memory_space<vmem>>, %arg3: memref<128x128xbf16, #tpu.memory_space<vmem>>, %arg4: memref<1x128xf32, #tpu.memory_space<vmem>>, %arg5: memref<64x1xf32, #tpu.memory_space<vmem>>, %arg6: memref<1x128xf32, #tpu.memory_space<vmem>>, %arg7: memref<256x512xbf16, #tpu.memory_space<vmem>>, %arg8: memref<64x128xbf16, #tpu.memory_space<vmem>>, %arg9: memref<64x128xf32, #tpu.memory_space<vmem>>, %arg10: memref<64x128xf32, #tpu.memory_space<vmem>>, %arg11: memref<64x128xf32, #tpu.memory_space<vmem>>, %arg12: memref<64x1xf32, #tpu.memory_space<vmem>>, %arg13: memref<64x1xf32, #tpu.memory_space<vmem>>, %arg14: memref<64x128xf32, #tpu.memory_space<vmem>>) attributes {dimension_semantics = [#tpu.dimension_semantics<parallel>, #tpu.dimension_semantics<arbitrary>], iteration_bounds = array<i64: 4, 2>, scalar_prefetch = 0 : i64, scratch_operands = 3 : i64, tpu.core_type = #tpu.core_type<tc>, window_params = [{transform_indices = @transform_0, window_bounds = array<i64: 64, 128>}, {transform_indices = @transform_1, window_bounds = array<i64: 128, 128>}, {transform_indices = @transform_2, window_bounds = array<i64: 1, 128>}, {transform_indices = @transform_3, window_bounds = array<i64: 64, 1>}, {pipeline_mode = #tpu.pipeline_mode<synchronous>, transform_indices = @transform_4, window_bounds = array<i64: 1, 128>}, {pipeline_mode = #tpu.pipeline_mode<synchronous>, transform_indices = @transform_5, window_bounds = array<i64: 256, 512>}, {transform_indices = @transform_6, window_bounds = array<i64: 64, 128>}, {transform_indices = @transform_7, window_bounds = array<i64: 64, 128>}, {transform_indices = @transform_8, window_bounds = array<i64: 64, 128>}, {transform_indices = @transform_9, window_bounds = array<i64: 64, 128>}]} {
    %c0_i32 = arith.constant 0 : i32
    %0 = arith.cmpi eq, %arg1, %c0_i32 : i32
    %1 = arith.extui %0 : i1 to i32
    %c0_i32_0 = arith.constant 0 : i32
    %2 = arith.cmpi ne, %1, %c0_i32_0 : i32
    scf.if %2 {
      %cst_25 = arith.constant -1.000000e+09 : f32
      %43 = vector.broadcast %cst_25 : f32 to vector<64x1xf32>
      %c0_26 = arith.constant 0 : index
      %c0_27 = arith.constant 0 : index
      %44 = vector.load %arg12[%c0_26, %c0_27] : memref<64x1xf32, #tpu.memory_space<vmem>>, vector<64x1xf32>
      tpu.vector_store %arg12[%c0_26, %c0_27], %43 {strides = array<i32>} : memref<64x1xf32, #tpu.memory_space<vmem>>, vector<64x1xf32>,
      %cst_28 = arith.constant 0.000000e+00 : f32
      %45 = vector.broadcast %cst_28 : f32 to vector<64x1xf32>
      %c0_29 = arith.constant 0 : index
      %c0_30 = arith.constant 0 : index
      %46 = vector.load %arg13[%c0_29, %c0_30] : memref<64x1xf32, #tpu.memory_space<vmem>>, vector<64x1xf32>
      tpu.vector_store %arg13[%c0_29, %c0_30], %45 {strides = array<i32>} : memref<64x1xf32, #tpu.memory_space<vmem>>, vector<64x1xf32>,
      %cst_31 = arith.constant 0.000000e+00 : f32
      %47 = vector.broadcast %cst_31 : f32 to vector<64x128xf32>
      %c0_32 = arith.constant 0 : index
      %c0_33 = arith.constant 0 : index
      %48 = vector.load %arg14[%c0_32, %c0_33] : memref<64x128xf32, #tpu.memory_space<vmem>>, vector<64x128xf32>
      tpu.vector_store %arg14[%c0_32, %c0_33], %47 {strides = array<i32>} : memref<64x128xf32, #tpu.memory_space<vmem>>, vector<64x128xf32>,
    } else {
    }
    %c0 = arith.constant 0 : index
    %c0_1 = arith.constant 0 : index
    %3 = vector.load %arg2[%c0, %c0_1] : memref<64x128xi8, #tpu.memory_space<vmem>>, vector<64x128xi8>
    %c0_i8 = arith.constant 0 : i8
    %4 = vector.broadcast %c0_i8 : i8 to vector<64x128xi8>
    %5 = arith.cmpi ne, %3, %4 : vector<64x128xi8>
    %c0_2 = arith.constant 0 : index
    %c0_3 = arith.constant 0 : index
    %6 = vector.load %arg5[%c0_2, %c0_3] : memref<64x1xf32, #tpu.memory_space<vmem>>, vector<64x1xf32>
    %c0_4 = arith.constant 0 : index
    %c0_5 = arith.constant 0 : index
    %7 = vector.load %arg4[%c0_4, %c0_5] : memref<1x128xf32, #tpu.memory_space<vmem>>, vector<1x128xf32>
    %8 = vector.broadcast %6 : vector<64x1xf32> to vector<64x128xf32>
    %9 = vector.broadcast %7 : vector<1x128xf32> to vector<64x128xf32>
    %10 = arith.addf %8, %9 : vector<64x128xf32>
    %cst = arith.constant 2.000000e-01 : f32
    %11 = vector.broadcast %cst : f32 to vector<64x128xf32>
    %12 = arith.mulf %11, %10 : vector<64x128xf32>
    %13 = arith.maximumf %10, %12 : vector<64x128xf32>
    %cst_6 = arith.constant -1.000000e+30 : f32
    %14 = vector.broadcast %cst_6 : f32 to vector<64x128xf32>
    %15 = arith.select %5, %13, %14 : vector<64x128xi1>, vector<64x128xf32>
    %cst_7 = arith.constant dense<0xFF800000> : vector<64xf32>
    %16 = vector.multi_reduction <maximumf>, %15, %cst_7 [1] : vector<64x128xf32> to vector<64xf32>
    %17 = vector.shape_cast %16 : vector<64xf32> to vector<64x1xf32>
    %c0_8 = arith.constant 0 : index
    %c0_9 = arith.constant 0 : index
    %18 = vector.load %arg12[%c0_8, %c0_9] : memref<64x1xf32, #tpu.memory_space<vmem>>, vector<64x1xf32>
    %19 = arith.maximumf %18, %17 : vector<64x1xf32>
    %20 = arith.subf %18, %19 : vector<64x1xf32>
    %21 = math.exp %20 : vector<64x1xf32>
    %22 = vector.broadcast %19 : vector<64x1xf32> to vector<64x128xf32>
    %23 = arith.subf %15, %22 : vector<64x128xf32>
    %24 = math.exp %23 : vector<64x128xf32>
    %25 = arith.truncf %24 : vector<64x128xf32> to vector<64x128xbf16>
    %c0_10 = arith.constant 0 : index
    %c0_11 = arith.constant 0 : index
    %26 = vector.load %arg13[%c0_10, %c0_11] : memref<64x1xf32, #tpu.memory_space<vmem>>, vector<64x1xf32>
    %27 = arith.mulf %21, %26 : vector<64x1xf32>
    %cst_12 = arith.constant dense<0.000000e+00> : vector<64xf32>
    %28 = vector.multi_reduction <add>, %24, %cst_12 [1] : vector<64x128xf32> to vector<64xf32>
    %29 = vector.shape_cast %28 : vector<64xf32> to vector<64x1xf32>
    %30 = arith.addf %27, %29 : vector<64x1xf32>
    %c0_13 = arith.constant 0 : index
    %c0_14 = arith.constant 0 : index
    %31 = vector.load %arg13[%c0_13, %c0_14] : memref<64x1xf32, #tpu.memory_space<vmem>>, vector<64x1xf32>
    tpu.vector_store %arg13[%c0_13, %c0_14], %30 {strides = array<i32>} : memref<64x1xf32, #tpu.memory_space<vmem>>, vector<64x1xf32>,
    %c0_15 = arith.constant 0 : index
    %c0_16 = arith.constant 0 : index
    %32 = vector.load %arg14[%c0_15, %c0_16] : memref<64x128xf32, #tpu.memory_space<vmem>>, vector<64x128xf32>
    %33 = vector.broadcast %21 : vector<64x1xf32> to vector<64x128xf32>
    %34 = arith.mulf %33, %32 : vector<64x128xf32>
    %c0_17 = arith.constant 0 : index
    %c0_18 = arith.constant 0 : index
    %35 = vector.load %arg3[%c0_17, %c0_18] : memref<128x128xbf16, #tpu.memory_space<vmem>>, vector<128x128xbf16>
    %cst_19 = arith.constant dense<0.000000e+00> : vector<64x128xf32>
    %36 = tpu.matmul %25, %35, %cst_19 {dimension_numbers = #tpu.dot_dimension_numbers<[1], [0], [0], [1], [0, 0, 1, 1], [], []>} : vector<64x128xbf16>, vector<128x128xbf16>, vector<64x128xf32> -> vector<64x128xf32>
    %37 = arith.addf %34, %36 : vector<64x128xf32>
    %c0_20 = arith.constant 0 : index
    %c0_21 = arith.constant 0 : index
    %38 = vector.load %arg14[%c0_20, %c0_21] : memref<64x128xf32, #tpu.memory_space<vmem>>, vector<64x128xf32>
    tpu.vector_store %arg14[%c0_20, %c0_21], %37 {strides = array<i32>} : memref<64x128xf32, #tpu.memory_space<vmem>>, vector<64x128xf32>,
    %c0_22 = arith.constant 0 : index
    %c0_23 = arith.constant 0 : index
    %39 = vector.load %arg12[%c0_22, %c0_23] : memref<64x1xf32, #tpu.memory_space<vmem>>, vector<64x1xf32>
    tpu.vector_store %arg12[%c0_22, %c0_23], %19 {strides = array<i32>} : memref<64x1xf32, #tpu.memory_space<vmem>>, vector<64x1xf32>,
    %c1_i32 = arith.constant 1 : i32
    %40 = arith.cmpi eq, %arg1, %c1_i32 : i32
    %41 = arith.extui %40 : i1 to i32
    %c0_i32_24 = arith.constant 0 : i32
    %42 = arith.cmpi ne, %41, %c0_i32_24 : i32
    scf.if %42 {
      %c0_25 = arith.constant 0 : index
      %c0_26 = arith.constant 0 : index
      %43 = vector.load %arg13[%c0_25, %c0_26] : memref<64x1xf32, #tpu.memory_space<vmem>>, vector<64x1xf32>
      %44 = tpu.reciprocal %43 {approx = true} : vector<64x1xf32> -> vector<64x1xf32>
      %c0_27 = arith.constant 0 : index
      %c0_28 = arith.constant 0 : index
      %45 = vector.load %arg14[%c0_27, %c0_28] : memref<64x128xf32, #tpu.memory_space<vmem>>, vector<64x128xf32>
      %46 = vector.broadcast %44 : vector<64x1xf32> to vector<64x128xf32>
      %47 = arith.mulf %45, %46 : vector<64x128xf32>
      %c0_29 = arith.constant 0 : index
      %c0_30 = arith.constant 0 : index
      %48 = vector.load %arg6[%c0_29, %c0_30] : memref<1x128xf32, #tpu.memory_space<vmem>>, vector<1x128xf32>
      %49 = vector.broadcast %48 : vector<1x128xf32> to vector<64x128xf32>
      %50 = arith.addf %47, %49 : vector<64x128xf32>
      %51 = math.tanh %50 : vector<64x128xf32>
      %52 = arith.truncf %51 : vector<64x128xf32> to vector<64x128xbf16>
      %c0_31 = arith.constant 0 : index
      %c0_32 = arith.constant 0 : index
      %53 = vector.load %arg8[%c0_31, %c0_32] : memref<64x128xbf16, #tpu.memory_space<vmem>>, vector<64x128xbf16>
      %54 = tpu.concatenate %52, %53 in 1 : vector<64x128xbf16>, vector<64x128xbf16> -> vector<64x256xbf16>
      %c0_33 = arith.constant 0 : index
      %c0_34 = arith.constant 0 : index
      %55 = vector.load %arg7[%c0_33, %c0_34] : memref<256x512xbf16, #tpu.memory_space<vmem>>, vector<256x512xbf16>
      %cst_35 = arith.constant dense<0.000000e+00> : vector<64x512xf32>
      %56 = tpu.matmul %54, %55, %cst_35 {dimension_numbers = #tpu.dot_dimension_numbers<[1], [0], [0], [1], [0, 0, 1, 1], [], []>} : vector<64x256xbf16>, vector<256x512xbf16>, vector<64x512xf32> -> vector<64x512xf32>
      %57 = vector.extract_strided_slice %56 {offsets = [0, 0], sizes = [64, 128], strides = [1, 1]} : vector<64x512xf32> to vector<64x128xf32>
      %58 = arith.negf %57 : vector<64x128xf32>
      %59 = math.exp %58 : vector<64x128xf32>
      %cst_36 = arith.constant 1.000000e+00 : f32
      %60 = vector.broadcast %cst_36 : f32 to vector<64x128xf32>
      %61 = arith.addf %60, %59 : vector<64x128xf32>
      %62 = arith.divf %60, %61 : vector<64x128xf32>
      %63 = vector.extract_strided_slice %56 {offsets = [0, 128], sizes = [64, 128], strides = [1, 1]} : vector<64x512xf32> to vector<64x128xf32>
      %64 = arith.negf %63 : vector<64x128xf32>
      %65 = math.exp %64 : vector<64x128xf32>
      %cst_37 = arith.constant 1.000000e+00 : f32
      %66 = vector.broadcast %cst_37 : f32 to vector<64x128xf32>
      %67 = arith.addf %66, %65 : vector<64x128xf32>
      %68 = arith.divf %66, %67 : vector<64x128xf32>
      %69 = vector.extract_strided_slice %56 {offsets = [0, 256], sizes = [64, 128], strides = [1, 1]} : vector<64x512xf32> to vector<64x128xf32>
      %70 = math.tanh %69 : vector<64x128xf32>
      %71 = vector.extract_strided_slice %56 {offsets = [0, 384], sizes = [64, 128], strides = [1, 1]} : vector<64x512xf32> to vector<64x128xf32>
      %72 = arith.negf %71 : vector<64x128xf32>
      %73 = math.exp %72 : vector<64x128xf32>
      %cst_38 = arith.constant 1.000000e+00 : f32
      %74 = vector.broadcast %cst_38 : f32 to vector<64x128xf32>
      %75 = arith.addf %74, %73 : vector<64x128xf32>
      %76 = arith.divf %74, %75 : vector<64x128xf32>
      %c0_39 = arith.constant 0 : index
      %c0_40 = arith.constant 0 : index
      %77 = vector.load %arg9[%c0_39, %c0_40] : memref<64x128xf32, #tpu.memory_space<vmem>>, vector<64x128xf32>
      %78 = arith.mulf %68, %77 : vector<64x128xf32>
      %79 = arith.mulf %62, %70 : vector<64x128xf32>
      %80 = arith.addf %78, %79 : vector<64x128xf32>
      %81 = math.tanh %80 : vector<64x128xf32>
      %82 = arith.mulf %76, %81 : vector<64x128xf32>
      %c0_41 = arith.constant 0 : index
      %c0_42 = arith.constant 0 : index
      %83 = vector.load %arg10[%c0_41, %c0_42] : memref<64x128xf32, #tpu.memory_space<vmem>>, vector<64x128xf32>
      tpu.vector_store %arg10[%c0_41, %c0_42], %82 {strides = array<i32>} : memref<64x128xf32, #tpu.memory_space<vmem>>, vector<64x128xf32>,
      %c0_43 = arith.constant 0 : index
      %c0_44 = arith.constant 0 : index
      %84 = vector.load %arg11[%c0_43, %c0_44] : memref<64x128xf32, #tpu.memory_space<vmem>>, vector<64x128xf32>
      tpu.vector_store %arg11[%c0_43, %c0_44], %80 {strides = array<i32>} : memref<64x128xf32, #tpu.memory_space<vmem>>, vector<64x128xf32>,
    } else {
    }
    return
  }
  func.func @transform_0(%arg0: i32, %arg1: i32) -> (i32, i32) {
    %c0_i32 = arith.constant 0 : i32
    return %arg0, %arg1 : i32, i32
  }
  func.func @transform_1(%arg0: i32, %arg1: i32) -> (i32, i32) {
    %c0_i32 = arith.constant 0 : i32
    %c0_i32_0 = arith.constant 0 : i32
    return %arg1, %c0_i32 : i32, i32
  }
  func.func @transform_2(%arg0: i32, %arg1: i32) -> (i32, i32) {
    %c0_i32 = arith.constant 0 : i32
    %c0_i32_0 = arith.constant 0 : i32
    return %c0_i32, %arg1 : i32, i32
  }
  func.func @transform_3(%arg0: i32, %arg1: i32) -> (i32, i32) {
    %c0_i32 = arith.constant 0 : i32
    %c0_i32_0 = arith.constant 0 : i32
    return %arg0, %c0_i32 : i32, i32
  }
  func.func @transform_4(%arg0: i32, %arg1: i32) -> (i32, i32) {
    %c0_i32 = arith.constant 0 : i32
    %c0_i32_0 = arith.constant 0 : i32
    %c0_i32_1 = arith.constant 0 : i32
    return %c0_i32, %c0_i32_0 : i32, i32
  }
  func.func @transform_5(%arg0: i32, %arg1: i32) -> (i32, i32) {
    %c0_i32 = arith.constant 0 : i32
    %c0_i32_0 = arith.constant 0 : i32
    %c0_i32_1 = arith.constant 0 : i32
    return %c0_i32, %c0_i32_0 : i32, i32
  }
  func.func @transform_6(%arg0: i32, %arg1: i32) -> (i32, i32) {
    %c0_i32 = arith.constant 0 : i32
    %c0_i32_0 = arith.constant 0 : i32
    return %arg0, %c0_i32 : i32, i32
  }
  func.func @transform_7(%arg0: i32, %arg1: i32) -> (i32, i32) {
    %c0_i32 = arith.constant 0 : i32
    %c0_i32_0 = arith.constant 0 : i32
    return %arg0, %c0_i32 : i32, i32
  }
  func.func @transform_8(%arg0: i32, %arg1: i32) -> (i32, i32) {
    %c0_i32 = arith.constant 0 : i32
    %c0_i32_0 = arith.constant 0 : i32
    return %arg0, %c0_i32 : i32, i32
  }
  func.func @transform_9(%arg0: i32, %arg1: i32) -> (i32, i32) {
    %c0_i32 = arith.constant 0 : i32
    %c0_i32_0 = arith.constant 0 : i32
    return %arg0, %c0_i32 : i32, i32
  }
}

</mosaic_0001>

<llo_original>
// kernel: _geniepath_layer_impl.2
$region0: #{_geniepath_layer_impl.2}
  #allocation0 [shape = 'u32[]', space=smem, size = 0x4, offset = 0x4, fixed_abs, tag = 'smem constant byte address 0x4 - core index']
  #allocation1 [shape = 'u32[72,128]{1,0:T(1,128)}', space=vmem, size = 0x9000, scoped, tag = 'internal scratch']
  %s0 = inlined_call_operand.vmem [shape: bf16[256,128], index: 0, kind: input, shape index: {}]
  %s1 = inlined_call_operand.vmem [shape: bf16[128,128], index: 1, kind: input, shape index: {}]
  %s2 = inlined_call_operand.vmem [shape: f32[1,128], index: 2, kind: input, shape index: {}]
  %s3 = inlined_call_operand.vmem [shape: f32[1,128], index: 3, kind: input, shape index: {}]
  %s4 = inlined_call_operand.vmem [shape: bf16[256,128], index: 4, kind: output, shape index: {0}]
  %s5 = inlined_call_operand.vmem [shape: f32[256,1], index: 5, kind: output, shape index: {1}]
  %s6 = inlined_call_operand.vmem [shape: f32[256,1], index: 6, kind: output, shape index: {2}]
  %7 = xla_tuple %s4, %s5, %s6
  %s8 = sld [smem:[#allocation0]]
  $region65: #{_geniepath_layer_impl.2} parent=0
    _
  %s10 = ssub.s32 1, %s8
  %s11 = scalar_select 0, %s10, %s8
  loop: start=0, step=1, limit=4
  $region2: #{_geniepath_layer_impl.2} parent=0 // loop_pre_header
    _
  $region3: #{_geniepath_layer_impl.2} parent=0 // loop_header
    %s13 = sphi 0, %s17
    %p14 = scmp.ge.s32.totalorder %s13, 4
    %s23 = sphi 0, %s25
    %s26 = sphi 0, %s23
    %s27 = sphi 0, %s26
    %s43 = sphi 0, %s27
    %s47 = sphi 0, %s47
    %s49 = sphi 0, %s47
    %s50 = sphi 0, %s49
    %s64 = sphi 0, %s50
    %s68 = sphi 0, %s68
    %s70 = sphi 0, %s68
    %s71 = sphi 0, %s70
    %s85 = sphi 0, %s71
    %s89 = sphi 0, %s89
    %s91 = sphi 0, %s89
    %s92 = sphi 0, %s91
    %s106 = sphi 0, %s92
    %s112 = sphi 0, %s114
    %s115 = sphi 0, %s112
    %s116 = sphi 0, %s115
    %s132 = sphi 0, %s116
    %s138 = sphi 0, %s140
    %s141 = sphi 0, %s138
    %s142 = sphi 0, %s141
    %s158 = sphi 0, %s142
    %s164 = sphi 0, %s166
    %s167 = sphi 0, %s164
    %s168 = sphi 0, %s167
    %s184 = sphi 0, %s168
  $region4: #{_geniepath_layer_impl.2} parent=0 // loop_header_branch
    %16 = sbr.rel (%p14) target = $region8
  $region5: #{_geniepath_layer_impl.2} parent=0 // loop_body
    %s18 = ssub.s32 %s13, 1
    %s19 = ssub.s32 %s13, 2
    %s20 = sadd.s32 %s13, 1
    %s21 = ssub.s32 %s13, %s20
    %p22 = scmp.eq.s32.totalorder %s21, 0
    %s24 = sadd.s32 %s23, 1
    %s25 = scalar_select %p22, %s23, %s24
    %p28 = pneg %p22
    %p29 = scmp.eq.s32.totalorder %s13, 1
    %p30 = por %p28, %p29
    %p31 = scmp.ne.s32.totalorder %s23, %s26
    %p32 = scmp.eq.s32.totalorder %s13, 0
    %p33 = por %p31, %p32
    %p34 = scmp.ne.s32.totalorder %s23, %s26
    %p35 = scmp.eq.s32.totalorder %s18, 1
    %p36 = por %p34, %p35
    %p37 = scmp.ne.s32.totalorder %s26, %s27
    %p38 = scmp.eq.s32.totalorder %s18, 0
    %p39 = por %p37, %p38
    %p40 = scmp.ne.s32.totalorder %s26, %s27
    %p41 = scmp.eq.s32.totalorder %s19, 1
    %p42 = por %p40, %p41
    %p44 = scmp.ne.s32.totalorder %s27, %s43
    %p45 = scmp.eq.s32.totalorder %s19, 0
    %p46 = por %p44, %p45
    %s48 = sadd.s32 %s47, 1
    %p51 = scmp.eq.s32.totalorder %s13, 1
    %p52 = scmp.ne.s32.totalorder %s47, %s49
    %p53 = scmp.eq.s32.totalorder %s13, 0
    %p54 = por %p52, %p53
    %p55 = scmp.ne.s32.totalorder %s47, %s49
    %p56 = scmp.eq.s32.totalorder %s18, 1
    %p57 = por %p55, %p56
    %p58 = scmp.ne.s32.totalorder %s49, %s50
    %p59 = scmp.eq.s32.totalorder %s18, 0
    %p60 = por %p58, %p59
    %p61 = scmp.ne.s32.totalorder %s49, %s50
    %p62 = scmp.eq.s32.totalorder %s19, 1
    %p63 = por %p61, %p62
    %p65 = scmp.ne.s32.totalorder %s50, %s64
    %p66 = scmp.eq.s32.totalorder %s19, 0
    %p67 = por %p65, %p66
    %s69 = sadd.s32 %s68, 1
    %p72 = scmp.eq.s32.totalorder %s13, 1
    %p73 = scmp.ne.s32.totalorder %s68, %s70
    %p74 = scmp.eq.s32.totalorder %s13, 0
    %p75 = por %p73, %p74
    %p76 = scmp.ne.s32.totalorder %s68, %s70
    %p77 = scmp.eq.s32.totalorder %s18, 1
    %p78 = por %p76, %p77
    %p79 = scmp.ne.s32.totalorder %s70, %s71
    %p80 = scmp.eq.s32.totalorder %s18, 0
    %p81 = por %p79, %p80
    %p82 = scmp.ne.s32.totalorder %s70, %s71
    %p83 = scmp.eq.s32.totalorder %s19, 1
    %p84 = por %p82, %p83
    %p86 = scmp.ne.s32.totalorder %s71, %s85
    %p87 = scmp.eq.s32.totalorder %s19, 0
    %p88 = por %p86, %p87
    %s90 = sadd.s32 %s89, 1
    %p93 = scmp.eq.s32.totalorder %s13, 1
    %p94 = scmp.ne.s32.totalorder %s89, %s91
    %p95 = scmp.eq.s32.totalorder %s13, 0
    %p96 = por %p94, %p95
    %p97 = scmp.ne.s32.totalorder %s89, %s91
    %p98 = scmp.eq.s32.totalorder %s18, 1
    %p99 = por %p97, %p98
    %p100 = scmp.ne.s32.totalorder %s91, %s92
    %p101 = scmp.eq.s32.totalorder %s18, 0
    %p102 = por %p100, %p101
    %p103 = scmp.ne.s32.totalorder %s91, %s92
    %p104 = scmp.eq.s32.totalorder %s19, 1
    %p105 = por %p103, %p104
    %p107 = scmp.ne.s32.totalorder %s92, %s106
    %p108 = scmp.eq.s32.totalorder %s19, 0
    %p109 = por %p107, %p108
    %s110 = ssub.s32 %s13, %s20
    %p111 = scmp.eq.s32.totalorder %s110, 0
    %s113 = sadd.s32 %s112, 1
    %s114 = scalar_select %p111, %s112, %s113
    %p117 = pneg %p111
    %p118 = scmp.eq.s32.totalorder %s13, 1
    %p119 = por %p117, %p118
    %p120 = scmp.ne.s32.totalorder %s112, %s115
    %p121 = scmp.eq.s32.totalorder %s13, 0
    %p122 = por %p120, %p121
    %p123 = scmp.ne.s32.totalorder %s112, %s115
    %p124 = scmp.eq.s32.totalorder %s18, 1
    %p125 = por %p123, %p124
    %p126 = scmp.ne.s32.totalorder %s115, %s116
    %p127 = scmp.eq.s32.totalorder %s18, 0
    %p128 = por %p126, %p127
    %p129 = scmp.ne.s32.totalorder %s115, %s116
    %p130 = scmp.eq.s32.totalorder %s19, 1
    %p131 = por %p129, %p130
    %p133 = scmp.ne.s32.totalorder %s116, %s132
    %p134 = scmp.eq.s32.totalorder %s19, 0
    %p135 = por %p133, %p134
    %s136 = ssub.s32 %s13, %s20
    %p137 = scmp.eq.s32.totalorder %s136, 0
    %s139 = sadd.s32 %s138, 1
    %s140 = scalar_select %p137, %s138, %s139
    %p143 = pneg %p137
    %p144 = scmp.eq.s32.totalorder %s13, 1
    %p145 = por %p143, %p144
    %p146 = scmp.ne.s32.totalorder %s138, %s141
    %p147 = scmp.eq.s32.totalorder %s13, 0
    %p148 = por %p146, %p147
    %p149 = scmp.ne.s32.totalorder %s138, %s141
    %p150 = scmp.eq.s32.totalorder %s18, 1
    %p151 = por %p149, %p150
    %p152 = scmp.ne.s32.totalorder %s141, %s142
    %p153 = scmp.eq.s32.totalorder %s18, 0
    %p154 = por %p152, %p153
    %p155 = scmp.ne.s32.totalorder %s141, %s142
    %p156 = scmp.eq.s32.totalorder %s19, 1
    %p157 = por %p155, %p156
    %p159 = scmp.ne.s32.totalorder %s142, %s158
    %p160 = scmp.eq.s32.totalorder %s19, 0
    %p161 = por %p159, %p160
    %s162 = ssub.s32 %s13, %s20
    %p163 = scmp.eq.s32.totalorder %s162, 0
    %s165 = sadd.s32 %s164, 1
    %s166 = scalar_select %p163, %s164, %s165
    %p169 = pneg %p163
    %p170 = scmp.eq.s32.totalorder %s13, 1
    %p171 = por %p169, %p170
    %p172 = scmp.ne.s32.totalorder %s164, %s167
    %p173 = scmp.eq.s32.totalorder %s13, 0
    %p174 = por %p172, %p173
    %p175 = scmp.ne.s32.totalorder %s164, %s167
    %p176 = scmp.eq.s32.totalorder %s18, 1
    %p177 = por %p175, %p176
    %p178 = scmp.ne.s32.totalorder %s167, %s168
    %p179 = scmp.eq.s32.totalorder %s18, 0
    %p180 = por %p178, %p179
    %p181 = scmp.ne.s32.totalorder %s167, %s168
    %p182 = scmp.eq.s32.totalorder %s19, 1
    %p183 = por %p181, %p182
    %p185 = scmp.ne.s32.totalorder %s168, %s184
    %p186 = scmp.eq.s32.totalorder %s19, 0
    %p187 = por %p185, %p186
    %p188 = scmp.le.s32.totalorder 1, %s13
    %p189 = scmp.lt.s32.totalorder %s13, 3
    %p190 = pnand %p188, %p189
    %p191 = pneg %p190
    // Predicated region
    $region9: #{_geniepath_layer_impl.2} parent=5 // pred_check
      _
    $region10: #{_geniepath_layer_impl.2} parent=5 // pred_check_branch
      %193 = sbr.rel (%p190) target = $region12
    $region11: #{_geniepath_layer_impl.2} parent=5 // pred_region
      %s194 = ssub.s32 %s13, 1
      // Predicated region
      $region13: #{_geniepath_layer_impl.2} parent=11 // pred_check
        %p195 = pneg %p60
      $region14: #{_geniepath_layer_impl.2} parent=11 // pred_check_branch
        %197 = sbr.rel (%p195) target = $region16
      $region15: #{_geniepath_layer_impl.2} parent=11 // pred_region
        _
      $region16: #{_geniepath_layer_impl.2} parent=11 // pred_fallthru
        _
      // Predicated region
      $region17: #{_geniepath_layer_impl.2} parent=11 // pred_check
        %p198 = pneg %p81
      $region18: #{_geniepath_layer_impl.2} parent=11 // pred_check_branch
        %200 = sbr.rel (%p198) target = $region20
      $region19: #{_geniepath_layer_impl.2} parent=11 // pred_region
        _
      $region20: #{_geniepath_layer_impl.2} parent=11 // pred_fallthru
        _
      // Predicated region
      $region21: #{_geniepath_layer_impl.2} parent=11 // pred_check
        %p201 = pneg %p102
      $region22: #{_geniepath_layer_impl.2} parent=11 // pred_check_branch
        %203 = sbr.rel (%p201) target = $region24
      $region23: #{_geniepath_layer_impl.2} parent=11 // pred_region
        _
      $region24: #{_geniepath_layer_impl.2} parent=11 // pred_fallthru
        _
    $region12: #{_geniepath_layer_impl.2} parent=5 // pred_fallthru
      _
    %p204 = scmp.lt.s32.totalorder %s13, 2
    // Predicated region
    $region25: #{_geniepath_layer_impl.2} parent=5 // pred_check
      %p205 = pneg %p204
    $region26: #{_geniepath_layer_impl.2} parent=5 // pred_check_branch
      %207 = sbr.rel (%p205) target = $region28
    $region27: #{_geniepath_layer_impl.2} parent=5 // pred_region
      // Predicated region
      $region29: #{_geniepath_layer_impl.2} parent=27 // pred_check
        %p208 = pneg %p33
      $region30: #{_geniepath_layer_impl.2} parent=27 // pred_check_branch
        %210 = sbr.rel (%p208) target = $region32
      $region31: #{_geniepath_layer_impl.2} parent=27 // pred_region
        %s211 = smul.u32 16, %s13
        %p212 = scmp.lt.s32.totalorder %s211, 31
        %s213 = scalar_select %p212, %s211, 31
        %s214 = smul.addr %s213, 4
        %s215 = scalar_lea.vmem %s0, %s214
        %s216 = smul.u32 16, %s13
      $region32: #{_geniepath_layer_impl.2} parent=27 // pred_fallthru
        _
    $region28: #{_geniepath_layer_impl.2} parent=5 // pred_fallthru
      _
    %p217 = scmp.le.s32.totalorder 1, %s13
    %p218 = scmp.lt.s32.totalorder %s13, 3
    %p219 = pnand %p217, %p218
    %p220 = pneg %p219
    // Predicated region
    $region33: #{_geniepath_layer_impl.2} parent=5 // pred_check
      _
    $region34: #{_geniepath_layer_impl.2} parent=5 // pred_check_branch
      %222 = sbr.rel (%p219) target = $region36
    $region35: #{_geniepath_layer_impl.2} parent=5 // pred_region
      %s223 = ssub.s32 %s13, 1
      %s224 = smul.u32 16, %s18
      %p225 = scmp.lt.s32.totalorder %s224, 31
      %s226 = scalar_select %p225, %s224, 31
      %s227 = smul.addr %s226, 4
      %s228 = scalar_lea.vmem %s0, %s227
      %p229 = pneg %p39
      %p230 = pneg %p36
      %p231 = pneg %p60
      %p232 = pneg %p57
      %p233 = pneg %p81
      %p234 = pneg %p78
      %p235 = pneg %p102
      %p236 = pneg %p99
      %p237 = pneg %p128
      %p238 = pneg %p125
      %s239 = smul.u32 16, %s18
      %p240 = scmp.lt.s32.totalorder %s239, 31
      %s241 = scalar_select %p240, %s239, 31
      %s242 = smul.addr %s241, 4
      %s243 = scalar_lea.vmem %s4, %s242
      %p244 = pneg %p154
      %p245 = pneg %p151
      %s246 = smul.u32 16, %s18
      %p247 = scmp.lt.s32.totalorder %s246, 31
      %s248 = scalar_select %p247, %s246, 31
      %s249 = smul.addr %s248, 8
      %s250 = scalar_lea.vmem %s5, %s249
      %p251 = pneg %p180
      %p252 = pneg %p177
      %s253 = smul.u32 16, %s18
      %p254 = scmp.lt.s32.totalorder %s253, 31
      %s255 = scalar_select %p254, %s253, 31
      %s256 = smul.addr %s255, 8
      %s257 = scalar_lea.vmem %s6, %s256
      %s258 = smul.u32 16, %s18
      %p259 = scmp.lt.s32.totalorder %s258, 31
      %s260 = scalar_select %p259, %s258, 31
      %s261 = smul.addr %s260, 4
      %s262 = scalar_lea.vmem %s0, %s261
      %s263 = smul.u32 16, %s18
      %s264 = smul.u32 16, %s18
      %p265 = scmp.lt.s32.totalorder %s264, 31
      %s266 = scalar_select %p265, %s264, 31
      %s267 = smul.addr %s266, 4
      %s268 = scalar_lea.vmem %s4, %s267
      %s269 = smul.u32 16, %s18
      %s270 = smul.u32 16, %s18
      %p271 = scmp.lt.s32.totalorder %s270, 31
      %s272 = scalar_select %p271, %s270, 31
      %s273 = smul.addr %s272, 8
      %s274 = scalar_lea.vmem %s5, %s273
      %s275 = smul.u32 16, %s18
      %s276 = smul.u32 16, %s18
      %p277 = scmp.lt.s32.totalorder %s276, 31
      %s278 = scalar_select %p277, %s276, 31
      %s279 = smul.addr %s278, 8
      %s280 = scalar_lea.vmem %s6, %s279
      %s281 = smul.u32 16, %s18
      %v282 = vld [vmem:[%s262] sm:$0xf]
      %v283 = vld [vmem:[%s262 + $0x4] sm:$0xf]
      %v284 = vld [vmem:[%s262 + $0x8] sm:$0xf]
      %v285 = vld [vmem:[%s262 + $0xc] sm:$0xf]
      %v286 = vld [vmem:[%s262 + $0x10] sm:$0xf]
      %v287 = vld [vmem:[%s262 + $0x14] sm:$0xf]
      %v288 = vld [vmem:[%s262 + $0x18] sm:$0xf]
      %v289 = vld [vmem:[%s262 + $0x1c] sm:$0xf]
      %v290 = vld [vmem:[%s262 + $0x20] sm:$0xf]
      %v291 = vld [vmem:[%s262 + $0x24] sm:$0xf]
      %v292 = vld [vmem:[%s262 + $0x28] sm:$0xf]
      %v293 = vld [vmem:[%s262 + $0x2c] sm:$0xf]
      %v294 = vld [vmem:[%s262 + $0x30] sm:$0xf]
      %v295 = vld [vmem:[%s262 + $0x34] sm:$0xf]
      %v296 = vld [vmem:[%s262 + $0x38] sm:$0xf]
      %v297 = vld [vmem:[%s262 + $0x3c] sm:$0xf]
      %v298 = vld [vmem:[%s1] sm:$0xf]
      %v299 = vld [vmem:[%s1 + $0x4] sm:$0xf]
      %v300 = vld [vmem:[%s1 + $0x8] sm:$0xf]
      %v301 = vld [vmem:[%s1 + $0xc] sm:$0xf]
      %v302 = vld [vmem:[%s1 + $0x10] sm:$0xf]
      %v303 = vld [vmem:[%s1 + $0x14] sm:$0xf]
      %v304 = vld [vmem:[%s1 + $0x18] sm:$0xf]
      %v305 = vld [vmem:[%s1 + $0x1c] sm:$0xf]
      %v306 = vld [vmem:[%s1 + $0x20] sm:$0xf]
      %v307 = vld [vmem:[%s1 + $0x24] sm:$0xf]
      %v308 = vld [vmem:[%s1 + $0x28] sm:$0xf]
      %v309 = vld [vmem:[%s1 + $0x2c] sm:$0xf]
      %v310 = vld [vmem:[%s1 + $0x30] sm:$0xf]
      %v311 = vld [vmem:[%s1 + $0x34] sm:$0xf]
      %v312 = vld [vmem:[%s1 + $0x38] sm:$0xf]
      %v313 = vld [vmem:[%s1 + $0x3c] sm:$0xf]
      %v330 = vunpack.c.l.b16 %v282
      %v331 = vunpack.c.l.b16 %v283
      %v332 = vunpack.c.l.b16 %v284
      %v333 = vunpack.c.l.b16 %v285
      %v334 = vunpack.c.l.b16 %v286
      %v335 = vunpack.c.l.b16 %v287
      %v336 = vunpack.c.l.b16 %v288
      %v337 = vunpack.c.l.b16 %v289
      %v338 = vunpack.c.l.b16 %v290
      %v339 = vunpack.c.l.b16 %v291
      %v340 = vunpack.c.l.b16 %v292
      %v341 = vunpack.c.l.b16 %v293
      %v342 = vunpack.c.l.b16 %v294
      %v343 = vunpack.c.l.b16 %v295
      %v344 = vunpack.c.l.b16 %v296
      %v345 = vunpack.c.l.b16 %v297
      %v346 = vpack.c.b16 %v331, %v330
      %v347 = vpack.c.b16 %v333, %v332
      %v348 = vpack.c.b16 %v335, %v334
      %v349 = vpack.c.b16 %v337, %v336
      %v350 = vpack.c.b16 %v339, %v338
      %v351 = vpack.c.b16 %v341, %v340
      %v352 = vpack.c.b16 %v343, %v342
      %v353 = vpack.c.b16 %v345, %v344
      %v378 = vunpack.c.l.b16 %v298
      %v379 = vunpack.c.l.b16 %v299
      %v380 = vunpack.c.l.b16 %v300
      %v381 = vunpack.c.l.b16 %v301
      %v382 = vunpack.c.l.b16 %v302
      %v383 = vunpack.c.l.b16 %v303
      %v384 = vunpack.c.l.b16 %v304
      %v385 = vunpack.c.l.b16 %v305
      %v386 = vunpack.c.l.b16 %v306
      %v387 = vunpack.c.l.b16 %v307
      %v388 = vunpack.c.l.b16 %v308
      %v389 = vunpack.c.l.b16 %v309
      %v390 = vunpack.c.l.b16 %v310
      %v391 = vunpack.c.l.b16 %v311
      %v392 = vunpack.c.l.b16 %v312
      %v393 = vunpack.c.l.b16 %v313
      %v394 = vpack.c.b16 %v379, %v378
      %v395 = vpack.c.b16 %v381, %v380
      %v396 = vpack.c.b16 %v383, %v382
      %v397 = vpack.c.b16 %v385, %v384
      %v398 = vpack.c.b16 %v387, %v386
      %v399 = vpack.c.b16 %v389, %v388
      %v400 = vpack.c.b16 %v391, %v390
      %v401 = vpack.c.b16 %v393, %v392
      %410 = vmatpush.bf16.msra.mxu0 %v401
      %411 = vmatpush.bf16.msra.mxu0 %v400
      %412 = vmatpush.bf16.msra.mxu0 %v399
      %413 = vmatpush.bf16.msra.mxu0 %v398
      %414 = vmatpush.bf16.msra.mxu0 %v397
      %415 = vmatpush.bf16.msra.mxu0 %v396
      %416 = vmatpush.bf16.msra.mxu0 %v395
      %417 = vmatpush.bf16.msra.mxu0 %v394
      %418 = vmatmul.bf16.gmra.mxu0 %v346
      %v419 = vpop.f32.mrf.mxu0
      %v420 = vadd.f32 0.0, %v419
      %v421 = vpop.f32.mrf.mxu0
      %v422 = vadd.f32 0.0, %v421
      %423 = vmatmul.bf16.gmra.mxu0 %v347
      %v424 = vpop.f32.mrf.mxu0
      %v425 = vadd.f32 0.0, %v424
      %v426 = vpop.f32.mrf.mxu0
      %v427 = vadd.f32 0.0, %v426
      %428 = vmatmul.bf16.gmra.mxu0 %v348
      %v429 = vpop.f32.mrf.mxu0
      %v430 = vadd.f32 0.0, %v429
      %v431 = vpop.f32.mrf.mxu0
      %v432 = vadd.f32 0.0, %v431
      %433 = vmatmul.bf16.gmra.mxu0 %v349
      %v434 = vpop.f32.mrf.mxu0
      %v435 = vadd.f32 0.0, %v434
      %v436 = vpop.f32.mrf.mxu0
      %v437 = vadd.f32 0.0, %v436
      %438 = vmatmul.bf16.gmra.mxu0 %v350
      %v439 = vpop.f32.mrf.mxu0
      %v440 = vadd.f32 0.0, %v439
      %v441 = vpop.f32.mrf.mxu0
      %v442 = vadd.f32 0.0, %v441
      %443 = vmatmul.bf16.gmra.mxu0 %v351
      %v444 = vpop.f32.mrf.mxu0
      %v445 = vadd.f32 0.0, %v444
      %v446 = vpop.f32.mrf.mxu0
      %v447 = vadd.f32 0.0, %v446
      %448 = vmatmul.bf16.gmra.mxu0 %v352
      %v449 = vpop.f32.mrf.mxu0
      %v450 = vadd.f32 0.0, %v449
      %v451 = vpop.f32.mrf.mxu0
      %v452 = vadd.f32 0.0, %v451
      %453 = vmatmul.bf16.gmra.mxu0 %v353
      %v454 = vpop.f32.mrf.mxu0
      %v455 = vadd.f32 0.0, %v454
      %v456 = vpop.f32.mrf.mxu0
      %v457 = vadd.f32 0.0, %v456
      %458 = vdwg.mxu0
      %v459 = vpack.c.bf16 %v420, %v420
      %v460 = vpack.c.bf16 %v422, %v422
      %v461 = vpack.c.bf16 %v425, %v425
      %v462 = vpack.c.bf16 %v427, %v427
      %v463 = vpack.c.bf16 %v430, %v430
      %v464 = vpack.c.bf16 %v432, %v432
      %v465 = vpack.c.bf16 %v435, %v435
      %v466 = vpack.c.bf16 %v437, %v437
      %v467 = vpack.c.bf16 %v440, %v440
      %v468 = vpack.c.bf16 %v442, %v442
      %v469 = vpack.c.bf16 %v445, %v445
      %v470 = vpack.c.bf16 %v447, %v447
      %v471 = vpack.c.bf16 %v450, %v450
      %v472 = vpack.c.bf16 %v452, %v452
      %v473 = vpack.c.bf16 %v455, %v455
      %v474 = vpack.c.bf16 %v457, %v457
      %475 = vst [vmem:[%s268] sm:$0xf] %v459
      %476 = vst [vmem:[%s268 + $0x4] sm:$0xf] %v460
      %477 = vst [vmem:[%s268 + $0x8] sm:$0xf] %v461
      %478 = vst [vmem:[%s268 + $0xc] sm:$0xf] %v462
      %479 = vst [vmem:[%s268 + $0x10] sm:$0xf] %v463
      %480 = vst [vmem:[%s268 + $0x14] sm:$0xf] %v464
      %481 = vst [vmem:[%s268 + $0x18] sm:$0xf] %v465
      %482 = vst [vmem:[%s268 + $0x1c] sm:$0xf] %v466
      %483 = vst [vmem:[%s268 + $0x20] sm:$0xf] %v467
      %484 = vst [vmem:[%s268 + $0x24] sm:$0xf] %v468
      %485 = vst [vmem:[%s268 + $0x28] sm:$0xf] %v469
      %486 = vst [vmem:[%s268 + $0x2c] sm:$0xf] %v470
      %487 = vst [vmem:[%s268 + $0x30] sm:$0xf] %v471
      %488 = vst [vmem:[%s268 + $0x34] sm:$0xf] %v472
      %489 = vst [vmem:[%s268 + $0x38] sm:$0xf] %v473
      %490 = vst [vmem:[%s268 + $0x3c] sm:$0xf] %v474
      %v491 = vld [vmem:[%s2] sm:$0x1]
      %v493 = vperm.slane %v491, 0
      %v495 = vmul.f32 %v420, %v493
      %v496 = vmul.f32 %v422, %v493
      %v497 = vmul.f32 %v425, %v493
      %v498 = vmul.f32 %v427, %v493
      %v499 = vmul.f32 %v430, %v493
      %v500 = vmul.f32 %v432, %v493
      %v501 = vmul.f32 %v435, %v493
      %v502 = vmul.f32 %v437, %v493
      %v503 = vmul.f32 %v440, %v493
      %v504 = vmul.f32 %v442, %v493
      %v505 = vmul.f32 %v445, %v493
      %v506 = vmul.f32 %v447, %v493
      %v507 = vmul.f32 %v450, %v493
      %v508 = vmul.f32 %v452, %v493
      %v509 = vmul.f32 %v455, %v493
      %v510 = vmul.f32 %v457, %v493
      %511 = vadd.xlane.f32.xlu0 %v495
      %v512 = vpop.xlane.xlu0 %511
      %513 = vadd.xlane.f32.xlu0 %v496
      %v514 = vpop.xlane.xlu0 %513
      %515 = vadd.xlane.f32.xlu0 %v497
      %v516 = vpop.xlane.xlu0 %515
      %517 = vadd.xlane.f32.xlu0 %v498
      %v518 = vpop.xlane.xlu0 %517
      %519 = vadd.xlane.f32.xlu0 %v499
      %v520 = vpop.xlane.xlu0 %519
      %521 = vadd.xlane.f32.xlu0 %v500
      %v522 = vpop.xlane.xlu0 %521
      %523 = vadd.xlane.f32.xlu0 %v501
      %v524 = vpop.xlane.xlu0 %523
      %525 = vadd.xlane.f32.xlu0 %v502
      %v526 = vpop.xlane.xlu0 %525
      %527 = vadd.xlane.f32.xlu0 %v503
      %v528 = vpop.xlane.xlu0 %527
      %529 = vadd.xlane.f32.xlu0 %v504
      %v530 = vpop.xlane.xlu0 %529
      %531 = vadd.xlane.f32.xlu0 %v505
      %v532 = vpop.xlane.xlu0 %531
      %533 = vadd.xlane.f32.xlu0 %v506
      %v534 = vpop.xlane.xlu0 %533
      %535 = vadd.xlane.f32.xlu0 %v507
      %v536 = vpop.xlane.xlu0 %535
      %537 = vadd.xlane.f32.xlu0 %v508
      %v538 = vpop.xlane.xlu0 %537
      %539 = vadd.xlane.f32.xlu0 %v509
      %v540 = vpop.xlane.xlu0 %539
      %541 = vadd.xlane.f32.xlu0 %v510
      %v542 = vpop.xlane.xlu0 %541
      %vm543 = vcmask 7168
      %544 = vst.msk [vmem:[%s274] sm:$0xff] %vm543, %v512
      %545 = vst.msk [vmem:[%s274 + $0x8] sm:$0xff] %vm543, %v514
      %546 = vst.msk [vmem:[%s274 + $0x10] sm:$0xff] %vm543, %v516
      %547 = vst.msk [vmem:[%s274 + $0x18] sm:$0xff] %vm543, %v518
      %548 = vst.msk [vmem:[%s274 + $0x20] sm:$0xff] %vm543, %v520
      %549 = vst.msk [vmem:[%s274 + $0x28] sm:$0xff] %vm543, %v522
      %550 = vst.msk [vmem:[%s274 + $0x30] sm:$0xff] %vm543, %v524
      %551 = vst.msk [vmem:[%s274 + $0x38] sm:$0xff] %vm543, %v526
      %552 = vst.msk [vmem:[%s274 + $0x40] sm:$0xff] %vm543, %v528
      %553 = vst.msk [vmem:[%s274 + $0x48] sm:$0xff] %vm543, %v530
      %554 = vst.msk [vmem:[%s274 + $0x50] sm:$0xff] %vm543, %v532
      %555 = vst.msk [vmem:[%s274 + $0x58] sm:$0xff] %vm543, %v534
      %556 = vst.msk [vmem:[%s274 + $0x60] sm:$0xff] %vm543, %v536
      %557 = vst.msk [vmem:[%s274 + $0x68] sm:$0xff] %vm543, %v538
      %558 = vst.msk [vmem:[%s274 + $0x70] sm:$0xff] %vm543, %v540
      %559 = vst.msk [vmem:[%s274 + $0x78] sm:$0xff] %vm543, %v542
      %v560 = vld [vmem:[%s3] sm:$0x1]
      %v562 = vperm.slane %v560, 0
      %v564 = vmul.f32 %v420, %v562
      %v565 = vmul.f32 %v422, %v562
      %v566 = vmul.f32 %v425, %v562
      %v567 = vmul.f32 %v427, %v562
      %v568 = vmul.f32 %v430, %v562
      %v569 = vmul.f32 %v432, %v562
      %v570 = vmul.f32 %v435, %v562
      %v571 = vmul.f32 %v437, %v562
      %v572 = vmul.f32 %v440, %v562
      %v573 = vmul.f32 %v442, %v562
      %v574 = vmul.f32 %v445, %v562
      %v575 = vmul.f32 %v447, %v562
      %v576 = vmul.f32 %v450, %v562
      %v577 = vmul.f32 %v452, %v562
      %v578 = vmul.f32 %v455, %v562
      %v579 = vmul.f32 %v457, %v562
      %580 = vadd.xlane.f32.xlu0 %v564
      %v581 = vpop.xlane.xlu0 %580
      %582 = vadd.xlane.f32.xlu0 %v565
      %v583 = vpop.xlane.xlu0 %582
      %584 = vadd.xlane.f32.xlu0 %v566
      %v585 = vpop.xlane.xlu0 %584
      %586 = vadd.xlane.f32.xlu0 %v567
      %v587 = vpop.xlane.xlu0 %586
      %588 = vadd.xlane.f32.xlu0 %v568
      %v589 = vpop.xlane.xlu0 %588
      %590 = vadd.xlane.f32.xlu0 %v569
      %v591 = vpop.xlane.xlu0 %590
      %592 = vadd.xlane.f32.xlu0 %v570
      %v593 = vpop.xlane.xlu0 %592
      %594 = vadd.xlane.f32.xlu0 %v571
      %v595 = vpop.xlane.xlu0 %594
      %596 = vadd.xlane.f32.xlu0 %v572
      %v597 = vpop.xlane.xlu0 %596
      %598 = vadd.xlane.f32.xlu0 %v573
      %v599 = vpop.xlane.xlu0 %598
      %600 = vadd.xlane.f32.xlu0 %v574
      %v601 = vpop.xlane.xlu0 %600
      %602 = vadd.xlane.f32.xlu0 %v575
      %v603 = vpop.xlane.xlu0 %602
      %604 = vadd.xlane.f32.xlu0 %v576
      %v605 = vpop.xlane.xlu0 %604
      %606 = vadd.xlane.f32.xlu0 %v577
      %v607 = vpop.xlane.xlu0 %606
      %608 = vadd.xlane.f32.xlu0 %v578
      %v609 = vpop.xlane.xlu0 %608
      %610 = vadd.xlane.f32.xlu0 %v579
      %v611 = vpop.xlane.xlu0 %610
      %612 = vst.msk [vmem:[%s280] sm:$0xff] %vm543, %v581
      %613 = vst.msk [vmem:[%s280 + $0x8] sm:$0xff] %vm543, %v583
      %614 = vst.msk [vmem:[%s280 + $0x10] sm:$0xff] %vm543, %v585
      %615 = vst.msk [vmem:[%s280 + $0x18] sm:$0xff] %vm543, %v587
      %616 = vst.msk [vmem:[%s280 + $0x20] sm:$0xff] %vm543, %v589
      %617 = vst.msk [vmem:[%s280 + $0x28] sm:$0xff] %vm543, %v591
      %618 = vst.msk [vmem:[%s280 + $0x30] sm:$0xff] %vm543, %v593
      %619 = vst.msk [vmem:[%s280 + $0x38] sm:$0xff] %vm543, %v595
      %620 = vst.msk [vmem:[%s280 + $0x40] sm:$0xff] %vm543, %v597
      %621 = vst.msk [vmem:[%s280 + $0x48] sm:$0xff] %vm543, %v599
      %622 = vst.msk [vmem:[%s280 + $0x50] sm:$0xff] %vm543, %v601
      %623 = vst.msk [vmem:[%s280 + $0x58] sm:$0xff] %vm543, %v603
      %624 = vst.msk [vmem:[%s280 + $0x60] sm:$0xff] %vm543, %v605
      %625 = vst.msk [vmem:[%s280 + $0x68] sm:$0xff] %vm543, %v607
      %626 = vst.msk [vmem:[%s280 + $0x70] sm:$0xff] %vm543, %v609
      %627 = vst.msk [vmem:[%s280 + $0x78] sm:$0xff] %vm543, %v611
      %s628 = smul.u32 16, %s18
      %p629 = scmp.lt.s32.totalorder %s628, 31
      %s630 = scalar_select %p629, %s628, 31
      %s631 = smul.addr %s630, 4
      %s632 = scalar_lea.vmem %s4, %s631
      %s633 = smul.u32 16, %s18
      %p634 = scmp.lt.s32.totalorder %s633, 31
      %s635 = scalar_select %p634, %s633, 31
      %s636 = smul.addr %s635, 8
      %s637 = scalar_lea.vmem %s5, %s636
      %s638 = smul.u32 16, %s18
      %p639 = scmp.lt.s32.totalorder %s638, 31
      %s640 = scalar_select %p639, %s638, 31
      %s641 = smul.addr %s640, 8
      %s642 = scalar_lea.vmem %s6, %s641
      // Predicated region
      $region37: #{_geniepath_layer_impl.2} parent=35 // pred_check
        %p643 = pneg %p125
      $region38: #{_geniepath_layer_impl.2} parent=35 // pred_check_branch
        %645 = sbr.rel (%p643) target = $region40
      $region39: #{_geniepath_layer_impl.2} parent=35 // pred_region
        %s646 = smul.u32 16, %s18
      $region40: #{_geniepath_layer_impl.2} parent=35 // pred_fallthru
        _
      // Predicated region
      $region41: #{_geniepath_layer_impl.2} parent=35 // pred_check
        %p647 = pneg %p151
      $region42: #{_geniepath_layer_impl.2} parent=35 // pred_check_branch
        %649 = sbr.rel (%p647) target = $region44
      $region43: #{_geniepath_layer_impl.2} parent=35 // pred_region
        %s650 = smul.u32 16, %s18
      $region44: #{_geniepath_layer_impl.2} parent=35 // pred_fallthru
        _
      // Predicated region
      $region45: #{_geniepath_layer_impl.2} parent=35 // pred_check
        %p651 = pneg %p177
      $region46: #{_geniepath_layer_impl.2} parent=35 // pred_check_branch
        %653 = sbr.rel (%p651) target = $region48
      $region47: #{_geniepath_layer_impl.2} parent=35 // pred_region
        %s654 = smul.u32 16, %s18
      $region48: #{_geniepath_layer_impl.2} parent=35 // pred_fallthru
        _
    $region36: #{_geniepath_layer_impl.2} parent=5 // pred_fallthru
      _
    %p655 = scmp.le.s32.totalorder 2, %s13
    // Predicated region
    $region49: #{_geniepath_layer_impl.2} parent=5 // pred_check
      %p656 = pneg %p655
    $region50: #{_geniepath_layer_impl.2} parent=5 // pred_check_branch
      %658 = sbr.rel (%p656) target = $region52
    $region51: #{_geniepath_layer_impl.2} parent=5 // pred_region
      %s659 = ssub.s32 %s13, 2
      // Predicated region
      $region53: #{_geniepath_layer_impl.2} parent=51 // pred_check
        %p660 = pneg %p131
      $region54: #{_geniepath_layer_impl.2} parent=51 // pred_check_branch
        %662 = sbr.rel (%p660) target = $region56
      $region55: #{_geniepath_layer_impl.2} parent=51 // pred_region
        %s663 = smul.u32 16, %s19
        %p664 = scmp.lt.s32.totalorder %s663, 31
        %s665 = scalar_select %p664, %s663, 31
        %s666 = smul.addr %s665, 4
        %s667 = scalar_lea.vmem %s4, %s666
      $region56: #{_geniepath_layer_impl.2} parent=51 // pred_fallthru
        _
      // Predicated region
      $region57: #{_geniepath_layer_impl.2} parent=51 // pred_check
        %p668 = pneg %p157
      $region58: #{_geniepath_layer_impl.2} parent=51 // pred_check_branch
        %670 = sbr.rel (%p668) target = $region60
      $region59: #{_geniepath_layer_impl.2} parent=51 // pred_region
        %s671 = smul.u32 16, %s19
        %p672 = scmp.lt.s32.totalorder %s671, 31
        %s673 = scalar_select %p672, %s671, 31
        %s674 = smul.addr %s673, 8
        %s675 = scalar_lea.vmem %s5, %s674
      $region60: #{_geniepath_layer_impl.2} parent=51 // pred_fallthru
        _
      // Predicated region
      $region61: #{_geniepath_layer_impl.2} parent=51 // pred_check
        %p676 = pneg %p183
      $region62: #{_geniepath_layer_impl.2} parent=51 // pred_check_branch
        %678 = sbr.rel (%p676) target = $region64
      $region63: #{_geniepath_layer_impl.2} parent=51 // pred_region
        %s679 = smul.u32 16, %s19
        %p680 = scmp.lt.s32.totalorder %s679, 31
        %s681 = scalar_select %p680, %s679, 31
        %s682 = smul.addr %s681, 8
        %s683 = scalar_lea.vmem %s6, %s682
      $region64: #{_geniepath_layer_impl.2} parent=51 // pred_fallthru
        _
    $region52: #{_geniepath_layer_impl.2} parent=5 // pred_fallthru
      _
  $region6: #{_geniepath_layer_impl.2} parent=0 // loop_footer
    %s17 = sadd.s32 1, %s13
  $region7: #{_geniepath_layer_impl.2} parent=0 // loop_footer_branch
    %12 = sbr.rel target = $region3
  $region8: #{_geniepath_layer_impl.2} parent=0 // loop_exit
    _

// kernel: _geniepath_layer_impl.3
$region0: #{_geniepath_layer_impl.3}
  #allocation0 [shape = 'u32[]', space=smem, size = 0x4, offset = 0x4, fixed_abs, tag = 'smem constant byte address 0x4 - core index']
  #allocation1 [shape = 'u32[72,128]{1,0:T(1,128)}', space=vmem, size = 0x9000, scoped, tag = 'internal scratch']
  #allocation2 [shape = 'f32[64,1]{1,0:T(8,128)}', space=vmem, size = 0x8000, scoped, tag = 'scratch operand']
  #allocation3 [shape = 'f32[64,1]{1,0:T(8,128)}', space=vmem, size = 0x8000, scoped, tag = 'scratch operand']
  #allocation4 [shape = 'f32[64,128]{1,0:T(8,128)}', space=vmem, size = 0x8000, scoped, tag = 'scratch operand']
  %s0 = inlined_call_operand.vmem [shape: s8[256,256], index: 0, kind: input, shape index: {}]
  %s1 = inlined_call_operand.vmem [shape: bf16[256,128], index: 1, kind: input, shape index: {}]
  %s2 = inlined_call_operand.vmem [shape: f32[1,256], index: 2, kind: input, shape index: {}]
  %s3 = inlined_call_operand.vmem [shape: f32[256,1], index: 3, kind: input, shape index: {}]
  %s4 = inlined_call_operand.vmem [shape: f32[1,128], index: 4, kind: input, shape index: {}]
  %s5 = inlined_call_operand.vmem [shape: bf16[256,512], index: 5, kind: input, shape index: {}]
  %s6 = inlined_call_operand.vmem [shape: bf16[256,128], index: 6, kind: input, shape index: {}]
  %s7 = inlined_call_operand.vmem [shape: f32[256,128], index: 7, kind: input, shape index: {}]
  %s8 = inlined_call_operand.vmem [shape: f32[256,128], index: 8, kind: output, shape index: {0}]
  %s9 = inlined_call_operand.vmem [shape: f32[256,128], index: 9, kind: output, shape index: {1}]
  %10 = xla_tuple %s8, %s9
  %s11 = sld [smem:[#allocation0]]
  $region122: #{_geniepath_layer_impl.3} parent=0
    _
  %s13 = ssub.s32 1, %s11
  %s14 = scalar_select 0, %s13, %s11
  $region1: #{_geniepath_layer_impl.3} parent=0
    #allocation5 [shape = 'u8[16384]{0}', space=vmem, size = 0x4000, scoped, tag = 'input window, operand 0']
    loop: start=0, step=1, limit=10
    $region2: #{_geniepath_layer_impl.3} parent=1 // loop_pre_header
      _
    $region3: #{_geniepath_layer_impl.3} parent=1 // loop_header
      %s16 = sphi 0, %s20
      %p17 = scmp.ge.s32.totalorder %s16, 10
      %s23 = sphi 0, %s35
      %s24 = sphi 0, %s31
      %s25 = sphi 0, %s23
      %s26 = sphi 0, %s24
      %s27 = sphi 0, %s25
      %s28 = sphi 0, %s26
      %s40 = sphi 0, %s42
      %s43 = sphi 0, %s40
      %s44 = sphi 0, %s43
      %s60 = sphi 0, %s44
      %s66 = sphi 0, %s68
      %s69 = sphi 0, %s66
      %s70 = sphi 0, %s69
      %s86 = sphi 0, %s70
      %s92 = sphi 0, %s94
      %s95 = sphi 0, %s92
      %s96 = sphi 0, %s95
      %s112 = sphi 0, %s96
      %s118 = sphi 0, %s120
      %s121 = sphi 0, %s118
      %s122 = sphi 0, %s121
      %s138 = sphi 0, %s122
      %s142 = sphi 0, %s142
      %s144 = sphi 0, %s142
      %s145 = sphi 0, %s144
      %s159 = sphi 0, %s145
      %s163 = sphi 0, %s163
      %s165 = sphi 0, %s163
      %s166 = sphi 0, %s165
      %s180 = sphi 0, %s166
      %s186 = sphi 0, %s188
      %s189 = sphi 0, %s186
      %s190 = sphi 0, %s189
      %s206 = sphi 0, %s190
      %s212 = sphi 0, %s214
      %s215 = sphi 0, %s212
      %s216 = sphi 0, %s215
      %s232 = sphi 0, %s216
      %s238 = sphi 0, %s240
      %s241 = sphi 0, %s238
      %s242 = sphi 0, %s241
      %s258 = sphi 0, %s242
      %s264 = sphi 0, %s266
      %s267 = sphi 0, %s264
      %s268 = sphi 0, %s267
      %s284 = sphi 0, %s268
    $region4: #{_geniepath_layer_impl.3} parent=1 // loop_header_branch
      %19 = sbr.rel (%p17) target = $region8
    $region5: #{_geniepath_layer_impl.3} parent=1 // loop_body
      %s21 = ssub.s32 %s16, 1
      %s22 = ssub.s32 %s16, 2
      %s29 = sadd.s32 1, %s24
      %p30 = scmp.ge.s32.totalorder %s29, 2
      %s31 = scalar_select %p30, 0, %s29
      %s32 = sadd.s32 1, %s23
      %s33 = scalar_select %p30, %s32, %s23
      %p34 = scmp.ge.s32.totalorder %s33, 4
      %s35 = scalar_select %p34, 0, %s33
      %s36 = ssub.s32 %s23, %s35
      %s37 = ssub.s32 %s24, %s31
      %s38 = sor.u32 %s36, %s37
      %p39 = scmp.eq.s32.totalorder %s38, 0
      %s41 = sadd.s32 %s40, 1
      %s42 = scalar_select %p39, %s40, %s41
      %p45 = pneg %p39
      %p46 = scmp.eq.s32.totalorder %s16, 7
      %p47 = por %p45, %p46
      %p48 = scmp.ne.s32.totalorder %s40, %s43
      %p49 = scmp.eq.s32.totalorder %s16, 0
      %p50 = por %p48, %p49
      %p51 = scmp.ne.s32.totalorder %s40, %s43
      %p52 = scmp.eq.s32.totalorder %s21, 7
      %p53 = por %p51, %p52
      %p54 = scmp.ne.s32.totalorder %s43, %s44
      %p55 = scmp.eq.s32.totalorder %s21, 0
      %p56 = por %p54, %p55
      %p57 = scmp.ne.s32.totalorder %s43, %s44
      %p58 = scmp.eq.s32.totalorder %s22, 7
      %p59 = por %p57, %p58
      %p61 = scmp.ne.s32.totalorder %s44, %s60
      %p62 = scmp.eq.s32.totalorder %s22, 0
      %p63 = por %p61, %p62
      %s64 = ssub.s32 %s24, %s31
      %p65 = scmp.eq.s32.totalorder %s64, 0
      %s67 = sadd.s32 %s66, 1
      %s68 = scalar_select %p65, %s66, %s67
      %p71 = pneg %p65
      %p72 = scmp.eq.s32.totalorder %s16, 7
      %p73 = por %p71, %p72
      %p74 = scmp.ne.s32.totalorder %s66, %s69
      %p75 = scmp.eq.s32.totalorder %s16, 0
      %p76 = por %p74, %p75
      %p77 = scmp.ne.s32.totalorder %s66, %s69
      %p78 = scmp.eq.s32.totalorder %s21, 7
      %p79 = por %p77, %p78
      %p80 = scmp.ne.s32.totalorder %s69, %s70
      %p81 = scmp.eq.s32.totalorder %s21, 0
      %p82 = por %p80, %p81
      %p83 = scmp.ne.s32.totalorder %s69, %s70
      %p84 = scmp.eq.s32.totalorder %s22, 7
      %p85 = por %p83, %p84
      %p87 = scmp.ne.s32.totalorder %s70, %s86
      %p88 = scmp.eq.s32.totalorder %s22, 0
      %p89 = por %p87, %p88
      %s90 = ssub.s32 %s24, %s31
      %p91 = scmp.eq.s32.totalorder %s90, 0
      %s93 = sadd.s32 %s92, 1
      %s94 = scalar_select %p91, %s92, %s93
      %p97 = pneg %p91
      %p98 = scmp.eq.s32.totalorder %s16, 7
      %p99 = por %p97, %p98
      %p100 = scmp.ne.s32.totalorder %s92, %s95
      %p101 = scmp.eq.s32.totalorder %s16, 0
      %p102 = por %p100, %p101
      %p103 = scmp.ne.s32.totalorder %s92, %s95
      %p104 = scmp.eq.s32.totalorder %s21, 7
      %p105 = por %p103, %p104
      %p106 = scmp.ne.s32.totalorder %s95, %s96
      %p107 = scmp.eq.s32.totalorder %s21, 0
      %p108 = por %p106, %p107
      %p109 = scmp.ne.s32.totalorder %s95, %s96
      %p110 = scmp.eq.s32.totalorder %s22, 7
      %p111 = por %p109, %p110
      %p113 = scmp.ne.s32.totalorder %s96, %s112
      %p114 = scmp.eq.s32.totalorder %s22, 0
      %p115 = por %p113, %p114
      %s116 = ssub.s32 %s23, %s35
      %p117 = scmp.eq.s32.totalorder %s116, 0
      %s119 = sadd.s32 %s118, 1
      %s120 = scalar_select %p117, %s118, %s119
      %p123 = pneg %p117
      %p124 = scmp.eq.s32.totalorder %s16, 7
      %p125 = por %p123, %p124
      %p126 = scmp.ne.s32.totalorder %s118, %s121
      %p127 = scmp.eq.s32.totalorder %s16, 0
      %p128 = por %p126, %p127
      %p129 = scmp.ne.s32.totalorder %s118, %s121
      %p130 = scmp.eq.s32.totalorder %s21, 7
      %p131 = por %p129, %p130
      %p132 = scmp.ne.s32.totalorder %s121, %s122
      %p133 = scmp.eq.s32.totalorder %s21, 0
      %p134 = por %p132, %p133
      %p135 = scmp.ne.s32.totalorder %s121, %s122
      %p136 = scmp.eq.s32.totalorder %s22, 7
      %p137 = por %p135, %p136
      %p139 = scmp.ne.s32.totalorder %s122, %s138
      %p140 = scmp.eq.s32.totalorder %s22, 0
      %p141 = por %p139, %p140
      %s143 = sadd.s32 %s142, 1
      %p146 = scmp.eq.s32.totalorder %s16, 7
      %p147 = scmp.ne.s32.totalorder %s142, %s144
      %p148 = scmp.eq.s32.totalorder %s16, 0
      %p149 = por %p147, %p148
      %p150 = scmp.ne.s32.totalorder %s142, %s144
      %p151 = scmp.eq.s32.totalorder %s21, 7
      %p152 = por %p150, %p151
      %p153 = scmp.ne.s32.totalorder %s144, %s145
      %p154 = scmp.eq.s32.totalorder %s21, 0
      %p155 = por %p153, %p154
      %p156 = scmp.ne.s32.totalorder %s144, %s145
      %p157 = scmp.eq.s32.totalorder %s22, 7
      %p158 = por %p156, %p157
      %p160 = scmp.ne.s32.totalorder %s145, %s159
      %p161 = scmp.eq.s32.totalorder %s22, 0
      %p162 = por %p160, %p161
      %s164 = sadd.s32 %s163, 1
      %p167 = scmp.eq.s32.totalorder %s16, 7
      %p168 = scmp.ne.s32.totalorder %s163, %s165
      %p169 = scmp.eq.s32.totalorder %s16, 0
      %p170 = por %p168, %p169
      %p171 = scmp.ne.s32.totalorder %s163, %s165
      %p172 = scmp.eq.s32.totalorder %s21, 7
      %p173 = por %p171, %p172
      %p174 = scmp.ne.s32.totalorder %s165, %s166
      %p175 = scmp.eq.s32.totalorder %s21, 0
      %p176 = por %p174, %p175
      %p177 = scmp.ne.s32.totalorder %s165, %s166
      %p178 = scmp.eq.s32.totalorder %s22, 7
      %p179 = por %p177, %p178
      %p181 = scmp.ne.s32.totalorder %s166, %s180
      %p182 = scmp.eq.s32.totalorder %s22, 0
      %p183 = por %p181, %p182
      %s184 = ssub.s32 %s23, %s35
      %p185 = scmp.eq.s32.totalorder %s184, 0
      %s187 = sadd.s32 %s186, 1
      %s188 = scalar_select %p185, %s186, %s187
      %p191 = pneg %p185
      %p192 = scmp.eq.s32.totalorder %s16, 7
      %p193 = por %p191, %p192
      %p194 = scmp.ne.s32.totalorder %s186, %s189
      %p195 = scmp.eq.s32.totalorder %s16, 0
      %p196 = por %p194, %p195
      %p197 = scmp.ne.s32.totalorder %s186, %s189
      %p198 = scmp.eq.s32.totalorder %s21, 7
      %p199 = por %p197, %p198
      %p200 = scmp.ne.s32.totalorder %s189, %s190
      %p201 = scmp.eq.s32.totalorder %s21, 0
      %p202 = por %p200, %p201
      %p203 = scmp.ne.s32.totalorder %s189, %s190
      %p204 = scmp.eq.s32.totalorder %s22, 7
      %p205 = por %p203, %p204
      %p207 = scmp.ne.s32.totalorder %s190, %s206
      %p208 = scmp.eq.s32.totalorder %s22, 0
      %p209 = por %p207, %p208
      %s210 = ssub.s32 %s23, %s35
      %p211 = scmp.eq.s32.totalorder %s210, 0
      %s213 = sadd.s32 %s212, 1
      %s214 = scalar_select %p211, %s212, %s213
      %p217 = pneg %p211
      %p218 = scmp.eq.s32.totalorder %s16, 7
      %p219 = por %p217, %p218
      %p220 = scmp.ne.s32.totalorder %s212, %s215
      %p221 = scmp.eq.s32.totalorder %s16, 0
      %p222 = por %p220, %p221
      %p223 = scmp.ne.s32.totalorder %s212, %s215
      %p224 = scmp.eq.s32.totalorder %s21, 7
      %p225 = por %p223, %p224
      %p226 = scmp.ne.s32.totalorder %s215, %s216
      %p227 = scmp.eq.s32.totalorder %s21, 0
      %p228 = por %p226, %p227
      %p229 = scmp.ne.s32.totalorder %s215, %s216
      %p230 = scmp.eq.s32.totalorder %s22, 7
      %p231 = por %p229, %p230
      %p233 = scmp.ne.s32.totalorder %s216, %s232
      %p234 = scmp.eq.s32.totalorder %s22, 0
      %p235 = por %p233, %p234
      %s236 = ssub.s32 %s23, %s35
      %p237 = scmp.eq.s32.totalorder %s236, 0
      %s239 = sadd.s32 %s238, 1
      %s240 = scalar_select %p237, %s238, %s239
      %p243 = pneg %p237
      %p244 = scmp.eq.s32.totalorder %s16, 7
      %p245 = por %p243, %p244
      %p246 = scmp.ne.s32.totalorder %s238, %s241
      %p247 = scmp.eq.s32.totalorder %s16, 0
      %p248 = por %p246, %p247
      %p249 = scmp.ne.s32.totalorder %s238, %s241
      %p250 = scmp.eq.s32.totalorder %s21, 7
      %p251 = por %p249, %p250
      %p252 = scmp.ne.s32.totalorder %s241, %s242
      %p253 = scmp.eq.s32.totalorder %s21, 0
      %p254 = por %p252, %p253
      %p255 = scmp.ne.s32.totalorder %s241, %s242
      %p256 = scmp.eq.s32.totalorder %s22, 7
      %p257 = por %p255, %p256
      %p259 = scmp.ne.s32.totalorder %s242, %s258
      %p260 = scmp.eq.s32.totalorder %s22, 0
      %p261 = por %p259, %p260
      %s262 = ssub.s32 %s23, %s35
      %p263 = scmp.eq.s32.totalorder %s262, 0
      %s265 = sadd.s32 %s264, 1
      %s266 = scalar_select %p263, %s264, %s265
      %p269 = pneg %p263
      %p270 = scmp.eq.s32.totalorder %s16, 7
      %p271 = por %p269, %p270
      %p272 = scmp.ne.s32.totalorder %s264, %s267
      %p273 = scmp.eq.s32.totalorder %s16, 0
      %p274 = por %p272, %p273
      %p275 = scmp.ne.s32.totalorder %s264, %s267
      %p276 = scmp.eq.s32.totalorder %s21, 7
      %p277 = por %p275, %p276
      %p278 = scmp.ne.s32.totalorder %s267, %s268
      %p279 = scmp.eq.s32.totalorder %s21, 0
      %p280 = por %p278, %p279
      %p281 = scmp.ne.s32.totalorder %s267, %s268
      %p282 = scmp.eq.s32.totalorder %s22, 7
      %p283 = por %p281, %p282
      %p285 = scmp.ne.s32.totalorder %s268, %s284
      %p286 = scmp.eq.s32.totalorder %s22, 0
      %p287 = por %p285, %p286
      %p288 = scmp.le.s32.totalorder 1, %s16
      %p289 = scmp.lt.s32.totalorder %s16, 9
      %p290 = pnand %p288, %p289
      %p291 = pneg %p290
      // Predicated region
      $region9: #{_geniepath_layer_impl.3} parent=5 // pred_check
        _
      $region10: #{_geniepath_layer_impl.3} parent=5 // pred_check_branch
        %293 = sbr.rel (%p290) target = $region12
      $region11: #{_geniepath_layer_impl.3} parent=5 // pred_region
        %s294 = ssub.s32 %s16, 1
        // Predicated region
        $region13: #{_geniepath_layer_impl.3} parent=11 // pred_check
          %p295 = pneg %p155
        $region14: #{_geniepath_layer_impl.3} parent=11 // pred_check_branch
          %297 = sbr.rel (%p295) target = $region16
        $region15: #{_geniepath_layer_impl.3} parent=11 // pred_region
          _
        $region16: #{_geniepath_layer_impl.3} parent=11 // pred_fallthru
          _
        // Predicated region
        $region17: #{_geniepath_layer_impl.3} parent=11 // pred_check
          %p298 = pneg %p176
        $region18: #{_geniepath_layer_impl.3} parent=11 // pred_check_branch
          %300 = sbr.rel (%p298) target = $region20
        $region19: #{_geniepath_layer_impl.3} parent=11 // pred_region
          _
        $region20: #{_geniepath_layer_impl.3} parent=11 // pred_fallthru
          _
      $region12: #{_geniepath_layer_impl.3} parent=5 // pred_fallthru
        _
      %p301 = scmp.lt.s32.totalorder %s16, 8
      // Predicated region
      $region21: #{_geniepath_layer_impl.3} parent=5 // pred_check
        %p302 = pneg %p301
      $region22: #{_geniepath_layer_impl.3} parent=5 // pred_check_branch
        %304 = sbr.rel (%p302) target = $region24
      $region23: #{_geniepath_layer_impl.3} parent=5 // pred_region
        // Predicated region
        $region25: #{_geniepath_layer_impl.3} parent=23 // pred_check
          %p305 = pneg %p50
        $region26: #{_geniepath_layer_impl.3} parent=23 // pred_check_branch
          %307 = sbr.rel (%p305) target = $region28
        $region27: #{_geniepath_layer_impl.3} parent=23 // pred_region
          %s308 = sand.u32 %s40, 1
          %s309 = sand.u32 %s40, 1
          %s310 = smul.addr %s309, 16
          %s311 = scalar_lea.vmem [#allocation5], %s310
          %s312 = smul.u32 8, %s23
          %s313 = smul.addr %s312, 2
          %s314 = sadd.s32 %s24, %s313
          %s315 = smul.addr %s314, 2
          %s316 = scalar_lea.vmem %s0, %s315
          // Predicated region
          $region29: #{_geniepath_layer_impl.3} parent=27 // pred_check
            _
          $region30: #{_geniepath_layer_impl.3} parent=27 // pred_check_branch
            %318 = sbr.rel (0) target = $region32
          $region31: #{_geniepath_layer_impl.3} parent=27 // pred_region
            // Predicated region
            $region33: #{_geniepath_layer_impl.3} parent=31 // pred_check
              _
            $region34: #{_geniepath_layer_impl.3} parent=31 // pred_check_branch
              %320 = sbr.rel target = $region36
            $region35: #{_geniepath_layer_impl.3} parent=31 // pred_region
              // Predicated region
              $region48: #{_geniepath_layer_impl.3} parent=35 // pred_check
                _
              $region49: #{_geniepath_layer_impl.3} parent=35 // pred_check_branch
                %350 = sbr.rel (0) target = $region51
              $region50: #{_geniepath_layer_impl.3} parent=35 // pred_region
                loop: start=0, step=1, limit=1
                $region52: #{_geniepath_layer_impl.3} parent=50 // loop_pre_header
                  _
                $region53: #{_geniepath_layer_impl.3} parent=50 // loop_header
                  %s352 = sphi 0, %s356
                  %p353 = scmp.ge.s32.totalorder %s352, 1
                  %s357 = sphi %s316, %s316
                  %s358 = sphi %s311, %s311
                $region54: #{_geniepath_layer_impl.3} parent=50 // loop_header_branch
                  %355 = sbr.rel (%p353) target = $region58
                $region55: #{_geniepath_layer_impl.3} parent=50 // loop_body
                  _
                $region56: #{_geniepath_layer_impl.3} parent=50 // loop_footer
                  %s356 = sadd.s32 1, %s352
                $region57: #{_geniepath_layer_impl.3} parent=50 // loop_footer_branch
                  %351 = sbr.rel target = $region53
                $region58: #{_geniepath_layer_impl.3} parent=50 // loop_exit
                  _
                %s360 = ssub.s32 4, 1
                loop: start=0, step=1, limit=1
                $region59: #{_geniepath_layer_impl.3} parent=50 // loop_pre_header
                  _
                $region60: #{_geniepath_layer_impl.3} parent=50 // loop_header
                  %s362 = sphi 0, %s366
                  %p363 = scmp.ge.s32.totalorder %s362, 1
                  %s367 = sphi %s316, %s316
                  %s368 = sphi %s311, %s311
                $region61: #{_geniepath_layer_impl.3} parent=50 // loop_header_branch
                  %365 = sbr.rel (%p363) target = $region65
                $region62: #{_geniepath_layer_impl.3} parent=50 // loop_body
                  %v369 = vld [vmem:[%s367] sm:%s360]
                  %370 = vst [vmem:[%s368] sm:%s360] %v369
                  %v371 = vld [vmem:[%s367 + $0x4] sm:%s360]
                  %372 = vst [vmem:[%s368 + $0x2] sm:%s360] %v371
                  %v373 = vld [vmem:[%s367 + $0x8] sm:%s360]
                  %374 = vst [vmem:[%s368 + $0x4] sm:%s360] %v373
                  %v375 = vld [vmem:[%s367 + $0xc] sm:%s360]
                  %376 = vst [vmem:[%s368 + $0x6] sm:%s360] %v375
                  %v377 = vld [vmem:[%s367 + $0x10] sm:%s360]
                  %378 = vst [vmem:[%s368 + $0x8] sm:%s360] %v377
                  %v379 = vld [vmem:[%s367 + $0x14] sm:%s360]
                  %380 = vst [vmem:[%s368 + $0xa] sm:%s360] %v379
                  %v381 = vld [vmem:[%s367 + $0x18] sm:%s360]
                  %382 = vst [vmem:[%s368 + $0xc] sm:%s360] %v381
                  %v383 = vld [vmem:[%s367 + $0x1c] sm:%s360]
                  %384 = vst [vmem:[%s368 + $0xe] sm:%s360] %v383
                $region63: #{_geniepath_layer_impl.3} parent=50 // loop_footer
                  %s366 = sadd.s32 1, %s362
                $region64: #{_geniepath_layer_impl.3} parent=50 // loop_footer_branch
                  %361 = sbr.rel target = $region60
                $region65: #{_geniepath_layer_impl.3} parent=50 // loop_exit
                  _
              $region51: #{_geniepath_layer_impl.3} parent=35 // pred_fallthru
                _
            $region36: #{_geniepath_layer_impl.3} parent=31 // pred_fallthru
              _
            // Predicated region
            $region37: #{_geniepath_layer_impl.3} parent=31 // pred_check
              _
            $region38: #{_geniepath_layer_impl.3} parent=31 // pred_check_branch
              %322 = sbr.rel (0) target = $region40
            $region39: #{_geniepath_layer_impl.3} parent=31 // pred_region
              %s324 = ssub.s32 4, 1
              loop: start=0, step=1, limit=1
              $region41: #{_geniepath_layer_impl.3} parent=39 // loop_pre_header
                _
              $region42: #{_geniepath_layer_impl.3} parent=39 // loop_header
                %s326 = sphi 0, %s330
                %p327 = scmp.ge.s32.totalorder %s326, 1
                %s331 = sphi %s316, %s316
                %s332 = sphi %s311, %s311
              $region43: #{_geniepath_layer_impl.3} parent=39 // loop_header_branch
                %329 = sbr.rel (%p327) target = $region47
              $region44: #{_geniepath_layer_impl.3} parent=39 // loop_body
                %v333 = vld [vmem:[%s331] sm:%s324]
                %334 = vst [vmem:[%s332] sm:%s324] %v333
                %v335 = vld [vmem:[%s331 + $0x4] sm:%s324]
                %336 = vst [vmem:[%s332 + $0x2] sm:%s324] %v335
                %v337 = vld [vmem:[%s331 + $0x8] sm:%s324]
                %338 = vst [vmem:[%s332 + $0x4] sm:%s324] %v337
                %v339 = vld [vmem:[%s331 + $0xc] sm:%s324]
                %340 = vst [vmem:[%s332 + $0x6] sm:%s324] %v339
                %v341 = vld [vmem:[%s331 + $0x10] sm:%s324]
                %342 = vst [vmem:[%s332 + $0x8] sm:%s324] %v341
                %v343 = vld [vmem:[%s331 + $0x14] sm:%s324]
                %344 = vst [vmem:[%s332 + $0xa] sm:%s324] %v343
                %v345 = vld [vmem:[%s331 + $0x18] sm:%s324]
                %346 = vst [vmem:[%s332 + $0xc] sm:%s324] %v345
                %v347 = vld [vmem:[%s331 + $0x1c] sm:%s324]
                %348 = vst [vmem:[%s332 + $0xe] sm:%s324] %v347
              $region45: #{_geniepath_layer_impl.3} parent=39 // loop_footer
                %s330 = sadd.s32 1, %s326
              $region46: #{_geniepath_layer_impl.3} parent=39 // loop_footer_branch
                %325 = sbr.rel target = $region42
              $region47: #{_geniepath_layer_impl.3} parent=39 // loop_exit
                _
            $region40: #{_geniepath_layer_impl.3} parent=31 // pred_fallthru
              _
          $region32: #{_geniepath_layer_impl.3} parent=27 // pred_fallthru
            _
          %385 = vnop
        $region28: #{_geniepath_layer_impl.3} parent=23 // pred_fallthru
          _
        // Predicated region
        $region66: #{_geniepath_layer_impl.3} parent=23 // pred_check
          %p386 = pneg %p76
        $region67: #{_geniepath_layer_impl.3} parent=23 // pred_check_branch
          %388 = sbr.rel (%p386) target = $region69
        $region68: #{_geniepath_layer_impl.3} parent=23 // pred_region
          %s389 = smul.u32 16, %s24
          %p390 = scmp.lt.s32.totalorder %s389, 31
          %s391 = scalar_select %p390, %s389, 31
          %s392 = smul.addr %s391, 4
          %s393 = scalar_lea.vmem %s1, %s392
          %s394 = smul.u32 16, %s24
        $region69: #{_geniepath_layer_impl.3} parent=23 // pred_fallthru
          _
        // Predicated region
        $region70: #{_geniepath_layer_impl.3} parent=23 // pred_check
          %p395 = pneg %p102
        $region71: #{_geniepath_layer_impl.3} parent=23 // pred_check_branch
          %397 = sbr.rel (%p395) target = $region73
        $region72: #{_geniepath_layer_impl.3} parent=23 // pred_region
          %p398 = scmp.lt.s32.totalorder %s24, 1
          %s399 = scalar_select %p398, %s24, 1
          %s400 = scalar_lea.vmem %s2, %s399
        $region73: #{_geniepath_layer_impl.3} parent=23 // pred_fallthru
          _
        // Predicated region
        $region74: #{_geniepath_layer_impl.3} parent=23 // pred_check
          %p401 = pneg %p128
        $region75: #{_geniepath_layer_impl.3} parent=23 // pred_check_branch
          %403 = sbr.rel (%p401) target = $region77
        $region76: #{_geniepath_layer_impl.3} parent=23 // pred_region
          %s404 = smul.u32 8, %s23
          %p405 = scmp.lt.s32.totalorder %s404, 31
          %s406 = scalar_select %p405, %s404, 31
          %s407 = smul.addr %s406, 8
          %s408 = scalar_lea.vmem %s3, %s407
          %s409 = smul.u32 8, %s23
        $region77: #{_geniepath_layer_impl.3} parent=23 // pred_fallthru
          _
        // Predicated region
        $region78: #{_geniepath_layer_impl.3} parent=23 // pred_check
          %p410 = pneg %p196
        $region79: #{_geniepath_layer_impl.3} parent=23 // pred_check_branch
          %412 = sbr.rel (%p410) target = $region81
        $region80: #{_geniepath_layer_impl.3} parent=23 // pred_region
          %s413 = smul.u32 8, %s23
          %p414 = scmp.lt.s32.totalorder %s413, 31
          %s415 = scalar_select %p414, %s413, 31
          %s416 = smul.addr %s415, 4
          %s417 = scalar_lea.vmem %s6, %s416
          %s418 = smul.u32 8, %s23
        $region81: #{_geniepath_layer_impl.3} parent=23 // pred_fallthru
          _
        // Predicated region
        $region82: #{_geniepath_layer_impl.3} parent=23 // pred_check
          %p419 = pneg %p222
        $region83: #{_geniepath_layer_impl.3} parent=23 // pred_check_branch
          %421 = sbr.rel (%p419) target = $region85
        $region84: #{_geniepath_layer_impl.3} parent=23 // pred_region
          %s422 = smul.u32 8, %s23
          %p423 = scmp.lt.s32.totalorder %s422, 31
          %s424 = scalar_select %p423, %s422, 31
          %s425 = smul.addr %s424, 8
          %s426 = scalar_lea.vmem %s7, %s425
          %s427 = smul.u32 8, %s23
        $region85: #{_geniepath_layer_impl.3} parent=23 // pred_fallthru
          _
      $region24: #{_geniepath_layer_impl.3} parent=5 // pred_fallthru
        _
      %p428 = scmp.le.s32.totalorder 1, %s16
      %p429 = scmp.lt.s32.totalorder %s16, 9
      %p430 = pnand %p428, %p429
      %p431 = pneg %p430
      // Predicated region
      $region86: #{_geniepath_layer_impl.3} parent=5 // pred_check
        _
      $region87: #{_geniepath_layer_impl.3} parent=5 // pred_check_branch
        %433 = sbr.rel (%p430) target = $region89
      $region88: #{_geniepath_layer_impl.3} parent=5 // pred_region
        %s434 = ssub.s32 %s16, 1
        %s435 = sand.u32 %s43, 1
        %s436 = sand.u32 %s43, 1
        %s437 = smul.addr %s436, 16
        %s438 = scalar_lea.vmem [#allocation5], %s437
        // Predicated region
        $region90: #{_geniepath_layer_impl.3} parent=88 // pred_check
          %p439 = pneg %p56
        $region91: #{_geniepath_layer_impl.3} parent=88 // pred_check_branch
          %441 = sbr.rel (%p439) target = $region93
        $region92: #{_geniepath_layer_impl.3} parent=88 // pred_region
          _
        $region93: #{_geniepath_layer_impl.3} parent=88 // pred_fallthru
          _
        %s442 = sand.u32 %s43, 1
        %s443 = sand.u32 %s43, 1
        %s444 = smul.addr %s443, 16
        %s445 = scalar_lea.vmem [#allocation5], %s444
        %p446 = pneg %p56
        %p447 = pneg %p53
        %s448 = smul.u32 16, %s26
        %p449 = scmp.lt.s32.totalorder %s448, 31
        %s450 = scalar_select %p449, %s448, 31
        %s451 = smul.addr %s450, 4
        %s452 = scalar_lea.vmem %s1, %s451
        %p453 = pneg %p82
        %p454 = pneg %p79
        %p455 = scmp.lt.s32.totalorder %s26, 1
        %s456 = scalar_select %p455, %s26, 1
        %s457 = scalar_lea.vmem %s2, %s456
        %p458 = pneg %p108
        %p459 = pneg %p105
        %s460 = smul.u32 8, %s25
        %p461 = scmp.lt.s32.totalorder %s460, 31
        %s462 = scalar_select %p461, %s460, 31
        %s463 = smul.addr %s462, 8
        %s464 = scalar_lea.vmem %s3, %s463
        %p465 = pneg %p134
        %p466 = pneg %p131
        %p467 = pneg %p155
        %p468 = pneg %p152
        %p469 = pneg %p176
        %p470 = pneg %p173
        %s471 = smul.u32 8, %s25
        %p472 = scmp.lt.s32.totalorder %s471, 31
        %s473 = scalar_select %p472, %s471, 31
        %s474 = smul.addr %s473, 4
        %s475 = scalar_lea.vmem %s6, %s474
        %p476 = pneg %p202
        %p477 = pneg %p199
        %s478 = smul.u32 8, %s25
        %p479 = scmp.lt.s32.totalorder %s478, 31
        %s480 = scalar_select %p479, %s478, 31
        %s481 = smul.addr %s480, 8
        %s482 = scalar_lea.vmem %s7, %s481
        %p483 = pneg %p228
        %p484 = pneg %p225
        %p485 = pneg %p254
        %p486 = pneg %p251
        %s487 = smul.u32 8, %s25
        %p488 = scmp.lt.s32.totalorder %s487, 31
        %s489 = scalar_select %p488, %s487, 31
        %s490 = smul.addr %s489, 8
        %s491 = scalar_lea.vmem %s8, %s490
        %p492 = pneg %p280
        %p493 = pneg %p277
        %s494 = smul.u32 8, %s25
        %p495 = scmp.lt.s32.totalorder %s494, 31
        %s496 = scalar_select %p495, %s494, 31
        %s497 = smul.addr %s496, 8
        %s498 = scalar_lea.vmem %s9, %s497
        %s499 = smul.u32 8, %s25
        %s500 = smul.u32 16, %s26
        %p501 = scmp.lt.s32.totalorder %s500, 31
        %s502 = scalar_select %p501, %s500, 31
        %s503 = smul.addr %s502, 4
        %s504 = scalar_lea.vmem %s1, %s503
        %s505 = smul.u32 16, %s26
        %p506 = scmp.lt.s32.totalorder %s26, 1
        %s507 = scalar_select %p506, %s26, 1
        %s508 = scalar_lea.vmem %s2, %s507
        %s509 = smul.u32 8, %s25
        %p510 = scmp.lt.s32.totalorder %s509, 31
        %s511 = scalar_select %p510, %s509, 31
        %s512 = smul.addr %s511, 8
        %s513 = scalar_lea.vmem %s3, %s512
        %s514 = smul.u32 8, %s25
        %s515 = smul.u32 8, %s25
        %p516 = scmp.lt.s32.totalorder %s515, 31
        %s517 = scalar_select %p516, %s515, 31
        %s518 = smul.addr %s517, 4
        %s519 = scalar_lea.vmem %s6, %s518
        %s520 = smul.u32 8, %s25
        %s521 = smul.u32 8, %s25
        %p522 = scmp.lt.s32.totalorder %s521, 31
        %s523 = scalar_select %p522, %s521, 31
        %s524 = smul.addr %s523, 8
        %s525 = scalar_lea.vmem %s7, %s524
        %s526 = smul.u32 8, %s25
        %s527 = smul.u32 8, %s25
        %p528 = scmp.lt.s32.totalorder %s527, 31
        %s529 = scalar_select %p528, %s527, 31
        %s530 = smul.addr %s529, 8
        %s531 = scalar_lea.vmem %s8, %s530
        %s532 = smul.u32 8, %s25
        %s533 = smul.u32 8, %s25
        %p534 = scmp.lt.s32.totalorder %s533, 31
        %s535 = scalar_select %p534, %s533, 31
        %s536 = smul.addr %s535, 8
        %s537 = scalar_lea.vmem %s9, %s536
        %s538 = smul.u32 8, %s25
        %p541 = scmp.eq.s32.totalorder %s26, 0
        // Predicated region
        $region94: #{_geniepath_layer_impl.3} parent=88 // pred_check
          %p542 = pneg %p541
        $region95: #{_geniepath_layer_impl.3} parent=88 // pred_check_branch
          %544 = sbr.rel (%p542) target = $region97
        $region96: #{_geniepath_layer_impl.3} parent=88 // pred_region
          %vm545 = vcmask 7168
          %546 = vst.msk [vmem:[#allocation2] sm:$0xff] %vm545, -1e+09
          %547 = vst.msk [vmem:[#allocation2 + $0x8] sm:$0xff] %vm545, -1e+09
          %548 = vst.msk [vmem:[#allocation2 + $0x10] sm:$0xff] %vm545, -1e+09
          %549 = vst.msk [vmem:[#allocation2 + $0x18] sm:$0xff] %vm545, -1e+09
          %550 = vst.msk [vmem:[#allocation2 + $0x20] sm:$0xff] %vm545, -1e+09
          %551 = vst.msk [vmem:[#allocation2 + $0x28] sm:$0xff] %vm545, -1e+09
          %552 = vst.msk [vmem:[#allocation2 + $0x30] sm:$0xff] %vm545, -1e+09
          %553 = vst.msk [vmem:[#allocation2 + $0x38] sm:$0xff] %vm545, -1e+09
          %554 = vst.msk [vmem:[#allocation3] sm:$0xff] %vm545, 0.0
          %555 = vst.msk [vmem:[#allocation3 + $0x8] sm:$0xff] %vm545, 0.0
          %556 = vst.msk [vmem:[#allocation3 + $0x10] sm:$0xff] %vm545, 0.0
          %557 = vst.msk [vmem:[#allocation3 + $0x18] sm:$0xff] %vm545, 0.0
          %558 = vst.msk [vmem:[#allocation3 + $0x20] sm:$0xff] %vm545, 0.0
          %559 = vst.msk [vmem:[#allocation3 + $0x28] sm:$0xff] %vm545, 0.0
          %560 = vst.msk [vmem:[#allocation3 + $0x30] sm:$0xff] %vm545, 0.0
          %561 = vst.msk [vmem:[#allocation3 + $0x38] sm:$0xff] %vm545, 0.0
          %562 = vst [vmem:[#allocation4] sm:$0xff] 0.0
          %563 = vst [vmem:[#allocation4 + $0x8] sm:$0xff] 0.0
          %564 = vst [vmem:[#allocation4 + $0x10] sm:$0xff] 0.0
          %565 = vst [vmem:[#allocation4 + $0x18] sm:$0xff] 0.0
          %566 = vst [vmem:[#allocation4 + $0x20] sm:$0xff] 0.0
          %567 = vst [vmem:[#allocation4 + $0x28] sm:$0xff] 0.0
          %568 = vst [vmem:[#allocation4 + $0x30] sm:$0xff] 0.0
          %569 = vst [vmem:[#allocation4 + $0x38] sm:$0xff] 0.0
        $region97: #{_geniepath_layer_impl.3} parent=88 // pred_fallthru
          _
        %v570 = vld [vmem:[%s438] sm:$0x3]
        %v571 = vld [vmem:[%s438 + $0x2] sm:$0x3]
        %v572 = vld [vmem:[%s438 + $0x4] sm:$0x3]
        %v573 = vld [vmem:[%s438 + $0x6] sm:$0x3]
        %v574 = vld [vmem:[%s438 + $0x8] sm:$0x3]
        %v575 = vld [vmem:[%s438 + $0xa] sm:$0x3]
        %v576 = vld [vmem:[%s438 + $0xc] sm:$0x3]
        %v577 = vld [vmem:[%s438 + $0xe] sm:$0x3]
        %vm578 = vnez %v570
        %vm579 = vnez %v571
        %vm580 = vnez %v572
        %vm581 = vnez %v573
        %vm582 = vnez %v574
        %vm583 = vnez %v575
        %vm584 = vnez %v576
        %vm585 = vnez %v577
        %v586 = vld [vmem:[%s513] sm:$0xff]
        %v587 = vld [vmem:[%s513 + $0x8] sm:$0xff]
        %v588 = vld [vmem:[%s513 + $0x10] sm:$0xff]
        %v589 = vld [vmem:[%s513 + $0x18] sm:$0xff]
        %v590 = vld [vmem:[%s513 + $0x20] sm:$0xff]
        %v591 = vld [vmem:[%s513 + $0x28] sm:$0xff]
        %v592 = vld [vmem:[%s513 + $0x30] sm:$0xff]
        %v593 = vld [vmem:[%s513 + $0x38] sm:$0xff]
        %v594 = vld [vmem:[%s508] sm:$0x1]
        %596 = vset.pattern.permute.xlu0 0
        %597 = vperm.xlu0 %596, %v586
        %v598 = vpop.permute.xlu0 %597
        %601 = vset.pattern.permute.xlu0 0
        %602 = vperm.xlu0 %601, %v587
        %v603 = vpop.permute.xlu0 %602
        %606 = vset.pattern.permute.xlu0 0
        %607 = vperm.xlu0 %606, %v588
        %v608 = vpop.permute.xlu0 %607
        %611 = vset.pattern.permute.xlu0 0
        %612 = vperm.xlu0 %611, %v589
        %v613 = vpop.permute.xlu0 %612
        %616 = vset.pattern.permute.xlu0 0
        %617 = vperm.xlu0 %616, %v590
        %v618 = vpop.permute.xlu0 %617
        %621 = vset.pattern.permute.xlu0 0
        %622 = vperm.xlu0 %621, %v591
        %v623 = vpop.permute.xlu0 %622
        %626 = vset.pattern.permute.xlu0 0
        %627 = vperm.xlu0 %626, %v592
        %v628 = vpop.permute.xlu0 %627
        %631 = vset.pattern.permute.xlu0 0
        %632 = vperm.xlu0 %631, %v593
        %v633 = vpop.permute.xlu0 %632
        %v636 = vperm.slane %v594, 0
        %v638 = vadd.f32 %v598, %v636
        %v639 = vadd.f32 %v603, %v636
        %v640 = vadd.f32 %v608, %v636
        %v641 = vadd.f32 %v613, %v636
        %v642 = vadd.f32 %v618, %v636
        %v643 = vadd.f32 %v623, %v636
        %v644 = vadd.f32 %v628, %v636
        %v645 = vadd.f32 %v633, %v636
        %v646 = vmul.f32 %v638, 0.2
        %v647 = vmul.f32 %v639, 0.2
        %v648 = vmul.f32 %v640, 0.2
        %v649 = vmul.f32 %v641, 0.2
        %v650 = vmul.f32 %v642, 0.2
        %v651 = vmul.f32 %v643, 0.2
        %v652 = vmul.f32 %v644, 0.2
        %v653 = vmul.f32 %v645, 0.2
        %v654 = vmax.f32 %v638, %v646
        %v655 = vmax.f32 %v639, %v647
        %v656 = vmax.f32 %v640, %v648
        %v657 = vmax.f32 %v641, %v649
        %v658 = vmax.f32 %v642, %v650
        %v659 = vmax.f32 %v643, %v651
        %v660 = vmax.f32 %v644, %v652
        %v661 = vmax.f32 %v645, %v653
        %v662 = vsel %vm578, 16843009, 0
        %v663 = vsel %vm579, 16843009, 0
        %v664 = vsel %vm580, 16843009, 0
        %v665 = vsel %vm581, 16843009, 0
        %v666 = vsel %vm582, 16843009, 0
        %v667 = vsel %vm583, 16843009, 0
        %v668 = vsel %vm584, 16843009, 0
        %v669 = vsel %vm585, 16843009, 0
        %v670 = vunpack.c.0.s8 %v662
        %v671 = vunpack.c.0.s8 %v663
        %v672 = vunpack.c.0.s8 %v664
        %v673 = vunpack.c.0.s8 %v665
        %v674 = vunpack.c.0.s8 %v666
        %v675 = vunpack.c.0.s8 %v667
        %v676 = vunpack.c.0.s8 %v668
        %v677 = vunpack.c.0.s8 %v669
        %vm678 = vcmp.ne.s32.totalorder %v670, 0
        %vm679 = vcmp.ne.s32.totalorder %v671, 0
        %vm680 = vcmp.ne.s32.totalorder %v672, 0
        %vm681 = vcmp.ne.s32.totalorder %v673, 0
        %vm682 = vcmp.ne.s32.totalorder %v674, 0
        %vm683 = vcmp.ne.s32.totalorder %v675, 0
        %vm684 = vcmp.ne.s32.totalorder %v676, 0
        %vm685 = vcmp.ne.s32.totalorder %v677, 0
        %v686 = vsel %vm678, %v654, -1e+30
        %v687 = vsel %vm679, %v655, -1e+30
        %v688 = vsel %vm680, %v656, -1e+30
        %v689 = vsel %vm681, %v657, -1e+30
        %v690 = vsel %vm682, %v658, -1e+30
        %v691 = vsel %vm683, %v659, -1e+30
        %v692 = vsel %vm684, %v660, -1e+30
        %v693 = vsel %vm685, %v661, -1e+30
        %694 = vmax.xlane.f32.xlu0 %v686
        %v695 = vpop.xlane.xlu0 %694
        %696 = vmax.xlane.f32.xlu0 %v687
        %v697 = vpop.xlane.xlu0 %696
        %698 = vmax.xlane.f32.xlu0 %v688
        %v699 = vpop.xlane.xlu0 %698
        %700 = vmax.xlane.f32.xlu0 %v689
        %v701 = vpop.xlane.xlu0 %700
        %702 = vmax.xlane.f32.xlu0 %v690
        %v703 = vpop.xlane.xlu0 %702
        %704 = vmax.xlane.f32.xlu0 %v691
        %v705 = vpop.xlane.xlu0 %704
        %706 = vmax.xlane.f32.xlu0 %v692
        %v707 = vpop.xlane.xlu0 %706
        %708 = vmax.xlane.f32.xlu0 %v693
        %v709 = vpop.xlane.xlu0 %708
        %v710 = vld [vmem:[#allocation2] sm:$0xff]
        %v711 = vld [vmem:[#allocation2 + $0x8] sm:$0xff]
        %v712 = vld [vmem:[#allocation2 + $0x10] sm:$0xff]
        %v713 = vld [vmem:[#allocation2 + $0x18] sm:$0xff]
        %v714 = vld [vmem:[#allocation2 + $0x20] sm:$0xff]
        %v715 = vld [vmem:[#allocation2 + $0x28] sm:$0xff]
        %v716 = vld [vmem:[#allocation2 + $0x30] sm:$0xff]
        %v717 = vld [vmem:[#allocation2 + $0x38] sm:$0xff]
        %v718 = vmax.f32 %v710, %v695
        %v719 = vmax.f32 %v711, %v697
        %v720 = vmax.f32 %v712, %v699
        %v721 = vmax.f32 %v713, %v701
        %v722 = vmax.f32 %v714, %v703
        %v723 = vmax.f32 %v715, %v705
        %v724 = vmax.f32 %v716, %v707
        %v725 = vmax.f32 %v717, %v709
        %v726 = vsub.f32 %v710, %v718
        %v727 = vsub.f32 %v711, %v719
        %v728 = vsub.f32 %v712, %v720
        %v729 = vsub.f32 %v713, %v721
        %v730 = vsub.f32 %v714, %v722
        %v731 = vsub.f32 %v715, %v723
        %v732 = vsub.f32 %v716, %v724
        %v733 = vsub.f32 %v717, %v725
        %v734 = vmul.f32 %v726, 1.442695
        %v735 = vpow.pop %v734
        %v736 = vmul.f32 %v727, 1.442695
        %v737 = vpow.pop %v736
        %v738 = vmul.f32 %v728, 1.442695
        %v739 = vpow.pop %v738
        %v740 = vmul.f32 %v729, 1.442695
        %v741 = vpow.pop %v740
        %v742 = vmul.f32 %v730, 1.442695
        %v743 = vpow.pop %v742
        %v744 = vmul.f32 %v731, 1.442695
        %v745 = vpow.pop %v744
        %v746 = vmul.f32 %v732, 1.442695
        %v747 = vpow.pop %v746
        %v748 = vmul.f32 %v733, 1.442695
        %v749 = vpow.pop %v748
        %751 = vset.pattern.permute.xlu0 0
        %752 = vperm.xlu0 %751, %v718
        %v753 = vpop.permute.xlu0 %752
        %756 = vset.pattern.permute.xlu0 0
        %757 = vperm.xlu0 %756, %v719
        %v758 = vpop.permute.xlu0 %757
        %761 = vset.pattern.permute.xlu0 0
        %762 = vperm.xlu0 %761, %v720
        %v763 = vpop.permute.xlu0 %762
        %766 = vset.pattern.permute.xlu0 0
        %767 = vperm.xlu0 %766, %v721
        %v768 = vpop.permute.xlu0 %767
        %771 = vset.pattern.permute.xlu0 0
        %772 = vperm.xlu0 %771, %v722
        %v773 = vpop.permute.xlu0 %772
        %776 = vset.pattern.permute.xlu0 0
        %777 = vperm.xlu0 %776, %v723
        %v778 = vpop.permute.xlu0 %777
        %781 = vset.pattern.permute.xlu0 0
        %782 = vperm.xlu0 %781, %v724
        %v783 = vpop.permute.xlu0 %782
        %786 = vset.pattern.permute.xlu0 0
        %787 = vperm.xlu0 %786, %v725
        %v788 = vpop.permute.xlu0 %787
        %v790 = vsub.f32 %v686, %v753
        %v791 = vsub.f32 %v687, %v758
        %v792 = vsub.f32 %v688, %v763
        %v793 = vsub.f32 %v689, %v768
        %v794 = vsub.f32 %v690, %v773
        %v795 = vsub.f32 %v691, %v778
        %v796 = vsub.f32 %v692, %v783
        %v797 = vsub.f32 %v693, %v788
        %v798 = vmul.f32 %v790, 1.442695
        %v799 = vpow.pop %v798
        %v800 = vmul.f32 %v791, 1.442695
        %v801 = vpow.pop %v800
        %v802 = vmul.f32 %v792, 1.442695
        %v803 = vpow.pop %v802
        %v804 = vmul.f32 %v793, 1.442695
        %v805 = vpow.pop %v804
        %v806 = vmul.f32 %v794, 1.442695
        %v807 = vpow.pop %v806
        %v808 = vmul.f32 %v795, 1.442695
        %v809 = vpow.pop %v808
        %v810 = vmul.f32 %v796, 1.442695
        %v811 = vpow.pop %v810
        %v812 = vmul.f32 %v797, 1.442695
        %v813 = vpow.pop %v812
        %v814 = vpack.c.bf16 %v801, %v799
        %v815 = vpack.c.bf16 %v805, %v803
        %v816 = vpack.c.bf16 %v809, %v807
        %v817 = vpack.c.bf16 %v813, %v811
        %v818 = vld [vmem:[#allocation3] sm:$0xff]
        %v819 = vld [vmem:[#allocation3 + $0x8] sm:$0xff]
        %v820 = vld [vmem:[#allocation3 + $0x10] sm:$0xff]
        %v821 = vld [vmem:[#allocation3 + $0x18] sm:$0xff]
        %v822 = vld [vmem:[#allocation3 + $0x20] sm:$0xff]
        %v823 = vld [vmem:[#allocation3 + $0x28] sm:$0xff]
        %v824 = vld [vmem:[#allocation3 + $0x30] sm:$0xff]
        %v825 = vld [vmem:[#allocation3 + $0x38] sm:$0xff]
        %v826 = vmul.f32 %v735, %v818
        %v827 = vmul.f32 %v737, %v819
        %v828 = vmul.f32 %v739, %v820
        %v829 = vmul.f32 %v741, %v821
        %v830 = vmul.f32 %v743, %v822
        %v831 = vmul.f32 %v745, %v823
        %v832 = vmul.f32 %v747, %v824
        %v833 = vmul.f32 %v749, %v825
        %834 = vadd.xlane.f32.xlu0 %v799
        %v835 = vpop.xlane.xlu0 %834
        %836 = vadd.xlane.f32.xlu0 %v801
        %v837 = vpop.xlane.xlu0 %836
        %838 = vadd.xlane.f32.xlu0 %v803
        %v839 = vpop.xlane.xlu0 %838
        %840 = vadd.xlane.f32.xlu0 %v805
        %v841 = vpop.xlane.xlu0 %840
        %842 = vadd.xlane.f32.xlu0 %v807
        %v843 = vpop.xlane.xlu0 %842
        %844 = vadd.xlane.f32.xlu0 %v809
        %v845 = vpop.xlane.xlu0 %844
        %846 = vadd.xlane.f32.xlu0 %v811
        %v847 = vpop.xlane.xlu0 %846
        %848 = vadd.xlane.f32.xlu0 %v813
        %v849 = vpop.xlane.xlu0 %848
        %v850 = vadd.f32 %v826, %v835
        %v851 = vadd.f32 %v827, %v837
        %v852 = vadd.f32 %v828, %v839
        %v853 = vadd.f32 %v829, %v841
        %v854 = vadd.f32 %v830, %v843
        %v855 = vadd.f32 %v831, %v845
        %v856 = vadd.f32 %v832, %v847
        %v857 = vadd.f32 %v833, %v849
        %vm858 = vcmask 7168
        %859 = vst.msk [vmem:[#allocation3] sm:$0xff] %vm858, %v850
        %860 = vst.msk [vmem:[#allocation3 + $0x8] sm:$0xff] %vm858, %v851
        %861 = vst.msk [vmem:[#allocation3 + $0x10] sm:$0xff] %vm858, %v852
        %862 = vst.msk [vmem:[#allocation3 + $0x18] sm:$0xff] %vm858, %v853
        %863 = vst.msk [vmem:[#allocation3 + $0x20] sm:$0xff] %vm858, %v854
        %864 = vst.msk [vmem:[#allocation3 + $0x28] sm:$0xff] %vm858, %v855
        %865 = vst.msk [vmem:[#allocation3 + $0x30] sm:$0xff] %vm858, %v856
        %866 = vst.msk [vmem:[#allocation3 + $0x38] sm:$0xff] %vm858, %v857
        %v867 = vld [vmem:[#allocation4] sm:$0xff]
        %v868 = vld [vmem:[#allocation4 + $0x8] sm:$0xff]
        %v869 = vld [vmem:[#allocation4 + $0x10] sm:$0xff]
        %v870 = vld [vmem:[#allocation4 + $0x18] sm:$0xff]
        %v871 = vld [vmem:[#allocation4 + $0x20] sm:$0xff]
        %v872 = vld [vmem:[#allocation4 + $0x28] sm:$0xff]
        %v873 = vld [vmem:[#allocation4 + $0x30] sm:$0xff]
        %v874 = vld [vmem:[#allocation4 + $0x38] sm:$0xff]
        %876 = vset.pattern.permute.xlu0 0
        %877 = vperm.xlu0 %876, %v735
        %v878 = vpop.permute.xlu0 %877
        %881 = vset.pattern.permute.xlu0 0
        %882 = vperm.xlu0 %881, %v737
        %v883 = vpop.permute.xlu0 %882
        %886 = vset.pattern.permute.xlu0 0
        %887 = vperm.xlu0 %886, %v739
        %v888 = vpop.permute.xlu0 %887
        %891 = vset.pattern.permute.xlu0 0
        %892 = vperm.xlu0 %891, %v741
        %v893 = vpop.permute.xlu0 %892
        %896 = vset.pattern.permute.xlu0 0
        %897 = vperm.xlu0 %896, %v743
        %v898 = vpop.permute.xlu0 %897
        %901 = vset.pattern.permute.xlu0 0
        %902 = vperm.xlu0 %901, %v745
        %v903 = vpop.permute.xlu0 %902
        %906 = vset.pattern.permute.xlu0 0
        %907 = vperm.xlu0 %906, %v747
        %v908 = vpop.permute.xlu0 %907
        %911 = vset.pattern.permute.xlu0 0
        %912 = vperm.xlu0 %911, %v749
        %v913 = vpop.permute.xlu0 %912
        %v915 = vmul.f32 %v878, %v867
        %v916 = vmul.f32 %v883, %v868
        %v917 = vmul.f32 %v888, %v869
        %v918 = vmul.f32 %v893, %v870
        %v919 = vmul.f32 %v898, %v871
        %v920 = vmul.f32 %v903, %v872
        %v921 = vmul.f32 %v908, %v873
        %v922 = vmul.f32 %v913, %v874
        %v923 = vld [vmem:[%s504] sm:$0xf]
        %v924 = vld [vmem:[%s504 + $0x4] sm:$0xf]
        %v925 = vld [vmem:[%s504 + $0x8] sm:$0xf]
        %v926 = vld [vmem:[%s504 + $0xc] sm:$0xf]
        %v927 = vld [vmem:[%s504 + $0x10] sm:$0xf]
        %v928 = vld [vmem:[%s504 + $0x14] sm:$0xf]
        %v929 = vld [vmem:[%s504 + $0x18] sm:$0xf]
        %v930 = vld [vmem:[%s504 + $0x1c] sm:$0xf]
        %v931 = vld [vmem:[%s504 + $0x20] sm:$0xf]
        %v932 = vld [vmem:[%s504 + $0x24] sm:$0xf]
        %v933 = vld [vmem:[%s504 + $0x28] sm:$0xf]
        %v934 = vld [vmem:[%s504 + $0x2c] sm:$0xf]
        %v935 = vld [vmem:[%s504 + $0x30] sm:$0xf]
        %v936 = vld [vmem:[%s504 + $0x34] sm:$0xf]
        %v937 = vld [vmem:[%s504 + $0x38] sm:$0xf]
        %v938 = vld [vmem:[%s504 + $0x3c] sm:$0xf]
        %v955 = vunpack.c.l.b16 %v923
        %v956 = vunpack.c.l.b16 %v924
        %v957 = vunpack.c.l.b16 %v925
        %v958 = vunpack.c.l.b16 %v926
        %v959 = vunpack.c.l.b16 %v927
        %v960 = vunpack.c.l.b16 %v928
        %v961 = vunpack.c.l.b16 %v929
        %v962 = vunpack.c.l.b16 %v930
        %v963 = vunpack.c.l.b16 %v931
        %v964 = vunpack.c.l.b16 %v932
        %v965 = vunpack.c.l.b16 %v933
        %v966 = vunpack.c.l.b16 %v934
        %v967 = vunpack.c.l.b16 %v935
        %v968 = vunpack.c.l.b16 %v936
        %v969 = vunpack.c.l.b16 %v937
        %v970 = vunpack.c.l.b16 %v938
        %v971 = vpack.c.b16 %v956, %v955
        %v972 = vpack.c.b16 %v958, %v957
        %v973 = vpack.c.b16 %v960, %v959
        %v974 = vpack.c.b16 %v962, %v961
        %v975 = vpack.c.b16 %v964, %v963
        %v976 = vpack.c.b16 %v966, %v965
        %v977 = vpack.c.b16 %v968, %v967
        %v978 = vpack.c.b16 %v970, %v969
        %987 = vmatpush.bf16.msra.mxu0 %v978
        %988 = vmatpush.bf16.msra.mxu0 %v977
        %989 = vmatpush.bf16.msra.mxu0 %v976
        %990 = vmatpush.bf16.msra.mxu0 %v975
        %991 = vmatpush.bf16.msra.mxu0 %v974
        %992 = vmatpush.bf16.msra.mxu0 %v973
        %993 = vmatpush.bf16.msra.mxu0 %v972
        %994 = vmatpush.bf16.msra.mxu0 %v971
        %995 = vmatmul.bf16.gmra.mxu0 %v814
        %v996 = vpop.f32.mrf.mxu0
        %v997 = vadd.f32 0.0, %v996
        %v998 = vpop.f32.mrf.mxu0
        %v999 = vadd.f32 0.0, %v998
        %1000 = vmatmul.bf16.gmra.mxu0 %v815
        %v1001 = vpop.f32.mrf.mxu0
        %v1002 = vadd.f32 0.0, %v1001
        %v1003 = vpop.f32.mrf.mxu0
        %v1004 = vadd.f32 0.0, %v1003
        %1005 = vmatmul.bf16.gmra.mxu0 %v816
        %v1006 = vpop.f32.mrf.mxu0
        %v1007 = vadd.f32 0.0, %v1006
        %v1008 = vpop.f32.mrf.mxu0
        %v1009 = vadd.f32 0.0, %v1008
        %1010 = vmatmul.bf16.gmra.mxu0 %v817
        %v1011 = vpop.f32.mrf.mxu0
        %v1012 = vadd.f32 0.0, %v1011
        %v1013 = vpop.f32.mrf.mxu0
        %v1014 = vadd.f32 0.0, %v1013
        %1015 = vdwg.mxu0
        %v1016 = vadd.f32 %v915, %v997
        %v1017 = vadd.f32 %v916, %v999
        %v1018 = vadd.f32 %v917, %v1002
        %v1019 = vadd.f32 %v918, %v1004
        %v1020 = vadd.f32 %v919, %v1007
        %v1021 = vadd.f32 %v920, %v1009
        %v1022 = vadd.f32 %v921, %v1012
        %v1023 = vadd.f32 %v922, %v1014
        %1024 = vst [vmem:[#allocation4] sm:$0xff] %v1016
        %1025 = vst [vmem:[#allocation4 + $0x8] sm:$0xff] %v1017
        %1026 = vst [vmem:[#allocation4 + $0x10] sm:$0xff] %v1018
        %1027 = vst [vmem:[#allocation4 + $0x18] sm:$0xff] %v1019
        %1028 = vst [vmem:[#allocation4 + $0x20] sm:$0xff] %v1020
        %1029 = vst [vmem:[#allocation4 + $0x28] sm:$0xff] %v1021
        %1030 = vst [vmem:[#allocation4 + $0x30] sm:$0xff] %v1022
        %1031 = vst [vmem:[#allocation4 + $0x38] sm:$0xff] %v1023
        %1032 = vst.msk [vmem:[#allocation2] sm:$0xff] %vm858, %v718
        %1033 = vst.msk [vmem:[#allocation2 + $0x8] sm:$0xff] %vm858, %v719
        %1034 = vst.msk [vmem:[#allocation2 + $0x10] sm:$0xff] %vm858, %v720
        %1035 = vst.msk [vmem:[#allocation2 + $0x18] sm:$0xff] %vm858, %v721
        %1036 = vst.msk [vmem:[#allocation2 + $0x20] sm:$0xff] %vm858, %v722
        %1037 = vst.msk [vmem:[#allocation2 + $0x28] sm:$0xff] %vm858, %v723
        %1038 = vst.msk [vmem:[#allocation2 + $0x30] sm:$0xff] %vm858, %v724
        %1039 = vst.msk [vmem:[#allocation2 + $0x38] sm:$0xff] %vm858, %v725
        %p1040 = scmp.eq.s32.totalorder %s26, 1
        // Predicated region
        $region98: #{_geniepath_layer_impl.3} parent=88 // pred_check
          %p1041 = pneg %p1040
        $region99: #{_geniepath_layer_impl.3} parent=88 // pred_check_branch
          %1043 = sbr.rel (%p1041) target = $region101
        $region100: #{_geniepath_layer_impl.3} parent=88 // pred_region
          %v1044 = vld [vmem:[#allocation3] sm:$0xff]
          %v1045 = vld [vmem:[#allocation3 + $0x8] sm:$0xff]
          %v1046 = vld [vmem:[#allocation3 + $0x10] sm:$0xff]
          %v1047 = vld [vmem:[#allocation3 + $0x18] sm:$0xff]
          %v1048 = vld [vmem:[#allocation3 + $0x20] sm:$0xff]
          %v1049 = vld [vmem:[#allocation3 + $0x28] sm:$0xff]
          %v1050 = vld [vmem:[#allocation3 + $0x30] sm:$0xff]
          %v1051 = vld [vmem:[#allocation3 + $0x38] sm:$0xff]
          %v1052 = vrcp.pop %v1044
          %v1053 = vrcp.pop %v1045
          %v1054 = vrcp.pop %v1046
          %v1055 = vrcp.pop %v1047
          %v1056 = vrcp.pop %v1048
          %v1057 = vrcp.pop %v1049
          %v1058 = vrcp.pop %v1050
          %v1059 = vrcp.pop %v1051
          %v1060 = vld [vmem:[#allocation4] sm:$0xff]
          %v1061 = vld [vmem:[#allocation4 + $0x8] sm:$0xff]
          %v1062 = vld [vmem:[#allocation4 + $0x10] sm:$0xff]
          %v1063 = vld [vmem:[#allocation4 + $0x18] sm:$0xff]
          %v1064 = vld [vmem:[#allocation4 + $0x20] sm:$0xff]
          %v1065 = vld [vmem:[#allocation4 + $0x28] sm:$0xff]
          %v1066 = vld [vmem:[#allocation4 + $0x30] sm:$0xff]
          %v1067 = vld [vmem:[#allocation4 + $0x38] sm:$0xff]
          %1069 = vset.pattern.permute.xlu0 0
          %1070 = vperm.xlu0 %1069, %v1052
          %v1071 = vpop.permute.xlu0 %1070
          %1074 = vset.pattern.permute.xlu0 0
          %1075 = vperm.xlu0 %1074, %v1053
          %v1076 = vpop.permute.xlu0 %1075
          %1079 = vset.pattern.permute.xlu0 0
          %1080 = vperm.xlu0 %1079, %v1054
          %v1081 = vpop.permute.xlu0 %1080
          %1084 = vset.pattern.permute.xlu0 0
          %1085 = vperm.xlu0 %1084, %v1055
          %v1086 = vpop.permute.xlu0 %1085
          %1089 = vset.pattern.permute.xlu0 0
          %1090 = vperm.xlu0 %1089, %v1056
          %v1091 = vpop.permute.xlu0 %1090
          %1094 = vset.pattern.permute.xlu0 0
          %1095 = vperm.xlu0 %1094, %v1057
          %v1096 = vpop.permute.xlu0 %1095
          %1099 = vset.pattern.permute.xlu0 0
          %1100 = vperm.xlu0 %1099, %v1058
          %v1101 = vpop.permute.xlu0 %1100
          %1104 = vset.pattern.permute.xlu0 0
          %1105 = vperm.xlu0 %1104, %v1059
          %v1106 = vpop.permute.xlu0 %1105
          %v1108 = vmul.f32 %v1060, %v1071
          %v1109 = vmul.f32 %v1061, %v1076
          %v1110 = vmul.f32 %v1062, %v1081
          %v1111 = vmul.f32 %v1063, %v1086
          %v1112 = vmul.f32 %v1064, %v1091
          %v1113 = vmul.f32 %v1065, %v1096
          %v1114 = vmul.f32 %v1066, %v1101
          %v1115 = vmul.f32 %v1067, %v1106
          %v1116 = vld [vmem:[%s4] sm:$0x1]
          %v1118 = vperm.slane %v1116, 0
          %v1120 = vadd.f32 %v1108, %v1118
          %v1121 = vadd.f32 %v1109, %v1118
          %v1122 = vadd.f32 %v1110, %v1118
          %v1123 = vadd.f32 %v1111, %v1118
          %v1124 = vadd.f32 %v1112, %v1118
          %v1125 = vadd.f32 %v1113, %v1118
          %v1126 = vadd.f32 %v1114, %v1118
          %v1127 = vadd.f32 %v1115, %v1118
          %v1128 = vtanh.pop %v1120
          %v1129 = vtanh.pop %v1121
          %v1130 = vtanh.pop %v1122
          %v1131 = vtanh.pop %v1123
          %v1132 = vtanh.pop %v1124
          %v1133 = vtanh.pop %v1125
          %v1134 = vtanh.pop %v1126
          %v1135 = vtanh.pop %v1127
          %v1136 = vpack.c.bf16 %v1128, %v1128
          %v1137 = vpack.c.bf16 %v1129, %v1129
          %v1138 = vpack.c.bf16 %v1130, %v1130
          %v1139 = vpack.c.bf16 %v1131, %v1131
          %v1140 = vpack.c.bf16 %v1132, %v1132
          %v1141 = vpack.c.bf16 %v1133, %v1133
          %v1142 = vpack.c.bf16 %v1134, %v1134
          %v1143 = vpack.c.bf16 %v1135, %v1135
          %v1144 = vld [vmem:[%s519] sm:$0xf]
          %v1145 = vld [vmem:[%s519 + $0x4] sm:$0xf]
          %v1146 = vld [vmem:[%s519 + $0x8] sm:$0xf]
          %v1147 = vld [vmem:[%s519 + $0xc] sm:$0xf]
          %v1148 = vld [vmem:[%s519 + $0x10] sm:$0xf]
          %v1149 = vld [vmem:[%s519 + $0x14] sm:$0xf]
          %v1150 = vld [vmem:[%s519 + $0x18] sm:$0xf]
          %v1151 = vld [vmem:[%s519 + $0x1c] sm:$0xf]
          %v1160 = vunpack.c.l.b16 %v1136
          %v1161 = vunpack.c.l.b16 %v1137
          %v1162 = vunpack.c.l.b16 %v1138
          %v1163 = vunpack.c.l.b16 %v1139
          %v1164 = vunpack.c.l.b16 %v1140
          %v1165 = vunpack.c.l.b16 %v1141
          %v1166 = vunpack.c.l.b16 %v1142
          %v1167 = vunpack.c.l.b16 %v1143
          %v1168 = vpack.c.b16 %v1161, %v1160
          %v1169 = vpack.c.b16 %v1163, %v1162
          %v1170 = vpack.c.b16 %v1165, %v1164
          %v1171 = vpack.c.b16 %v1167, %v1166
          %v1184 = vunpack.c.l.b16 %v1144
          %v1185 = vunpack.c.l.b16 %v1145
          %v1186 = vunpack.c.l.b16 %v1146
          %v1187 = vunpack.c.l.b16 %v1147
          %v1188 = vunpack.c.l.b16 %v1148
          %v1189 = vunpack.c.l.b16 %v1149
          %v1190 = vunpack.c.l.b16 %v1150
          %v1191 = vunpack.c.l.b16 %v1151
          %v1192 = vpack.c.b16 %v1185, %v1184
          %v1193 = vpack.c.b16 %v1187, %v1186
          %v1194 = vpack.c.b16 %v1189, %v1188
          %v1195 = vpack.c.b16 %v1191, %v1190
          %v1200 = vld [vmem:[%s5] sm:$0xff]
          %v1201 = vld [vmem:[%s5 + $0x8] sm:$0xff]
          %v1202 = vld [vmem:[%s5 + $0x10] sm:$0xff]
          %v1203 = vld [vmem:[%s5 + $0x18] sm:$0xff]
          %v1204 = vld [vmem:[%s5 + $0x20] sm:$0xff]
          %v1205 = vld [vmem:[%s5 + $0x28] sm:$0xff]
          %v1206 = vld [vmem:[%s5 + $0x30] sm:$0xff]
          %v1207 = vld [vmem:[%s5 + $0x38] sm:$0xff]
          %v1208 = vld [vmem:[%s5 + $0x40] sm:$0xff]
          %v1209 = vld [vmem:[%s5 + $0x48] sm:$0xff]
          %v1210 = vld [vmem:[%s5 + $0x50] sm:$0xff]
          %v1211 = vld [vmem:[%s5 + $0x58] sm:$0xff]
          %v1212 = vld [vmem:[%s5 + $0x60] sm:$0xff]
          %v1213 = vld [vmem:[%s5 + $0x68] sm:$0xff]
          %v1214 = vld [vmem:[%s5 + $0x70] sm:$0xff]
          %v1215 = vld [vmem:[%s5 + $0x78] sm:$0xff]
          %v1216 = vld [vmem:[%s5 + $0x80] sm:$0xff]
          %v1217 = vld [vmem:[%s5 + $0x88] sm:$0xff]
          %v1218 = vld [vmem:[%s5 + $0x90] sm:$0xff]
          %v1219 = vld [vmem:[%s5 + $0x98] sm:$0xff]
          %v1220 = vld [vmem:[%s5 + $0xa0] sm:$0xff]
          %v1221 = vld [vmem:[%s5 + $0xa8] sm:$0xff]
          %v1222 = vld [vmem:[%s5 + $0xb0] sm:$0xff]
          %v1223 = vld [vmem:[%s5 + $0xb8] sm:$0xff]
          %v1224 = vld [vmem:[%s5 + $0xc0] sm:$0xff]
          %v1225 = vld [vmem:[%s5 + $0xc8] sm:$0xff]
          %v1226 = vld [vmem:[%s5 + $0xd0] sm:$0xff]
          %v1227 = vld [vmem:[%s5 + $0xd8] sm:$0xff]
          %v1228 = vld [vmem:[%s5 + $0xe0] sm:$0xff]
          %v1229 = vld [vmem:[%s5 + $0xe8] sm:$0xff]
          %v1230 = vld [vmem:[%s5 + $0xf0] sm:$0xff]
          %v1231 = vld [vmem:[%s5 + $0xf8] sm:$0xff]
          %v1232 = vld [vmem:[%s5 + $0x100] sm:$0xff]
          %v1233 = vld [vmem:[%s5 + $0x108] sm:$0xff]
          %v1234 = vld [vmem:[%s5 + $0x110] sm:$0xff]
          %v1235 = vld [vmem:[%s5 + $0x118] sm:$0xff]
          %v1236 = vld [vmem:[%s5 + $0x120] sm:$0xff]
          %v1237 = vld [vmem:[%s5 + $0x128] sm:$0xff]
          %v1238 = vld [vmem:[%s5 + $0x130] sm:$0xff]
          %v1239 = vld [vmem:[%s5 + $0x138] sm:$0xff]
          %v1240 = vld [vmem:[%s5 + $0x140] sm:$0xff]
          %v1241 = vld [vmem:[%s5 + $0x148] sm:$0xff]
          %v1242 = vld [vmem:[%s5 + $0x150] sm:$0xff]
          %v1243 = vld [vmem:[%s5 + $0x158] sm:$0xff]
          %v1244 = vld [vmem:[%s5 + $0x160] sm:$0xff]
          %v1245 = vld [vmem:[%s5 + $0x168] sm:$0xff]
          %v1246 = vld [vmem:[%s5 + $0x170] sm:$0xff]
          %v1247 = vld [vmem:[%s5 + $0x178] sm:$0xff]
          %v1248 = vld [vmem:[%s5 + $0x180] sm:$0xff]
          %v1249 = vld [vmem:[%s5 + $0x188] sm:$0xff]
          %v1250 = vld [vmem:[%s5 + $0x190] sm:$0xff]
          %v1251 = vld [vmem:[%s5 + $0x198] sm:$0xff]
          %v1252 = vld [vmem:[%s5 + $0x1a0] sm:$0xff]
          %v1253 = vld [vmem:[%s5 + $0x1a8] sm:$0xff]
          %v1254 = vld [vmem:[%s5 + $0x1b0] sm:$0xff]
          %v1255 = vld [vmem:[%s5 + $0x1b8] sm:$0xff]
          %v1256 = vld [vmem:[%s5 + $0x1c0] sm:$0xff]
          %v1257 = vld [vmem:[%s5 + $0x1c8] sm:$0xff]
          %v1258 = vld [vmem:[%s5 + $0x1d0] sm:$0xff]
          %v1259 = vld [vmem:[%s5 + $0x1d8] sm:$0xff]
          %v1260 = vld [vmem:[%s5 + $0x1e0] sm:$0xff]
          %v1261 = vld [vmem:[%s5 + $0x1e8] sm:$0xff]
          %v1262 = vld [vmem:[%s5 + $0x1f0] sm:$0xff]
          %v1263 = vld [vmem:[%s5 + $0x1f8] sm:$0xff]
          %v1328 = vunpack.c.l.b16 %v1200
          %v1329 = vunpack.c.h.b16 %v1200
          %v1330 = vunpack.c.l.b16 %v1201
          %v1331 = vunpack.c.h.b16 %v1201
          %v1332 = vunpack.c.l.b16 %v1202
          %v1333 = vunpack.c.h.b16 %v1202
          %v1334 = vunpack.c.l.b16 %v1203
          %v1335 = vunpack.c.h.b16 %v1203
          %v1336 = vunpack.c.l.b16 %v1204
          %v1337 = vunpack.c.h.b16 %v1204
          %v1338 = vunpack.c.l.b16 %v1205
          %v1339 = vunpack.c.h.b16 %v1205
          %v1340 = vunpack.c.l.b16 %v1206
          %v1341 = vunpack.c.h.b16 %v1206
          %v1342 = vunpack.c.l.b16 %v1207
          %v1343 = vunpack.c.h.b16 %v1207
          %v1344 = vunpack.c.l.b16 %v1208
          %v1345 = vunpack.c.h.b16 %v1208
          %v1346 = vunpack.c.l.b16 %v1209
          %v1347 = vunpack.c.h.b16 %v1209
          %v1348 = vunpack.c.l.b16 %v1210
          %v1349 = vunpack.c.h.b16 %v1210
          %v1350 = vunpack.c.l.b16 %v1211
          %v1351 = vunpack.c.h.b16 %v1211
          %v1352 = vunpack.c.l.b16 %v1212
          %v1353 = vunpack.c.h.b16 %v1212
          %v1354 = vunpack.c.l.b16 %v1213
          %v1355 = vunpack.c.h.b16 %v1213
          %v1356 = vunpack.c.l.b16 %v1214
          %v1357 = vunpack.c.h.b16 %v1214
          %v1358 = vunpack.c.l.b16 %v1215
          %v1359 = vunpack.c.h.b16 %v1215
          %v1360 = vunpack.c.l.b16 %v1216
          %v1361 = vunpack.c.h.b16 %v1216
          %v1362 = vunpack.c.l.b16 %v1217
          %v1363 = vunpack.c.h.b16 %v1217
          %v1364 = vunpack.c.l.b16 %v1218
          %v1365 = vunpack.c.h.b16 %v1218
          %v1366 = vunpack.c.l.b16 %v1219
          %v1367 = vunpack.c.h.b16 %v1219
          %v1368 = vunpack.c.l.b16 %v1220
          %v1369 = vunpack.c.h.b16 %v1220
          %v1370 = vunpack.c.l.b16 %v1221
          %v1371 = vunpack.c.h.b16 %v1221
          %v1372 = vunpack.c.l.b16 %v1222
          %v1373 = vunpack.c.h.b16 %v1222
          %v1374 = vunpack.c.l.b16 %v1223
          %v1375 = vunpack.c.h.b16 %v1223
          %v1376 = vunpack.c.l.b16 %v1224
          %v1377 = vunpack.c.h.b16 %v1224
          %v1378 = vunpack.c.l.b16 %v1225
          %v1379 = vunpack.c.h.b16 %v1225
          %v1380 = vunpack.c.l.b16 %v1226
          %v1381 = vunpack.c.h.b16 %v1226
          %v1382 = vunpack.c.l.b16 %v1227
          %v1383 = vunpack.c.h.b16 %v1227
          %v1384 = vunpack.c.l.b16 %v1228
          %v1385 = vunpack.c.h.b16 %v1228
          %v1386 = vunpack.c.l.b16 %v1229
          %v1387 = vunpack.c.h.b16 %v1229
          %v1388 = vunpack.c.l.b16 %v1230
          %v1389 = vunpack.c.h.b16 %v1230
          %v1390 = vunpack.c.l.b16 %v1231
          %v1391 = vunpack.c.h.b16 %v1231
          %v1392 = vunpack.c.l.b16 %v1232
          %v1393 = vunpack.c.h.b16 %v1232
          %v1394 = vunpack.c.l.b16 %v1233
          %v1395 = vunpack.c.h.b16 %v1233
          %v1396 = vunpack.c.l.b16 %v1234
          %v1397 = vunpack.c.h.b16 %v1234
          %v1398 = vunpack.c.l.b16 %v1235
          %v1399 = vunpack.c.h.b16 %v1235
          %v1400 = vunpack.c.l.b16 %v1236
          %v1401 = vunpack.c.h.b16 %v1236
          %v1402 = vunpack.c.l.b16 %v1237
          %v1403 = vunpack.c.h.b16 %v1237
          %v1404 = vunpack.c.l.b16 %v1238
          %v1405 = vunpack.c.h.b16 %v1238
          %v1406 = vunpack.c.l.b16 %v1239
          %v1407 = vunpack.c.h.b16 %v1239
          %v1408 = vunpack.c.l.b16 %v1240
          %v1409 = vunpack.c.h.b16 %v1240
          %v1410 = vunpack.c.l.b16 %v1241
          %v1411 = vunpack.c.h.b16 %v1241
          %v1412 = vunpack.c.l.b16 %v1242
          %v1413 = vunpack.c.h.b16 %v1242
          %v1414 = vunpack.c.l.b16 %v1243
          %v1415 = vunpack.c.h.b16 %v1243
          %v1416 = vunpack.c.l.b16 %v1244
          %v1417 = vunpack.c.h.b16 %v1244
          %v1418 = vunpack.c.l.b16 %v1245
          %v1419 = vunpack.c.h.b16 %v1245
          %v1420 = vunpack.c.l.b16 %v1246
          %v1421 = vunpack.c.h.b16 %v1246
          %v1422 = vunpack.c.l.b16 %v1247
          %v1423 = vunpack.c.h.b16 %v1247
          %v1424 = vunpack.c.l.b16 %v1248
          %v1425 = vunpack.c.h.b16 %v1248
          %v1426 = vunpack.c.l.b16 %v1249
          %v1427 = vunpack.c.h.b16 %v1249
          %v1428 = vunpack.c.l.b16 %v1250
          %v1429 = vunpack.c.h.b16 %v1250
          %v1430 = vunpack.c.l.b16 %v1251
          %v1431 = vunpack.c.h.b16 %v1251
          %v1432 = vunpack.c.l.b16 %v1252
          %v1433 = vunpack.c.h.b16 %v1252
          %v1434 = vunpack.c.l.b16 %v1253
          %v1435 = vunpack.c.h.b16 %v1253
          %v1436 = vunpack.c.l.b16 %v1254
          %v1437 = vunpack.c.h.b16 %v1254
          %v1438 = vunpack.c.l.b16 %v1255
          %v1439 = vunpack.c.h.b16 %v1255
          %v1440 = vunpack.c.l.b16 %v1256
          %v1441 = vunpack.c.h.b16 %v1256
          %v1442 = vunpack.c.l.b16 %v1257
          %v1443 = vunpack.c.h.b16 %v1257
          %v1444 = vunpack.c.l.b16 %v1258
          %v1445 = vunpack.c.h.b16 %v1258
          %v1446 = vunpack.c.l.b16 %v1259
          %v1447 = vunpack.c.h.b16 %v1259
          %v1448 = vunpack.c.l.b16 %v1260
          %v1449 = vunpack.c.h.b16 %v1260
          %v1450 = vunpack.c.l.b16 %v1261
          %v1451 = vunpack.c.h.b16 %v1261
          %v1452 = vunpack.c.l.b16 %v1262
          %v1453 = vunpack.c.h.b16 %v1262
          %v1454 = vunpack.c.l.b16 %v1263
          %v1455 = vunpack.c.h.b16 %v1263
          %v1456 = vpack.c.b16 %v1332, %v1328
          %v1457 = vpack.c.b16 %v1333, %v1329
          %v1458 = vpack.c.b16 %v1334, %v1330
          %v1459 = vpack.c.b16 %v1335, %v1331
          %v1460 = vpack.c.b16 %v1340, %v1336
          %v1461 = vpack.c.b16 %v1341, %v1337
          %v1462 = vpack.c.b16 %v1342, %v1338
          %v1463 = vpack.c.b16 %v1343, %v1339
          %v1464 = vpack.c.b16 %v1348, %v1344
          %v1465 = vpack.c.b16 %v1349, %v1345
          %v1466 = vpack.c.b16 %v1350, %v1346
          %v1467 = vpack.c.b16 %v1351, %v1347
          %v1468 = vpack.c.b16 %v1356, %v1352
          %v1469 = vpack.c.b16 %v1357, %v1353
          %v1470 = vpack.c.b16 %v1358, %v1354
          %v1471 = vpack.c.b16 %v1359, %v1355
          %v1472 = vpack.c.b16 %v1364, %v1360
          %v1473 = vpack.c.b16 %v1365, %v1361
          %v1474 = vpack.c.b16 %v1366, %v1362
          %v1475 = vpack.c.b16 %v1367, %v1363
          %v1476 = vpack.c.b16 %v1372, %v1368
          %v1477 = vpack.c.b16 %v1373, %v1369
          %v1478 = vpack.c.b16 %v1374, %v1370
          %v1479 = vpack.c.b16 %v1375, %v1371
          %v1480 = vpack.c.b16 %v1380, %v1376
          %v1481 = vpack.c.b16 %v1381, %v1377
          %v1482 = vpack.c.b16 %v1382, %v1378
          %v1483 = vpack.c.b16 %v1383, %v1379
          %v1484 = vpack.c.b16 %v1388, %v1384
          %v1485 = vpack.c.b16 %v1389, %v1385
          %v1486 = vpack.c.b16 %v1390, %v1386
          %v1487 = vpack.c.b16 %v1391, %v1387
          %v1488 = vpack.c.b16 %v1396, %v1392
          %v1489 = vpack.c.b16 %v1397, %v1393
          %v1490 = vpack.c.b16 %v1398, %v1394
          %v1491 = vpack.c.b16 %v1399, %v1395
          %v1492 = vpack.c.b16 %v1404, %v1400
          %v1493 = vpack.c.b16 %v1405, %v1401
          %v1494 = vpack.c.b16 %v1406, %v1402
          %v1495 = vpack.c.b16 %v1407, %v1403
          %v1496 = vpack.c.b16 %v1412, %v1408
          %v1497 = vpack.c.b16 %v1413, %v1409
          %v1498 = vpack.c.b16 %v1414, %v1410
          %v1499 = vpack.c.b16 %v1415, %v1411
          %v1500 = vpack.c.b16 %v1420, %v1416
          %v1501 = vpack.c.b16 %v1421, %v1417
          %v1502 = vpack.c.b16 %v1422, %v1418
          %v1503 = vpack.c.b16 %v1423, %v1419
          %v1504 = vpack.c.b16 %v1428, %v1424
          %v1505 = vpack.c.b16 %v1429, %v1425
          %v1506 = vpack.c.b16 %v1430, %v1426
          %v1507 = vpack.c.b16 %v1431, %v1427
          %v1508 = vpack.c.b16 %v1436, %v1432
          %v1509 = vpack.c.b16 %v1437, %v1433
          %v1510 = vpack.c.b16 %v1438, %v1434
          %v1511 = vpack.c.b16 %v1439, %v1435
          %v1512 = vpack.c.b16 %v1444, %v1440
          %v1513 = vpack.c.b16 %v1445, %v1441
          %v1514 = vpack.c.b16 %v1446, %v1442
          %v1515 = vpack.c.b16 %v1447, %v1443
          %v1516 = vpack.c.b16 %v1452, %v1448
          %v1517 = vpack.c.b16 %v1453, %v1449
          %v1518 = vpack.c.b16 %v1454, %v1450
          %v1519 = vpack.c.b16 %v1455, %v1451
          %1584 = vmatpush.bf16.msra.mxu0 %v1484
          %1585 = vmatpush.bf16.msra.mxu0 %v1480
          %1586 = vmatpush.bf16.msra.mxu0 %v1476
          %1587 = vmatpush.bf16.msra.mxu0 %v1472
          %1588 = vmatpush.bf16.msra.mxu0 %v1468
          %1589 = vmatpush.bf16.msra.mxu0 %v1464
          %1590 = vmatpush.bf16.msra.mxu0 %v1460
          %1591 = vmatpush.bf16.msra.mxu0 %v1456
          %1592 = vmatmul.bf16.gmra.mxu0 %v1168
          %v1593 = vpop.f32.mrf.mxu0
          %v1594 = vadd.f32 0.0, %v1593
          %v1595 = vpop.f32.mrf.mxu0
          %v1596 = vadd.f32 0.0, %v1595
          %1597 = vmatmul.bf16.gmra.mxu0 %v1169
          %v1598 = vpop.f32.mrf.mxu0
          %v1599 = vadd.f32 0.0, %v1598
          %v1600 = vpop.f32.mrf.mxu0
          %v1601 = vadd.f32 0.0, %v1600
          %1602 = vmatmul.bf16.gmra.mxu0 %v1170
          %v1603 = vpop.f32.mrf.mxu0
          %v1604 = vadd.f32 0.0, %v1603
          %v1605 = vpop.f32.mrf.mxu0
          %v1606 = vadd.f32 0.0, %v1605
          %1607 = vmatmul.bf16.gmra.mxu0 %v1171
          %v1608 = vpop.f32.mrf.mxu0
          %v1609 = vadd.f32 0.0, %v1608
          %v1610 = vpop.f32.mrf.mxu0
          %v1611 = vadd.f32 0.0, %v1610
          %1612 = vdwg.mxu0
          %1613 = vmatpush.bf16.msra.mxu0 %v1516
          %1614 = vmatpush.bf16.msra.mxu0 %v1512
          %1615 = vmatpush.bf16.msra.mxu0 %v1508
          %1616 = vmatpush.bf16.msra.mxu0 %v1504
          %1617 = vmatpush.bf16.msra.mxu0 %v1500
          %1618 = vmatpush.bf16.msra.mxu0 %v1496
          %1619 = vmatpush.bf16.msra.mxu0 %v1492
          %1620 = vmatpush.bf16.msra.mxu0 %v1488
          %1621 = vmatmul.bf16.gmra.mxu0 %v1192
          %v1622 = vpop.f32.mrf.mxu0
          %v1623 = vadd.f32 %v1594, %v1622
          %v1624 = vpop.f32.mrf.mxu0
          %v1625 = vadd.f32 %v1596, %v1624
          %1626 = vmatmul.bf16.gmra.mxu0 %v1193
          %v1627 = vpop.f32.mrf.mxu0
          %v1628 = vadd.f32 %v1599, %v1627
          %v1629 = vpop.f32.mrf.mxu0
          %v1630 = vadd.f32 %v1601, %v1629
          %1631 = vmatmul.bf16.gmra.mxu0 %v1194
          %v1632 = vpop.f32.mrf.mxu0
          %v1633 = vadd.f32 %v1604, %v1632
          %v1634 = vpop.f32.mrf.mxu0
          %v1635 = vadd.f32 %v1606, %v1634
          %1636 = vmatmul.bf16.gmra.mxu0 %v1195
          %v1637 = vpop.f32.mrf.mxu0
          %v1638 = vadd.f32 %v1609, %v1637
          %v1639 = vpop.f32.mrf.mxu0
          %v1640 = vadd.f32 %v1611, %v1639
          %1641 = vdwg.mxu0
          %1642 = vmatpush.bf16.msra.mxu0 %v1485
          %1643 = vmatpush.bf16.msra.mxu0 %v1481
          %1644 = vmatpush.bf16.msra.mxu0 %v1477
          %1645 = vmatpush.bf16.msra.mxu0 %v1473
          %1646 = vmatpush.bf16.msra.mxu0 %v1469
          %1647 = vmatpush.bf16.msra.mxu0 %v1465
          %1648 = vmatpush.bf16.msra.mxu0 %v1461
          %1649 = vmatpush.bf16.msra.mxu0 %v1457
          %1650 = vmatmul.bf16.gmra.mxu0 %v1168
          %v1651 = vpop.f32.mrf.mxu0
          %v1652 = vadd.f32 0.0, %v1651
          %v1653 = vpop.f32.mrf.mxu0
          %v1654 = vadd.f32 0.0, %v1653
          %1655 = vmatmul.bf16.gmra.mxu0 %v1169
          %v1656 = vpop.f32.mrf.mxu0
          %v1657 = vadd.f32 0.0, %v1656
          %v1658 = vpop.f32.mrf.mxu0
          %v1659 = vadd.f32 0.0, %v1658
          %1660 = vmatmul.bf16.gmra.mxu0 %v1170
          %v1661 = vpop.f32.mrf.mxu0
          %v1662 = vadd.f32 0.0, %v1661
          %v1663 = vpop.f32.mrf.mxu0
          %v1664 = vadd.f32 0.0, %v1663
          %1665 = vmatmul.bf16.gmra.mxu0 %v1171
          %v1666 = vpop.f32.mrf.mxu0
          %v1667 = vadd.f32 0.0, %v1666
          %v1668 = vpop.f32.mrf.mxu0
          %v1669 = vadd.f32 0.0, %v1668
          %1670 = vdwg.mxu0
          %1671 = vmatpush.bf16.msra.mxu0 %v1517
          %1672 = vmatpush.bf16.msra.mxu0 %v1513
          %1673 = vmatpush.bf16.msra.mxu0 %v1509
          %1674 = vmatpush.bf16.msra.mxu0 %v1505
          %1675 = vmatpush.bf16.msra.mxu0 %v1501
          %1676 = vmatpush.bf16.msra.mxu0 %v1497
          %1677 = vmatpush.bf16.msra.mxu0 %v1493
          %1678 = vmatpush.bf16.msra.mxu0 %v1489
          %1679 = vmatmul.bf16.gmra.mxu0 %v1192
          %v1680 = vpop.f32.mrf.mxu0
          %v1681 = vadd.f32 %v1652, %v1680
          %v1682 = vpop.f32.mrf.mxu0
          %v1683 = vadd.f32 %v1654, %v1682
          %1684 = vmatmul.bf16.gmra.mxu0 %v1193
          %v1685 = vpop.f32.mrf.mxu0
          %v1686 = vadd.f32 %v1657, %v1685
          %v1687 = vpop.f32.mrf.mxu0
          %v1688 = vadd.f32 %v1659, %v1687
          %1689 = vmatmul.bf16.gmra.mxu0 %v1194
          %v1690 = vpop.f32.mrf.mxu0
          %v1691 = vadd.f32 %v1662, %v1690
          %v1692 = vpop.f32.mrf.mxu0
          %v1693 = vadd.f32 %v1664, %v1692
          %1694 = vmatmul.bf16.gmra.mxu0 %v1195
          %v1695 = vpop.f32.mrf.mxu0
          %v1696 = vadd.f32 %v1667, %v1695
          %v1697 = vpop.f32.mrf.mxu0
          %v1698 = vadd.f32 %v1669, %v1697
          %1699 = vdwg.mxu0
          %1700 = vmatpush.bf16.msra.mxu0 %v1486
          %1701 = vmatpush.bf16.msra.mxu0 %v1482
          %1702 = vmatpush.bf16.msra.mxu0 %v1478
          %1703 = vmatpush.bf16.msra.mxu0 %v1474
          %1704 = vmatpush.bf16.msra.mxu0 %v1470
          %1705 = vmatpush.bf16.msra.mxu0 %v1466
          %1706 = vmatpush.bf16.msra.mxu0 %v1462
          %1707 = vmatpush.bf16.msra.mxu0 %v1458
          %1708 = vmatmul.bf16.gmra.mxu0 %v1168
          %v1709 = vpop.f32.mrf.mxu0
          %v1710 = vadd.f32 0.0, %v1709
          %v1711 = vpop.f32.mrf.mxu0
          %v1712 = vadd.f32 0.0, %v1711
          %1713 = vmatmul.bf16.gmra.mxu0 %v1169
          %v1714 = vpop.f32.mrf.mxu0
          %v1715 = vadd.f32 0.0, %v1714
          %v1716 = vpop.f32.mrf.mxu0
          %v1717 = vadd.f32 0.0, %v1716
          %1718 = vmatmul.bf16.gmra.mxu0 %v1170
          %v1719 = vpop.f32.mrf.mxu0
          %v1720 = vadd.f32 0.0, %v1719
          %v1721 = vpop.f32.mrf.mxu0
          %v1722 = vadd.f32 0.0, %v1721
          %1723 = vmatmul.bf16.gmra.mxu0 %v1171
          %v1724 = vpop.f32.mrf.mxu0
          %v1725 = vadd.f32 0.0, %v1724
          %v1726 = vpop.f32.mrf.mxu0
          %v1727 = vadd.f32 0.0, %v1726
          %1728 = vdwg.mxu0
          %1729 = vmatpush.bf16.msra.mxu0 %v1518
          %1730 = vmatpush.bf16.msra.mxu0 %v1514
          %1731 = vmatpush.bf16.msra.mxu0 %v1510
          %1732 = vmatpush.bf16.msra.mxu0 %v1506
          %1733 = vmatpush.bf16.msra.mxu0 %v1502
          %1734 = vmatpush.bf16.msra.mxu0 %v1498
          %1735 = vmatpush.bf16.msra.mxu0 %v1494
          %1736 = vmatpush.bf16.msra.mxu0 %v1490
          %1737 = vmatmul.bf16.gmra.mxu0 %v1192
          %v1738 = vpop.f32.mrf.mxu0
          %v1739 = vadd.f32 %v1710, %v1738
          %v1740 = vpop.f32.mrf.mxu0
          %v1741 = vadd.f32 %v1712, %v1740
          %1742 = vmatmul.bf16.gmra.mxu0 %v1193
          %v1743 = vpop.f32.mrf.mxu0
          %v1744 = vadd.f32 %v1715, %v1743
          %v1745 = vpop.f32.mrf.mxu0
          %v1746 = vadd.f32 %v1717, %v1745
          %1747 = vmatmul.bf16.gmra.mxu0 %v1194
          %v1748 = vpop.f32.mrf.mxu0
          %v1749 = vadd.f32 %v1720, %v1748
          %v1750 = vpop.f32.mrf.mxu0
          %v1751 = vadd.f32 %v1722, %v1750
          %1752 = vmatmul.bf16.gmra.mxu0 %v1195
          %v1753 = vpop.f32.mrf.mxu0
          %v1754 = vadd.f32 %v1725, %v1753
          %v1755 = vpop.f32.mrf.mxu0
          %v1756 = vadd.f32 %v1727, %v1755
          %1757 = vdwg.mxu0
          %1758 = vmatpush.bf16.msra.mxu0 %v1487
          %1759 = vmatpush.bf16.msra.mxu0 %v1483
          %1760 = vmatpush.bf16.msra.mxu0 %v1479
          %1761 = vmatpush.bf16.msra.mxu0 %v1475
          %1762 = vmatpush.bf16.msra.mxu0 %v1471
          %1763 = vmatpush.bf16.msra.mxu0 %v1467
          %1764 = vmatpush.bf16.msra.mxu0 %v1463
          %1765 = vmatpush.bf16.msra.mxu0 %v1459
          %1766 = vmatmul.bf16.gmra.mxu0 %v1168
          %v1767 = vpop.f32.mrf.mxu0
          %v1768 = vadd.f32 0.0, %v1767
          %v1769 = vpop.f32.mrf.mxu0
          %v1770 = vadd.f32 0.0, %v1769
          %1771 = vmatmul.bf16.gmra.mxu0 %v1169
          %v1772 = vpop.f32.mrf.mxu0
          %v1773 = vadd.f32 0.0, %v1772
          %v1774 = vpop.f32.mrf.mxu0
          %v1775 = vadd.f32 0.0, %v1774
          %1776 = vmatmul.bf16.gmra.mxu0 %v1170
          %v1777 = vpop.f32.mrf.mxu0
          %v1778 = vadd.f32 0.0, %v1777
          %v1779 = vpop.f32.mrf.mxu0
          %v1780 = vadd.f32 0.0, %v1779
          %1781 = vmatmul.bf16.gmra.mxu0 %v1171
          %v1782 = vpop.f32.mrf.mxu0
          %v1783 = vadd.f32 0.0, %v1782
          %v1784 = vpop.f32.mrf.mxu0
          %v1785 = vadd.f32 0.0, %v1784
          %1786 = vdwg.mxu0
          %1787 = vmatpush.bf16.msra.mxu0 %v1519
          %1788 = vmatpush.bf16.msra.mxu0 %v1515
          %1789 = vmatpush.bf16.msra.mxu0 %v1511
          %1790 = vmatpush.bf16.msra.mxu0 %v1507
          %1791 = vmatpush.bf16.msra.mxu0 %v1503
          %1792 = vmatpush.bf16.msra.mxu0 %v1499
          %1793 = vmatpush.bf16.msra.mxu0 %v1495
          %1794 = vmatpush.bf16.msra.mxu0 %v1491
          %1795 = vmatmul.bf16.gmra.mxu0 %v1192
          %v1796 = vpop.f32.mrf.mxu0
          %v1797 = vadd.f32 %v1768, %v1796
          %v1798 = vpop.f32.mrf.mxu0
          %v1799 = vadd.f32 %v1770, %v1798
          %1800 = vmatmul.bf16.gmra.mxu0 %v1193
          %v1801 = vpop.f32.mrf.mxu0
          %v1802 = vadd.f32 %v1773, %v1801
          %v1803 = vpop.f32.mrf.mxu0
          %v1804 = vadd.f32 %v1775, %v1803
          %1805 = vmatmul.bf16.gmra.mxu0 %v1194
          %v1806 = vpop.f32.mrf.mxu0
          %v1807 = vadd.f32 %v1778, %v1806
          %v1808 = vpop.f32.mrf.mxu0
          %v1809 = vadd.f32 %v1780, %v1808
          %1810 = vmatmul.bf16.gmra.mxu0 %v1195
          %v1811 = vpop.f32.mrf.mxu0
          %v1812 = vadd.f32 %v1783, %v1811
          %v1813 = vpop.f32.mrf.mxu0
          %v1814 = vadd.f32 %v1785, %v1813
          %1815 = vdwg.mxu0
          %v1816 = vxor.u32 %v1623, 2147483648
          %v1817 = vxor.u32 %v1625, 2147483648
          %v1818 = vxor.u32 %v1628, 2147483648
          %v1819 = vxor.u32 %v1630, 2147483648
          %v1820 = vxor.u32 %v1633, 2147483648
          %v1821 = vxor.u32 %v1635, 2147483648
          %v1822 = vxor.u32 %v1638, 2147483648
          %v1823 = vxor.u32 %v1640, 2147483648
          %v1824 = vmul.f32 %v1816, 1.442695
          %v1825 = vpow.pop %v1824
          %v1826 = vmul.f32 %v1817, 1.442695
          %v1827 = vpow.pop %v1826
          %v1828 = vmul.f32 %v1818, 1.442695
          %v1829 = vpow.pop %v1828
          %v1830 = vmul.f32 %v1819, 1.442695
          %v1831 = vpow.pop %v1830
          %v1832 = vmul.f32 %v1820, 1.442695
          %v1833 = vpow.pop %v1832
          %v1834 = vmul.f32 %v1821, 1.442695
          %v1835 = vpow.pop %v1834
          %v1836 = vmul.f32 %v1822, 1.442695
          %v1837 = vpow.pop %v1836
          %v1838 = vmul.f32 %v1823, 1.442695
          %v1839 = vpow.pop %v1838
          %v1840 = vadd.f32 %v1825, 1.0
          %v1841 = vadd.f32 %v1827, 1.0
          %v1842 = vadd.f32 %v1829, 1.0
          %v1843 = vadd.f32 %v1831, 1.0
          %v1844 = vadd.f32 %v1833, 1.0
          %v1845 = vadd.f32 %v1835, 1.0
          %v1846 = vadd.f32 %v1837, 1.0
          %v1847 = vadd.f32 %v1839, 1.0
          %v1848 = vrcp.pop %v1840
          %v1849 = vmul.f32 %v1840, %v1848
          %v1850 = vsub.f32 1.0, %v1849
          %v1851 = vmul.f32 %v1848, %v1850
          %v1852 = vadd.f32 %v1848, %v1851
          %vm1853 = vweird.f32 %v1840
          %vm1854 = vweird.f32 %v1848
          %vm1855 = vmor %vm1853, %vm1854
          %v1856 = vsel %vm1855, %v1848, %v1852
          %v1857 = vand.u32 2147483647, %v1840
          %vm1858 = vcmp.eq.f32.partialorder %v1857, 8.507059e+37
          %v1859 = vand.u32 %v1840, 2147483648
          %v1860 = vor.u32 1.1754944e-38, %v1859
          %v1861 = vsel %vm1858, %v1860, %v1856
          %v1862 = vmul.f32 1.0, %v1861
          %v1863 = vrcp.pop %v1841
          %v1864 = vmul.f32 %v1841, %v1863
          %v1865 = vsub.f32 1.0, %v1864
          %v1866 = vmul.f32 %v1863, %v1865
          %v1867 = vadd.f32 %v1863, %v1866
          %vm1868 = vweird.f32 %v1841
          %vm1869 = vweird.f32 %v1863
          %vm1870 = vmor %vm1868, %vm1869
          %v1871 = vsel %vm1870, %v1863, %v1867
          %v1872 = vand.u32 2147483647, %v1841
          %vm1873 = vcmp.eq.f32.partialorder %v1872, 8.507059e+37
          %v1874 = vand.u32 %v1841, 2147483648
          %v1875 = vor.u32 1.1754944e-38, %v1874
          %v1876 = vsel %vm1873, %v1875, %v1871
          %v1877 = vmul.f32 1.0, %v1876
          %v1878 = vrcp.pop %v1842
          %v1879 = vmul.f32 %v1842, %v1878
          %v1880 = vsub.f32 1.0, %v1879
          %v1881 = vmul.f32 %v1878, %v1880
          %v1882 = vadd.f32 %v1878, %v1881
          %vm1883 = vweird.f32 %v1842
          %vm1884 = vweird.f32 %v1878
          %vm1885 = vmor %vm1883, %vm1884
          %v1886 = vsel %vm1885, %v1878, %v1882
          %v1887 = vand.u32 2147483647, %v1842
          %vm1888 = vcmp.eq.f32.partialorder %v1887, 8.507059e+37
          %v1889 = vand.u32 %v1842, 2147483648
          %v1890 = vor.u32 1.1754944e-38, %v1889
          %v1891 = vsel %vm1888, %v1890, %v1886
          %v1892 = vmul.f32 1.0, %v1891
          %v1893 = vrcp.pop %v1843
          %v1894 = vmul.f32 %v1843, %v1893
          %v1895 = vsub.f32 1.0, %v1894
          %v1896 = vmul.f32 %v1893, %v1895
          %v1897 = vadd.f32 %v1893, %v1896
          %vm1898 = vweird.f32 %v1843
          %vm1899 = vweird.f32 %v1893
          %vm1900 = vmor %vm1898, %vm1899
          %v1901 = vsel %vm1900, %v1893, %v1897
          %v1902 = vand.u32 2147483647, %v1843
          %vm1903 = vcmp.eq.f32.partialorder %v1902, 8.507059e+37
          %v1904 = vand.u32 %v1843, 2147483648
          %v1905 = vor.u32 1.1754944e-38, %v1904
          %v1906 = vsel %vm1903, %v1905, %v1901
          %v1907 = vmul.f32 1.0, %v1906
          %v1908 = vrcp.pop %v1844
          %v1909 = vmul.f32 %v1844, %v1908
          %v1910 = vsub.f32 1.0, %v1909
          %v1911 = vmul.f32 %v1908, %v1910
          %v1912 = vadd.f32 %v1908, %v1911
          %vm1913 = vweird.f32 %v1844
          %vm1914 = vweird.f32 %v1908
          %vm1915 = vmor %vm1913, %vm1914
          %v1916 = vsel %vm1915, %v1908, %v1912
          %v1917 = vand.u32 2147483647, %v1844
          %vm1918 = vcmp.eq.f32.partialorder %v1917, 8.507059e+37
          %v1919 = vand.u32 %v1844, 2147483648
          %v1920 = vor.u32 1.1754944e-38, %v1919
          %v1921 = vsel %vm1918, %v1920, %v1916
          %v1922 = vmul.f32 1.0, %v1921
          %v1923 = vrcp.pop %v1845
          %v1924 = vmul.f32 %v1845, %v1923
          %v1925 = vsub.f32 1.0, %v1924
          %v1926 = vmul.f32 %v1923, %v1925
          %v1927 = vadd.f32 %v1923, %v1926
          %vm1928 = vweird.f32 %v1845
          %vm1929 = vweird.f32 %v1923
          %vm1930 = vmor %vm1928, %vm1929
          %v1931 = vsel %vm1930, %v1923, %v1927
          %v1932 = vand.u32 2147483647, %v1845
          %vm1933 = vcmp.eq.f32.partialorder %v1932, 8.507059e+37
          %v1934 = vand.u32 %v1845, 2147483648
          %v1935 = vor.u32 1.1754944e-38, %v1934
          %v1936 = vsel %vm1933, %v1935, %v1931
          %v1937 = vmul.f32 1.0, %v1936
          %v1938 = vrcp.pop %v1846
          %v1939 = vmul.f32 %v1846, %v1938
          %v1940 = vsub.f32 1.0, %v1939
          %v1941 = vmul.f32 %v1938, %v1940
          %v1942 = vadd.f32 %v1938, %v1941
          %vm1943 = vweird.f32 %v1846
          %vm1944 = vweird.f32 %v1938
          %vm1945 = vmor %vm1943, %vm1944
          %v1946 = vsel %vm1945, %v1938, %v1942
          %v1947 = vand.u32 2147483647, %v1846
          %vm1948 = vcmp.eq.f32.partialorder %v1947, 8.507059e+37
          %v1949 = vand.u32 %v1846, 2147483648
          %v1950 = vor.u32 1.1754944e-38, %v1949
          %v1951 = vsel %vm1948, %v1950, %v1946
          %v1952 = vmul.f32 1.0, %v1951
          %v1953 = vrcp.pop %v1847
          %v1954 = vmul.f32 %v1847, %v1953
          %v1955 = vsub.f32 1.0, %v1954
          %v1956 = vmul.f32 %v1953, %v1955
          %v1957 = vadd.f32 %v1953, %v1956
          %vm1958 = vweird.f32 %v1847
          %vm1959 = vweird.f32 %v1953
          %vm1960 = vmor %vm1958, %vm1959
          %v1961 = vsel %vm1960, %v1953, %v1957
          %v1962 = vand.u32 2147483647, %v1847
          %vm1963 = vcmp.eq.f32.partialorder %v1962, 8.507059e+37
          %v1964 = vand.u32 %v1847, 2147483648
          %v1965 = vor.u32 1.1754944e-38, %v1964
          %v1966 = vsel %vm1963, %v1965, %v1961
          %v1967 = vmul.f32 1.0, %v1966
          %v1968 = vxor.u32 %v1681, 2147483648
          %v1969 = vxor.u32 %v1683, 2147483648
          %v1970 = vxor.u32 %v1686, 2147483648
          %v1971 = vxor.u32 %v1688, 2147483648
          %v1972 = vxor.u32 %v1691, 2147483648
          %v1973 = vxor.u32 %v1693, 2147483648
          %v1974 = vxor.u32 %v1696, 2147483648
          %v1975 = vxor.u32 %v1698, 2147483648
          %v1976 = vmul.f32 %v1968, 1.442695
          %v1977 = vpow.pop %v1976
          %v1978 = vmul.f32 %v1969, 1.442695
          %v1979 = vpow.pop %v1978
          %v1980 = vmul.f32 %v1970, 1.442695
          %v1981 = vpow.pop %v1980
          %v1982 = vmul.f32 %v1971, 1.442695
          %v1983 = vpow.pop %v1982
          %v1984 = vmul.f32 %v1972, 1.442695
          %v1985 = vpow.pop %v1984
          %v1986 = vmul.f32 %v1973, 1.442695
          %v1987 = vpow.pop %v1986
          %v1988 = vmul.f32 %v1974, 1.442695
          %v1989 = vpow.pop %v1988
          %v1990 = vmul.f32 %v1975, 1.442695
          %v1991 = vpow.pop %v1990
          %v1992 = vadd.f32 %v1977, 1.0
          %v1993 = vadd.f32 %v1979, 1.0
          %v1994 = vadd.f32 %v1981, 1.0
          %v1995 = vadd.f32 %v1983, 1.0
          %v1996 = vadd.f32 %v1985, 1.0
          %v1997 = vadd.f32 %v1987, 1.0
          %v1998 = vadd.f32 %v1989, 1.0
          %v1999 = vadd.f32 %v1991, 1.0
          %v2000 = vrcp.pop %v1992
          %v2001 = vmul.f32 %v1992, %v2000
          %v2002 = vsub.f32 1.0, %v2001
          %v2003 = vmul.f32 %v2000, %v2002
          %v2004 = vadd.f32 %v2000, %v2003
          %vm2005 = vweird.f32 %v1992
          %vm2006 = vweird.f32 %v2000
          %vm2007 = vmor %vm2005, %vm2006
          %v2008 = vsel %vm2007, %v2000, %v2004
          %v2009 = vand.u32 2147483647, %v1992
          %vm2010 = vcmp.eq.f32.partialorder %v2009, 8.507059e+37
          %v2011 = vand.u32 %v1992, 2147483648
          %v2012 = vor.u32 1.1754944e-38, %v2011
          %v2013 = vsel %vm2010, %v2012, %v2008
          %v2014 = vmul.f32 1.0, %v2013
          %v2015 = vrcp.pop %v1993
          %v2016 = vmul.f32 %v1993, %v2015
          %v2017 = vsub.f32 1.0, %v2016
          %v2018 = vmul.f32 %v2015, %v2017
          %v2019 = vadd.f32 %v2015, %v2018
          %vm2020 = vweird.f32 %v1993
          %vm2021 = vweird.f32 %v2015
          %vm2022 = vmor %vm2020, %vm2021
          %v2023 = vsel %vm2022, %v2015, %v2019
          %v2024 = vand.u32 2147483647, %v1993
          %vm2025 = vcmp.eq.f32.partialorder %v2024, 8.507059e+37
          %v2026 = vand.u32 %v1993, 2147483648
          %v2027 = vor.u32 1.1754944e-38, %v2026
          %v2028 = vsel %vm2025, %v2027, %v2023
          %v2029 = vmul.f32 1.0, %v2028
          %v2030 = vrcp.pop %v1994
          %v2031 = vmul.f32 %v1994, %v2030
          %v2032 = vsub.f32 1.0, %v2031
          %v2033 = vmul.f32 %v2030, %v2032
          %v2034 = vadd.f32 %v2030, %v2033
          %vm2035 = vweird.f32 %v1994
          %vm2036 = vweird.f32 %v2030
          %vm2037 = vmor %vm2035, %vm2036
          %v2038 = vsel %vm2037, %v2030, %v2034
          %v2039 = vand.u32 2147483647, %v1994
          %vm2040 = vcmp.eq.f32.partialorder %v2039, 8.507059e+37
          %v2041 = vand.u32 %v1994, 2147483648
          %v2042 = vor.u32 1.1754944e-38, %v2041
          %v2043 = vsel %vm2040, %v2042, %v2038
          %v2044 = vmul.f32 1.0, %v2043
          %v2045 = vrcp.pop %v1995
          %v2046 = vmul.f32 %v1995, %v2045
          %v2047 = vsub.f32 1.0, %v2046
          %v2048 = vmul.f32 %v2045, %v2047
          %v2049 = vadd.f32 %v2045, %v2048
          %vm2050 = vweird.f32 %v1995
          %vm2051 = vweird.f32 %v2045
          %vm2052 = vmor %vm2050, %vm2051
          %v2053 = vsel %vm2052, %v2045, %v2049
          %v2054 = vand.u32 2147483647, %v1995
          %vm2055 = vcmp.eq.f32.partialorder %v2054, 8.507059e+37
          %v2056 = vand.u32 %v1995, 2147483648
          %v2057 = vor.u32 1.1754944e-38, %v2056
          %v2058 = vsel %vm2055, %v2057, %v2053
          %v2059 = vmul.f32 1.0, %v2058
          %v2060 = vrcp.pop %v1996
          %v2061 = vmul.f32 %v1996, %v2060
          %v2062 = vsub.f32 1.0, %v2061
          %v2063 = vmul.f32 %v2060, %v2062
          %v2064 = vadd.f32 %v2060, %v2063
          %vm2065 = vweird.f32 %v1996
          %vm2066 = vweird.f32 %v2060
          %vm2067 = vmor %vm2065, %vm2066
          %v2068 = vsel %vm2067, %v2060, %v2064
          %v2069 = vand.u32 2147483647, %v1996
          %vm2070 = vcmp.eq.f32.partialorder %v2069, 8.507059e+37
          %v2071 = vand.u32 %v1996, 2147483648
          %v2072 = vor.u32 1.1754944e-38, %v2071
          %v2073 = vsel %vm2070, %v2072, %v2068
          %v2074 = vmul.f32 1.0, %v2073
          %v2075 = vrcp.pop %v1997
          %v2076 = vmul.f32 %v1997, %v2075
          %v2077 = vsub.f32 1.0, %v2076
          %v2078 = vmul.f32 %v2075, %v2077
          %v2079 = vadd.f32 %v2075, %v2078
          %vm2080 = vweird.f32 %v1997
          %vm2081 = vweird.f32 %v2075
          %vm2082 = vmor %vm2080, %vm2081
          %v2083 = vsel %vm2082, %v2075, %v2079
          %v2084 = vand.u32 2147483647, %v1997
          %vm2085 = vcmp.eq.f32.partialorder %v2084, 8.507059e+37
          %v2086 = vand.u32 %v1997, 2147483648
          %v2087 = vor.u32 1.1754944e-38, %v2086
          %v2088 = vsel %vm2085, %v2087, %v2083
          %v2089 = vmul.f32 1.0, %v2088
          %v2090 = vrcp.pop %v1998
          %v2091 = vmul.f32 %v1998, %v2090
          %v2092 = vsub.f32 1.0, %v2091
          %v2093 = vmul.f32 %v2090, %v2092
          %v2094 = vadd.f32 %v2090, %v2093
          %vm2095 = vweird.f32 %v1998
          %vm2096 = vweird.f32 %v2090
          %vm2097 = vmor %vm2095, %vm2096
          %v2098 = vsel %vm2097, %v2090, %v2094
          %v2099 = vand.u32 2147483647, %v1998
          %vm2100 = vcmp.eq.f32.partialorder %v2099, 8.507059e+37
          %v2101 = vand.u32 %v1998, 2147483648
          %v2102 = vor.u32 1.1754944e-38, %v2101
          %v2103 = vsel %vm2100, %v2102, %v2098
          %v2104 = vmul.f32 1.0, %v2103
          %v2105 = vrcp.pop %v1999
          %v2106 = vmul.f32 %v1999, %v2105
          %v2107 = vsub.f32 1.0, %v2106
          %v2108 = vmul.f32 %v2105, %v2107
          %v2109 = vadd.f32 %v2105, %v2108
          %vm2110 = vweird.f32 %v1999
          %vm2111 = vweird.f32 %v2105
          %vm2112 = vmor %vm2110, %vm2111
          %v2113 = vsel %vm2112, %v2105, %v2109
          %v2114 = vand.u32 2147483647, %v1999
          %vm2115 = vcmp.eq.f32.partialorder %v2114, 8.507059e+37
          %v2116 = vand.u32 %v1999, 2147483648
          %v2117 = vor.u32 1.1754944e-38, %v2116
          %v2118 = vsel %vm2115, %v2117, %v2113
          %v2119 = vmul.f32 1.0, %v2118
          %v2120 = vtanh.pop %v1739
          %v2121 = vtanh.pop %v1741
          %v2122 = vtanh.pop %v1744
          %v2123 = vtanh.pop %v1746
          %v2124 = vtanh.pop %v1749
          %v2125 = vtanh.pop %v1751
          %v2126 = vtanh.pop %v1754
          %v2127 = vtanh.pop %v1756
          %v2128 = vxor.u32 %v1797, 2147483648
          %v2129 = vxor.u32 %v1799, 2147483648
          %v2130 = vxor.u32 %v1802, 2147483648
          %v2131 = vxor.u32 %v1804, 2147483648
          %v2132 = vxor.u32 %v1807, 2147483648
          %v2133 = vxor.u32 %v1809, 2147483648
          %v2134 = vxor.u32 %v1812, 2147483648
          %v2135 = vxor.u32 %v1814, 2147483648
          %v2136 = vmul.f32 %v2128, 1.442695
          %v2137 = vpow.pop %v2136
          %v2138 = vmul.f32 %v2129, 1.442695
          %v2139 = vpow.pop %v2138
          %v2140 = vmul.f32 %v2130, 1.442695
          %v2141 = vpow.pop %v2140
          %v2142 = vmul.f32 %v2131, 1.442695
          %v2143 = vpow.pop %v2142
          %v2144 = vmul.f32 %v2132, 1.442695
          %v2145 = vpow.pop %v2144
          %v2146 = vmul.f32 %v2133, 1.442695
          %v2147 = vpow.pop %v2146
          %v2148 = vmul.f32 %v2134, 1.442695
          %v2149 = vpow.pop %v2148
          %v2150 = vmul.f32 %v2135, 1.442695
          %v2151 = vpow.pop %v2150
          %v2152 = vadd.f32 %v2137, 1.0
          %v2153 = vadd.f32 %v2139, 1.0
          %v2154 = vadd.f32 %v2141, 1.0
          %v2155 = vadd.f32 %v2143, 1.0
          %v2156 = vadd.f32 %v2145, 1.0
          %v2157 = vadd.f32 %v2147, 1.0
          %v2158 = vadd.f32 %v2149, 1.0
          %v2159 = vadd.f32 %v2151, 1.0
          %v2160 = vrcp.pop %v2152
          %v2161 = vmul.f32 %v2152, %v2160
          %v2162 = vsub.f32 1.0, %v2161
          %v2163 = vmul.f32 %v2160, %v2162
          %v2164 = vadd.f32 %v2160, %v2163
          %vm2165 = vweird.f32 %v2152
          %vm2166 = vweird.f32 %v2160
          %vm2167 = vmor %vm2165, %vm2166
          %v2168 = vsel %vm2167, %v2160, %v2164
          %v2169 = vand.u32 2147483647, %v2152
          %vm2170 = vcmp.eq.f32.partialorder %v2169, 8.507059e+37
          %v2171 = vand.u32 %v2152, 2147483648
          %v2172 = vor.u32 1.1754944e-38, %v2171
          %v2173 = vsel %vm2170, %v2172, %v2168
          %v2174 = vmul.f32 1.0, %v2173
          %v2175 = vrcp.pop %v2153
          %v2176 = vmul.f32 %v2153, %v2175
          %v2177 = vsub.f32 1.0, %v2176
          %v2178 = vmul.f32 %v2175, %v2177
          %v2179 = vadd.f32 %v2175, %v2178
          %vm2180 = vweird.f32 %v2153
          %vm2181 = vweird.f32 %v2175
          %vm2182 = vmor %vm2180, %vm2181
          %v2183 = vsel %vm2182, %v2175, %v2179
          %v2184 = vand.u32 2147483647, %v2153
          %vm2185 = vcmp.eq.f32.partialorder %v2184, 8.507059e+37
          %v2186 = vand.u32 %v2153, 2147483648
          %v2187 = vor.u32 1.1754944e-38, %v2186
          %v2188 = vsel %vm2185, %v2187, %v2183
          %v2189 = vmul.f32 1.0, %v2188
          %v2190 = vrcp.pop %v2154
          %v2191 = vmul.f32 %v2154, %v2190
          %v2192 = vsub.f32 1.0, %v2191
          %v2193 = vmul.f32 %v2190, %v2192
          %v2194 = vadd.f32 %v2190, %v2193
          %vm2195 = vweird.f32 %v2154
          %vm2196 = vweird.f32 %v2190
          %vm2197 = vmor %vm2195, %vm2196
          %v2198 = vsel %vm2197, %v2190, %v2194
          %v2199 = vand.u32 2147483647, %v2154
          %vm2200 = vcmp.eq.f32.partialorder %v2199, 8.507059e+37
          %v2201 = vand.u32 %v2154, 2147483648
          %v2202 = vor.u32 1.1754944e-38, %v2201
          %v2203 = vsel %vm2200, %v2202, %v2198
          %v2204 = vmul.f32 1.0, %v2203
          %v2205 = vrcp.pop %v2155
          %v2206 = vmul.f32 %v2155, %v2205
          %v2207 = vsub.f32 1.0, %v2206
          %v2208 = vmul.f32 %v2205, %v2207
          %v2209 = vadd.f32 %v2205, %v2208
          %vm2210 = vweird.f32 %v2155
          %vm2211 = vweird.f32 %v2205
          %vm2212 = vmor %vm2210, %vm2211
          %v2213 = vsel %vm2212, %v2205, %v2209
          %v2214 = vand.u32 2147483647, %v2155
          %vm2215 = vcmp.eq.f32.partialorder %v2214, 8.507059e+37
          %v2216 = vand.u32 %v2155, 2147483648
          %v2217 = vor.u32 1.1754944e-38, %v2216
          %v2218 = vsel %vm2215, %v2217, %v2213
          %v2219 = vmul.f32 1.0, %v2218
          %v2220 = vrcp.pop %v2156
          %v2221 = vmul.f32 %v2156, %v2220
          %v2222 = vsub.f32 1.0, %v2221
          %v2223 = vmul.f32 %v2220, %v2222
          %v2224 = vadd.f32 %v2220, %v2223
          %vm2225 = vweird.f32 %v2156
          %vm2226 = vweird.f32 %v2220
          %vm2227 = vmor %vm2225, %vm2226
          %v2228 = vsel %vm2227, %v2220, %v2224
          %v2229 = vand.u32 2147483647, %v2156
          %vm2230 = vcmp.eq.f32.partialorder %v2229, 8.507059e+37
          %v2231 = vand.u32 %v2156, 2147483648
          %v2232 = vor.u32 1.1754944e-38, %v2231
          %v2233 = vsel %vm2230, %v2232, %v2228
          %v2234 = vmul.f32 1.0, %v2233
          %v2235 = vrcp.pop %v2157
          %v2236 = vmul.f32 %v2157, %v2235
          %v2237 = vsub.f32 1.0, %v2236
          %v2238 = vmul.f32 %v2235, %v2237
          %v2239 = vadd.f32 %v2235, %v2238
          %vm2240 = vweird.f32 %v2157
          %vm2241 = vweird.f32 %v2235
          %vm2242 = vmor %vm2240, %vm2241
          %v2243 = vsel %vm2242, %v2235, %v2239
          %v2244 = vand.u32 2147483647, %v2157
          %vm2245 = vcmp.eq.f32.partialorder %v2244, 8.507059e+37
          %v2246 = vand.u32 %v2157, 2147483648
          %v2247 = vor.u32 1.1754944e-38, %v2246
          %v2248 = vsel %vm2245, %v2247, %v2243
          %v2249 = vmul.f32 1.0, %v2248
          %v2250 = vrcp.pop %v2158
          %v2251 = vmul.f32 %v2158, %v2250
          %v2252 = vsub.f32 1.0, %v2251
          %v2253 = vmul.f32 %v2250, %v2252
          %v2254 = vadd.f32 %v2250, %v2253
          %vm2255 = vweird.f32 %v2158
          %vm2256 = vweird.f32 %v2250
          %vm2257 = vmor %vm2255, %vm2256
          %v2258 = vsel %vm2257, %v2250, %v2254
          %v2259 = vand.u32 2147483647, %v2158
          %vm2260 = vcmp.eq.f32.partialorder %v2259, 8.507059e+37
          %v2261 = vand.u32 %v2158, 2147483648
          %v2262 = vor.u32 1.1754944e-38, %v2261
          %v2263 = vsel %vm2260, %v2262, %v2258
          %v2264 = vmul.f32 1.0, %v2263
          %v2265 = vrcp.pop %v2159
          %v2266 = vmul.f32 %v2159, %v2265
          %v2267 = vsub.f32 1.0, %v2266
          %v2268 = vmul.f32 %v2265, %v2267
          %v2269 = vadd.f32 %v2265, %v2268
          %vm2270 = vweird.f32 %v2159
          %vm2271 = vweird.f32 %v2265
          %vm2272 = vmor %vm2270, %vm2271
          %v2273 = vsel %vm2272, %v2265, %v2269
          %v2274 = vand.u32 2147483647, %v2159
          %vm2275 = vcmp.eq.f32.partialorder %v2274, 8.507059e+37
          %v2276 = vand.u32 %v2159, 2147483648
          %v2277 = vor.u32 1.1754944e-38, %v2276
          %v2278 = vsel %vm2275, %v2277, %v2273
          %v2279 = vmul.f32 1.0, %v2278
          %v2280 = vld [vmem:[%s525] sm:$0xff]
          %v2281 = vld [vmem:[%s525 + $0x8] sm:$0xff]
          %v2282 = vld [vmem:[%s525 + $0x10] sm:$0xff]
          %v2283 = vld [vmem:[%s525 + $0x18] sm:$0xff]
          %v2284 = vld [vmem:[%s525 + $0x20] sm:$0xff]
          %v2285 = vld [vmem:[%s525 + $0x28] sm:$0xff]
          %v2286 = vld [vmem:[%s525 + $0x30] sm:$0xff]
          %v2287 = vld [vmem:[%s525 + $0x38] sm:$0xff]
          %v2288 = vmul.f32 %v2014, %v2280
          %v2289 = vmul.f32 %v2029, %v2281
          %v2290 = vmul.f32 %v2044, %v2282
          %v2291 = vmul.f32 %v2059, %v2283
          %v2292 = vmul.f32 %v2074, %v2284
          %v2293 = vmul.f32 %v2089, %v2285
          %v2294 = vmul.f32 %v2104, %v2286
          %v2295 = vmul.f32 %v2119, %v2287
          %v2296 = vmul.f32 %v1862, %v2120
          %v2297 = vmul.f32 %v1877, %v2121
          %v2298 = vmul.f32 %v1892, %v2122
          %v2299 = vmul.f32 %v1907, %v2123
          %v2300 = vmul.f32 %v1922, %v2124
          %v2301 = vmul.f32 %v1937, %v2125
          %v2302 = vmul.f32 %v1952, %v2126
          %v2303 = vmul.f32 %v1967, %v2127
          %v2304 = vadd.f32 %v2288, %v2296
          %v2305 = vadd.f32 %v2289, %v2297
          %v2306 = vadd.f32 %v2290, %v2298
          %v2307 = vadd.f32 %v2291, %v2299
          %v2308 = vadd.f32 %v2292, %v2300
          %v2309 = vadd.f32 %v2293, %v2301
          %v2310 = vadd.f32 %v2294, %v2302
          %v2311 = vadd.f32 %v2295, %v2303
          %v2312 = vtanh.pop %v2304
          %v2313 = vtanh.pop %v2305
          %v2314 = vtanh.pop %v2306
          %v2315 = vtanh.pop %v2307
          %v2316 = vtanh.pop %v2308
          %v2317 = vtanh.pop %v2309
          %v2318 = vtanh.pop %v2310
          %v2319 = vtanh.pop %v2311
          %v2320 = vmul.f32 %v2174, %v2312
          %v2321 = vmul.f32 %v2189, %v2313
          %v2322 = vmul.f32 %v2204, %v2314
          %v2323 = vmul.f32 %v2219, %v2315
          %v2324 = vmul.f32 %v2234, %v2316
          %v2325 = vmul.f32 %v2249, %v2317
          %v2326 = vmul.f32 %v2264, %v2318
          %v2327 = vmul.f32 %v2279, %v2319
          %2328 = vst [vmem:[%s531] sm:$0xff] %v2320
          %2329 = vst [vmem:[%s531 + $0x8] sm:$0xff] %v2321
          %2330 = vst [vmem:[%s531 + $0x10] sm:$0xff] %v2322
          %2331 = vst [vmem:[%s531 + $0x18] sm:$0xff] %v2323
          %2332 = vst [vmem:[%s531 + $0x20] sm:$0xff] %v2324
          %2333 = vst [vmem:[%s531 + $0x28] sm:$0xff] %v2325
          %2334 = vst [vmem:[%s531 + $0x30] sm:$0xff] %v2326
          %2335 = vst [vmem:[%s531 + $0x38] sm:$0xff] %v2327
          %2336 = vst [vmem:[%s537] sm:$0xff] %v2304
          %2337 = vst [vmem:[%s537 + $0x8] sm:$0xff] %v2305
          %2338 = vst [vmem:[%s537 + $0x10] sm:$0xff] %v2306
          %2339 = vst [vmem:[%s537 + $0x18] sm:$0xff] %v2307
          %2340 = vst [vmem:[%s537 + $0x20] sm:$0xff] %v2308
          %2341 = vst [vmem:[%s537 + $0x28] sm:$0xff] %v2309
          %2342 = vst [vmem:[%s537 + $0x30] sm:$0xff] %v2310
          %2343 = vst [vmem:[%s537 + $0x38] sm:$0xff] %v2311
        $region101: #{_geniepath_layer_impl.3} parent=88 // pred_fallthru
          _
        %s2344 = smul.u32 8, %s25
        %p2345 = scmp.lt.s32.totalorder %s2344, 31
        %s2346 = scalar_select %p2345, %s2344, 31
        %s2347 = smul.addr %s2346, 8
        %s2348 = scalar_lea.vmem %s8, %s2347
        %s2349 = smul.u32 8, %s25
        %p2350 = scmp.lt.s32.totalorder %s2349, 31
        %s2351 = scalar_select %p2350, %s2349, 31
        %s2352 = smul.addr %s2351, 8
        %s2353 = scalar_lea.vmem %s9, %s2352
        // Predicated region
        $region102: #{_geniepath_layer_impl.3} parent=88 // pred_check
          %p2354 = pneg %p251
        $region103: #{_geniepath_layer_impl.3} parent=88 // pred_check_branch
          %2356 = sbr.rel (%p2354) target = $region105
        $region104: #{_geniepath_layer_impl.3} parent=88 // pred_region
          %s2357 = smul.u32 8, %s25
        $region105: #{_geniepath_layer_impl.3} parent=88 // pred_fallthru
          _
        // Predicated region
        $region106: #{_geniepath_layer_impl.3} parent=88 // pred_check
          %p2358 = pneg %p277
        $region107: #{_geniepath_layer_impl.3} parent=88 // pred_check_branch
          %2360 = sbr.rel (%p2358) target = $region109
        $region108: #{_geniepath_layer_impl.3} parent=88 // pred_region
          %s2361 = smul.u32 8, %s25
        $region109: #{_geniepath_layer_impl.3} parent=88 // pred_fallthru
          _
      $region89: #{_geniepath_layer_impl.3} parent=5 // pred_fallthru
        _
      %p2362 = scmp.le.s32.totalorder 2, %s16
      // Predicated region
      $region110: #{_geniepath_layer_impl.3} parent=5 // pred_check
        %p2363 = pneg %p2362
      $region111: #{_geniepath_layer_impl.3} parent=5 // pred_check_branch
        %2365 = sbr.rel (%p2363) target = $region113
      $region112: #{_geniepath_layer_impl.3} parent=5 // pred_region
        %s2366 = ssub.s32 %s16, 2
        // Predicated region
        $region114: #{_geniepath_layer_impl.3} parent=112 // pred_check
          %p2367 = pneg %p257
        $region115: #{_geniepath_layer_impl.3} parent=112 // pred_check_branch
          %2369 = sbr.rel (%p2367) target = $region117
        $region116: #{_geniepath_layer_impl.3} parent=112 // pred_region
          %s2370 = smul.u32 8, %s27
          %p2371 = scmp.lt.s32.totalorder %s2370, 31
          %s2372 = scalar_select %p2371, %s2370, 31
          %s2373 = smul.addr %s2372, 8
          %s2374 = scalar_lea.vmem %s8, %s2373
        $region117: #{_geniepath_layer_impl.3} parent=112 // pred_fallthru
          _
        // Predicated region
        $region118: #{_geniepath_layer_impl.3} parent=112 // pred_check
          %p2375 = pneg %p283
        $region119: #{_geniepath_layer_impl.3} parent=112 // pred_check_branch
          %2377 = sbr.rel (%p2375) target = $region121
        $region120: #{_geniepath_layer_impl.3} parent=112 // pred_region
          %s2378 = smul.u32 8, %s27
          %p2379 = scmp.lt.s32.totalorder %s2378, 31
          %s2380 = scalar_select %p2379, %s2378, 31
          %s2381 = smul.addr %s2380, 8
          %s2382 = scalar_lea.vmem %s9, %s2381
        $region121: #{_geniepath_layer_impl.3} parent=112 // pred_fallthru
          _
      $region113: #{_geniepath_layer_impl.3} parent=5 // pred_fallthru
        _
    $region6: #{_geniepath_layer_impl.3} parent=1 // loop_footer
      %s20 = sadd.s32 1, %s16
    $region7: #{_geniepath_layer_impl.3} parent=1 // loop_footer_branch
      %15 = sbr.rel target = $region3
    $region8: #{_geniepath_layer_impl.3} parent=1 // loop_exit
      _

// kernel: _geniepath_layer_impl.2
$region0: #{_geniepath_layer_impl.2}
  #allocation0 [shape = 'u32[]', space=smem, size = 0x4, offset = 0x4, fixed_abs, tag = 'smem constant byte address 0x4 - core index']
  #allocation1 [shape = 'u32[72,128]{1,0:T(1,128)}', space=vmem, size = 0x9000, scoped, tag = 'internal scratch']
  %s0 = inlined_call_operand.vmem [shape: bf16[256,128], index: 0, kind: input, shape index: {}]
  %s1 = inlined_call_operand.vmem [shape: bf16[128,128], index: 1, kind: input, shape index: {}]
  %s2 = inlined_call_operand.vmem [shape: f32[1,128], index: 2, kind: input, shape index: {}]
  %s3 = inlined_call_operand.vmem [shape: f32[1,128], index: 3, kind: input, shape index: {}]
  %s4 = inlined_call_operand.vmem [shape: bf16[256,128], index: 4, kind: output, shape index: {0}]
  %s5 = inlined_call_operand.vmem [shape: f32[256,1], index: 5, kind: output, shape index: {1}]
  %s6 = inlined_call_operand.vmem [shape: f32[256,1], index: 6, kind: output, shape index: {2}]
  %7 = xla_tuple %s4, %s5, %s6
  %s8 = sld [smem:[#allocation0]]
  $region65: #{_geniepath_layer_impl.2} parent=0
    _
  %s10 = ssub.s32 1, %s8
  %s11 = scalar_select 0, %s10, %s8
  loop: start=0, step=1, limit=4
  $region2: #{_geniepath_layer_impl.2} parent=0 // loop_pre_header
    _
  $region3: #{_geniepath_layer_impl.2} parent=0 // loop_header
    %s13 = sphi 0, %s17
    %p14 = scmp.ge.s32.totalorder %s13, 4
    %s23 = sphi 0, %s25
    %s26 = sphi 0, %s23
    %s27 = sphi 0, %s26
    %s43 = sphi 0, %s27
    %s47 = sphi 0, %s47
    %s49 = sphi 0, %s47
    %s50 = sphi 0, %s49
    %s64 = sphi 0, %s50
    %s68 = sphi 0, %s68
    %s70 = sphi 0, %s68
    %s71 = sphi 0, %s70
    %s85 = sphi 0, %s71
    %s89 = sphi 0, %s89
    %s91 = sphi 0, %s89
    %s92 = sphi 0, %s91
    %s106 = sphi 0, %s92
    %s112 = sphi 0, %s114
    %s115 = sphi 0, %s112
    %s116 = sphi 0, %s115
    %s132 = sphi 0, %s116
    %s138 = sphi 0, %s140
    %s141 = sphi 0, %s138
    %s142 = sphi 0, %s141
    %s158 = sphi 0, %s142
    %s164 = sphi 0, %s166
    %s167 = sphi 0, %s164
    %s168 = sphi 0, %s167
    %s184 = sphi 0, %s168
  $region4: #{_geniepath_layer_impl.2} parent=0 // loop_header_branch
    %16 = sbr.rel (%p14) target = $region8
  $region5: #{_geniepath_layer_impl.2} parent=0 // loop_body
    %s18 = ssub.s32 %s13, 1
    %s19 = ssub.s32 %s13, 2
    %s20 = sadd.s32 %s13, 1
    %s21 = ssub.s32 %s13, %s20
    %p22 = scmp.eq.s32.totalorder %s21, 0
    %s24 = sadd.s32 %s23, 1
    %s25 = scalar_select %p22, %s23, %s24
    %p28 = pneg %p22
    %p29 = scmp.eq.s32.totalorder %s13, 1
    %p30 = por %p28, %p29
    %p31 = scmp.ne.s32.totalorder %s23, %s26
    %p32 = scmp.eq.s32.totalorder %s13, 0
    %p33 = por %p31, %p32
    %p34 = scmp.ne.s32.totalorder %s23, %s26
    %p35 = scmp.eq.s32.totalorder %s18, 1
    %p36 = por %p34, %p35
    %p37 = scmp.ne.s32.totalorder %s26, %s27
    %p38 = scmp.eq.s32.totalorder %s18, 0
    %p39 = por %p37, %p38
    %p40 = scmp.ne.s32.totalorder %s26, %s27
    %p41 = scmp.eq.s32.totalorder %s19, 1
    %p42 = por %p40, %p41
    %p44 = scmp.ne.s32.totalorder %s27, %s43
    %p45 = scmp.eq.s32.totalorder %s19, 0
    %p46 = por %p44, %p45
    %s48 = sadd.s32 %s47, 1
    %p51 = scmp.eq.s32.totalorder %s13, 1
    %p52 = scmp.ne.s32.totalorder %s47, %s49
    %p53 = scmp.eq.s32.totalorder %s13, 0
    %p54 = por %p52, %p53
    %p55 = scmp.ne.s32.totalorder %s47, %s49
    %p56 = scmp.eq.s32.totalorder %s18, 1
    %p57 = por %p55, %p56
    %p58 = scmp.ne.s32.totalorder %s49, %s50
    %p59 = scmp.eq.s32.totalorder %s18, 0
    %p60 = por %p58, %p59
    %p61 = scmp.ne.s32.totalorder %s49, %s50
    %p62 = scmp.eq.s32.totalorder %s19, 1
    %p63 = por %p61, %p62
    %p65 = scmp.ne.s32.totalorder %s50, %s64
    %p66 = scmp.eq.s32.totalorder %s19, 0
    %p67 = por %p65, %p66
    %s69 = sadd.s32 %s68, 1
    %p72 = scmp.eq.s32.totalorder %s13, 1
    %p73 = scmp.ne.s32.totalorder %s68, %s70
    %p74 = scmp.eq.s32.totalorder %s13, 0
    %p75 = por %p73, %p74
    %p76 = scmp.ne.s32.totalorder %s68, %s70
    %p77 = scmp.eq.s32.totalorder %s18, 1
    %p78 = por %p76, %p77
    %p79 = scmp.ne.s32.totalorder %s70, %s71
    %p80 = scmp.eq.s32.totalorder %s18, 0
    %p81 = por %p79, %p80
    %p82 = scmp.ne.s32.totalorder %s70, %s71
    %p83 = scmp.eq.s32.totalorder %s19, 1
    %p84 = por %p82, %p83
    %p86 = scmp.ne.s32.totalorder %s71, %s85
    %p87 = scmp.eq.s32.totalorder %s19, 0
    %p88 = por %p86, %p87
    %s90 = sadd.s32 %s89, 1
    %p93 = scmp.eq.s32.totalorder %s13, 1
    %p94 = scmp.ne.s32.totalorder %s89, %s91
    %p95 = scmp.eq.s32.totalorder %s13, 0
    %p96 = por %p94, %p95
    %p97 = scmp.ne.s32.totalorder %s89, %s91
    %p98 = scmp.eq.s32.totalorder %s18, 1
    %p99 = por %p97, %p98
    %p100 = scmp.ne.s32.totalorder %s91, %s92
    %p101 = scmp.eq.s32.totalorder %s18, 0
    %p102 = por %p100, %p101
    %p103 = scmp.ne.s32.totalorder %s91, %s92
    %p104 = scmp.eq.s32.totalorder %s19, 1
    %p105 = por %p103, %p104
    %p107 = scmp.ne.s32.totalorder %s92, %s106
    %p108 = scmp.eq.s32.totalorder %s19, 0
    %p109 = por %p107, %p108
    %s110 = ssub.s32 %s13, %s20
    %p111 = scmp.eq.s32.totalorder %s110, 0
    %s113 = sadd.s32 %s112, 1
    %s114 = scalar_select %p111, %s112, %s113
    %p117 = pneg %p111
    %p118 = scmp.eq.s32.totalorder %s13, 1
    %p119 = por %p117, %p118
    %p120 = scmp.ne.s32.totalorder %s112, %s115
    %p121 = scmp.eq.s32.totalorder %s13, 0
    %p122 = por %p120, %p121
    %p123 = scmp.ne.s32.totalorder %s112, %s115
    %p124 = scmp.eq.s32.totalorder %s18, 1
    %p125 = por %p123, %p124
    %p126 = scmp.ne.s32.totalorder %s115, %s116
    %p127 = scmp.eq.s32.totalorder %s18, 0
    %p128 = por %p126, %p127
    %p129 = scmp.ne.s32.totalorder %s115, %s116
    %p130 = scmp.eq.s32.totalorder %s19, 1
    %p131 = por %p129, %p130
    %p133 = scmp.ne.s32.totalorder %s116, %s132
    %p134 = scmp.eq.s32.totalorder %s19, 0
    %p135 = por %p133, %p134
    %s136 = ssub.s32 %s13, %s20
    %p137 = scmp.eq.s32.totalorder %s136, 0
    %s139 = sadd.s32 %s138, 1
    %s140 = scalar_select %p137, %s138, %s139
    %p143 = pneg %p137
    %p144 = scmp.eq.s32.totalorder %s13, 1
    %p145 = por %p143, %p144
    %p146 = scmp.ne.s32.totalorder %s138, %s141
    %p147 = scmp.eq.s32.totalorder %s13, 0
    %p148 = por %p146, %p147
    %p149 = scmp.ne.s32.totalorder %s138, %s141
    %p150 = scmp.eq.s32.totalorder %s18, 1
    %p151 = por %p149, %p150
    %p152 = scmp.ne.s32.totalorder %s141, %s142
    %p153 = scmp.eq.s32.totalorder %s18, 0
    %p154 = por %p152, %p153
    %p155 = scmp.ne.s32.totalorder %s141, %s142
    %p156 = scmp.eq.s32.totalorder %s19, 1
    %p157 = por %p155, %p156
    %p159 = scmp.ne.s32.totalorder %s142, %s158
    %p160 = scmp.eq.s32.totalorder %s19, 0
    %p161 = por %p159, %p160
    %s162 = ssub.s32 %s13, %s20
    %p163 = scmp.eq.s32.totalorder %s162, 0
    %s165 = sadd.s32 %s164, 1
    %s166 = scalar_select %p163, %s164, %s165
    %p169 = pneg %p163
    %p170 = scmp.eq.s32.totalorder %s13, 1
    %p171 = por %p169, %p170
    %p172 = scmp.ne.s32.totalorder %s164, %s167
    %p173 = scmp.eq.s32.totalorder %s13, 0
    %p174 = por %p172, %p173
    %p175 = scmp.ne.s32.totalorder %s164, %s167
    %p176 = scmp.eq.s32.totalorder %s18, 1
    %p177 = por %p175, %p176
    %p178 = scmp.ne.s32.totalorder %s167, %s168
    %p179 = scmp.eq.s32.totalorder %s18, 0
    %p180 = por %p178, %p179
    %p181 = scmp.ne.s32.totalorder %s167, %s168
    %p182 = scmp.eq.s32.totalorder %s19, 1
    %p183 = por %p181, %p182
    %p185 = scmp.ne.s32.totalorder %s168, %s184
    %p186 = scmp.eq.s32.totalorder %s19, 0
    %p187 = por %p185, %p186
    %p188 = scmp.le.s32.totalorder 1, %s13
    %p189 = scmp.lt.s32.totalorder %s13, 3
    %p190 = pnand %p188, %p189
    %p191 = pneg %p190
    // Predicated region
    $region9: #{_geniepath_layer_impl.2} parent=5 // pred_check
      _
    $region10: #{_geniepath_layer_impl.2} parent=5 // pred_check_branch
      %193 = sbr.rel (%p190) target = $region12
    $region11: #{_geniepath_layer_impl.2} parent=5 // pred_region
      %s194 = ssub.s32 %s13, 1
      // Predicated region
      $region13: #{_geniepath_layer_impl.2} parent=11 // pred_check
        %p195 = pneg %p60
      $region14: #{_geniepath_layer_impl.2} parent=11 // pred_check_branch
        %197 = sbr.rel (%p195) target = $region16
      $region15: #{_geniepath_layer_impl.2} parent=11 // pred_region
        _
      $region16: #{_geniepath_layer_impl.2} parent=11 // pred_fallthru
        _
      // Predicated region
      $region17: #{_geniepath_layer_impl.2} parent=11 // pred_check
        %p198 = pneg %p81
      $region18: #{_geniepath_layer_impl.2} parent=11 // pred_check_branch
        %200 = sbr.rel (%p198) target = $region20
      $region19: #{_geniepath_layer_impl.2} parent=11 // pred_region
        _
      $region20: #{_geniepath_layer_impl.2} parent=11 // pred_fallthru
        _
      // Predicated region
      $region21: #{_geniepath_layer_impl.2} parent=11 // pred_check
        %p201 = pneg %p102
      $region22: #{_geniepath_layer_impl.2} parent=11 // pred_check_branch
        %203 = sbr.rel (%p201) target = $region24
      $region23: #{_geniepath_layer_impl.2} parent=11 // pred_region
        _
      $region24: #{_geniepath_layer_impl.2} parent=11 // pred_fallthru
        _
    $region12: #{_geniepath_layer_impl.2} parent=5 // pred_fallthru
      _
    %p204 = scmp.lt.s32.totalorder %s13, 2
    // Predicated region
    $region25: #{_geniepath_layer_impl.2} parent=5 // pred_check
      %p205 = pneg %p204
    $region26: #{_geniepath_layer_impl.2} parent=5 // pred_check_branch
      %207 = sbr.rel (%p205) target = $region28
    $region27: #{_geniepath_layer_impl.2} parent=5 // pred_region
      // Predicated region
      $region29: #{_geniepath_layer_impl.2} parent=27 // pred_check
        %p208 = pneg %p33
      $region30: #{_geniepath_layer_impl.2} parent=27 // pred_check_branch
        %210 = sbr.rel (%p208) target = $region32
      $region31: #{_geniepath_layer_impl.2} parent=27 // pred_region
        %s211 = smul.u32 16, %s13
        %p212 = scmp.lt.s32.totalorder %s211, 31
        %s213 = scalar_select %p212, %s211, 31
        %s214 = smul.addr %s213, 4
        %s215 = scalar_lea.vmem %s0, %s214
        %s216 = smul.u32 16, %s13
      $region32: #{_geniepath_layer_impl.2} parent=27 // pred_fallthru
        _
    $region28: #{_geniepath_layer_impl.2} parent=5 // pred_fallthru
      _
    %p217 = scmp.le.s32.totalorder 1, %s13
    %p218 = scmp.lt.s32.totalorder %s13, 3
    %p219 = pnand %p217, %p218
    %p220 = pneg %p219
    // Predicated region
    $region33: #{_geniepath_layer_impl.2} parent=5 // pred_check
      _
    $region34: #{_geniepath_layer_impl.2} parent=5 // pred_check_branch
      %222 = sbr.rel (%p219) target = $region36
    $region35: #{_geniepath_layer_impl.2} parent=5 // pred_region
      %s223 = ssub.s32 %s13, 1
      %s224 = smul.u32 16, %s18
      %p225 = scmp.lt.s32.totalorder %s224, 31
      %s226 = scalar_select %p225, %s224, 31
      %s227 = smul.addr %s226, 4
      %s228 = scalar_lea.vmem %s0, %s227
      %p229 = pneg %p39
      %p230 = pneg %p36
      %p231 = pneg %p60
      %p232 = pneg %p57
      %p233 = pneg %p81
      %p234 = pneg %p78
      %p235 = pneg %p102
      %p236 = pneg %p99
      %p237 = pneg %p128
      %p238 = pneg %p125
      %s239 = smul.u32 16, %s18
      %p240 = scmp.lt.s32.totalorder %s239, 31
      %s241 = scalar_select %p240, %s239, 31
      %s242 = smul.addr %s241, 4
      %s243 = scalar_lea.vmem %s4, %s242
      %p244 = pneg %p154
      %p245 = pneg %p151
      %s246 = smul.u32 16, %s18
      %p247 = scmp.lt.s32.totalorder %s246, 31
      %s248 = scalar_select %p247, %s246, 31
      %s249 = smul.addr %s248, 8
      %s250 = scalar_lea.vmem %s5, %s249
      %p251 = pneg %p180
      %p252 = pneg %p177
      %s253 = smul.u32 16, %s18
      %p254 = scmp.lt.s32.totalorder %s253, 31
      %s255 = scalar_select %p254, %s253, 31
      %s256 = smul.addr %s255, 8
      %s257 = scalar_lea.vmem %s6, %s256
      %s258 = smul.u32 16, %s18
      %p259 = scmp.lt.s32.totalorder %s258, 31
      %s260 = scalar_select %p259, %s258, 31
      %s261 = smul.addr %s260, 4
      %s262 = scalar_lea.vmem %s0, %s261
      %s263 = smul.u32 16, %s18
      %s264 = smul.u32 16, %s18
      %p265 = scmp.lt.s32.totalorder %s264, 31
      %s266 = scalar_select %p265, %s264, 31
      %s267 = smul.addr %s266, 4
      %s268 = scalar_lea.vmem %s4, %s267
      %s269 = smul.u32 16, %s18
      %s270 = smul.u32 16, %s18
      %p271 = scmp.lt.s32.totalorder %s270, 31
      %s272 = scalar_select %p271, %s270, 31
      %s273 = smul.addr %s272, 8
      %s274 = scalar_lea.vmem %s5, %s273
      %s275 = smul.u32 16, %s18
      %s276 = smul.u32 16, %s18
      %p277 = scmp.lt.s32.totalorder %s276, 31
      %s278 = scalar_select %p277, %s276, 31
      %s279 = smul.addr %s278, 8
      %s280 = scalar_lea.vmem %s6, %s279
      %s281 = smul.u32 16, %s18
      %v282 = vld [vmem:[%s262] sm:$0xf]
      %v283 = vld [vmem:[%s262 + $0x4] sm:$0xf]
      %v284 = vld [vmem:[%s262 + $0x8] sm:$0xf]
      %v285 = vld [vmem:[%s262 + $0xc] sm:$0xf]
      %v286 = vld [vmem:[%s262 + $0x10] sm:$0xf]
      %v287 = vld [vmem:[%s262 + $0x14] sm:$0xf]
      %v288 = vld [vmem:[%s262 + $0x18] sm:$0xf]
      %v289 = vld [vmem:[%s262 + $0x1c] sm:$0xf]
      %v290 = vld [vmem:[%s262 + $0x20] sm:$0xf]
      %v291 = vld [vmem:[%s262 + $0x24] sm:$0xf]
      %v292 = vld [vmem:[%s262 + $0x28] sm:$0xf]
      %v293 = vld [vmem:[%s262 + $0x2c] sm:$0xf]
      %v294 = vld [vmem:[%s262 + $0x30] sm:$0xf]
      %v295 = vld [vmem:[%s262 + $0x34] sm:$0xf]
      %v296 = vld [vmem:[%s262 + $0x38] sm:$0xf]
      %v297 = vld [vmem:[%s262 + $0x3c] sm:$0xf]
      %v298 = vld [vmem:[%s1] sm:$0xf]
      %v299 = vld [vmem:[%s1 + $0x4] sm:$0xf]
      %v300 = vld [vmem:[%s1 + $0x8] sm:$0xf]
      %v301 = vld [vmem:[%s1 + $0xc] sm:$0xf]
      %v302 = vld [vmem:[%s1 + $0x10] sm:$0xf]
      %v303 = vld [vmem:[%s1 + $0x14] sm:$0xf]
      %v304 = vld [vmem:[%s1 + $0x18] sm:$0xf]
      %v305 = vld [vmem:[%s1 + $0x1c] sm:$0xf]
      %v306 = vld [vmem:[%s1 + $0x20] sm:$0xf]
      %v307 = vld [vmem:[%s1 + $0x24] sm:$0xf]
      %v308 = vld [vmem:[%s1 + $0x28] sm:$0xf]
      %v309 = vld [vmem:[%s1 + $0x2c] sm:$0xf]
      %v310 = vld [vmem:[%s1 + $0x30] sm:$0xf]
      %v311 = vld [vmem:[%s1 + $0x34] sm:$0xf]
      %v312 = vld [vmem:[%s1 + $0x38] sm:$0xf]
      %v313 = vld [vmem:[%s1 + $0x3c] sm:$0xf]
      %v330 = vunpack.c.l.b16 %v282
      %v331 = vunpack.c.l.b16 %v283
      %v332 = vunpack.c.l.b16 %v284
      %v333 = vunpack.c.l.b16 %v285
      %v334 = vunpack.c.l.b16 %v286
      %v335 = vunpack.c.l.b16 %v287
      %v336 = vunpack.c.l.b16 %v288
      %v337 = vunpack.c.l.b16 %v289
      %v338 = vunpack.c.l.b16 %v290
      %v339 = vunpack.c.l.b16 %v291
      %v340 = vunpack.c.l.b16 %v292
      %v341 = vunpack.c.l.b16 %v293
      %v342 = vunpack.c.l.b16 %v294
      %v343 = vunpack.c.l.b16 %v295
      %v344 = vunpack.c.l.b16 %v296
      %v345 = vunpack.c.l.b16 %v297
      %v346 = vpack.c.b16 %v331, %v330
      %v347 = vpack.c.b16 %v333, %v332
      %v348 = vpack.c.b16 %v335, %v334
      %v349 = vpack.c.b16 %v337, %v336
      %v350 = vpack.c.b16 %v339, %v338
      %v351 = vpack.c.b16 %v341, %v340
      %v352 = vpack.c.b16 %v343, %v342
      %v353 = vpack.c.b16 %v345, %v344
      %v378 = vunpack.c.l.b16 %v298
      %v379 = vunpack.c.l.b16 %v299
      %v380 = vunpack.c.l.b16 %v300
      %v381 = vunpack.c.l.b16 %v301
      %v382 = vunpack.c.l.b16 %v302
      %v383 = vunpack.c.l.b16 %v303
      %v384 = vunpack.c.l.b16 %v304
      %v385 = vunpack.c.l.b16 %v305
      %v386 = vunpack.c.l.b16 %v306
      %v387 = vunpack.c.l.b16 %v307
      %v388 = vunpack.c.l.b16 %v308
      %v389 = vunpack.c.l.b16 %v309
      %v390 = vunpack.c.l.b16 %v310
      %v391 = vunpack.c.l.b16 %v311
      %v392 = vunpack.c.l.b16 %v312
      %v393 = vunpack.c.l.b16 %v313
      %v394 = vpack.c.b16 %v379, %v378
      %v395 = vpack.c.b16 %v381, %v380
      %v396 = vpack.c.b16 %v383, %v382
      %v397 = vpack.c.b16 %v385, %v384
      %v398 = vpack.c.b16 %v387, %v386
      %v399 = vpack.c.b16 %v389, %v388
      %v400 = vpack.c.b16 %v391, %v390
      %v401 = vpack.c.b16 %v393, %v392
      %410 = vmatpush.bf16.msra.mxu0 %v401
      %411 = vmatpush.bf16.msra.mxu0 %v400
      %412 = vmatpush.bf16.msra.mxu0 %v399
      %413 = vmatpush.bf16.msra.mxu0 %v398
      %414 = vmatpush.bf16.msra.mxu0 %v397
      %415 = vmatpush.bf16.msra.mxu0 %v396
      %416 = vmatpush.bf16.msra.mxu0 %v395
      %417 = vmatpush.bf16.msra.mxu0 %v394
      %418 = vmatmul.bf16.gmra.mxu0 %v346
      %v419 = vpop.f32.mrf.mxu0
      %v420 = vadd.f32 0.0, %v419
      %v421 = vpop.f32.mrf.mxu0
      %v422 = vadd.f32 0.0, %v421
      %423 = vmatmul.bf16.gmra.mxu0 %v347
      %v424 = vpop.f32.mrf.mxu0
      %v425 = vadd.f32 0.0, %v424
      %v426 = vpop.f32.mrf.mxu0
      %v427 = vadd.f32 0.0, %v426
      %428 = vmatmul.bf16.gmra.mxu0 %v348
      %v429 = vpop.f32.mrf.mxu0
      %v430 = vadd.f32 0.0, %v429
      %v431 = vpop.f32.mrf.mxu0
      %v432 = vadd.f32 0.0, %v431
      %433 = vmatmul.bf16.gmra.mxu0 %v349
      %v434 = vpop.f32.mrf.mxu0
      %v435 = vadd.f32 0.0, %v434
      %v436 = vpop.f32.mrf.mxu0
      %v437 = vadd.f32 0.0, %v436
      %438 = vmatmul.bf16.gmra.mxu0 %v350
      %v439 = vpop.f32.mrf.mxu0
      %v440 = vadd.f32 0.0, %v439
      %v441 = vpop.f32.mrf.mxu0
      %v442 = vadd.f32 0.0, %v441
      %443 = vmatmul.bf16.gmra.mxu0 %v351
      %v444 = vpop.f32.mrf.mxu0
      %v445 = vadd.f32 0.0, %v444
      %v446 = vpop.f32.mrf.mxu0
      %v447 = vadd.f32 0.0, %v446
      %448 = vmatmul.bf16.gmra.mxu0 %v352
      %v449 = vpop.f32.mrf.mxu0
      %v450 = vadd.f32 0.0, %v449
      %v451 = vpop.f32.mrf.mxu0
      %v452 = vadd.f32 0.0, %v451
      %453 = vmatmul.bf16.gmra.mxu0 %v353
      %v454 = vpop.f32.mrf.mxu0
      %v455 = vadd.f32 0.0, %v454
      %v456 = vpop.f32.mrf.mxu0
      %v457 = vadd.f32 0.0, %v456
      %458 = vdwg.mxu0
      %v459 = vpack.c.bf16 %v420, %v420
      %v460 = vpack.c.bf16 %v422, %v422
      %v461 = vpack.c.bf16 %v425, %v425
      %v462 = vpack.c.bf16 %v427, %v427
      %v463 = vpack.c.bf16 %v430, %v430
      %v464 = vpack.c.bf16 %v432, %v432
      %v465 = vpack.c.bf16 %v435, %v435
      %v466 = vpack.c.bf16 %v437, %v437
      %v467 = vpack.c.bf16 %v440, %v440
      %v468 = vpack.c.bf16 %v442, %v442
      %v469 = vpack.c.bf16 %v445, %v445
      %v470 = vpack.c.bf16 %v447, %v447
      %v471 = vpack.c.bf16 %v450, %v450
      %v472 = vpack.c.bf16 %v452, %v452
      %v473 = vpack.c.bf16 %v455, %v455
      %v474 = vpack.c.bf16 %v457, %v457
      %475 = vst [vmem:[%s268] sm:$0xf] %v459
      %476 = vst [vmem:[%s268 + $0x4] sm:$0xf] %v460
      %477 = vst [vmem:[%s268 + $0x8] sm:$0xf] %v461
      %478 = vst [vmem:[%s268 + $0xc] sm:$0xf] %v462
      %479 = vst [vmem:[%s268 + $0x10] sm:$0xf] %v463
      %480 = vst [vmem:[%s268 + $0x14] sm:$0xf] %v464
      %481 = vst [vmem:[%s268 + $0x18] sm:$0xf] %v465
      %482 = vst [vmem:[%s268 + $0x1c] sm:$0xf] %v466
      %483 = vst [vmem:[%s268 + $0x20] sm:$0xf] %v467
      %484 = vst [vmem:[%s268 + $0x24] sm:$0xf] %v468
      %485 = vst [vmem:[%s268 + $0x28] sm:$0xf] %v469
      %486 = vst [vmem:[%s268 + $0x2c] sm:$0xf] %v470
      %487 = vst [vmem:[%s268 + $0x30] sm:$0xf] %v471
      %488 = vst [vmem:[%s268 + $0x34] sm:$0xf] %v472
      %489 = vst [vmem:[%s268 + $0x38] sm:$0xf] %v473
      %490 = vst [vmem:[%s268 + $0x3c] sm:$0xf] %v474
      %v491 = vld [vmem:[%s2] sm:$0x1]
      %v493 = vperm.slane %v491, 0
      %v495 = vmul.f32 %v420, %v493
      %v496 = vmul.f32 %v422, %v493
      %v497 = vmul.f32 %v425, %v493
      %v498 = vmul.f32 %v427, %v493
      %v499 = vmul.f32 %v430, %v493
      %v500 = vmul.f32 %v432, %v493
      %v501 = vmul.f32 %v435, %v493
      %v502 = vmul.f32 %v437, %v493
      %v503 = vmul.f32 %v440, %v493
      %v504 = vmul.f32 %v442, %v493
      %v505 = vmul.f32 %v445, %v493
      %v506 = vmul.f32 %v447, %v493
      %v507 = vmul.f32 %v450, %v493
      %v508 = vmul.f32 %v452, %v493
      %v509 = vmul.f32 %v455, %v493
      %v510 = vmul.f32 %v457, %v493
      %511 = vadd.xlane.f32.xlu0 %v495
      %v512 = vpop.xlane.xlu0 %511
      %513 = vadd.xlane.f32.xlu0 %v496
      %v514 = vpop.xlane.xlu0 %513
      %515 = vadd.xlane.f32.xlu0 %v497
      %v516 = vpop.xlane.xlu0 %515
      %517 = vadd.xlane.f32.xlu0 %v498
      %v518 = vpop.xlane.xlu0 %517
      %519 = vadd.xlane.f32.xlu0 %v499
      %v520 = vpop.xlane.xlu0 %519
      %521 = vadd.xlane.f32.xlu0 %v500
      %v522 = vpop.xlane.xlu0 %521
      %523 = vadd.xlane.f32.xlu0 %v501
      %v524 = vpop.xlane.xlu0 %523
      %525 = vadd.xlane.f32.xlu0 %v502
      %v526 = vpop.xlane.xlu0 %525
      %527 = vadd.xlane.f32.xlu0 %v503
      %v528 = vpop.xlane.xlu0 %527
      %529 = vadd.xlane.f32.xlu0 %v504
      %v530 = vpop.xlane.xlu0 %529
      %531 = vadd.xlane.f32.xlu0 %v505
      %v532 = vpop.xlane.xlu0 %531
      %533 = vadd.xlane.f32.xlu0 %v506
      %v534 = vpop.xlane.xlu0 %533
      %535 = vadd.xlane.f32.xlu0 %v507
      %v536 = vpop.xlane.xlu0 %535
      %537 = vadd.xlane.f32.xlu0 %v508
      %v538 = vpop.xlane.xlu0 %537
      %539 = vadd.xlane.f32.xlu0 %v509
      %v540 = vpop.xlane.xlu0 %539
      %541 = vadd.xlane.f32.xlu0 %v510
      %v542 = vpop.xlane.xlu0 %541
      %vm543 = vcmask 7168
      %544 = vst.msk [vmem:[%s274] sm:$0xff] %vm543, %v512
      %545 = vst.msk [vmem:[%s274 + $0x8] sm:$0xff] %vm543, %v514
      %546 = vst.msk [vmem:[%s274 + $0x10] sm:$0xff] %vm543, %v516
      %547 = vst.msk [vmem:[%s274 + $0x18] sm:$0xff] %vm543, %v518
      %548 = vst.msk [vmem:[%s274 + $0x20] sm:$0xff] %vm543, %v520
      %549 = vst.msk [vmem:[%s274 + $0x28] sm:$0xff] %vm543, %v522
      %550 = vst.msk [vmem:[%s274 + $0x30] sm:$0xff] %vm543, %v524
      %551 = vst.msk [vmem:[%s274 + $0x38] sm:$0xff] %vm543, %v526
      %552 = vst.msk [vmem:[%s274 + $0x40] sm:$0xff] %vm543, %v528
      %553 = vst.msk [vmem:[%s274 + $0x48] sm:$0xff] %vm543, %v530
      %554 = vst.msk [vmem:[%s274 + $0x50] sm:$0xff] %vm543, %v532
      %555 = vst.msk [vmem:[%s274 + $0x58] sm:$0xff] %vm543, %v534
      %556 = vst.msk [vmem:[%s274 + $0x60] sm:$0xff] %vm543, %v536
      %557 = vst.msk [vmem:[%s274 + $0x68] sm:$0xff] %vm543, %v538
      %558 = vst.msk [vmem:[%s274 + $0x70] sm:$0xff] %vm543, %v540
      %559 = vst.msk [vmem:[%s274 + $0x78] sm:$0xff] %vm543, %v542
      %v560 = vld [vmem:[%s3] sm:$0x1]
      %v562 = vperm.slane %v560, 0
      %v564 = vmul.f32 %v420, %v562
      %v565 = vmul.f32 %v422, %v562
      %v566 = vmul.f32 %v425, %v562
      %v567 = vmul.f32 %v427, %v562
      %v568 = vmul.f32 %v430, %v562
      %v569 = vmul.f32 %v432, %v562
      %v570 = vmul.f32 %v435, %v562
      %v571 = vmul.f32 %v437, %v562
      %v572 = vmul.f32 %v440, %v562
      %v573 = vmul.f32 %v442, %v562
      %v574 = vmul.f32 %v445, %v562
      %v575 = vmul.f32 %v447, %v562
      %v576 = vmul.f32 %v450, %v562
      %v577 = vmul.f32 %v452, %v562
      %v578 = vmul.f32 %v455, %v562
      %v579 = vmul.f32 %v457, %v562
      %580 = vadd.xlane.f32.xlu0 %v564
      %v581 = vpop.xlane.xlu0 %580
      %582 = vadd.xlane.f32.xlu0 %v565
      %v583 = vpop.xlane.xlu0 %582
      %584 = vadd.xlane.f32.xlu0 %v566
      %v585 = vpop.xlane.xlu0 %584
      %586 = vadd.xlane.f32.xlu0 %v567
      %v587 = vpop.xlane.xlu0 %586
      %588 = vadd.xlane.f32.xlu0 %v568
      %v589 = vpop.xlane.xlu0 %588
      %590 = vadd.xlane.f32.xlu0 %v569
      %v591 = vpop.xlane.xlu0 %590
      %592 = vadd.xlane.f32.xlu0 %v570
      %v593 = vpop.xlane.xlu0 %592
      %594 = vadd.xlane.f32.xlu0 %v571
      %v595 = vpop.xlane.xlu0 %594
      %596 = vadd.xlane.f32.xlu0 %v572
      %v597 = vpop.xlane.xlu0 %596
      %598 = vadd.xlane.f32.xlu0 %v573
      %v599 = vpop.xlane.xlu0 %598
      %600 = vadd.xlane.f32.xlu0 %v574
      %v601 = vpop.xlane.xlu0 %600
      %602 = vadd.xlane.f32.xlu0 %v575
      %v603 = vpop.xlane.xlu0 %602
      %604 = vadd.xlane.f32.xlu0 %v576
      %v605 = vpop.xlane.xlu0 %604
      %606 = vadd.xlane.f32.xlu0 %v577
      %v607 = vpop.xlane.xlu0 %606
      %608 = vadd.xlane.f32.xlu0 %v578
      %v609 = vpop.xlane.xlu0 %608
      %610 = vadd.xlane.f32.xlu0 %v579
      %v611 = vpop.xlane.xlu0 %610
      %612 = vst.msk [vmem:[%s280] sm:$0xff] %vm543, %v581
      %613 = vst.msk [vmem:[%s280 + $0x8] sm:$0xff] %vm543, %v583
      %614 = vst.msk [vmem:[%s280 + $0x10] sm:$0xff] %vm543, %v585
      %615 = vst.msk [vmem:[%s280 + $0x18] sm:$0xff] %vm543, %v587
      %616 = vst.msk [vmem:[%s280 + $0x20] sm:$0xff] %vm543, %v589
      %617 = vst.msk [vmem:[%s280 + $0x28] sm:$0xff] %vm543, %v591
      %618 = vst.msk [vmem:[%s280 + $0x30] sm:$0xff] %vm543, %v593
      %619 = vst.msk [vmem:[%s280 + $0x38] sm:$0xff] %vm543, %v595
      %620 = vst.msk [vmem:[%s280 + $0x40] sm:$0xff] %vm543, %v597
      %621 = vst.msk [vmem:[%s280 + $0x48] sm:$0xff] %vm543, %v599
      %622 = vst.msk [vmem:[%s280 + $0x50] sm:$0xff] %vm543, %v601
      %623 = vst.msk [vmem:[%s280 + $0x58] sm:$0xff] %vm543, %v603
      %624 = vst.msk [vmem:[%s280 + $0x60] sm:$0xff] %vm543, %v605
      %625 = vst.msk [vmem:[%s280 + $0x68] sm:$0xff] %vm543, %v607
      %626 = vst.msk [vmem:[%s280 + $0x70] sm:$0xff] %vm543, %v609
      %627 = vst.msk [vmem:[%s280 + $0x78] sm:$0xff] %vm543, %v611
      %s628 = smul.u32 16, %s18
      %p629 = scmp.lt.s32.totalorder %s628, 31
      %s630 = scalar_select %p629, %s628, 31
      %s631 = smul.addr %s630, 4
      %s632 = scalar_lea.vmem %s4, %s631
      %s633 = smul.u32 16, %s18
      %p634 = scmp.lt.s32.totalorder %s633, 31
      %s635 = scalar_select %p634, %s633, 31
      %s636 = smul.addr %s635, 8
      %s637 = scalar_lea.vmem %s5, %s636
      %s638 = smul.u32 16, %s18
      %p639 = scmp.lt.s32.totalorder %s638, 31
      %s640 = scalar_select %p639, %s638, 31
      %s641 = smul.addr %s640, 8
      %s642 = scalar_lea.vmem %s6, %s641
      // Predicated region
      $region37: #{_geniepath_layer_impl.2} parent=35 // pred_check
        %p643 = pneg %p125
      $region38: #{_geniepath_layer_impl.2} parent=35 // pred_check_branch
        %645 = sbr.rel (%p643) target = $region40
      $region39: #{_geniepath_layer_impl.2} parent=35 // pred_region
        %s646 = smul.u32 16, %s18
      $region40: #{_geniepath_layer_impl.2} parent=35 // pred_fallthru
        _
      // Predicated region
      $region41: #{_geniepath_layer_impl.2} parent=35 // pred_check
        %p647 = pneg %p151
      $region42: #{_geniepath_layer_impl.2} parent=35 // pred_check_branch
        %649 = sbr.rel (%p647) target = $region44
      $region43: #{_geniepath_layer_impl.2} parent=35 // pred_region
        %s650 = smul.u32 16, %s18
      $region44: #{_geniepath_layer_impl.2} parent=35 // pred_fallthru
        _
      // Predicated region
      $region45: #{_geniepath_layer_impl.2} parent=35 // pred_check
        %p651 = pneg %p177
      $region46: #{_geniepath_layer_impl.2} parent=35 // pred_check_branch
        %653 = sbr.rel (%p651) target = $region48
      $region47: #{_geniepath_layer_impl.2} parent=35 // pred_region
        %s654 = smul.u32 16, %s18
      $region48: #{_geniepath_layer_impl.2} parent=35 // pred_fallthru
        _
    $region36: #{_geniepath_layer_impl.2} parent=5 // pred_fallthru
      _
    %p655 = scmp.le.s32.totalorder 2, %s13
    // Predicated region
    $region49: #{_geniepath_layer_impl.2} parent=5 // pred_check
      %p656 = pneg %p655
    $region50: #{_geniepath_layer_impl.2} parent=5 // pred_check_branch
      %658 = sbr.rel (%p656) target = $region52
    $region51: #{_geniepath_layer_impl.2} parent=5 // pred_region
      %s659 = ssub.s32 %s13, 2
      // Predicated region
      $region53: #{_geniepath_layer_impl.2} parent=51 // pred_check
        %p660 = pneg %p131
      $region54: #{_geniepath_layer_impl.2} parent=51 // pred_check_branch
        %662 = sbr.rel (%p660) target = $region56
      $region55: #{_geniepath_layer_impl.2} parent=51 // pred_region
        %s663 = smul.u32 16, %s19
        %p664 = scmp.lt.s32.totalorder %s663, 31
        %s665 = scalar_select %p664, %s663, 31
        %s666 = smul.addr %s665, 4
        %s667 = scalar_lea.vmem %s4, %s666
      $region56: #{_geniepath_layer_impl.2} parent=51 // pred_fallthru
        _
      // Predicated region
      $region57: #{_geniepath_layer_impl.2} parent=51 // pred_check
        %p668 = pneg %p157
      $region58: #{_geniepath_layer_impl.2} parent=51 // pred_check_branch
        %670 = sbr.rel (%p668) target = $region60
      $region59: #{_geniepath_layer_impl.2} parent=51 // pred_region
        %s671 = smul.u32 16, %s19
        %p672 = scmp.lt.s32.totalorder %s671, 31
        %s673 = scalar_select %p672, %s671, 31
        %s674 = smul.addr %s673, 8
        %s675 = scalar_lea.vmem %s5, %s674
      $region60: #{_geniepath_layer_impl.2} parent=51 // pred_fallthru
        _
      // Predicated region
      $region61: #{_geniepath_layer_impl.2} parent=51 // pred_check
        %p676 = pneg %p183
      $region62: #{_geniepath_layer_impl.2} parent=51 // pred_check_branch
        %678 = sbr.rel (%p676) target = $region64
      $region63: #{_geniepath_layer_impl.2} parent=51 // pred_region
        %s679 = smul.u32 16, %s19
        %p680 = scmp.lt.s32.totalorder %s679, 31
        %s681 = scalar_select %p680, %s679, 31
        %s682 = smul.addr %s681, 8
        %s683 = scalar_lea.vmem %s6, %s682
      $region64: #{_geniepath_layer_impl.2} parent=51 // pred_fallthru
        _
    $region52: #{_geniepath_layer_impl.2} parent=5 // pred_fallthru
      _
  $region6: #{_geniepath_layer_impl.2} parent=0 // loop_footer
    %s17 = sadd.s32 1, %s13
  $region7: #{_geniepath_layer_impl.2} parent=0 // loop_footer_branch
    %12 = sbr.rel target = $region3
  $region8: #{_geniepath_layer_impl.2} parent=0 // loop_exit
    _

// kernel: _geniepath_layer_impl.3
$region0: #{_geniepath_layer_impl.3}
  #allocation0 [shape = 'u32[]', space=smem, size = 0x4, offset = 0x4, fixed_abs, tag = 'smem constant byte address 0x4 - core index']
  #allocation1 [shape = 'u32[72,128]{1,0:T(1,128)}', space=vmem, size = 0x9000, scoped, tag = 'internal scratch']
  #allocation2 [shape = 'f32[64,1]{1,0:T(8,128)}', space=vmem, size = 0x8000, scoped, tag = 'scratch operand']
  #allocation3 [shape = 'f32[64,1]{1,0:T(8,128)}', space=vmem, size = 0x8000, scoped, tag = 'scratch operand']
  #allocation4 [shape = 'f32[64,128]{1,0:T(8,128)}', space=vmem, size = 0x8000, scoped, tag = 'scratch operand']
  %s0 = inlined_call_operand.vmem [shape: s8[256,256], index: 0, kind: input, shape index: {}]
  %s1 = inlined_call_operand.vmem [shape: bf16[256,128], index: 1, kind: input, shape index: {}]
  %s2 = inlined_call_operand.vmem [shape: f32[1,256], index: 2, kind: input, shape index: {}]
  %s3 = inlined_call_operand.vmem [shape: f32[256,1], index: 3, kind: input, shape index: {}]
  %s4 = inlined_call_operand.vmem [shape: f32[1,128], index: 4, kind: input, shape index: {}]
  %s5 = inlined_call_operand.vmem [shape: bf16[256,512], index: 5, kind: input, shape index: {}]
  %s6 = inlined_call_operand.vmem [shape: bf16[256,128], index: 6, kind: input, shape index: {}]
  %s7 = inlined_call_operand.vmem [shape: f32[256,128], index: 7, kind: input, shape index: {}]
  %s8 = inlined_call_operand.vmem [shape: f32[256,128], index: 8, kind: output, shape index: {0}]
  %s9 = inlined_call_operand.vmem [shape: f32[256,128], index: 9, kind: output, shape index: {1}]
  %10 = xla_tuple %s8, %s9
  %s11 = sld [smem:[#allocation0]]
  $region122: #{_geniepath_layer_impl.3} parent=0
    _
  %s13 = ssub.s32 1, %s11
  %s14 = scalar_select 0, %s13, %s11
  $region1: #{_geniepath_layer_impl.3} parent=0
    #allocation5 [shape = 'u8[16384]{0}', space=vmem, size = 0x4000, scoped, tag = 'input window, operand 0']
    loop: start=0, step=1, limit=10
    $region2: #{_geniepath_layer_impl.3} parent=1 // loop_pre_header
      _
    $region3: #{_geniepath_layer_impl.3} parent=1 // loop_header
      %s16 = sphi 0, %s20
      %p17 = scmp.ge.s32.totalorder %s16, 10
      %s23 = sphi 0, %s35
      %s24 = sphi 0, %s31
      %s25 = sphi 0, %s23
      %s26 = sphi 0, %s24
      %s27 = sphi 0, %s25
      %s28 = sphi 0, %s26
      %s40 = sphi 0, %s42
      %s43 = sphi 0, %s40
      %s44 = sphi 0, %s43
      %s60 = sphi 0, %s44
      %s66 = sphi 0, %s68
      %s69 = sphi 0, %s66
      %s70 = sphi 0, %s69
      %s86 = sphi 0, %s70
      %s92 = sphi 0, %s94
      %s95 = sphi 0, %s92
      %s96 = sphi 0, %s95
      %s112 = sphi 0, %s96
      %s118 = sphi 0, %s120
      %s121 = sphi 0, %s118
      %s122 = sphi 0, %s121
      %s138 = sphi 0, %s122
      %s142 = sphi 0, %s142
      %s144 = sphi 0, %s142
      %s145 = sphi 0, %s144
      %s159 = sphi 0, %s145
      %s163 = sphi 0, %s163
      %s165 = sphi 0, %s163
      %s166 = sphi 0, %s165
      %s180 = sphi 0, %s166
      %s186 = sphi 0, %s188
      %s189 = sphi 0, %s186
      %s190 = sphi 0, %s189
      %s206 = sphi 0, %s190
      %s212 = sphi 0, %s214
      %s215 = sphi 0, %s212
      %s216 = sphi 0, %s215
      %s232 = sphi 0, %s216
      %s238 = sphi 0, %s240
      %s241 = sphi 0, %s238
      %s242 = sphi 0, %s241
      %s258 = sphi 0, %s242
      %s264 = sphi 0, %s266
      %s267 = sphi 0, %s264
      %s268 = sphi 0, %s267
      %s284 = sphi 0, %s268
    $region4: #{_geniepath_layer_impl.3} parent=1 // loop_header_branch
      %19 = sbr.rel (%p17) target = $region8
    $region5: #{_geniepath_layer_impl.3} parent=1 // loop_body
      %s21 = ssub.s32 %s16, 1
      %s22 = ssub.s32 %s16, 2
      %s29 = sadd.s32 1, %s24
      %p30 = scmp.ge.s32.totalorder %s29, 2
      %s31 = scalar_select %p30, 0, %s29
      %s32 = sadd.s32 1, %s23
      %s33 = scalar_select %p30, %s32, %s23
      %p34 = scmp.ge.s32.totalorder %s33, 4
      %s35 = scalar_select %p34, 0, %s33
      %s36 = ssub.s32 %s23, %s35
      %s37 = ssub.s32 %s24, %s31
      %s38 = sor.u32 %s36, %s37
      %p39 = scmp.eq.s32.totalorder %s38, 0
      %s41 = sadd.s32 %s40, 1
      %s42 = scalar_select %p39, %s40, %s41
      %p45 = pneg %p39
      %p46 = scmp.eq.s32.totalorder %s16, 7
      %p47 = por %p45, %p46
      %p48 = scmp.ne.s32.totalorder %s40, %s43
      %p49 = scmp.eq.s32.totalorder %s16, 0
      %p50 = por %p48, %p49
      %p51 = scmp.ne.s32.totalorder %s40, %s43
      %p52 = scmp.eq.s32.totalorder %s21, 7
      %p53 = por %p51, %p52
      %p54 = scmp.ne.s32.totalorder %s43, %s44
      %p55 = scmp.eq.s32.totalorder %s21, 0
      %p56 = por %p54, %p55
      %p57 = scmp.ne.s32.totalorder %s43, %s44
      %p58 = scmp.eq.s32.totalorder %s22, 7
      %p59 = por %p57, %p58
      %p61 = scmp.ne.s32.totalorder %s44, %s60
      %p62 = scmp.eq.s32.totalorder %s22, 0
      %p63 = por %p61, %p62
      %s64 = ssub.s32 %s24, %s31
      %p65 = scmp.eq.s32.totalorder %s64, 0
      %s67 = sadd.s32 %s66, 1
      %s68 = scalar_select %p65, %s66, %s67
      %p71 = pneg %p65
      %p72 = scmp.eq.s32.totalorder %s16, 7
      %p73 = por %p71, %p72
      %p74 = scmp.ne.s32.totalorder %s66, %s69
      %p75 = scmp.eq.s32.totalorder %s16, 0
      %p76 = por %p74, %p75
      %p77 = scmp.ne.s32.totalorder %s66, %s69
      %p78 = scmp.eq.s32.totalorder %s21, 7
      %p79 = por %p77, %p78
      %p80 = scmp.ne.s32.totalorder %s69, %s70
      %p81 = scmp.eq.s32.totalorder %s21, 0
      %p82 = por %p80, %p81
      %p83 = scmp.ne.s32.totalorder %s69, %s70
      %p84 = scmp.eq.s32.totalorder %s22, 7
      %p85 = por %p83, %p84
      %p87 = scmp.ne.s32.totalorder %s70, %s86
      %p88 = scmp.eq.s32.totalorder %s22, 0
      %p89 = por %p87, %p88
      %s90 = ssub.s32 %s24, %s31
      %p91 = scmp.eq.s32.totalorder %s90, 0
      %s93 = sadd.s32 %s92, 1
      %s94 = scalar_select %p91, %s92, %s93
      %p97 = pneg %p91
      %p98 = scmp.eq.s32.totalorder %s16, 7
      %p99 = por %p97, %p98
      %p100 = scmp.ne.s32.totalorder %s92, %s95
      %p101 = scmp.eq.s32.totalorder %s16, 0
      %p102 = por %p100, %p101
      %p103 = scmp.ne.s32.totalorder %s92, %s95
      %p104 = scmp.eq.s32.totalorder %s21, 7
      %p105 = por %p103, %p104
      %p106 = scmp.ne.s32.totalorder %s95, %s96
      %p107 = scmp.eq.s32.totalorder %s21, 0
      %p108 = por %p106, %p107
      %p109 = scmp.ne.s32.totalorder %s95, %s96
      %p110 = scmp.eq.s32.totalorder %s22, 7
      %p111 = por %p109, %p110
      %p113 = scmp.ne.s32.totalorder %s96, %s112
      %p114 = scmp.eq.s32.totalorder %s22, 0
      %p115 = por %p113, %p114
      %s116 = ssub.s32 %s23, %s35
      %p117 = scmp.eq.s32.totalorder %s116, 0
      %s119 = sadd.s32 %s118, 1
      %s120 = scalar_select %p117, %s118, %s119
      %p123 = pneg %p117
      %p124 = scmp.eq.s32.totalorder %s16, 7
      %p125 = por %p123, %p124
      %p126 = scmp.ne.s32.totalorder %s118, %s121
      %p127 = scmp.eq.s32.totalorder %s16, 0
      %p128 = por %p126, %p127
      %p129 = scmp.ne.s32.totalorder %s118, %s121
      %p130 = scmp.eq.s32.totalorder %s21, 7
      %p131 = por %p129, %p130
      %p132 = scmp.ne.s32.totalorder %s121, %s122
      %p133 = scmp.eq.s32.totalorder %s21, 0
      %p134 = por %p132, %p133
      %p135 = scmp.ne.s32.totalorder %s121, %s122
      %p136 = scmp.eq.s32.totalorder %s22, 7
      %p137 = por %p135, %p136
      %p139 = scmp.ne.s32.totalorder %s122, %s138
      %p140 = scmp.eq.s32.totalorder %s22, 0
      %p141 = por %p139, %p140
      %s143 = sadd.s32 %s142, 1
      %p146 = scmp.eq.s32.totalorder %s16, 7
      %p147 = scmp.ne.s32.totalorder %s142, %s144
      %p148 = scmp.eq.s32.totalorder %s16, 0
      %p149 = por %p147, %p148
      %p150 = scmp.ne.s32.totalorder %s142, %s144
      %p151 = scmp.eq.s32.totalorder %s21, 7
      %p152 = por %p150, %p151
      %p153 = scmp.ne.s32.totalorder %s144, %s145
      %p154 = scmp.eq.s32.totalorder %s21, 0
      %p155 = por %p153, %p154
      %p156 = scmp.ne.s32.totalorder %s144, %s145
      %p157 = scmp.eq.s32.totalorder %s22, 7
      %p158 = por %p156, %p157
      %p160 = scmp.ne.s32.totalorder %s145, %s159
      %p161 = scmp.eq.s32.totalorder %s22, 0
      %p162 = por %p160, %p161
      %s164 = sadd.s32 %s163, 1
      %p167 = scmp.eq.s32.totalorder %s16, 7
      %p168 = scmp.ne.s32.totalorder %s163, %s165
      %p169 = scmp.eq.s32.totalorder %s16, 0
      %p170 = por %p168, %p169
      %p171 = scmp.ne.s32.totalorder %s163, %s165
      %p172 = scmp.eq.s32.totalorder %s21, 7
      %p173 = por %p171, %p172
      %p174 = scmp.ne.s32.totalorder %s165, %s166
      %p175 = scmp.eq.s32.totalorder %s21, 0
      %p176 = por %p174, %p175
      %p177 = scmp.ne.s32.totalorder %s165, %s166
      %p178 = scmp.eq.s32.totalorder %s22, 7
      %p179 = por %p177, %p178
      %p181 = scmp.ne.s32.totalorder %s166, %s180
      %p182 = scmp.eq.s32.totalorder %s22, 0
      %p183 = por %p181, %p182
      %s184 = ssub.s32 %s23, %s35
      %p185 = scmp.eq.s32.totalorder %s184, 0
      %s187 = sadd.s32 %s186, 1
      %s188 = scalar_select %p185, %s186, %s187
      %p191 = pneg %p185
      %p192 = scmp.eq.s32.totalorder %s16, 7
      %p193 = por %p191, %p192
      %p194 = scmp.ne.s32.totalorder %s186, %s189
      %p195 = scmp.eq.s32.totalorder %s16, 0
      %p196 = por %p194, %p195
      %p197 = scmp.ne.s32.totalorder %s186, %s189
      %p198 = scmp.eq.s32.totalorder %s21, 7
      %p199 = por %p197, %p198
      %p200 = scmp.ne.s32.totalorder %s189, %s190
      %p201 = scmp.eq.s32.totalorder %s21, 0
      %p202 = por %p200, %p201
      %p203 = scmp.ne.s32.totalorder %s189, %s190
      %p204 = scmp.eq.s32.totalorder %s22, 7
      %p205 = por %p203, %p204
      %p207 = scmp.ne.s32.totalorder %s190, %s206
      %p208 = scmp.eq.s32.totalorder %s22, 0
      %p209 = por %p207, %p208
      %s210 = ssub.s32 %s23, %s35
      %p211 = scmp.eq.s32.totalorder %s210, 0
      %s213 = sadd.s32 %s212, 1
      %s214 = scalar_select %p211, %s212, %s213
      %p217 = pneg %p211
      %p218 = scmp.eq.s32.totalorder %s16, 7
      %p219 = por %p217, %p218
      %p220 = scmp.ne.s32.totalorder %s212, %s215
      %p221 = scmp.eq.s32.totalorder %s16, 0
      %p222 = por %p220, %p221
      %p223 = scmp.ne.s32.totalorder %s212, %s215
      %p224 = scmp.eq.s32.totalorder %s21, 7
      %p225 = por %p223, %p224
      %p226 = scmp.ne.s32.totalorder %s215, %s216
      %p227 = scmp.eq.s32.totalorder %s21, 0
      %p228 = por %p226, %p227
      %p229 = scmp.ne.s32.totalorder %s215, %s216
      %p230 = scmp.eq.s32.totalorder %s22, 7
      %p231 = por %p229, %p230
      %p233 = scmp.ne.s32.totalorder %s216, %s232
      %p234 = scmp.eq.s32.totalorder %s22, 0
      %p235 = por %p233, %p234
      %s236 = ssub.s32 %s23, %s35
      %p237 = scmp.eq.s32.totalorder %s236, 0
      %s239 = sadd.s32 %s238, 1
      %s240 = scalar_select %p237, %s238, %s239
      %p243 = pneg %p237
      %p244 = scmp.eq.s32.totalorder %s16, 7
      %p245 = por %p243, %p244
      %p246 = scmp.ne.s32.totalorder %s238, %s241
      %p247 = scmp.eq.s32.totalorder %s16, 0
      %p248 = por %p246, %p247
      %p249 = scmp.ne.s32.totalorder %s238, %s241
      %p250 = scmp.eq.s32.totalorder %s21, 7
      %p251 = por %p249, %p250
      %p252 = scmp.ne.s32.totalorder %s241, %s242
      %p253 = scmp.eq.s32.totalorder %s21, 0
      %p254 = por %p252, %p253
      %p255 = scmp.ne.s32.totalorder %s241, %s242
      %p256 = scmp.eq.s32.totalorder %s22, 7
      %p257 = por %p255, %p256
      %p259 = scmp.ne.s32.totalorder %s242, %s258
      %p260 = scmp.eq.s32.totalorder %s22, 0
      %p261 = por %p259, %p260
      %s262 = ssub.s32 %s23, %s35
      %p263 = scmp.eq.s32.totalorder %s262, 0
      %s265 = sadd.s32 %s264, 1
      %s266 = scalar_select %p263, %s264, %s265
      %p269 = pneg %p263
      %p270 = scmp.eq.s32.totalorder %s16, 7
      %p271 = por %p269, %p270
      %p272 = scmp.ne.s32.totalorder %s264, %s267
      %p273 = scmp.eq.s32.totalorder %s16, 0
      %p274 = por %p272, %p273
      %p275 = scmp.ne.s32.totalorder %s264, %s267
      %p276 = scmp.eq.s32.totalorder %s21, 7
      %p277 = por %p275, %p276
      %p278 = scmp.ne.s32.totalorder %s267, %s268
      %p279 = scmp.eq.s32.totalorder %s21, 0
      %p280 = por %p278, %p279
      %p281 = scmp.ne.s32.totalorder %s267, %s268
      %p282 = scmp.eq.s32.totalorder %s22, 7
      %p283 = por %p281, %p282
      %p285 = scmp.ne.s32.totalorder %s268, %s284
      %p286 = scmp.eq.s32.totalorder %s22, 0
      %p287 = por %p285, %p286
      %p288 = scmp.le.s32.totalorder 1, %s16
      %p289 = scmp.lt.s32.totalorder %s16, 9
      %p290 = pnand %p288, %p289
      %p291 = pneg %p290
      // Predicated region
      $region9: #{_geniepath_layer_impl.3} parent=5 // pred_check
        _
      $region10: #{_geniepath_layer_impl.3} parent=5 // pred_check_branch
        %293 = sbr.rel (%p290) target = $region12
      $region11: #{_geniepath_layer_impl.3} parent=5 // pred_region
        %s294 = ssub.s32 %s16, 1
        // Predicated region
        $region13: #{_geniepath_layer_impl.3} parent=11 // pred_check
          %p295 = pneg %p155
        $region14: #{_geniepath_layer_impl.3} parent=11 // pred_check_branch
          %297 = sbr.rel (%p295) target = $region16
        $region15: #{_geniepath_layer_impl.3} parent=11 // pred_region
          _
        $region16: #{_geniepath_layer_impl.3} parent=11 // pred_fallthru
          _
        // Predicated region
        $region17: #{_geniepath_layer_impl.3} parent=11 // pred_check
          %p298 = pneg %p176
        $region18: #{_geniepath_layer_impl.3} parent=11 // pred_check_branch
          %300 = sbr.rel (%p298) target = $region20
        $region19: #{_geniepath_layer_impl.3} parent=11 // pred_region
          _
        $region20: #{_geniepath_layer_impl.3} parent=11 // pred_fallthru
          _
      $region12: #{_geniepath_layer_impl.3} parent=5 // pred_fallthru
        _
      %p301 = scmp.lt.s32.totalorder %s16, 8
      // Predicated region
      $region21: #{_geniepath_layer_impl.3} parent=5 // pred_check
        %p302 = pneg %p301
      $region22: #{_geniepath_layer_impl.3} parent=5 // pred_check_branch
        %304 = sbr.rel (%p302) target = $region24
      $region23: #{_geniepath_layer_impl.3} parent=5 // pred_region
        // Predicated region
        $region25: #{_geniepath_layer_impl.3} parent=23 // pred_check
          %p305 = pneg %p50
        $region26: #{_geniepath_layer_impl.3} parent=23 // pred_check_branch
          %307 = sbr.rel (%p305) target = $region28
        $region27: #{_geniepath_layer_impl.3} parent=23 // pred_region
          %s308 = sand.u32 %s40, 1
          %s309 = sand.u32 %s40, 1
          %s310 = smul.addr %s309, 16
          %s311 = scalar_lea.vmem [#allocation5], %s310
          %s312 = smul.u32 8, %s23
          %s313 = smul.addr %s312, 2
          %s314 = sadd.s32 %s24, %s313
          %s315 = smul.addr %s314, 2
          %s316 = scalar_lea.vmem %s0, %s315
          // Predicated region
          $region29: #{_geniepath_layer_impl.3} parent=27 // pred_check
            _
          $region30: #{_geniepath_layer_impl.3} parent=27 // pred_check_branch
            %318 = sbr.rel (0) target = $region32
          $region31: #{_geniepath_layer_impl.3} parent=27 // pred_region
            // Predicated region
            $region33: #{_geniepath_layer_impl.3} parent=31 // pred_check
              _
            $region34: #{_geniepath_layer_impl.3} parent=31 // pred_check_branch
              %320 = sbr.rel target = $region36
            $region35: #{_geniepath_layer_impl.3} parent=31 // pred_region
              // Predicated region
              $region48: #{_geniepath_layer_impl.3} parent=35 // pred_check
                _
              $region49: #{_geniepath_layer_impl.3} parent=35 // pred_check_branch
                %350 = sbr.rel (0) target = $region51
              $region50: #{_geniepath_layer_impl.3} parent=35 // pred_region
                loop: start=0, step=1, limit=1
                $region52: #{_geniepath_layer_impl.3} parent=50 // loop_pre_header
                  _
                $region53: #{_geniepath_layer_impl.3} parent=50 // loop_header
                  %s352 = sphi 0, %s356
                  %p353 = scmp.ge.s32.totalorder %s352, 1
                  %s357 = sphi %s316, %s316
                  %s358 = sphi %s311, %s311
                $region54: #{_geniepath_layer_impl.3} parent=50 // loop_header_branch
                  %355 = sbr.rel (%p353) target = $region58
                $region55: #{_geniepath_layer_impl.3} parent=50 // loop_body
                  _
                $region56: #{_geniepath_layer_impl.3} parent=50 // loop_footer
                  %s356 = sadd.s32 1, %s352
                $region57: #{_geniepath_layer_impl.3} parent=50 // loop_footer_branch
                  %351 = sbr.rel target = $region53
                $region58: #{_geniepath_layer_impl.3} parent=50 // loop_exit
                  _
                %s360 = ssub.s32 4, 1
                loop: start=0, step=1, limit=1
                $region59: #{_geniepath_layer_impl.3} parent=50 // loop_pre_header
                  _
                $region60: #{_geniepath_layer_impl.3} parent=50 // loop_header
                  %s362 = sphi 0, %s366
                  %p363 = scmp.ge.s32.totalorder %s362, 1
                  %s367 = sphi %s316, %s316
                  %s368 = sphi %s311, %s311
                $region61: #{_geniepath_layer_impl.3} parent=50 // loop_header_branch
                  %365 = sbr.rel (%p363) target = $region65
                $region62: #{_geniepath_layer_impl.3} parent=50 // loop_body
                  %v369 = vld [vmem:[%s367] sm:%s360]
                  %370 = vst [vmem:[%s368] sm:%s360] %v369
                  %v371 = vld [vmem:[%s367 + $0x4] sm:%s360]
                  %372 = vst [vmem:[%s368 + $0x2] sm:%s360] %v371
                  %v373 = vld [vmem:[%s367 + $0x8] sm:%s360]
                  %374 = vst [vmem:[%s368 + $0x4] sm:%s360] %v373
                  %v375 = vld [vmem:[%s367 + $0xc] sm:%s360]
                  %376 = vst [vmem:[%s368 + $0x6] sm:%s360] %v375
                  %v377 = vld [vmem:[%s367 + $0x10] sm:%s360]
                  %378 = vst [vmem:[%s368 + $0x8] sm:%s360] %v377
                  %v379 = vld [vmem:[%s367 + $0x14] sm:%s360]
                  %380 = vst [vmem:[%s368 + $0xa] sm:%s360] %v379
                  %v381 = vld [vmem:[%s367 + $0x18] sm:%s360]
                  %382 = vst [vmem:[%s368 + $0xc] sm:%s360] %v381
                  %v383 = vld [vmem:[%s367 + $0x1c] sm:%s360]
                  %384 = vst [vmem:[%s368 + $0xe] sm:%s360] %v383
                $region63: #{_geniepath_layer_impl.3} parent=50 // loop_footer
                  %s366 = sadd.s32 1, %s362
                $region64: #{_geniepath_layer_impl.3} parent=50 // loop_footer_branch
                  %361 = sbr.rel target = $region60
                $region65: #{_geniepath_layer_impl.3} parent=50 // loop_exit
                  _
              $region51: #{_geniepath_layer_impl.3} parent=35 // pred_fallthru
                _
            $region36: #{_geniepath_layer_impl.3} parent=31 // pred_fallthru
              _
            // Predicated region
            $region37: #{_geniepath_layer_impl.3} parent=31 // pred_check
              _
            $region38: #{_geniepath_layer_impl.3} parent=31 // pred_check_branch
              %322 = sbr.rel (0) target = $region40
            $region39: #{_geniepath_layer_impl.3} parent=31 // pred_region
              %s324 = ssub.s32 4, 1
              loop: start=0, step=1, limit=1
              $region41: #{_geniepath_layer_impl.3} parent=39 // loop_pre_header
                _
              $region42: #{_geniepath_layer_impl.3} parent=39 // loop_header
                %s326 = sphi 0, %s330
                %p327 = scmp.ge.s32.totalorder %s326, 1
                %s331 = sphi %s316, %s316
                %s332 = sphi %s311, %s311
              $region43: #{_geniepath_layer_impl.3} parent=39 // loop_header_branch
                %329 = sbr.rel (%p327) target = $region47
              $region44: #{_geniepath_layer_impl.3} parent=39 // loop_body
                %v333 = vld [vmem:[%s331] sm:%s324]
                %334 = vst [vmem:[%s332] sm:%s324] %v333
                %v335 = vld [vmem:[%s331 + $0x4] sm:%s324]
                %336 = vst [vmem:[%s332 + $0x2] sm:%s324] %v335
                %v337 = vld [vmem:[%s331 + $0x8] sm:%s324]
                %338 = vst [vmem:[%s332 + $0x4] sm:%s324] %v337
                %v339 = vld [vmem:[%s331 + $0xc] sm:%s324]
                %340 = vst [vmem:[%s332 + $0x6] sm:%s324] %v339
                %v341 = vld [vmem:[%s331 + $0x10] sm:%s324]
                %342 = vst [vmem:[%s332 + $0x8] sm:%s324] %v341
                %v343 = vld [vmem:[%s331 + $0x14] sm:%s324]
                %344 = vst [vmem:[%s332 + $0xa] sm:%s324] %v343
                %v345 = vld [vmem:[%s331 + $0x18] sm:%s324]
                %346 = vst [vmem:[%s332 + $0xc] sm:%s324] %v345
                %v347 = vld [vmem:[%s331 + $0x1c] sm:%s324]
                %348 = vst [vmem:[%s332 + $0xe] sm:%s324] %v347
              $region45: #{_geniepath_layer_impl.3} parent=39 // loop_footer
                %s330 = sadd.s32 1, %s326
              $region46: #{_geniepath_layer_impl.3} parent=39 // loop_footer_branch
                %325 = sbr.rel target = $region42
              $region47: #{_geniepath_layer_impl.3} parent=39 // loop_exit
                _
            $region40: #{_geniepath_layer_impl.3} parent=31 // pred_fallthru
              _
          $region32: #{_geniepath_layer_impl.3} parent=27 // pred_fallthru
            _
          %385 = vnop
        $region28: #{_geniepath_layer_impl.3} parent=23 // pred_fallthru
          _
        // Predicated region
        $region66: #{_geniepath_layer_impl.3} parent=23 // pred_check
          %p386 = pneg %p76
        $region67: #{_geniepath_layer_impl.3} parent=23 // pred_check_branch
          %388 = sbr.rel (%p386) target = $region69
        $region68: #{_geniepath_layer_impl.3} parent=23 // pred_region
          %s389 = smul.u32 16, %s24
          %p390 = scmp.lt.s32.totalorder %s389, 31
          %s391 = scalar_select %p390, %s389, 31
          %s392 = smul.addr %s391, 4
          %s393 = scalar_lea.vmem %s1, %s392
          %s394 = smul.u32 16, %s24
        $region69: #{_geniepath_layer_impl.3} parent=23 // pred_fallthru
          _
        // Predicated region
        $region70: #{_geniepath_layer_impl.3} parent=23 // pred_check
          %p395 = pneg %p102
        $region71: #{_geniepath_layer_impl.3} parent=23 // pred_check_branch
          %397 = sbr.rel (%p395) target = $region73
        $region72: #{_geniepath_layer_impl.3} parent=23 // pred_region
          %p398 = scmp.lt.s32.totalorder %s24, 1
          %s399 = scalar_select %p398, %s24, 1
          %s400 = scalar_lea.vmem %s2, %s399
        $region73: #{_geniepath_layer_impl.3} parent=23 // pred_fallthru
          _
        // Predicated region
        $region74: #{_geniepath_layer_impl.3} parent=23 // pred_check
          %p401 = pneg %p128
        $region75: #{_geniepath_layer_impl.3} parent=23 // pred_check_branch
          %403 = sbr.rel (%p401) target = $region77
        $region76: #{_geniepath_layer_impl.3} parent=23 // pred_region
          %s404 = smul.u32 8, %s23
          %p405 = scmp.lt.s32.totalorder %s404, 31
          %s406 = scalar_select %p405, %s404, 31
          %s407 = smul.addr %s406, 8
          %s408 = scalar_lea.vmem %s3, %s407
          %s409 = smul.u32 8, %s23
        $region77: #{_geniepath_layer_impl.3} parent=23 // pred_fallthru
          _
        // Predicated region
        $region78: #{_geniepath_layer_impl.3} parent=23 // pred_check
          %p410 = pneg %p196
        $region79: #{_geniepath_layer_impl.3} parent=23 // pred_check_branch
          %412 = sbr.rel (%p410) target = $region81
        $region80: #{_geniepath_layer_impl.3} parent=23 // pred_region
          %s413 = smul.u32 8, %s23
          %p414 = scmp.lt.s32.totalorder %s413, 31
          %s415 = scalar_select %p414, %s413, 31
          %s416 = smul.addr %s415, 4
          %s417 = scalar_lea.vmem %s6, %s416
          %s418 = smul.u32 8, %s23
        $region81: #{_geniepath_layer_impl.3} parent=23 // pred_fallthru
          _
        // Predicated region
        $region82: #{_geniepath_layer_impl.3} parent=23 // pred_check
          %p419 = pneg %p222
        $region83: #{_geniepath_layer_impl.3} parent=23 // pred_check_branch
          %421 = sbr.rel (%p419) target = $region85
        $region84: #{_geniepath_layer_impl.3} parent=23 // pred_region
          %s422 = smul.u32 8, %s23
          %p423 = scmp.lt.s32.totalorder %s422, 31
          %s424 = scalar_select %p423, %s422, 31
          %s425 = smul.addr %s424, 8
          %s426 = scalar_lea.vmem %s7, %s425
          %s427 = smul.u32 8, %s23
        $region85: #{_geniepath_layer_impl.3} parent=23 // pred_fallthru
          _
      $region24: #{_geniepath_layer_impl.3} parent=5 // pred_fallthru
        _
      %p428 = scmp.le.s32.totalorder 1, %s16
      %p429 = scmp.lt.s32.totalorder %s16, 9
      %p430 = pnand %p428, %p429
      %p431 = pneg %p430
      // Predicated region
      $region86: #{_geniepath_layer_impl.3} parent=5 // pred_check
        _
      $region87: #{_geniepath_layer_impl.3} parent=5 // pred_check_branch
        %433 = sbr.rel (%p430) target = $region89
      $region88: #{_geniepath_layer_impl.3} parent=5 // pred_region
        %s434 = ssub.s32 %s16, 1
        %s435 = sand.u32 %s43, 1
        %s436 = sand.u32 %s43, 1
        %s437 = smul.addr %s436, 16
        %s438 = scalar_lea.vmem [#allocation5], %s437
        // Predicated region
        $region90: #{_geniepath_layer_impl.3} parent=88 // pred_check
          %p439 = pneg %p56
        $region91: #{_geniepath_layer_impl.3} parent=88 // pred_check_branch
          %441 = sbr.rel (%p439) target = $region93
        $region92: #{_geniepath_layer_impl.3} parent=88 // pred_region
          _
        $region93: #{_geniepath_layer_impl.3} parent=88 // pred_fallthru
          _
        %s442 = sand.u32 %s43, 1
        %s443 = sand.u32 %s43, 1
        %s444 = smul.addr %s443, 16
        %s445 = scalar_lea.vmem [#allocation5], %s444
        %p446 = pneg %p56
        %p447 = pneg %p53
        %s448 = smul.u32 16, %s26
        %p449 = scmp.lt.s32.totalorder %s448, 31
        %s450 = scalar_select %p449, %s448, 31
        %s451 = smul.addr %s450, 4
        %s452 = scalar_lea.vmem %s1, %s451
        %p453 = pneg %p82
        %p454 = pneg %p79
        %p455 = scmp.lt.s32.totalorder %s26, 1
        %s456 = scalar_select %p455, %s26, 1
        %s457 = scalar_lea.vmem %s2, %s456
        %p458 = pneg %p108
        %p459 = pneg %p105
        %s460 = smul.u32 8, %s25
        %p461 = scmp.lt.s32.totalorder %s460, 31
        %s462 = scalar_select %p461, %s460, 31
        %s463 = smul.addr %s462, 8
        %s464 = scalar_lea.vmem %s3, %s463
        %p465 = pneg %p134
        %p466 = pneg %p131
        %p467 = pneg %p155
        %p468 = pneg %p152
        %p469 = pneg %p176
        %p470 = pneg %p173
        %s471 = smul.u32 8, %s25
        %p472 = scmp.lt.s32.totalorder %s471, 31
        %s473 = scalar_select %p472, %s471, 31
        %s474 = smul.addr %s473, 4
        %s475 = scalar_lea.vmem %s6, %s474
        %p476 = pneg %p202
        %p477 = pneg %p199
        %s478 = smul.u32 8, %s25
        %p479 = scmp.lt.s32.totalorder %s478, 31
        %s480 = scalar_select %p479, %s478, 31
        %s481 = smul.addr %s480, 8
        %s482 = scalar_lea.vmem %s7, %s481
        %p483 = pneg %p228
        %p484 = pneg %p225
        %p485 = pneg %p254
        %p486 = pneg %p251
        %s487 = smul.u32 8, %s25
        %p488 = scmp.lt.s32.totalorder %s487, 31
        %s489 = scalar_select %p488, %s487, 31
        %s490 = smul.addr %s489, 8
        %s491 = scalar_lea.vmem %s8, %s490
        %p492 = pneg %p280
        %p493 = pneg %p277
        %s494 = smul.u32 8, %s25
        %p495 = scmp.lt.s32.totalorder %s494, 31
        %s496 = scalar_select %p495, %s494, 31
        %s497 = smul.addr %s496, 8
        %s498 = scalar_lea.vmem %s9, %s497
        %s499 = smul.u32 8, %s25
        %s500 = smul.u32 16, %s26
        %p501 = scmp.lt.s32.totalorder %s500, 31
        %s502 = scalar_select %p501, %s500, 31
        %s503 = smul.addr %s502, 4
        %s504 = scalar_lea.vmem %s1, %s503
        %s505 = smul.u32 16, %s26
        %p506 = scmp.lt.s32.totalorder %s26, 1
        %s507 = scalar_select %p506, %s26, 1
        %s508 = scalar_lea.vmem %s2, %s507
        %s509 = smul.u32 8, %s25
        %p510 = scmp.lt.s32.totalorder %s509, 31
        %s511 = scalar_select %p510, %s509, 31
        %s512 = smul.addr %s511, 8
        %s513 = scalar_lea.vmem %s3, %s512
        %s514 = smul.u32 8, %s25
        %s515 = smul.u32 8, %s25
        %p516 = scmp.lt.s32.totalorder %s515, 31
        %s517 = scalar_select %p516, %s515, 31
        %s518 = smul.addr %s517, 4
        %s519 = scalar_lea.vmem %s6, %s518
        %s520 = smul.u32 8, %s25
        %s521 = smul.u32 8, %s25
        %p522 = scmp.lt.s32.totalorder %s521, 31
        %s523 = scalar_select %p522, %s521, 31
        %s524 = smul.addr %s523, 8
        %s525 = scalar_lea.vmem %s7, %s524
        %s526 = smul.u32 8, %s25
        %s527 = smul.u32 8, %s25
        %p528 = scmp.lt.s32.totalorder %s527, 31
        %s529 = scalar_select %p528, %s527, 31
        %s530 = smul.addr %s529, 8
        %s531 = scalar_lea.vmem %s8, %s530
        %s532 = smul.u32 8, %s25
        %s533 = smul.u32 8, %s25
        %p534 = scmp.lt.s32.totalorder %s533, 31
        %s535 = scalar_select %p534, %s533, 31
        %s536 = smul.addr %s535, 8
        %s537 = scalar_lea.vmem %s9, %s536
        %s538 = smul.u32 8, %s25
        %p541 = scmp.eq.s32.totalorder %s26, 0
        // Predicated region
        $region94: #{_geniepath_layer_impl.3} parent=88 // pred_check
          %p542 = pneg %p541
        $region95: #{_geniepath_layer_impl.3} parent=88 // pred_check_branch
          %544 = sbr.rel (%p542) target = $region97
        $region96: #{_geniepath_layer_impl.3} parent=88 // pred_region
          %vm545 = vcmask 7168
          %546 = vst.msk [vmem:[#allocation2] sm:$0xff] %vm545, -1e+09
          %547 = vst.msk [vmem:[#allocation2 + $0x8] sm:$0xff] %vm545, -1e+09
          %548 = vst.msk [vmem:[#allocation2 + $0x10] sm:$0xff] %vm545, -1e+09
          %549 = vst.msk [vmem:[#allocation2 + $0x18] sm:$0xff] %vm545, -1e+09
          %550 = vst.msk [vmem:[#allocation2 + $0x20] sm:$0xff] %vm545, -1e+09
          %551 = vst.msk [vmem:[#allocation2 + $0x28] sm:$0xff] %vm545, -1e+09
          %552 = vst.msk [vmem:[#allocation2 + $0x30] sm:$0xff] %vm545, -1e+09
          %553 = vst.msk [vmem:[#allocation2 + $0x38] sm:$0xff] %vm545, -1e+09
          %554 = vst.msk [vmem:[#allocation3] sm:$0xff] %vm545, 0.0
          %555 = vst.msk [vmem:[#allocation3 + $0x8] sm:$0xff] %vm545, 0.0
          %556 = vst.msk [vmem:[#allocation3 + $0x10] sm:$0xff] %vm545, 0.0
          %557 = vst.msk [vmem:[#allocation3 + $0x18] sm:$0xff] %vm545, 0.0
          %558 = vst.msk [vmem:[#allocation3 + $0x20] sm:$0xff] %vm545, 0.0
          %559 = vst.msk [vmem:[#allocation3 + $0x28] sm:$0xff] %vm545, 0.0
          %560 = vst.msk [vmem:[#allocation3 + $0x30] sm:$0xff] %vm545, 0.0
          %561 = vst.msk [vmem:[#allocation3 + $0x38] sm:$0xff] %vm545, 0.0
          %562 = vst [vmem:[#allocation4] sm:$0xff] 0.0
          %563 = vst [vmem:[#allocation4 + $0x8] sm:$0xff] 0.0
          %564 = vst [vmem:[#allocation4 + $0x10] sm:$0xff] 0.0
          %565 = vst [vmem:[#allocation4 + $0x18] sm:$0xff] 0.0
          %566 = vst [vmem:[#allocation4 + $0x20] sm:$0xff] 0.0
          %567 = vst [vmem:[#allocation4 + $0x28] sm:$0xff] 0.0
          %568 = vst [vmem:[#allocation4 + $0x30] sm:$0xff] 0.0
          %569 = vst [vmem:[#allocation4 + $0x38] sm:$0xff] 0.0
        $region97: #{_geniepath_layer_impl.3} parent=88 // pred_fallthru
          _
        %v570 = vld [vmem:[%s438] sm:$0x3]
        %v571 = vld [vmem:[%s438 + $0x2] sm:$0x3]
        %v572 = vld [vmem:[%s438 + $0x4] sm:$0x3]
        %v573 = vld [vmem:[%s438 + $0x6] sm:$0x3]
        %v574 = vld [vmem:[%s438 + $0x8] sm:$0x3]
        %v575 = vld [vmem:[%s438 + $0xa] sm:$0x3]
        %v576 = vld [vmem:[%s438 + $0xc] sm:$0x3]
        %v577 = vld [vmem:[%s438 + $0xe] sm:$0x3]
        %vm578 = vnez %v570
        %vm579 = vnez %v571
        %vm580 = vnez %v572
        %vm581 = vnez %v573
        %vm582 = vnez %v574
        %vm583 = vnez %v575
        %vm584 = vnez %v576
        %vm585 = vnez %v577
        %v586 = vld [vmem:[%s513] sm:$0xff]
        %v587 = vld [vmem:[%s513 + $0x8] sm:$0xff]
        %v588 = vld [vmem:[%s513 + $0x10] sm:$0xff]
        %v589 = vld [vmem:[%s513 + $0x18] sm:$0xff]
        %v590 = vld [vmem:[%s513 + $0x20] sm:$0xff]
        %v591 = vld [vmem:[%s513 + $0x28] sm:$0xff]
        %v592 = vld [vmem:[%s513 + $0x30] sm:$0xff]
        %v593 = vld [vmem:[%s513 + $0x38] sm:$0xff]
        %v594 = vld [vmem:[%s508] sm:$0x1]
        %596 = vset.pattern.permute.xlu0 0
        %597 = vperm.xlu0 %596, %v586
        %v598 = vpop.permute.xlu0 %597
        %601 = vset.pattern.permute.xlu0 0
        %602 = vperm.xlu0 %601, %v587
        %v603 = vpop.permute.xlu0 %602
        %606 = vset.pattern.permute.xlu0 0
        %607 = vperm.xlu0 %606, %v588
        %v608 = vpop.permute.xlu0 %607
        %611 = vset.pattern.permute.xlu0 0
        %612 = vperm.xlu0 %611, %v589
        %v613 = vpop.permute.xlu0 %612
        %616 = vset.pattern.permute.xlu0 0
        %617 = vperm.xlu0 %616, %v590
        %v618 = vpop.permute.xlu0 %617
        %621 = vset.pattern.permute.xlu0 0
        %622 = vperm.xlu0 %621, %v591
        %v623 = vpop.permute.xlu0 %622
        %626 = vset.pattern.permute.xlu0 0
        %627 = vperm.xlu0 %626, %v592
        %v628 = vpop.permute.xlu0 %627
        %631 = vset.pattern.permute.xlu0 0
        %632 = vperm.xlu0 %631, %v593
        %v633 = vpop.permute.xlu0 %632
        %v636 = vperm.slane %v594, 0
        %v638 = vadd.f32 %v598, %v636
        %v639 = vadd.f32 %v603, %v636
        %v640 = vadd.f32 %v608, %v636
        %v641 = vadd.f32 %v613, %v636
        %v642 = vadd.f32 %v618, %v636
        %v643 = vadd.f32 %v623, %v636
        %v644 = vadd.f32 %v628, %v636
        %v645 = vadd.f32 %v633, %v636
        %v646 = vmul.f32 %v638, 0.2
        %v647 = vmul.f32 %v639, 0.2
        %v648 = vmul.f32 %v640, 0.2
        %v649 = vmul.f32 %v641, 0.2
        %v650 = vmul.f32 %v642, 0.2
        %v651 = vmul.f32 %v643, 0.2
        %v652 = vmul.f32 %v644, 0.2
        %v653 = vmul.f32 %v645, 0.2
        %v654 = vmax.f32 %v638, %v646
        %v655 = vmax.f32 %v639, %v647
        %v656 = vmax.f32 %v640, %v648
        %v657 = vmax.f32 %v641, %v649
        %v658 = vmax.f32 %v642, %v650
        %v659 = vmax.f32 %v643, %v651
        %v660 = vmax.f32 %v644, %v652
        %v661 = vmax.f32 %v645, %v653
        %v662 = vsel %vm578, 16843009, 0
        %v663 = vsel %vm579, 16843009, 0
        %v664 = vsel %vm580, 16843009, 0
        %v665 = vsel %vm581, 16843009, 0
        %v666 = vsel %vm582, 16843009, 0
        %v667 = vsel %vm583, 16843009, 0
        %v668 = vsel %vm584, 16843009, 0
        %v669 = vsel %vm585, 16843009, 0
        %v670 = vunpack.c.0.s8 %v662
        %v671 = vunpack.c.0.s8 %v663
        %v672 = vunpack.c.0.s8 %v664
        %v673 = vunpack.c.0.s8 %v665
        %v674 = vunpack.c.0.s8 %v666
        %v675 = vunpack.c.0.s8 %v667
        %v676 = vunpack.c.0.s8 %v668
        %v677 = vunpack.c.0.s8 %v669
        %vm678 = vcmp.ne.s32.totalorder %v670, 0
        %vm679 = vcmp.ne.s32.totalorder %v671, 0
        %vm680 = vcmp.ne.s32.totalorder %v672, 0
        %vm681 = vcmp.ne.s32.totalorder %v673, 0
        %vm682 = vcmp.ne.s32.totalorder %v674, 0
        %vm683 = vcmp.ne.s32.totalorder %v675, 0
        %vm684 = vcmp.ne.s32.totalorder %v676, 0
        %vm685 = vcmp.ne.s32.totalorder %v677, 0
        %v686 = vsel %vm678, %v654, -1e+30
        %v687 = vsel %vm679, %v655, -1e+30
        %v688 = vsel %vm680, %v656, -1e+30
        %v689 = vsel %vm681, %v657, -1e+30
        %v690 = vsel %vm682, %v658, -1e+30
        %v691 = vsel %vm683, %v659, -1e+30
        %v692 = vsel %vm684, %v660, -1e+30
        %v693 = vsel %vm685, %v661, -1e+30
        %694 = vmax.xlane.f32.xlu0 %v686
        %v695 = vpop.xlane.xlu0 %694
        %696 = vmax.xlane.f32.xlu0 %v687
        %v697 = vpop.xlane.xlu0 %696
        %698 = vmax.xlane.f32.xlu0 %v688
        %v699 = vpop.xlane.xlu0 %698
        %700 = vmax.xlane.f32.xlu0 %v689
        %v701 = vpop.xlane.xlu0 %700
        %702 = vmax.xlane.f32.xlu0 %v690
        %v703 = vpop.xlane.xlu0 %702
        %704 = vmax.xlane.f32.xlu0 %v691
        %v705 = vpop.xlane.xlu0 %704
        %706 = vmax.xlane.f32.xlu0 %v692
        %v707 = vpop.xlane.xlu0 %706
        %708 = vmax.xlane.f32.xlu0 %v693
        %v709 = vpop.xlane.xlu0 %708
        %v710 = vld [vmem:[#allocation2] sm:$0xff]
        %v711 = vld [vmem:[#allocation2 + $0x8] sm:$0xff]
        %v712 = vld [vmem:[#allocation2 + $0x10] sm:$0xff]
        %v713 = vld [vmem:[#allocation2 + $0x18] sm:$0xff]
        %v714 = vld [vmem:[#allocation2 + $0x20] sm:$0xff]
        %v715 = vld [vmem:[#allocation2 + $0x28] sm:$0xff]
        %v716 = vld [vmem:[#allocation2 + $0x30] sm:$0xff]
        %v717 = vld [vmem:[#allocation2 + $0x38] sm:$0xff]
        %v718 = vmax.f32 %v710, %v695
        %v719 = vmax.f32 %v711, %v697
        %v720 = vmax.f32 %v712, %v699
        %v721 = vmax.f32 %v713, %v701
        %v722 = vmax.f32 %v714, %v703
        %v723 = vmax.f32 %v715, %v705
        %v724 = vmax.f32 %v716, %v707
        %v725 = vmax.f32 %v717, %v709
        %v726 = vsub.f32 %v710, %v718
        %v727 = vsub.f32 %v711, %v719
        %v728 = vsub.f32 %v712, %v720
        %v729 = vsub.f32 %v713, %v721
        %v730 = vsub.f32 %v714, %v722
        %v731 = vsub.f32 %v715, %v723
        %v732 = vsub.f32 %v716, %v724
        %v733 = vsub.f32 %v717, %v725
        %v734 = vmul.f32 %v726, 1.442695
        %v735 = vpow.pop %v734
        %v736 = vmul.f32 %v727, 1.442695
        %v737 = vpow.pop %v736
        %v738 = vmul.f32 %v728, 1.442695
        %v739 = vpow.pop %v738
        %v740 = vmul.f32 %v729, 1.442695
        %v741 = vpow.pop %v740
        %v742 = vmul.f32 %v730, 1.442695
        %v743 = vpow.pop %v742
        %v744 = vmul.f32 %v731, 1.442695
        %v745 = vpow.pop %v744
        %v746 = vmul.f32 %v732, 1.442695
        %v747 = vpow.pop %v746
        %v748 = vmul.f32 %v733, 1.442695
        %v749 = vpow.pop %v748
        %751 = vset.pattern.permute.xlu0 0
        %752 = vperm.xlu0 %751, %v718
        %v753 = vpop.permute.xlu0 %752
        %756 = vset.pattern.permute.xlu0 0
        %757 = vperm.xlu0 %756, %v719
        %v758 = vpop.permute.xlu0 %757
        %761 = vset.pattern.permute.xlu0 0
        %762 = vperm.xlu0 %761, %v720
        %v763 = vpop.permute.xlu0 %762
        %766 = vset.pattern.permute.xlu0 0
        %767 = vperm.xlu0 %766, %v721
        %v768 = vpop.permute.xlu0 %767
        %771 = vset.pattern.permute.xlu0 0
        %772 = vperm.xlu0 %771, %v722
        %v773 = vpop.permute.xlu0 %772
        %776 = vset.pattern.permute.xlu0 0
        %777 = vperm.xlu0 %776, %v723
        %v778 = vpop.permute.xlu0 %777
        %781 = vset.pattern.permute.xlu0 0
        %782 = vperm.xlu0 %781, %v724
        %v783 = vpop.permute.xlu0 %782
        %786 = vset.pattern.permute.xlu0 0
        %787 = vperm.xlu0 %786, %v725
        %v788 = vpop.permute.xlu0 %787
        %v790 = vsub.f32 %v686, %v753
        %v791 = vsub.f32 %v687, %v758
        %v792 = vsub.f32 %v688, %v763
        %v793 = vsub.f32 %v689, %v768
        %v794 = vsub.f32 %v690, %v773
        %v795 = vsub.f32 %v691, %v778
        %v796 = vsub.f32 %v692, %v783
        %v797 = vsub.f32 %v693, %v788
        %v798 = vmul.f32 %v790, 1.442695
        %v799 = vpow.pop %v798
        %v800 = vmul.f32 %v791, 1.442695
        %v801 = vpow.pop %v800
        %v802 = vmul.f32 %v792, 1.442695
        %v803 = vpow.pop %v802
        %v804 = vmul.f32 %v793, 1.442695
        %v805 = vpow.pop %v804
        %v806 = vmul.f32 %v794, 1.442695
        %v807 = vpow.pop %v806
        %v808 = vmul.f32 %v795, 1.442695
        %v809 = vpow.pop %v808
        %v810 = vmul.f32 %v796, 1.442695
        %v811 = vpow.pop %v810
        %v812 = vmul.f32 %v797, 1.442695
        %v813 = vpow.pop %v812
        %v814 = vpack.c.bf16 %v801, %v799
        %v815 = vpack.c.bf16 %v805, %v803
        %v816 = vpack.c.bf16 %v809, %v807
        %v817 = vpack.c.bf16 %v813, %v811
        %v818 = vld [vmem:[#allocation3] sm:$0xff]
        %v819 = vld [vmem:[#allocation3 + $0x8] sm:$0xff]
        %v820 = vld [vmem:[#allocation3 + $0x10] sm:$0xff]
        %v821 = vld [vmem:[#allocation3 + $0x18] sm:$0xff]
        %v822 = vld [vmem:[#allocation3 + $0x20] sm:$0xff]
        %v823 = vld [vmem:[#allocation3 + $0x28] sm:$0xff]
        %v824 = vld [vmem:[#allocation3 + $0x30] sm:$0xff]
        %v825 = vld [vmem:[#allocation3 + $0x38] sm:$0xff]
        %v826 = vmul.f32 %v735, %v818
        %v827 = vmul.f32 %v737, %v819
        %v828 = vmul.f32 %v739, %v820
        %v829 = vmul.f32 %v741, %v821
        %v830 = vmul.f32 %v743, %v822
        %v831 = vmul.f32 %v745, %v823
        %v832 = vmul.f32 %v747, %v824
        %v833 = vmul.f32 %v749, %v825
        %834 = vadd.xlane.f32.xlu0 %v799
        %v835 = vpop.xlane.xlu0 %834
        %836 = vadd.xlane.f32.xlu0 %v801
        %v837 = vpop.xlane.xlu0 %836
        %838 = vadd.xlane.f32.xlu0 %v803
        %v839 = vpop.xlane.xlu0 %838
        %840 = vadd.xlane.f32.xlu0 %v805
        %v841 = vpop.xlane.xlu0 %840
        %842 = vadd.xlane.f32.xlu0 %v807
        %v843 = vpop.xlane.xlu0 %842
        %844 = vadd.xlane.f32.xlu0 %v809
        %v845 = vpop.xlane.xlu0 %844
        %846 = vadd.xlane.f32.xlu0 %v811
        %v847 = vpop.xlane.xlu0 %846
        %848 = vadd.xlane.f32.xlu0 %v813
        %v849 = vpop.xlane.xlu0 %848
        %v850 = vadd.f32 %v826, %v835
        %v851 = vadd.f32 %v827, %v837
        %v852 = vadd.f32 %v828, %v839
        %v853 = vadd.f32 %v829, %v841
        %v854 = vadd.f32 %v830, %v843
        %v855 = vadd.f32 %v831, %v845
        %v856 = vadd.f32 %v832, %v847
        %v857 = vadd.f32 %v833, %v849
        %vm858 = vcmask 7168
        %859 = vst.msk [vmem:[#allocation3] sm:$0xff] %vm858, %v850
        %860 = vst.msk [vmem:[#allocation3 + $0x8] sm:$0xff] %vm858, %v851
        %861 = vst.msk [vmem:[#allocation3 + $0x10] sm:$0xff] %vm858, %v852
        %862 = vst.msk [vmem:[#allocation3 + $0x18] sm:$0xff] %vm858, %v853
        %863 = vst.msk [vmem:[#allocation3 + $0x20] sm:$0xff] %vm858, %v854
        %864 = vst.msk [vmem:[#allocation3 + $0x28] sm:$0xff] %vm858, %v855
        %865 = vst.msk [vmem:[#allocation3 + $0x30] sm:$0xff] %vm858, %v856
        %866 = vst.msk [vmem:[#allocation3 + $0x38] sm:$0xff] %vm858, %v857
        %v867 = vld [vmem:[#allocation4] sm:$0xff]
        %v868 = vld [vmem:[#allocation4 + $0x8] sm:$0xff]
        %v869 = vld [vmem:[#allocation4 + $0x10] sm:$0xff]
        %v870 = vld [vmem:[#allocation4 + $0x18] sm:$0xff]
        %v871 = vld [vmem:[#allocation4 + $0x20] sm:$0xff]
        %v872 = vld [vmem:[#allocation4 + $0x28] sm:$0xff]
        %v873 = vld [vmem:[#allocation4 + $0x30] sm:$0xff]
        %v874 = vld [vmem:[#allocation4 + $0x38] sm:$0xff]
        %876 = vset.pattern.permute.xlu0 0
        %877 = vperm.xlu0 %876, %v735
        %v878 = vpop.permute.xlu0 %877
        %881 = vset.pattern.permute.xlu0 0
        %882 = vperm.xlu0 %881, %v737
        %v883 = vpop.permute.xlu0 %882
        %886 = vset.pattern.permute.xlu0 0
        %887 = vperm.xlu0 %886, %v739
        %v888 = vpop.permute.xlu0 %887
        %891 = vset.pattern.permute.xlu0 0
        %892 = vperm.xlu0 %891, %v741
        %v893 = vpop.permute.xlu0 %892
        %896 = vset.pattern.permute.xlu0 0
        %897 = vperm.xlu0 %896, %v743
        %v898 = vpop.permute.xlu0 %897
        %901 = vset.pattern.permute.xlu0 0
        %902 = vperm.xlu0 %901, %v745
        %v903 = vpop.permute.xlu0 %902
        %906 = vset.pattern.permute.xlu0 0
        %907 = vperm.xlu0 %906, %v747
        %v908 = vpop.permute.xlu0 %907
        %911 = vset.pattern.permute.xlu0 0
        %912 = vperm.xlu0 %911, %v749
        %v913 = vpop.permute.xlu0 %912
        %v915 = vmul.f32 %v878, %v867
        %v916 = vmul.f32 %v883, %v868
        %v917 = vmul.f32 %v888, %v869
        %v918 = vmul.f32 %v893, %v870
        %v919 = vmul.f32 %v898, %v871
        %v920 = vmul.f32 %v903, %v872
        %v921 = vmul.f32 %v908, %v873
        %v922 = vmul.f32 %v913, %v874
        %v923 = vld [vmem:[%s504] sm:$0xf]
        %v924 = vld [vmem:[%s504 + $0x4] sm:$0xf]
        %v925 = vld [vmem:[%s504 + $0x8] sm:$0xf]
        %v926 = vld [vmem:[%s504 + $0xc] sm:$0xf]
        %v927 = vld [vmem:[%s504 + $0x10] sm:$0xf]
        %v928 = vld [vmem:[%s504 + $0x14] sm:$0xf]
        %v929 = vld [vmem:[%s504 + $0x18] sm:$0xf]
        %v930 = vld [vmem:[%s504 + $0x1c] sm:$0xf]
        %v931 = vld [vmem:[%s504 + $0x20] sm:$0xf]
        %v932 = vld [vmem:[%s504 + $0x24] sm:$0xf]
        %v933 = vld [vmem:[%s504 + $0x28] sm:$0xf]
        %v934 = vld [vmem:[%s504 + $0x2c] sm:$0xf]
        %v935 = vld [vmem:[%s504 + $0x30] sm:$0xf]
        %v936 = vld [vmem:[%s504 + $0x34] sm:$0xf]
        %v937 = vld [vmem:[%s504 + $0x38] sm:$0xf]
        %v938 = vld [vmem:[%s504 + $0x3c] sm:$0xf]
        %v955 = vunpack.c.l.b16 %v923
        %v956 = vunpack.c.l.b16 %v924
        %v957 = vunpack.c.l.b16 %v925
        %v958 = vunpack.c.l.b16 %v926
        %v959 = vunpack.c.l.b16 %v927
        %v960 = vunpack.c.l.b16 %v928
        %v961 = vunpack.c.l.b16 %v929
        %v962 = vunpack.c.l.b16 %v930
        %v963 = vunpack.c.l.b16 %v931
        %v964 = vunpack.c.l.b16 %v932
        %v965 = vunpack.c.l.b16 %v933
        %v966 = vunpack.c.l.b16 %v934
        %v967 = vunpack.c.l.b16 %v935
        %v968 = vunpack.c.l.b16 %v936
        %v969 = vunpack.c.l.b16 %v937
        %v970 = vunpack.c.l.b16 %v938
        %v971 = vpack.c.b16 %v956, %v955
        %v972 = vpack.c.b16 %v958, %v957
        %v973 = vpack.c.b16 %v960, %v959
        %v974 = vpack.c.b16 %v962, %v961
        %v975 = vpack.c.b16 %v964, %v963
        %v976 = vpack.c.b16 %v966, %v965
        %v977 = vpack.c.b16 %v968, %v967
        %v978 = vpack.c.b16 %v970, %v969
        %987 = vmatpush.bf16.msra.mxu0 %v978
        %988 = vmatpush.bf16.msra.mxu0 %v977
        %989 = vmatpush.bf16.msra.mxu0 %v976
        %990 = vmatpush.bf16.msra.mxu0 %v975
        %991 = vmatpush.bf16.msra.mxu0 %v974
        %992 = vmatpush.bf16.msra.mxu0 %v973
        %993 = vmatpush.bf16.msra.mxu0 %v972
        %994 = vmatpush.bf16.msra.mxu0 %v971
        %995 = vmatmul.bf16.gmra.mxu0 %v814
        %v996 = vpop.f32.mrf.mxu0
        %v997 = vadd.f32 0.0, %v996
        %v998 = vpop.f32.mrf.mxu0
        %v999 = vadd.f32 0.0, %v998
        %1000 = vmatmul.bf16.gmra.mxu0 %v815
        %v1001 = vpop.f32.mrf.mxu0
        %v1002 = vadd.f32 0.0, %v1001
        %v1003 = vpop.f32.mrf.mxu0
        %v1004 = vadd.f32 0.0, %v1003
        %1005 = vmatmul.bf16.gmra.mxu0 %v816
        %v1006 = vpop.f32.mrf.mxu0
        %v1007 = vadd.f32 0.0, %v1006
        %v1008 = vpop.f32.mrf.mxu0
        %v1009 = vadd.f32 0.0, %v1008
        %1010 = vmatmul.bf16.gmra.mxu0 %v817
        %v1011 = vpop.f32.mrf.mxu0
        %v1012 = vadd.f32 0.0, %v1011
        %v1013 = vpop.f32.mrf.mxu0
        %v1014 = vadd.f32 0.0, %v1013
        %1015 = vdwg.mxu0
        %v1016 = vadd.f32 %v915, %v997
        %v1017 = vadd.f32 %v916, %v999
        %v1018 = vadd.f32 %v917, %v1002
        %v1019 = vadd.f32 %v918, %v1004
        %v1020 = vadd.f32 %v919, %v1007
        %v1021 = vadd.f32 %v920, %v1009
        %v1022 = vadd.f32 %v921, %v1012
        %v1023 = vadd.f32 %v922, %v1014
        %1024 = vst [vmem:[#allocation4] sm:$0xff] %v1016
        %1025 = vst [vmem:[#allocation4 + $0x8] sm:$0xff] %v1017
        %1026 = vst [vmem:[#allocation4 + $0x10] sm:$0xff] %v1018
        %1027 = vst [vmem:[#allocation4 + $0x18] sm:$0xff] %v1019
        %1028 = vst [vmem:[#allocation4 + $0x20] sm:$0xff] %v1020
        %1029 = vst [vmem:[#allocation4 + $0x28] sm:$0xff] %v1021
        %1030 = vst [vmem:[#allocation4 + $0x30] sm:$0xff] %v1022
        %1031 = vst [vmem:[#allocation4 + $0x38] sm:$0xff] %v1023
        %1032 = vst.msk [vmem:[#allocation2] sm:$0xff] %vm858, %v718
        %1033 = vst.msk [vmem:[#allocation2 + $0x8] sm:$0xff] %vm858, %v719
        %1034 = vst.msk [vmem:[#allocation2 + $0x10] sm:$0xff] %vm858, %v720
        %1035 = vst.msk [vmem:[#allocation2 + $0x18] sm:$0xff] %vm858, %v721
        %1036 = vst.msk [vmem:[#allocation2 + $0x20] sm:$0xff] %vm858, %v722
        %1037 = vst.msk [vmem:[#allocation2 + $0x28] sm:$0xff] %vm858, %v723
        %1038 = vst.msk [vmem:[#allocation2 + $0x30] sm:$0xff] %vm858, %v724
        %1039 = vst.msk [vmem:[#allocation2 + $0x38] sm:$0xff] %vm858, %v725
        %p1040 = scmp.eq.s32.totalorder %s26, 1
        // Predicated region
        $region98: #{_geniepath_layer_impl.3} parent=88 // pred_check
          %p1041 = pneg %p1040
        $region99: #{_geniepath_layer_impl.3} parent=88 // pred_check_branch
          %1043 = sbr.rel (%p1041) target = $region101
        $region100: #{_geniepath_layer_impl.3} parent=88 // pred_region
          %v1044 = vld [vmem:[#allocation3] sm:$0xff]
          %v1045 = vld [vmem:[#allocation3 + $0x8] sm:$0xff]
          %v1046 = vld [vmem:[#allocation3 + $0x10] sm:$0xff]
          %v1047 = vld [vmem:[#allocation3 + $0x18] sm:$0xff]
          %v1048 = vld [vmem:[#allocation3 + $0x20] sm:$0xff]
          %v1049 = vld [vmem:[#allocation3 + $0x28] sm:$0xff]
          %v1050 = vld [vmem:[#allocation3 + $0x30] sm:$0xff]
          %v1051 = vld [vmem:[#allocation3 + $0x38] sm:$0xff]
          %v1052 = vrcp.pop %v1044
          %v1053 = vrcp.pop %v1045
          %v1054 = vrcp.pop %v1046
          %v1055 = vrcp.pop %v1047
          %v1056 = vrcp.pop %v1048
          %v1057 = vrcp.pop %v1049
          %v1058 = vrcp.pop %v1050
          %v1059 = vrcp.pop %v1051
          %v1060 = vld [vmem:[#allocation4] sm:$0xff]
          %v1061 = vld [vmem:[#allocation4 + $0x8] sm:$0xff]
          %v1062 = vld [vmem:[#allocation4 + $0x10] sm:$0xff]
          %v1063 = vld [vmem:[#allocation4 + $0x18] sm:$0xff]
          %v1064 = vld [vmem:[#allocation4 + $0x20] sm:$0xff]
          %v1065 = vld [vmem:[#allocation4 + $0x28] sm:$0xff]
          %v1066 = vld [vmem:[#allocation4 + $0x30] sm:$0xff]
          %v1067 = vld [vmem:[#allocation4 + $0x38] sm:$0xff]
          %1069 = vset.pattern.permute.xlu0 0
          %1070 = vperm.xlu0 %1069, %v1052
          %v1071 = vpop.permute.xlu0 %1070
          %1074 = vset.pattern.permute.xlu0 0
          %1075 = vperm.xlu0 %1074, %v1053
          %v1076 = vpop.permute.xlu0 %1075
          %1079 = vset.pattern.permute.xlu0 0
          %1080 = vperm.xlu0 %1079, %v1054
          %v1081 = vpop.permute.xlu0 %1080
          %1084 = vset.pattern.permute.xlu0 0
          %1085 = vperm.xlu0 %1084, %v1055
          %v1086 = vpop.permute.xlu0 %1085
          %1089 = vset.pattern.permute.xlu0 0
          %1090 = vperm.xlu0 %1089, %v1056
          %v1091 = vpop.permute.xlu0 %1090
          %1094 = vset.pattern.permute.xlu0 0
          %1095 = vperm.xlu0 %1094, %v1057
          %v1096 = vpop.permute.xlu0 %1095
          %1099 = vset.pattern.permute.xlu0 0
          %1100 = vperm.xlu0 %1099, %v1058
          %v1101 = vpop.permute.xlu0 %1100
          %1104 = vset.pattern.permute.xlu0 0
          %1105 = vperm.xlu0 %1104, %v1059
          %v1106 = vpop.permute.xlu0 %1105
          %v1108 = vmul.f32 %v1060, %v1071
          %v1109 = vmul.f32 %v1061, %v1076
          %v1110 = vmul.f32 %v1062, %v1081
          %v1111 = vmul.f32 %v1063, %v1086
          %v1112 = vmul.f32 %v1064, %v1091
          %v1113 = vmul.f32 %v1065, %v1096
          %v1114 = vmul.f32 %v1066, %v1101
          %v1115 = vmul.f32 %v1067, %v1106
          %v1116 = vld [vmem:[%s4] sm:$0x1]
          %v1118 = vperm.slane %v1116, 0
          %v1120 = vadd.f32 %v1108, %v1118
          %v1121 = vadd.f32 %v1109, %v1118
          %v1122 = vadd.f32 %v1110, %v1118
          %v1123 = vadd.f32 %v1111, %v1118
          %v1124 = vadd.f32 %v1112, %v1118
          %v1125 = vadd.f32 %v1113, %v1118
          %v1126 = vadd.f32 %v1114, %v1118
          %v1127 = vadd.f32 %v1115, %v1118
          %v1128 = vtanh.pop %v1120
          %v1129 = vtanh.pop %v1121
          %v1130 = vtanh.pop %v1122
          %v1131 = vtanh.pop %v1123
          %v1132 = vtanh.pop %v1124
          %v1133 = vtanh.pop %v1125
          %v1134 = vtanh.pop %v1126
          %v1135 = vtanh.pop %v1127
          %v1136 = vpack.c.bf16 %v1128, %v1128
          %v1137 = vpack.c.bf16 %v1129, %v1129
          %v1138 = vpack.c.bf16 %v1130, %v1130
          %v1139 = vpack.c.bf16 %v1131, %v1131
          %v1140 = vpack.c.bf16 %v1132, %v1132
          %v1141 = vpack.c.bf16 %v1133, %v1133
          %v1142 = vpack.c.bf16 %v1134, %v1134
          %v1143 = vpack.c.bf16 %v1135, %v1135
          %v1144 = vld [vmem:[%s519] sm:$0xf]
          %v1145 = vld [vmem:[%s519 + $0x4] sm:$0xf]
          %v1146 = vld [vmem:[%s519 + $0x8] sm:$0xf]
          %v1147 = vld [vmem:[%s519 + $0xc] sm:$0xf]
          %v1148 = vld [vmem:[%s519 + $0x10] sm:$0xf]
          %v1149 = vld [vmem:[%s519 + $0x14] sm:$0xf]
          %v1150 = vld [vmem:[%s519 + $0x18] sm:$0xf]
          %v1151 = vld [vmem:[%s519 + $0x1c] sm:$0xf]
          %v1160 = vunpack.c.l.b16 %v1136
          %v1161 = vunpack.c.l.b16 %v1137
          %v1162 = vunpack.c.l.b16 %v1138
          %v1163 = vunpack.c.l.b16 %v1139
          %v1164 = vunpack.c.l.b16 %v1140
          %v1165 = vunpack.c.l.b16 %v1141
          %v1166 = vunpack.c.l.b16 %v1142
          %v1167 = vunpack.c.l.b16 %v1143
          %v1168 = vpack.c.b16 %v1161, %v1160
          %v1169 = vpack.c.b16 %v1163, %v1162
          %v1170 = vpack.c.b16 %v1165, %v1164
          %v1171 = vpack.c.b16 %v1167, %v1166
          %v1184 = vunpack.c.l.b16 %v1144
          %v1185 = vunpack.c.l.b16 %v1145
          %v1186 = vunpack.c.l.b16 %v1146
          %v1187 = vunpack.c.l.b16 %v1147
          %v1188 = vunpack.c.l.b16 %v1148
          %v1189 = vunpack.c.l.b16 %v1149
          %v1190 = vunpack.c.l.b16 %v1150
          %v1191 = vunpack.c.l.b16 %v1151
          %v1192 = vpack.c.b16 %v1185, %v1184
          %v1193 = vpack.c.b16 %v1187, %v1186
          %v1194 = vpack.c.b16 %v1189, %v1188
          %v1195 = vpack.c.b16 %v1191, %v1190
          %v1200 = vld [vmem:[%s5] sm:$0xff]
          %v1201 = vld [vmem:[%s5 + $0x8] sm:$0xff]
          %v1202 = vld [vmem:[%s5 + $0x10] sm:$0xff]
          %v1203 = vld [vmem:[%s5 + $0x18] sm:$0xff]
          %v1204 = vld [vmem:[%s5 + $0x20] sm:$0xff]
          %v1205 = vld [vmem:[%s5 + $0x28] sm:$0xff]
          %v1206 = vld [vmem:[%s5 + $0x30] sm:$0xff]
          %v1207 = vld [vmem:[%s5 + $0x38] sm:$0xff]
          %v1208 = vld [vmem:[%s5 + $0x40] sm:$0xff]
          %v1209 = vld [vmem:[%s5 + $0x48] sm:$0xff]
          %v1210 = vld [vmem:[%s5 + $0x50] sm:$0xff]
          %v1211 = vld [vmem:[%s5 + $0x58] sm:$0xff]
          %v1212 = vld [vmem:[%s5 + $0x60] sm:$0xff]
          %v1213 = vld [vmem:[%s5 + $0x68] sm:$0xff]
          %v1214 = vld [vmem:[%s5 + $0x70] sm:$0xff]
          %v1215 = vld [vmem:[%s5 + $0x78] sm:$0xff]
          %v1216 = vld [vmem:[%s5 + $0x80] sm:$0xff]
          %v1217 = vld [vmem:[%s5 + $0x88] sm:$0xff]
          %v1218 = vld [vmem:[%s5 + $0x90] sm:$0xff]
          %v1219 = vld [vmem:[%s5 + $0x98] sm:$0xff]
          %v1220 = vld [vmem:[%s5 + $0xa0] sm:$0xff]
          %v1221 = vld [vmem:[%s5 + $0xa8] sm:$0xff]
          %v1222 = vld [vmem:[%s5 + $0xb0] sm:$0xff]
          %v1223 = vld [vmem:[%s5 + $0xb8] sm:$0xff]
          %v1224 = vld [vmem:[%s5 + $0xc0] sm:$0xff]
          %v1225 = vld [vmem:[%s5 + $0xc8] sm:$0xff]
          %v1226 = vld [vmem:[%s5 + $0xd0] sm:$0xff]
          %v1227 = vld [vmem:[%s5 + $0xd8] sm:$0xff]
          %v1228 = vld [vmem:[%s5 + $0xe0] sm:$0xff]
          %v1229 = vld [vmem:[%s5 + $0xe8] sm:$0xff]
          %v1230 = vld [vmem:[%s5 + $0xf0] sm:$0xff]
          %v1231 = vld [vmem:[%s5 + $0xf8] sm:$0xff]
          %v1232 = vld [vmem:[%s5 + $0x100] sm:$0xff]
          %v1233 = vld [vmem:[%s5 + $0x108] sm:$0xff]
          %v1234 = vld [vmem:[%s5 + $0x110] sm:$0xff]
          %v1235 = vld [vmem:[%s5 + $0x118] sm:$0xff]
          %v1236 = vld [vmem:[%s5 + $0x120] sm:$0xff]
          %v1237 = vld [vmem:[%s5 + $0x128] sm:$0xff]
          %v1238 = vld [vmem:[%s5 + $0x130] sm:$0xff]
          %v1239 = vld [vmem:[%s5 + $0x138] sm:$0xff]
          %v1240 = vld [vmem:[%s5 + $0x140] sm:$0xff]
          %v1241 = vld [vmem:[%s5 + $0x148] sm:$0xff]
          %v1242 = vld [vmem:[%s5 + $0x150] sm:$0xff]
          %v1243 = vld [vmem:[%s5 + $0x158] sm:$0xff]
          %v1244 = vld [vmem:[%s5 + $0x160] sm:$0xff]
          %v1245 = vld [vmem:[%s5 + $0x168] sm:$0xff]
          %v1246 = vld [vmem:[%s5 + $0x170] sm:$0xff]
          %v1247 = vld [vmem:[%s5 + $0x178] sm:$0xff]
          %v1248 = vld [vmem:[%s5 + $0x180] sm:$0xff]
          %v1249 = vld [vmem:[%s5 + $0x188] sm:$0xff]
          %v1250 = vld [vmem:[%s5 + $0x190] sm:$0xff]
          %v1251 = vld [vmem:[%s5 + $0x198] sm:$0xff]
          %v1252 = vld [vmem:[%s5 + $0x1a0] sm:$0xff]
          %v1253 = vld [vmem:[%s5 + $0x1a8] sm:$0xff]
          %v1254 = vld [vmem:[%s5 + $0x1b0] sm:$0xff]
          %v1255 = vld [vmem:[%s5 + $0x1b8] sm:$0xff]
          %v1256 = vld [vmem:[%s5 + $0x1c0] sm:$0xff]
          %v1257 = vld [vmem:[%s5 + $0x1c8] sm:$0xff]
          %v1258 = vld [vmem:[%s5 + $0x1d0] sm:$0xff]
          %v1259 = vld [vmem:[%s5 + $0x1d8] sm:$0xff]
          %v1260 = vld [vmem:[%s5 + $0x1e0] sm:$0xff]
          %v1261 = vld [vmem:[%s5 + $0x1e8] sm:$0xff]
          %v1262 = vld [vmem:[%s5 + $0x1f0] sm:$0xff]
          %v1263 = vld [vmem:[%s5 + $0x1f8] sm:$0xff]
          %v1328 = vunpack.c.l.b16 %v1200
          %v1329 = vunpack.c.h.b16 %v1200
          %v1330 = vunpack.c.l.b16 %v1201
          %v1331 = vunpack.c.h.b16 %v1201
          %v1332 = vunpack.c.l.b16 %v1202
          %v1333 = vunpack.c.h.b16 %v1202
          %v1334 = vunpack.c.l.b16 %v1203
          %v1335 = vunpack.c.h.b16 %v1203
          %v1336 = vunpack.c.l.b16 %v1204
          %v1337 = vunpack.c.h.b16 %v1204
          %v1338 = vunpack.c.l.b16 %v1205
          %v1339 = vunpack.c.h.b16 %v1205
          %v1340 = vunpack.c.l.b16 %v1206
          %v1341 = vunpack.c.h.b16 %v1206
          %v1342 = vunpack.c.l.b16 %v1207
          %v1343 = vunpack.c.h.b16 %v1207
          %v1344 = vunpack.c.l.b16 %v1208
          %v1345 = vunpack.c.h.b16 %v1208
          %v1346 = vunpack.c.l.b16 %v1209
          %v1347 = vunpack.c.h.b16 %v1209
          %v1348 = vunpack.c.l.b16 %v1210
          %v1349 = vunpack.c.h.b16 %v1210
          %v1350 = vunpack.c.l.b16 %v1211
          %v1351 = vunpack.c.h.b16 %v1211
          %v1352 = vunpack.c.l.b16 %v1212
          %v1353 = vunpack.c.h.b16 %v1212
          %v1354 = vunpack.c.l.b16 %v1213
          %v1355 = vunpack.c.h.b16 %v1213
          %v1356 = vunpack.c.l.b16 %v1214
          %v1357 = vunpack.c.h.b16 %v1214
          %v1358 = vunpack.c.l.b16 %v1215
          %v1359 = vunpack.c.h.b16 %v1215
          %v1360 = vunpack.c.l.b16 %v1216
          %v1361 = vunpack.c.h.b16 %v1216
          %v1362 = vunpack.c.l.b16 %v1217
          %v1363 = vunpack.c.h.b16 %v1217
          %v1364 = vunpack.c.l.b16 %v1218
          %v1365 = vunpack.c.h.b16 %v1218
          %v1366 = vunpack.c.l.b16 %v1219
          %v1367 = vunpack.c.h.b16 %v1219
          %v1368 = vunpack.c.l.b16 %v1220
          %v1369 = vunpack.c.h.b16 %v1220
          %v1370 = vunpack.c.l.b16 %v1221
          %v1371 = vunpack.c.h.b16 %v1221
          %v1372 = vunpack.c.l.b16 %v1222
          %v1373 = vunpack.c.h.b16 %v1222
          %v1374 = vunpack.c.l.b16 %v1223
          %v1375 = vunpack.c.h.b16 %v1223
          %v1376 = vunpack.c.l.b16 %v1224
          %v1377 = vunpack.c.h.b16 %v1224
          %v1378 = vunpack.c.l.b16 %v1225
          %v1379 = vunpack.c.h.b16 %v1225
          %v1380 = vunpack.c.l.b16 %v1226
          %v1381 = vunpack.c.h.b16 %v1226
          %v1382 = vunpack.c.l.b16 %v1227
          %v1383 = vunpack.c.h.b16 %v1227
          %v1384 = vunpack.c.l.b16 %v1228
          %v1385 = vunpack.c.h.b16 %v1228
          %v1386 = vunpack.c.l.b16 %v1229
          %v1387 = vunpack.c.h.b16 %v1229
          %v1388 = vunpack.c.l.b16 %v1230
          %v1389 = vunpack.c.h.b16 %v1230
          %v1390 = vunpack.c.l.b16 %v1231
          %v1391 = vunpack.c.h.b16 %v1231
          %v1392 = vunpack.c.l.b16 %v1232
          %v1393 = vunpack.c.h.b16 %v1232
          %v1394 = vunpack.c.l.b16 %v1233
          %v1395 = vunpack.c.h.b16 %v1233
          %v1396 = vunpack.c.l.b16 %v1234
          %v1397 = vunpack.c.h.b16 %v1234
          %v1398 = vunpack.c.l.b16 %v1235
          %v1399 = vunpack.c.h.b16 %v1235
          %v1400 = vunpack.c.l.b16 %v1236
          %v1401 = vunpack.c.h.b16 %v1236
          %v1402 = vunpack.c.l.b16 %v1237
          %v1403 = vunpack.c.h.b16 %v1237
          %v1404 = vunpack.c.l.b16 %v1238
          %v1405 = vunpack.c.h.b16 %v1238
          %v1406 = vunpack.c.l.b16 %v1239
          %v1407 = vunpack.c.h.b16 %v1239
          %v1408 = vunpack.c.l.b16 %v1240
          %v1409 = vunpack.c.h.b16 %v1240
          %v1410 = vunpack.c.l.b16 %v1241
          %v1411 = vunpack.c.h.b16 %v1241
          %v1412 = vunpack.c.l.b16 %v1242
          %v1413 = vunpack.c.h.b16 %v1242
          %v1414 = vunpack.c.l.b16 %v1243
          %v1415 = vunpack.c.h.b16 %v1243
          %v1416 = vunpack.c.l.b16 %v1244
          %v1417 = vunpack.c.h.b16 %v1244
          %v1418 = vunpack.c.l.b16 %v1245
          %v1419 = vunpack.c.h.b16 %v1245
          %v1420 = vunpack.c.l.b16 %v1246
          %v1421 = vunpack.c.h.b16 %v1246
          %v1422 = vunpack.c.l.b16 %v1247
          %v1423 = vunpack.c.h.b16 %v1247
          %v1424 = vunpack.c.l.b16 %v1248
          %v1425 = vunpack.c.h.b16 %v1248
          %v1426 = vunpack.c.l.b16 %v1249
          %v1427 = vunpack.c.h.b16 %v1249
          %v1428 = vunpack.c.l.b16 %v1250
          %v1429 = vunpack.c.h.b16 %v1250
          %v1430 = vunpack.c.l.b16 %v1251
          %v1431 = vunpack.c.h.b16 %v1251
          %v1432 = vunpack.c.l.b16 %v1252
          %v1433 = vunpack.c.h.b16 %v1252
          %v1434 = vunpack.c.l.b16 %v1253
          %v1435 = vunpack.c.h.b16 %v1253
          %v1436 = vunpack.c.l.b16 %v1254
          %v1437 = vunpack.c.h.b16 %v1254
          %v1438 = vunpack.c.l.b16 %v1255
          %v1439 = vunpack.c.h.b16 %v1255
          %v1440 = vunpack.c.l.b16 %v1256
          %v1441 = vunpack.c.h.b16 %v1256
          %v1442 = vunpack.c.l.b16 %v1257
          %v1443 = vunpack.c.h.b16 %v1257
          %v1444 = vunpack.c.l.b16 %v1258
          %v1445 = vunpack.c.h.b16 %v1258
          %v1446 = vunpack.c.l.b16 %v1259
          %v1447 = vunpack.c.h.b16 %v1259
          %v1448 = vunpack.c.l.b16 %v1260
          %v1449 = vunpack.c.h.b16 %v1260
          %v1450 = vunpack.c.l.b16 %v1261
          %v1451 = vunpack.c.h.b16 %v1261
          %v1452 = vunpack.c.l.b16 %v1262
          %v1453 = vunpack.c.h.b16 %v1262
          %v1454 = vunpack.c.l.b16 %v1263
          %v1455 = vunpack.c.h.b16 %v1263
          %v1456 = vpack.c.b16 %v1332, %v1328
          %v1457 = vpack.c.b16 %v1333, %v1329
          %v1458 = vpack.c.b16 %v1334, %v1330
          %v1459 = vpack.c.b16 %v1335, %v1331
          %v1460 = vpack.c.b16 %v1340, %v1336
          %v1461 = vpack.c.b16 %v1341, %v1337
          %v1462 = vpack.c.b16 %v1342, %v1338
          %v1463 = vpack.c.b16 %v1343, %v1339
          %v1464 = vpack.c.b16 %v1348, %v1344
          %v1465 = vpack.c.b16 %v1349, %v1345
          %v1466 = vpack.c.b16 %v1350, %v1346
          %v1467 = vpack.c.b16 %v1351, %v1347
          %v1468 = vpack.c.b16 %v1356, %v1352
          %v1469 = vpack.c.b16 %v1357, %v1353
          %v1470 = vpack.c.b16 %v1358, %v1354
          %v1471 = vpack.c.b16 %v1359, %v1355
          %v1472 = vpack.c.b16 %v1364, %v1360
          %v1473 = vpack.c.b16 %v1365, %v1361
          %v1474 = vpack.c.b16 %v1366, %v1362
          %v1475 = vpack.c.b16 %v1367, %v1363
          %v1476 = vpack.c.b16 %v1372, %v1368
          %v1477 = vpack.c.b16 %v1373, %v1369
          %v1478 = vpack.c.b16 %v1374, %v1370
          %v1479 = vpack.c.b16 %v1375, %v1371
          %v1480 = vpack.c.b16 %v1380, %v1376
          %v1481 = vpack.c.b16 %v1381, %v1377
          %v1482 = vpack.c.b16 %v1382, %v1378
          %v1483 = vpack.c.b16 %v1383, %v1379
          %v1484 = vpack.c.b16 %v1388, %v1384
          %v1485 = vpack.c.b16 %v1389, %v1385
          %v1486 = vpack.c.b16 %v1390, %v1386
          %v1487 = vpack.c.b16 %v1391, %v1387
          %v1488 = vpack.c.b16 %v1396, %v1392
          %v1489 = vpack.c.b16 %v1397, %v1393
          %v1490 = vpack.c.b16 %v1398, %v1394
          %v1491 = vpack.c.b16 %v1399, %v1395
          %v1492 = vpack.c.b16 %v1404, %v1400
          %v1493 = vpack.c.b16 %v1405, %v1401
          %v1494 = vpack.c.b16 %v1406, %v1402
          %v1495 = vpack.c.b16 %v1407, %v1403
          %v1496 = vpack.c.b16 %v1412, %v1408
          %v1497 = vpack.c.b16 %v1413, %v1409
          %v1498 = vpack.c.b16 %v1414, %v1410
          %v1499 = vpack.c.b16 %v1415, %v1411
          %v1500 = vpack.c.b16 %v1420, %v1416
          %v1501 = vpack.c.b16 %v1421, %v1417
          %v1502 = vpack.c.b16 %v1422, %v1418
          %v1503 = vpack.c.b16 %v1423, %v1419
          %v1504 = vpack.c.b16 %v1428, %v1424
          %v1505 = vpack.c.b16 %v1429, %v1425
          %v1506 = vpack.c.b16 %v1430, %v1426
          %v1507 = vpack.c.b16 %v1431, %v1427
          %v1508 = vpack.c.b16 %v1436, %v1432
          %v1509 = vpack.c.b16 %v1437, %v1433
          %v1510 = vpack.c.b16 %v1438, %v1434
          %v1511 = vpack.c.b16 %v1439, %v1435
          %v1512 = vpack.c.b16 %v1444, %v1440
          %v1513 = vpack.c.b16 %v1445, %v1441
          %v1514 = vpack.c.b16 %v1446, %v1442
          %v1515 = vpack.c.b16 %v1447, %v1443
          %v1516 = vpack.c.b16 %v1452, %v1448
          %v1517 = vpack.c.b16 %v1453, %v1449
          %v1518 = vpack.c.b16 %v1454, %v1450
          %v1519 = vpack.c.b16 %v1455, %v1451
          %1584 = vmatpush.bf16.msra.mxu0 %v1484
          %1585 = vmatpush.bf16.msra.mxu0 %v1480
          %1586 = vmatpush.bf16.msra.mxu0 %v1476
          %1587 = vmatpush.bf16.msra.mxu0 %v1472
          %1588 = vmatpush.bf16.msra.mxu0 %v1468
          %1589 = vmatpush.bf16.msra.mxu0 %v1464
          %1590 = vmatpush.bf16.msra.mxu0 %v1460
          %1591 = vmatpush.bf16.msra.mxu0 %v1456
          %1592 = vmatmul.bf16.gmra.mxu0 %v1168
          %v1593 = vpop.f32.mrf.mxu0
          %v1594 = vadd.f32 0.0, %v1593
          %v1595 = vpop.f32.mrf.mxu0
          %v1596 = vadd.f32 0.0, %v1595
          %1597 = vmatmul.bf16.gmra.mxu0 %v1169
          %v1598 = vpop.f32.mrf.mxu0
          %v1599 = vadd.f32 0.0, %v1598
          %v1600 = vpop.f32.mrf.mxu0
          %v1601 = vadd.f32 0.0, %v1600
          %1602 = vmatmul.bf16.gmra.mxu0 %v1170
          %v1603 = vpop.f32.mrf.mxu0
          %v1604 = vadd.f32 0.0, %v1603
          %v1605 = vpop.f32.mrf.mxu0
          %v1606 = vadd.f32 0.0, %v1605
          %1607 = vmatmul.bf16.gmra.mxu0 %v1171
          %v1608 = vpop.f32.mrf.mxu0
          %v1609 = vadd.f32 0.0, %v1608
          %v1610 = vpop.f32.mrf.mxu0
          %v1611 = vadd.f32 0.0, %v1610
          %1612 = vdwg.mxu0
          %1613 = vmatpush.bf16.msra.mxu0 %v1516
          %1614 = vmatpush.bf16.msra.mxu0 %v1512
          %1615 = vmatpush.bf16.msra.mxu0 %v1508
          %1616 = vmatpush.bf16.msra.mxu0 %v1504
          %1617 = vmatpush.bf16.msra.mxu0 %v1500
          %1618 = vmatpush.bf16.msra.mxu0 %v1496
          %1619 = vmatpush.bf16.msra.mxu0 %v1492
          %1620 = vmatpush.bf16.msra.mxu0 %v1488
          %1621 = vmatmul.bf16.gmra.mxu0 %v1192
          %v1622 = vpop.f32.mrf.mxu0
          %v1623 = vadd.f32 %v1594, %v1622
          %v1624 = vpop.f32.mrf.mxu0
          %v1625 = vadd.f32 %v1596, %v1624
          %1626 = vmatmul.bf16.gmra.mxu0 %v1193
          %v1627 = vpop.f32.mrf.mxu0
          %v1628 = vadd.f32 %v1599, %v1627
          %v1629 = vpop.f32.mrf.mxu0
          %v1630 = vadd.f32 %v1601, %v1629
          %1631 = vmatmul.bf16.gmra.mxu0 %v1194
          %v1632 = vpop.f32.mrf.mxu0
          %v1633 = vadd.f32 %v1604, %v1632
          %v1634 = vpop.f32.mrf.mxu0
          %v1635 = vadd.f32 %v1606, %v1634
          %1636 = vmatmul.bf16.gmra.mxu0 %v1195
          %v1637 = vpop.f32.mrf.mxu0
          %v1638 = vadd.f32 %v1609, %v1637
          %v1639 = vpop.f32.mrf.mxu0
          %v1640 = vadd.f32 %v1611, %v1639
          %1641 = vdwg.mxu0
          %1642 = vmatpush.bf16.msra.mxu0 %v1485
          %1643 = vmatpush.bf16.msra.mxu0 %v1481
          %1644 = vmatpush.bf16.msra.mxu0 %v1477
          %1645 = vmatpush.bf16.msra.mxu0 %v1473
          %1646 = vmatpush.bf16.msra.mxu0 %v1469
          %1647 = vmatpush.bf16.msra.mxu0 %v1465
          %1648 = vmatpush.bf16.msra.mxu0 %v1461
          %1649 = vmatpush.bf16.msra.mxu0 %v1457
          %1650 = vmatmul.bf16.gmra.mxu0 %v1168
          %v1651 = vpop.f32.mrf.mxu0
          %v1652 = vadd.f32 0.0, %v1651
          %v1653 = vpop.f32.mrf.mxu0
          %v1654 = vadd.f32 0.0, %v1653
          %1655 = vmatmul.bf16.gmra.mxu0 %v1169
          %v1656 = vpop.f32.mrf.mxu0
          %v1657 = vadd.f32 0.0, %v1656
          %v1658 = vpop.f32.mrf.mxu0
          %v1659 = vadd.f32 0.0, %v1658
          %1660 = vmatmul.bf16.gmra.mxu0 %v1170
          %v1661 = vpop.f32.mrf.mxu0
          %v1662 = vadd.f32 0.0, %v1661
          %v1663 = vpop.f32.mrf.mxu0
          %v1664 = vadd.f32 0.0, %v1663
          %1665 = vmatmul.bf16.gmra.mxu0 %v1171
          %v1666 = vpop.f32.mrf.mxu0
          %v1667 = vadd.f32 0.0, %v1666
          %v1668 = vpop.f32.mrf.mxu0
          %v1669 = vadd.f32 0.0, %v1668
          %1670 = vdwg.mxu0
          %1671 = vmatpush.bf16.msra.mxu0 %v1517
          %1672 = vmatpush.bf16.msra.mxu0 %v1513
          %1673 = vmatpush.bf16.msra.mxu0 %v1509
          %1674 = vmatpush.bf16.msra.mxu0 %v1505
          %1675 = vmatpush.bf16.msra.mxu0 %v1501
          %1676 = vmatpush.bf16.msra.mxu0 %v1497
          %1677 = vmatpush.bf16.msra.mxu0 %v1493
          %1678 = vmatpush.bf16.msra.mxu0 %v1489
          %1679 = vmatmul.bf16.gmra.mxu0 %v1192
          %v1680 = vpop.f32.mrf.mxu0
          %v1681 = vadd.f32 %v1652, %v1680
          %v1682 = vpop.f32.mrf.mxu0
          %v1683 = vadd.f32 %v1654, %v1682
          %1684 = vmatmul.bf16.gmra.mxu0 %v1193
          %v1685 = vpop.f32.mrf.mxu0
          %v1686 = vadd.f32 %v1657, %v1685
          %v1687 = vpop.f32.mrf.mxu0
          %v1688 = vadd.f32 %v1659, %v1687
          %1689 = vmatmul.bf16.gmra.mxu0 %v1194
          %v1690 = vpop.f32.mrf.mxu0
          %v1691 = vadd.f32 %v1662, %v1690
          %v1692 = vpop.f32.mrf.mxu0
          %v1693 = vadd.f32 %v1664, %v1692
          %1694 = vmatmul.bf16.gmra.mxu0 %v1195
          %v1695 = vpop.f32.mrf.mxu0
          %v1696 = vadd.f32 %v1667, %v1695
          %v1697 = vpop.f32.mrf.mxu0
          %v1698 = vadd.f32 %v1669, %v1697
          %1699 = vdwg.mxu0
          %1700 = vmatpush.bf16.msra.mxu0 %v1486
          %1701 = vmatpush.bf16.msra.mxu0 %v1482
          %1702 = vmatpush.bf16.msra.mxu0 %v1478
          %1703 = vmatpush.bf16.msra.mxu0 %v1474
          %1704 = vmatpush.bf16.msra.mxu0 %v1470
          %1705 = vmatpush.bf16.msra.mxu0 %v1466
          %1706 = vmatpush.bf16.msra.mxu0 %v1462
          %1707 = vmatpush.bf16.msra.mxu0 %v1458
          %1708 = vmatmul.bf16.gmra.mxu0 %v1168
          %v1709 = vpop.f32.mrf.mxu0
          %v1710 = vadd.f32 0.0, %v1709
          %v1711 = vpop.f32.mrf.mxu0
          %v1712 = vadd.f32 0.0, %v1711
          %1713 = vmatmul.bf16.gmra.mxu0 %v1169
          %v1714 = vpop.f32.mrf.mxu0
          %v1715 = vadd.f32 0.0, %v1714
          %v1716 = vpop.f32.mrf.mxu0
          %v1717 = vadd.f32 0.0, %v1716
          %1718 = vmatmul.bf16.gmra.mxu0 %v1170
          %v1719 = vpop.f32.mrf.mxu0
          %v1720 = vadd.f32 0.0, %v1719
          %v1721 = vpop.f32.mrf.mxu0
          %v1722 = vadd.f32 0.0, %v1721
          %1723 = vmatmul.bf16.gmra.mxu0 %v1171
          %v1724 = vpop.f32.mrf.mxu0
          %v1725 = vadd.f32 0.0, %v1724
          %v1726 = vpop.f32.mrf.mxu0
          %v1727 = vadd.f32 0.0, %v1726
          %1728 = vdwg.mxu0
          %1729 = vmatpush.bf16.msra.mxu0 %v1518
          %1730 = vmatpush.bf16.msra.mxu0 %v1514
          %1731 = vmatpush.bf16.msra.mxu0 %v1510
          %1732 = vmatpush.bf16.msra.mxu0 %v1506
          %1733 = vmatpush.bf16.msra.mxu0 %v1502
          %1734 = vmatpush.bf16.msra.mxu0 %v1498
          %1735 = vmatpush.bf16.msra.mxu0 %v1494
          %1736 = vmatpush.bf16.msra.mxu0 %v1490
          %1737 = vmatmul.bf16.gmra.mxu0 %v1192
          %v1738 = vpop.f32.mrf.mxu0
          %v1739 = vadd.f32 %v1710, %v1738
          %v1740 = vpop.f32.mrf.mxu0
          %v1741 = vadd.f32 %v1712, %v1740
          %1742 = vmatmul.bf16.gmra.mxu0 %v1193
          %v1743 = vpop.f32.mrf.mxu0
          %v1744 = vadd.f32 %v1715, %v1743
          %v1745 = vpop.f32.mrf.mxu0
          %v1746 = vadd.f32 %v1717, %v1745
          %1747 = vmatmul.bf16.gmra.mxu0 %v1194
          %v1748 = vpop.f32.mrf.mxu0
          %v1749 = vadd.f32 %v1720, %v1748
          %v1750 = vpop.f32.mrf.mxu0
          %v1751 = vadd.f32 %v1722, %v1750
          %1752 = vmatmul.bf16.gmra.mxu0 %v1195
          %v1753 = vpop.f32.mrf.mxu0
          %v1754 = vadd.f32 %v1725, %v1753
          %v1755 = vpop.f32.mrf.mxu0
          %v1756 = vadd.f32 %v1727, %v1755
          %1757 = vdwg.mxu0
          %1758 = vmatpush.bf16.msra.mxu0 %v1487
          %1759 = vmatpush.bf16.msra.mxu0 %v1483
          %1760 = vmatpush.bf16.msra.mxu0 %v1479
          %1761 = vmatpush.bf16.msra.mxu0 %v1475
          %1762 = vmatpush.bf16.msra.mxu0 %v1471
          %1763 = vmatpush.bf16.msra.mxu0 %v1467
          %1764 = vmatpush.bf16.msra.mxu0 %v1463
          %1765 = vmatpush.bf16.msra.mxu0 %v1459
          %1766 = vmatmul.bf16.gmra.mxu0 %v1168
          %v1767 = vpop.f32.mrf.mxu0
          %v1768 = vadd.f32 0.0, %v1767
          %v1769 = vpop.f32.mrf.mxu0
          %v1770 = vadd.f32 0.0, %v1769
          %1771 = vmatmul.bf16.gmra.mxu0 %v1169
          %v1772 = vpop.f32.mrf.mxu0
          %v1773 = vadd.f32 0.0, %v1772
          %v1774 = vpop.f32.mrf.mxu0
          %v1775 = vadd.f32 0.0, %v1774
          %1776 = vmatmul.bf16.gmra.mxu0 %v1170
          %v1777 = vpop.f32.mrf.mxu0
          %v1778 = vadd.f32 0.0, %v1777
          %v1779 = vpop.f32.mrf.mxu0
          %v1780 = vadd.f32 0.0, %v1779
          %1781 = vmatmul.bf16.gmra.mxu0 %v1171
          %v1782 = vpop.f32.mrf.mxu0
          %v1783 = vadd.f32 0.0, %v1782
          %v1784 = vpop.f32.mrf.mxu0
          %v1785 = vadd.f32 0.0, %v1784
          %1786 = vdwg.mxu0
          %1787 = vmatpush.bf16.msra.mxu0 %v1519
          %1788 = vmatpush.bf16.msra.mxu0 %v1515
          %1789 = vmatpush.bf16.msra.mxu0 %v1511
          %1790 = vmatpush.bf16.msra.mxu0 %v1507
          %1791 = vmatpush.bf16.msra.mxu0 %v1503
          %1792 = vmatpush.bf16.msra.mxu0 %v1499
          %1793 = vmatpush.bf16.msra.mxu0 %v1495
          %1794 = vmatpush.bf16.msra.mxu0 %v1491
          %1795 = vmatmul.bf16.gmra.mxu0 %v1192
          %v1796 = vpop.f32.mrf.mxu0
          %v1797 = vadd.f32 %v1768, %v1796
          %v1798 = vpop.f32.mrf.mxu0
          %v1799 = vadd.f32 %v1770, %v1798
          %1800 = vmatmul.bf16.gmra.mxu0 %v1193
          %v1801 = vpop.f32.mrf.mxu0
          %v1802 = vadd.f32 %v1773, %v1801
          %v1803 = vpop.f32.mrf.mxu0
          %v1804 = vadd.f32 %v1775, %v1803
          %1805 = vmatmul.bf16.gmra.mxu0 %v1194
          %v1806 = vpop.f32.mrf.mxu0
          %v1807 = vadd.f32 %v1778, %v1806
          %v1808 = vpop.f32.mrf.mxu0
          %v1809 = vadd.f32 %v1780, %v1808
          %1810 = vmatmul.bf16.gmra.mxu0 %v1195
          %v1811 = vpop.f32.mrf.mxu0
          %v1812 = vadd.f32 %v1783, %v1811
          %v1813 = vpop.f32.mrf.mxu0
          %v1814 = vadd.f32 %v1785, %v1813
          %1815 = vdwg.mxu0
          %v1816 = vxor.u32 %v1623, 2147483648
          %v1817 = vxor.u32 %v1625, 2147483648
          %v1818 = vxor.u32 %v1628, 2147483648
          %v1819 = vxor.u32 %v1630, 2147483648
          %v1820 = vxor.u32 %v1633, 2147483648
          %v1821 = vxor.u32 %v1635, 2147483648
          %v1822 = vxor.u32 %v1638, 2147483648
          %v1823 = vxor.u32 %v1640, 2147483648
          %v1824 = vmul.f32 %v1816, 1.442695
          %v1825 = vpow.pop %v1824
          %v1826 = vmul.f32 %v1817, 1.442695
          %v1827 = vpow.pop %v1826
          %v1828 = vmul.f32 %v1818, 1.442695
          %v1829 = vpow.pop %v1828
          %v1830 = vmul.f32 %v1819, 1.442695
          %v1831 = vpow.pop %v1830
          %v1832 = vmul.f32 %v1820, 1.442695
          %v1833 = vpow.pop %v1832
          %v1834 = vmul.f32 %v1821, 1.442695
          %v1835 = vpow.pop %v1834
          %v1836 = vmul.f32 %v1822, 1.442695
          %v1837 = vpow.pop %v1836
          %v1838 = vmul.f32 %v1823, 1.442695
          %v1839 = vpow.pop %v1838
          %v1840 = vadd.f32 %v1825, 1.0
          %v1841 = vadd.f32 %v1827, 1.0
          %v1842 = vadd.f32 %v1829, 1.0
          %v1843 = vadd.f32 %v1831, 1.0
          %v1844 = vadd.f32 %v1833, 1.0
          %v1845 = vadd.f32 %v1835, 1.0
          %v1846 = vadd.f32 %v1837, 1.0
          %v1847 = vadd.f32 %v1839, 1.0
          %v1848 = vrcp.pop %v1840
          %v1849 = vmul.f32 %v1840, %v1848
          %v1850 = vsub.f32 1.0, %v1849
          %v1851 = vmul.f32 %v1848, %v1850
          %v1852 = vadd.f32 %v1848, %v1851
          %vm1853 = vweird.f32 %v1840
          %vm1854 = vweird.f32 %v1848
          %vm1855 = vmor %vm1853, %vm1854
          %v1856 = vsel %vm1855, %v1848, %v1852
          %v1857 = vand.u32 2147483647, %v1840
          %vm1858 = vcmp.eq.f32.partialorder %v1857, 8.507059e+37
          %v1859 = vand.u32 %v1840, 2147483648
          %v1860 = vor.u32 1.1754944e-38, %v1859
          %v1861 = vsel %vm1858, %v1860, %v1856
          %v1862 = vmul.f32 1.0, %v1861
          %v1863 = vrcp.pop %v1841
          %v1864 = vmul.f32 %v1841, %v1863
          %v1865 = vsub.f32 1.0, %v1864
          %v1866 = vmul.f32 %v1863, %v1865
          %v1867 = vadd.f32 %v1863, %v1866
          %vm1868 = vweird.f32 %v1841
          %vm1869 = vweird.f32 %v1863
          %vm1870 = vmor %vm1868, %vm1869
          %v1871 = vsel %vm1870, %v1863, %v1867
          %v1872 = vand.u32 2147483647, %v1841
          %vm1873 = vcmp.eq.f32.partialorder %v1872, 8.507059e+37
          %v1874 = vand.u32 %v1841, 2147483648
          %v1875 = vor.u32 1.1754944e-38, %v1874
          %v1876 = vsel %vm1873, %v1875, %v1871
          %v1877 = vmul.f32 1.0, %v1876
          %v1878 = vrcp.pop %v1842
          %v1879 = vmul.f32 %v1842, %v1878
          %v1880 = vsub.f32 1.0, %v1879
          %v1881 = vmul.f32 %v1878, %v1880
          %v1882 = vadd.f32 %v1878, %v1881
          %vm1883 = vweird.f32 %v1842
          %vm1884 = vweird.f32 %v1878
          %vm1885 = vmor %vm1883, %vm1884
          %v1886 = vsel %vm1885, %v1878, %v1882
          %v1887 = vand.u32 2147483647, %v1842
          %vm1888 = vcmp.eq.f32.partialorder %v1887, 8.507059e+37
          %v1889 = vand.u32 %v1842, 2147483648
          %v1890 = vor.u32 1.1754944e-38, %v1889
          %v1891 = vsel %vm1888, %v1890, %v1886
          %v1892 = vmul.f32 1.0, %v1891
          %v1893 = vrcp.pop %v1843
          %v1894 = vmul.f32 %v1843, %v1893
          %v1895 = vsub.f32 1.0, %v1894
          %v1896 = vmul.f32 %v1893, %v1895
          %v1897 = vadd.f32 %v1893, %v1896
          %vm1898 = vweird.f32 %v1843
          %vm1899 = vweird.f32 %v1893
          %vm1900 = vmor %vm1898, %vm1899
          %v1901 = vsel %vm1900, %v1893, %v1897
          %v1902 = vand.u32 2147483647, %v1843
          %vm1903 = vcmp.eq.f32.partialorder %v1902, 8.507059e+37
          %v1904 = vand.u32 %v1843, 2147483648
          %v1905 = vor.u32 1.1754944e-38, %v1904
          %v1906 = vsel %vm1903, %v1905, %v1901
          %v1907 = vmul.f32 1.0, %v1906
          %v1908 = vrcp.pop %v1844
          %v1909 = vmul.f32 %v1844, %v1908
          %v1910 = vsub.f32 1.0, %v1909
          %v1911 = vmul.f32 %v1908, %v1910
          %v1912 = vadd.f32 %v1908, %v1911
          %vm1913 = vweird.f32 %v1844
          %vm1914 = vweird.f32 %v1908
          %vm1915 = vmor %vm1913, %vm1914
          %v1916 = vsel %vm1915, %v1908, %v1912
          %v1917 = vand.u32 2147483647, %v1844
          %vm1918 = vcmp.eq.f32.partialorder %v1917, 8.507059e+37
          %v1919 = vand.u32 %v1844, 2147483648
          %v1920 = vor.u32 1.1754944e-38, %v1919
          %v1921 = vsel %vm1918, %v1920, %v1916
          %v1922 = vmul.f32 1.0, %v1921
          %v1923 = vrcp.pop %v1845
          %v1924 = vmul.f32 %v1845, %v1923
          %v1925 = vsub.f32 1.0, %v1924
          %v1926 = vmul.f32 %v1923, %v1925
          %v1927 = vadd.f32 %v1923, %v1926
          %vm1928 = vweird.f32 %v1845
          %vm1929 = vweird.f32 %v1923
          %vm1930 = vmor %vm1928, %vm1929
          %v1931 = vsel %vm1930, %v1923, %v1927
          %v1932 = vand.u32 2147483647, %v1845
          %vm1933 = vcmp.eq.f32.partialorder %v1932, 8.507059e+37
          %v1934 = vand.u32 %v1845, 2147483648
          %v1935 = vor.u32 1.1754944e-38, %v1934
          %v1936 = vsel %vm1933, %v1935, %v1931
          %v1937 = vmul.f32 1.0, %v1936
          %v1938 = vrcp.pop %v1846
          %v1939 = vmul.f32 %v1846, %v1938
          %v1940 = vsub.f32 1.0, %v1939
          %v1941 = vmul.f32 %v1938, %v1940
          %v1942 = vadd.f32 %v1938, %v1941
          %vm1943 = vweird.f32 %v1846
          %vm1944 = vweird.f32 %v1938
          %vm1945 = vmor %vm1943, %vm1944
          %v1946 = vsel %vm1945, %v1938, %v1942
          %v1947 = vand.u32 2147483647, %v1846
          %vm1948 = vcmp.eq.f32.partialorder %v1947, 8.507059e+37
          %v1949 = vand.u32 %v1846, 2147483648
          %v1950 = vor.u32 1.1754944e-38, %v1949
          %v1951 = vsel %vm1948, %v1950, %v1946
          %v1952 = vmul.f32 1.0, %v1951
          %v1953 = vrcp.pop %v1847
          %v1954 = vmul.f32 %v1847, %v1953
          %v1955 = vsub.f32 1.0, %v1954
          %v1956 = vmul.f32 %v1953, %v1955
          %v1957 = vadd.f32 %v1953, %v1956
          %vm1958 = vweird.f32 %v1847
          %vm1959 = vweird.f32 %v1953
          %vm1960 = vmor %vm1958, %vm1959
          %v1961 = vsel %vm1960, %v1953, %v1957
          %v1962 = vand.u32 2147483647, %v1847
          %vm1963 = vcmp.eq.f32.partialorder %v1962, 8.507059e+37
          %v1964 = vand.u32 %v1847, 2147483648
          %v1965 = vor.u32 1.1754944e-38, %v1964
          %v1966 = vsel %vm1963, %v1965, %v1961
          %v1967 = vmul.f32 1.0, %v1966
          %v1968 = vxor.u32 %v1681, 2147483648
          %v1969 = vxor.u32 %v1683, 2147483648
          %v1970 = vxor.u32 %v1686, 2147483648
          %v1971 = vxor.u32 %v1688, 2147483648
          %v1972 = vxor.u32 %v1691, 2147483648
          %v1973 = vxor.u32 %v1693, 2147483648
          %v1974 = vxor.u32 %v1696, 2147483648
          %v1975 = vxor.u32 %v1698, 2147483648
          %v1976 = vmul.f32 %v1968, 1.442695
          %v1977 = vpow.pop %v1976
          %v1978 = vmul.f32 %v1969, 1.442695
          %v1979 = vpow.pop %v1978
          %v1980 = vmul.f32 %v1970, 1.442695
          %v1981 = vpow.pop %v1980
          %v1982 = vmul.f32 %v1971, 1.442695
          %v1983 = vpow.pop %v1982
          %v1984 = vmul.f32 %v1972, 1.442695
          %v1985 = vpow.pop %v1984
          %v1986 = vmul.f32 %v1973, 1.442695
          %v1987 = vpow.pop %v1986
          %v1988 = vmul.f32 %v1974, 1.442695
          %v1989 = vpow.pop %v1988
          %v1990 = vmul.f32 %v1975, 1.442695
          %v1991 = vpow.pop %v1990
          %v1992 = vadd.f32 %v1977, 1.0
          %v1993 = vadd.f32 %v1979, 1.0
          %v1994 = vadd.f32 %v1981, 1.0
          %v1995 = vadd.f32 %v1983, 1.0
          %v1996 = vadd.f32 %v1985, 1.0
          %v1997 = vadd.f32 %v1987, 1.0
          %v1998 = vadd.f32 %v1989, 1.0
          %v1999 = vadd.f32 %v1991, 1.0
          %v2000 = vrcp.pop %v1992
          %v2001 = vmul.f32 %v1992, %v2000
          %v2002 = vsub.f32 1.0, %v2001
          %v2003 = vmul.f32 %v2000, %v2002
          %v2004 = vadd.f32 %v2000, %v2003
          %vm2005 = vweird.f32 %v1992
          %vm2006 = vweird.f32 %v2000
          %vm2007 = vmor %vm2005, %vm2006
          %v2008 = vsel %vm2007, %v2000, %v2004
          %v2009 = vand.u32 2147483647, %v1992
          %vm2010 = vcmp.eq.f32.partialorder %v2009, 8.507059e+37
          %v2011 = vand.u32 %v1992, 2147483648
          %v2012 = vor.u32 1.1754944e-38, %v2011
          %v2013 = vsel %vm2010, %v2012, %v2008
          %v2014 = vmul.f32 1.0, %v2013
          %v2015 = vrcp.pop %v1993
          %v2016 = vmul.f32 %v1993, %v2015
          %v2017 = vsub.f32 1.0, %v2016
          %v2018 = vmul.f32 %v2015, %v2017
          %v2019 = vadd.f32 %v2015, %v2018
          %vm2020 = vweird.f32 %v1993
          %vm2021 = vweird.f32 %v2015
          %vm2022 = vmor %vm2020, %vm2021
          %v2023 = vsel %vm2022, %v2015, %v2019
          %v2024 = vand.u32 2147483647, %v1993
          %vm2025 = vcmp.eq.f32.partialorder %v2024, 8.507059e+37
          %v2026 = vand.u32 %v1993, 2147483648
          %v2027 = vor.u32 1.1754944e-38, %v2026
          %v2028 = vsel %vm2025, %v2027, %v2023
          %v2029 = vmul.f32 1.0, %v2028
          %v2030 = vrcp.pop %v1994
          %v2031 = vmul.f32 %v1994, %v2030
          %v2032 = vsub.f32 1.0, %v2031
          %v2033 = vmul.f32 %v2030, %v2032
          %v2034 = vadd.f32 %v2030, %v2033
          %vm2035 = vweird.f32 %v1994
          %vm2036 = vweird.f32 %v2030
          %vm2037 = vmor %vm2035, %vm2036
          %v2038 = vsel %vm2037, %v2030, %v2034
          %v2039 = vand.u32 2147483647, %v1994
          %vm2040 = vcmp.eq.f32.partialorder %v2039, 8.507059e+37
          %v2041 = vand.u32 %v1994, 2147483648
          %v2042 = vor.u32 1.1754944e-38, %v2041
          %v2043 = vsel %vm2040, %v2042, %v2038
          %v2044 = vmul.f32 1.0, %v2043
          %v2045 = vrcp.pop %v1995
          %v2046 = vmul.f32 %v1995, %v2045
          %v2047 = vsub.f32 1.0, %v2046
          %v2048 = vmul.f32 %v2045, %v2047
          %v2049 = vadd.f32 %v2045, %v2048
          %vm2050 = vweird.f32 %v1995
          %vm2051 = vweird.f32 %v2045
          %vm2052 = vmor %vm2050, %vm2051
          %v2053 = vsel %vm2052, %v2045, %v2049
          %v2054 = vand.u32 2147483647, %v1995
          %vm2055 = vcmp.eq.f32.partialorder %v2054, 8.507059e+37
          %v2056 = vand.u32 %v1995, 2147483648
          %v2057 = vor.u32 1.1754944e-38, %v2056
          %v2058 = vsel %vm2055, %v2057, %v2053
          %v2059 = vmul.f32 1.0, %v2058
          %v2060 = vrcp.pop %v1996
          %v2061 = vmul.f32 %v1996, %v2060
          %v2062 = vsub.f32 1.0, %v2061
          %v2063 = vmul.f32 %v2060, %v2062
          %v2064 = vadd.f32 %v2060, %v2063
          %vm2065 = vweird.f32 %v1996
          %vm2066 = vweird.f32 %v2060
          %vm2067 = vmor %vm2065, %vm2066
          %v2068 = vsel %vm2067, %v2060, %v2064
          %v2069 = vand.u32 2147483647, %v1996
          %vm2070 = vcmp.eq.f32.partialorder %v2069, 8.507059e+37
          %v2071 = vand.u32 %v1996, 2147483648
          %v2072 = vor.u32 1.1754944e-38, %v2071
          %v2073 = vsel %vm2070, %v2072, %v2068
          %v2074 = vmul.f32 1.0, %v2073
          %v2075 = vrcp.pop %v1997
          %v2076 = vmul.f32 %v1997, %v2075
          %v2077 = vsub.f32 1.0, %v2076
          %v2078 = vmul.f32 %v2075, %v2077
          %v2079 = vadd.f32 %v2075, %v2078
          %vm2080 = vweird.f32 %v1997
          %vm2081 = vweird.f32 %v2075
          %vm2082 = vmor %vm2080, %vm2081
          %v2083 = vsel %vm2082, %v2075, %v2079
          %v2084 = vand.u32 2147483647, %v1997
          %vm2085 = vcmp.eq.f32.partialorder %v2084, 8.507059e+37
          %v2086 = vand.u32 %v1997, 2147483648
          %v2087 = vor.u32 1.1754944e-38, %v2086
          %v2088 = vsel %vm2085, %v2087, %v2083
          %v2089 = vmul.f32 1.0, %v2088
          %v2090 = vrcp.pop %v1998
          %v2091 = vmul.f32 %v1998, %v2090
          %v2092 = vsub.f32 1.0, %v2091
          %v2093 = vmul.f32 %v2090, %v2092
          %v2094 = vadd.f32 %v2090, %v2093
          %vm2095 = vweird.f32 %v1998
          %vm2096 = vweird.f32 %v2090
          %vm2097 = vmor %vm2095, %vm2096
          %v2098 = vsel %vm2097, %v2090, %v2094
          %v2099 = vand.u32 2147483647, %v1998
          %vm2100 = vcmp.eq.f32.partialorder %v2099, 8.507059e+37
          %v2101 = vand.u32 %v1998, 2147483648
          %v2102 = vor.u32 1.1754944e-38, %v2101
          %v2103 = vsel %vm2100, %v2102, %v2098
          %v2104 = vmul.f32 1.0, %v2103
          %v2105 = vrcp.pop %v1999
          %v2106 = vmul.f32 %v1999, %v2105
          %v2107 = vsub.f32 1.0, %v2106
          %v2108 = vmul.f32 %v2105, %v2107
          %v2109 = vadd.f32 %v2105, %v2108
          %vm2110 = vweird.f32 %v1999
          %vm2111 = vweird.f32 %v2105
          %vm2112 = vmor %vm2110, %vm2111
          %v2113 = vsel %vm2112, %v2105, %v2109
          %v2114 = vand.u32 2147483647, %v1999
          %vm2115 = vcmp.eq.f32.partialorder %v2114, 8.507059e+37
          %v2116 = vand.u32 %v1999, 2147483648
          %v2117 = vor.u32 1.1754944e-38, %v2116
          %v2118 = vsel %vm2115, %v2117, %v2113
          %v2119 = vmul.f32 1.0, %v2118
          %v2120 = vtanh.pop %v1739
          %v2121 = vtanh.pop %v1741
          %v2122 = vtanh.pop %v1744
          %v2123 = vtanh.pop %v1746
          %v2124 = vtanh.pop %v1749
          %v2125 = vtanh.pop %v1751
          %v2126 = vtanh.pop %v1754
          %v2127 = vtanh.pop %v1756
          %v2128 = vxor.u32 %v1797, 2147483648
          %v2129 = vxor.u32 %v1799, 2147483648
          %v2130 = vxor.u32 %v1802, 2147483648
          %v2131 = vxor.u32 %v1804, 2147483648
          %v2132 = vxor.u32 %v1807, 2147483648
          %v2133 = vxor.u32 %v1809, 2147483648
          %v2134 = vxor.u32 %v1812, 2147483648
          %v2135 = vxor.u32 %v1814, 2147483648
          %v2136 = vmul.f32 %v2128, 1.442695
          %v2137 = vpow.pop %v2136
          %v2138 = vmul.f32 %v2129, 1.442695
          %v2139 = vpow.pop %v2138
          %v2140 = vmul.f32 %v2130, 1.442695
          %v2141 = vpow.pop %v2140
          %v2142 = vmul.f32 %v2131, 1.442695
          %v2143 = vpow.pop %v2142
          %v2144 = vmul.f32 %v2132, 1.442695
          %v2145 = vpow.pop %v2144
          %v2146 = vmul.f32 %v2133, 1.442695
          %v2147 = vpow.pop %v2146
          %v2148 = vmul.f32 %v2134, 1.442695
          %v2149 = vpow.pop %v2148
          %v2150 = vmul.f32 %v2135, 1.442695
          %v2151 = vpow.pop %v2150
          %v2152 = vadd.f32 %v2137, 1.0
          %v2153 = vadd.f32 %v2139, 1.0
          %v2154 = vadd.f32 %v2141, 1.0
          %v2155 = vadd.f32 %v2143, 1.0
          %v2156 = vadd.f32 %v2145, 1.0
          %v2157 = vadd.f32 %v2147, 1.0
          %v2158 = vadd.f32 %v2149, 1.0
          %v2159 = vadd.f32 %v2151, 1.0
          %v2160 = vrcp.pop %v2152
          %v2161 = vmul.f32 %v2152, %v2160
          %v2162 = vsub.f32 1.0, %v2161
          %v2163 = vmul.f32 %v2160, %v2162
          %v2164 = vadd.f32 %v2160, %v2163
          %vm2165 = vweird.f32 %v2152
          %vm2166 = vweird.f32 %v2160
          %vm2167 = vmor %vm2165, %vm2166
          %v2168 = vsel %vm2167, %v2160, %v2164
          %v2169 = vand.u32 2147483647, %v2152
          %vm2170 = vcmp.eq.f32.partialorder %v2169, 8.507059e+37
          %v2171 = vand.u32 %v2152, 2147483648
          %v2172 = vor.u32 1.1754944e-38, %v2171
          %v2173 = vsel %vm2170, %v2172, %v2168
          %v2174 = vmul.f32 1.0, %v2173
          %v2175 = vrcp.pop %v2153
          %v2176 = vmul.f32 %v2153, %v2175
          %v2177 = vsub.f32 1.0, %v2176
          %v2178 = vmul.f32 %v2175, %v2177
          %v2179 = vadd.f32 %v2175, %v2178
          %vm2180 = vweird.f32 %v2153
          %vm2181 = vweird.f32 %v2175
          %vm2182 = vmor %vm2180, %vm2181
          %v2183 = vsel %vm2182, %v2175, %v2179
          %v2184 = vand.u32 2147483647, %v2153
          %vm2185 = vcmp.eq.f32.partialorder %v2184, 8.507059e+37
          %v2186 = vand.u32 %v2153, 2147483648
          %v2187 = vor.u32 1.1754944e-38, %v2186
          %v2188 = vsel %vm2185, %v2187, %v2183
          %v2189 = vmul.f32 1.0, %v2188
          %v2190 = vrcp.pop %v2154
          %v2191 = vmul.f32 %v2154, %v2190
          %v2192 = vsub.f32 1.0, %v2191
          %v2193 = vmul.f32 %v2190, %v2192
          %v2194 = vadd.f32 %v2190, %v2193
          %vm2195 = vweird.f32 %v2154
          %vm2196 = vweird.f32 %v2190
          %vm2197 = vmor %vm2195, %vm2196
          %v2198 = vsel %vm2197, %v2190, %v2194
          %v2199 = vand.u32 2147483647, %v2154
          %vm2200 = vcmp.eq.f32.partialorder %v2199, 8.507059e+37
          %v2201 = vand.u32 %v2154, 2147483648
          %v2202 = vor.u32 1.1754944e-38, %v2201
          %v2203 = vsel %vm2200, %v2202, %v2198
          %v2204 = vmul.f32 1.0, %v2203
          %v2205 = vrcp.pop %v2155
          %v2206 = vmul.f32 %v2155, %v2205
          %v2207 = vsub.f32 1.0, %v2206
          %v2208 = vmul.f32 %v2205, %v2207
          %v2209 = vadd.f32 %v2205, %v2208
          %vm2210 = vweird.f32 %v2155
          %vm2211 = vweird.f32 %v2205
          %vm2212 = vmor %vm2210, %vm2211
          %v2213 = vsel %vm2212, %v2205, %v2209
          %v2214 = vand.u32 2147483647, %v2155
          %vm2215 = vcmp.eq.f32.partialorder %v2214, 8.507059e+37
          %v2216 = vand.u32 %v2155, 2147483648
          %v2217 = vor.u32 1.1754944e-38, %v2216
          %v2218 = vsel %vm2215, %v2217, %v2213
          %v2219 = vmul.f32 1.0, %v2218
          %v2220 = vrcp.pop %v2156
          %v2221 = vmul.f32 %v2156, %v2220
          %v2222 = vsub.f32 1.0, %v2221
          %v2223 = vmul.f32 %v2220, %v2222
          %v2224 = vadd.f32 %v2220, %v2223
          %vm2225 = vweird.f32 %v2156
          %vm2226 = vweird.f32 %v2220
          %vm2227 = vmor %vm2225, %vm2226
          %v2228 = vsel %vm2227, %v2220, %v2224
          %v2229 = vand.u32 2147483647, %v2156
          %vm2230 = vcmp.eq.f32.partialorder %v2229, 8.507059e+37
          %v2231 = vand.u32 %v2156, 2147483648
          %v2232 = vor.u32 1.1754944e-38, %v2231
          %v2233 = vsel %vm2230, %v2232, %v2228
          %v2234 = vmul.f32 1.0, %v2233
          %v2235 = vrcp.pop %v2157
          %v2236 = vmul.f32 %v2157, %v2235
          %v2237 = vsub.f32 1.0, %v2236
          %v2238 = vmul.f32 %v2235, %v2237
          %v2239 = vadd.f32 %v2235, %v2238
          %vm2240 = vweird.f32 %v2157
          %vm2241 = vweird.f32 %v2235
          %vm2242 = vmor %vm2240, %vm2241
          %v2243 = vsel %vm2242, %v2235, %v2239
          %v2244 = vand.u32 2147483647, %v2157
          %vm2245 = vcmp.eq.f32.partialorder %v2244, 8.507059e+37
          %v2246 = vand.u32 %v2157, 2147483648
          %v2247 = vor.u32 1.1754944e-38, %v2246
          %v2248 = vsel %vm2245, %v2247, %v2243
          %v2249 = vmul.f32 1.0, %v2248
          %v2250 = vrcp.pop %v2158
          %v2251 = vmul.f32 %v2158, %v2250
          %v2252 = vsub.f32 1.0, %v2251
          %v2253 = vmul.f32 %v2250, %v2252
          %v2254 = vadd.f32 %v2250, %v2253
          %vm2255 = vweird.f32 %v2158
          %vm2256 = vweird.f32 %v2250
          %vm2257 = vmor %vm2255, %vm2256
          %v2258 = vsel %vm2257, %v2250, %v2254
          %v2259 = vand.u32 2147483647, %v2158
          %vm2260 = vcmp.eq.f32.partialorder %v2259, 8.507059e+37
          %v2261 = vand.u32 %v2158, 2147483648
          %v2262 = vor.u32 1.1754944e-38, %v2261
          %v2263 = vsel %vm2260, %v2262, %v2258
          %v2264 = vmul.f32 1.0, %v2263
          %v2265 = vrcp.pop %v2159
          %v2266 = vmul.f32 %v2159, %v2265
          %v2267 = vsub.f32 1.0, %v2266
          %v2268 = vmul.f32 %v2265, %v2267
          %v2269 = vadd.f32 %v2265, %v2268
          %vm2270 = vweird.f32 %v2159
          %vm2271 = vweird.f32 %v2265
          %vm2272 = vmor %vm2270, %vm2271
          %v2273 = vsel %vm2272, %v2265, %v2269
          %v2274 = vand.u32 2147483647, %v2159
          %vm2275 = vcmp.eq.f32.partialorder %v2274, 8.507059e+37
          %v2276 = vand.u32 %v2159, 2147483648
          %v2277 = vor.u32 1.1754944e-38, %v2276
          %v2278 = vsel %vm2275, %v2277, %v2273
          %v2279 = vmul.f32 1.0, %v2278
          %v2280 = vld [vmem:[%s525] sm:$0xff]
          %v2281 = vld [vmem:[%s525 + $0x8] sm:$0xff]
          %v2282 = vld [vmem:[%s525 + $0x10] sm:$0xff]
          %v2283 = vld [vmem:[%s525 + $0x18] sm:$0xff]
          %v2284 = vld [vmem:[%s525 + $0x20] sm:$0xff]
          %v2285 = vld [vmem:[%s525 + $0x28] sm:$0xff]
          %v2286 = vld [vmem:[%s525 + $0x30] sm:$0xff]
          %v2287 = vld [vmem:[%s525 + $0x38] sm:$0xff]
          %v2288 = vmul.f32 %v2014, %v2280
          %v2289 = vmul.f32 %v2029, %v2281
          %v2290 = vmul.f32 %v2044, %v2282
          %v2291 = vmul.f32 %v2059, %v2283
          %v2292 = vmul.f32 %v2074, %v2284
          %v2293 = vmul.f32 %v2089, %v2285
          %v2294 = vmul.f32 %v2104, %v2286
          %v2295 = vmul.f32 %v2119, %v2287
          %v2296 = vmul.f32 %v1862, %v2120
          %v2297 = vmul.f32 %v1877, %v2121
          %v2298 = vmul.f32 %v1892, %v2122
          %v2299 = vmul.f32 %v1907, %v2123
          %v2300 = vmul.f32 %v1922, %v2124
          %v2301 = vmul.f32 %v1937, %v2125
          %v2302 = vmul.f32 %v1952, %v2126
          %v2303 = vmul.f32 %v1967, %v2127
          %v2304 = vadd.f32 %v2288, %v2296
          %v2305 = vadd.f32 %v2289, %v2297
          %v2306 = vadd.f32 %v2290, %v2298
          %v2307 = vadd.f32 %v2291, %v2299
          %v2308 = vadd.f32 %v2292, %v2300
          %v2309 = vadd.f32 %v2293, %v2301
          %v2310 = vadd.f32 %v2294, %v2302
          %v2311 = vadd.f32 %v2295, %v2303
          %v2312 = vtanh.pop %v2304
          %v2313 = vtanh.pop %v2305
          %v2314 = vtanh.pop %v2306
          %v2315 = vtanh.pop %v2307
          %v2316 = vtanh.pop %v2308
          %v2317 = vtanh.pop %v2309
          %v2318 = vtanh.pop %v2310
          %v2319 = vtanh.pop %v2311
          %v2320 = vmul.f32 %v2174, %v2312
          %v2321 = vmul.f32 %v2189, %v2313
          %v2322 = vmul.f32 %v2204, %v2314
          %v2323 = vmul.f32 %v2219, %v2315
          %v2324 = vmul.f32 %v2234, %v2316
          %v2325 = vmul.f32 %v2249, %v2317
          %v2326 = vmul.f32 %v2264, %v2318
          %v2327 = vmul.f32 %v2279, %v2319
          %2328 = vst [vmem:[%s531] sm:$0xff] %v2320
          %2329 = vst [vmem:[%s531 + $0x8] sm:$0xff] %v2321
          %2330 = vst [vmem:[%s531 + $0x10] sm:$0xff] %v2322
          %2331 = vst [vmem:[%s531 + $0x18] sm:$0xff] %v2323
          %2332 = vst [vmem:[%s531 + $0x20] sm:$0xff] %v2324
          %2333 = vst [vmem:[%s531 + $0x28] sm:$0xff] %v2325
          %2334 = vst [vmem:[%s531 + $0x30] sm:$0xff] %v2326
          %2335 = vst [vmem:[%s531 + $0x38] sm:$0xff] %v2327
          %2336 = vst [vmem:[%s537] sm:$0xff] %v2304
          %2337 = vst [vmem:[%s537 + $0x8] sm:$0xff] %v2305
          %2338 = vst [vmem:[%s537 + $0x10] sm:$0xff] %v2306
          %2339 = vst [vmem:[%s537 + $0x18] sm:$0xff] %v2307
          %2340 = vst [vmem:[%s537 + $0x20] sm:$0xff] %v2308
          %2341 = vst [vmem:[%s537 + $0x28] sm:$0xff] %v2309
          %2342 = vst [vmem:[%s537 + $0x30] sm:$0xff] %v2310
          %2343 = vst [vmem:[%s537 + $0x38] sm:$0xff] %v2311
        $region101: #{_geniepath_layer_impl.3} parent=88 // pred_fallthru
          _
        %s2344 = smul.u32 8, %s25
        %p2345 = scmp.lt.s32.totalorder %s2344, 31
        %s2346 = scalar_select %p2345, %s2344, 31
        %s2347 = smul.addr %s2346, 8
        %s2348 = scalar_lea.vmem %s8, %s2347
        %s2349 = smul.u32 8, %s25
        %p2350 = scmp.lt.s32.totalorder %s2349, 31
        %s2351 = scalar_select %p2350, %s2349, 31
        %s2352 = smul.addr %s2351, 8
        %s2353 = scalar_lea.vmem %s9, %s2352
        // Predicated region
        $region102: #{_geniepath_layer_impl.3} parent=88 // pred_check
          %p2354 = pneg %p251
        $region103: #{_geniepath_layer_impl.3} parent=88 // pred_check_branch
          %2356 = sbr.rel (%p2354) target = $region105
        $region104: #{_geniepath_layer_impl.3} parent=88 // pred_region
          %s2357 = smul.u32 8, %s25
        $region105: #{_geniepath_layer_impl.3} parent=88 // pred_fallthru
          _
        // Predicated region
        $region106: #{_geniepath_layer_impl.3} parent=88 // pred_check
          %p2358 = pneg %p277
        $region107: #{_geniepath_layer_impl.3} parent=88 // pred_check_branch
          %2360 = sbr.rel (%p2358) target = $region109
        $region108: #{_geniepath_layer_impl.3} parent=88 // pred_region
          %s2361 = smul.u32 8, %s25
        $region109: #{_geniepath_layer_impl.3} parent=88 // pred_fallthru
          _
      $region89: #{_geniepath_layer_impl.3} parent=5 // pred_fallthru
        _
      %p2362 = scmp.le.s32.totalorder 2, %s16
      // Predicated region
      $region110: #{_geniepath_layer_impl.3} parent=5 // pred_check
        %p2363 = pneg %p2362
      $region111: #{_geniepath_layer_impl.3} parent=5 // pred_check_branch
        %2365 = sbr.rel (%p2363) target = $region113
      $region112: #{_geniepath_layer_impl.3} parent=5 // pred_region
        %s2366 = ssub.s32 %s16, 2
        // Predicated region
        $region114: #{_geniepath_layer_impl.3} parent=112 // pred_check
          %p2367 = pneg %p257
        $region115: #{_geniepath_layer_impl.3} parent=112 // pred_check_branch
          %2369 = sbr.rel (%p2367) target = $region117
        $region116: #{_geniepath_layer_impl.3} parent=112 // pred_region
          %s2370 = smul.u32 8, %s27
          %p2371 = scmp.lt.s32.totalorder %s2370, 31
          %s2372 = scalar_select %p2371, %s2370, 31
          %s2373 = smul.addr %s2372, 8
          %s2374 = scalar_lea.vmem %s8, %s2373
        $region117: #{_geniepath_layer_impl.3} parent=112 // pred_fallthru
          _
        // Predicated region
        $region118: #{_geniepath_layer_impl.3} parent=112 // pred_check
          %p2375 = pneg %p283
        $region119: #{_geniepath_layer_impl.3} parent=112 // pred_check_branch
          %2377 = sbr.rel (%p2375) target = $region121
        $region120: #{_geniepath_layer_impl.3} parent=112 // pred_region
          %s2378 = smul.u32 8, %s27
          %p2379 = scmp.lt.s32.totalorder %s2378, 31
          %s2380 = scalar_select %p2379, %s2378, 31
          %s2381 = smul.addr %s2380, 8
          %s2382 = scalar_lea.vmem %s9, %s2381
        $region121: #{_geniepath_layer_impl.3} parent=112 // pred_fallthru
          _
      $region113: #{_geniepath_layer_impl.3} parent=5 // pred_fallthru
        _
    $region6: #{_geniepath_layer_impl.3} parent=1 // loop_footer
      %s20 = sadd.s32 1, %s16
    $region7: #{_geniepath_layer_impl.3} parent=1 // loop_footer_branch
      %15 = sbr.rel target = $region3
    $region8: #{_geniepath_layer_impl.3} parent=1 // loop_exit
      _

</llo_original>
